<compile_context>
chip_gen: v5e
topology: v5e:2x2
jax: 0.10.0
libtpu: 0.0.40
codegen_flags: <defaults>
</compile_context>

<pallas_src>
import math

import jax
import jax.numpy as jnp
from jax import lax
from jax.experimental import pallas as pl
from jax.experimental.pallas import tpu as pltpu


# ----------------------------------------------------------------------------
# Plain-JAX ResNet-50 backbone (deterministic random weights, training-mode BN)
# ----------------------------------------------------------------------------
def conv2d(x, w, stride=1, padding=0, dilation=1):
    return lax.conv_general_dilated(
        x, w, (stride, stride),
        ((padding, padding), (padding, padding)),
        rhs_dilation=(dilation, dilation),
        dimension_numbers=("NCHW", "OIHW", "NCHW"))


def bn2d_train(x, eps=1e-5):
    # BatchNorm2d in training mode: batch statistics, gamma=1, beta=0
    mu = jnp.mean(x, axis=(0, 2, 3), keepdims=True)
    var = jnp.mean((x - mu) ** 2, axis=(0, 2, 3), keepdims=True)
    return (x - mu) * lax.rsqrt(var + eps)


def maxpool_3x3_s2(x):
    return lax.reduce_window(
        x, -jnp.inf, lax.max,
        (1, 1, 3, 3), (1, 1, 2, 2),
        ((0, 0), (0, 0), (1, 1), (1, 1)))


def _conv_w(key, cout, cin, k):
    fan_in = cin * k * k
    return jax.random.normal(key, (cout, cin, k, k), jnp.float32) * math.sqrt(2.0 / fan_in)


def make_stem_params(key):
    return {"conv1": _conv_w(key, 64, 3, 7)}


def make_layer_params(key, cin, width, n_blocks):
    blocks = []
    for i in range(n_blocks):
        key, k1, k2, k3, k4 = jax.random.split(key, 5)
        p = {"w1": _conv_w(k1, width, cin, 1),
             "w2": _conv_w(k2, width, width, 3),
             "w3": _conv_w(k3, width * 4, width, 1)}
        if i == 0:
            p["wd"] = _conv_w(k4, width * 4, cin, 1)
        blocks.append(p)
        cin = width * 4
    return blocks, cin


def stem_forward(x, p):
    # conv1 -> bn1 -> relu -> maxpool   (visible_module / thermal_module)
    x = conv2d(x, p["conv1"], stride=2, padding=3)
    x = jnp.maximum(bn2d_train(x), 0.0)
    return maxpool_3x3_s2(x)


def bottleneck(x, p, stride=1, dilation=1):
    out = jnp.maximum(bn2d_train(conv2d(x, p["w1"])), 0.0)
    out = jnp.maximum(bn2d_train(conv2d(out, p["w2"], stride=stride,
                                        padding=dilation, dilation=dilation)), 0.0)
    out = bn2d_train(conv2d(out, p["w3"]))
    identity = bn2d_train(conv2d(x, p["wd"], stride=stride)) if "wd" in p else x
    return jnp.maximum(out + identity, 0.0)


def layer_forward(x, blocks, stride=1, dilation=1):
    for i, p in enumerate(blocks):
        x = bottleneck(x, p, stride=stride if i == 0 else 1, dilation=dilation)
    return x


# ----------------------------------------------------------------------------
# Pallas head kernel: BatchNorm1d + classifiers + head41 MLP (K-tiled, 2-way
# column-parallel for v7x megacore)
# ----------------------------------------------------------------------------
def _head_kernel(xp_ref, gamma_ref, beta_ref, w1_ref, b1_ref, w2_ref, wct_ref,
                 z_ref, logits_ref, feat_sc, h_acc, logit_acc):
    # grid = (J, KT):   j = pl.program_id(0) (parallel, weight-column half)
    #                   k = pl.program_id(1) (arbitrary, contraction tile)
    k = pl.program_id(1)
    P, N, C = xp_ref.shape
    KT, _, tk = feat_sc.shape

    @pl.when(k == 0)
    def _init():
        # Per-part BatchNorm1d (training mode: batch mean / biased var, eps=1e-5).
        # Done per part to keep register pressure low (one (N, C) strip at a time).
        feats = []
        for p in range(P):
            xp_p = xp_ref[p]                                       # (N, C) f32
            mu = jnp.mean(xp_p, axis=0, keepdims=True)
            var = jnp.mean((xp_p - mu) ** 2, axis=0, keepdims=True)
            f = (xp_p - mu) * lax.rsqrt(var + 1e-5)
            f = f * gamma_ref[p:p + 1, :] + beta_ref[p:p + 1, :]
            feats.append(f.astype(jnp.bfloat16))
        feat = jnp.concatenate(feats, axis=0)                      # (P*N, C) bf16
        for kk in range(KT):                                       # K-chunked stash
            feat_sc[kk] = feat[:, kk * tk:(kk + 1) * tk]
        h_acc[...] = jnp.zeros_like(h_acc)
        logit_acc[...] = jnp.zeros_like(logit_acc)

    # One contraction tile: accumulate both the head41 hidden layer and the
    # (part-folded) classifier logits.  bf16 operands, f32 accumulation.
    feat_blk = feat_sc[k]                                          # (P*N, tk) bf16
    h_acc[...] += jnp.dot(feat_blk, w1_ref[...],
                          preferred_element_type=jnp.float32)
    logit_acc[...] += jnp.dot(feat_blk, wct_ref[...],
                              preferred_element_type=jnp.float32)

    @pl.when(k == KT - 1)
    def _finalize():
        h = jnp.maximum(h_acc[...] + b1_ref[...], 0.0).astype(jnp.bfloat16)
        # Partial second matmul for this column half of w1 (rows of w2):
        # the two halves are summed (+ b2, L2 norm) on the tiny result in XLA.
        z_ref[0] = jnp.dot(h, w2_ref[...], preferred_element_type=jnp.float32)
        logits_ref[0] = logit_acc[...]


def pcb_head(x_feat, gamma, beta, w1t, b1, w2t, b2, wct, *, num_parts=4, tk=512):
    """x_feat: (N, C, H, W) layer-4 feature map (NCHW).

    Returns (xpool (P,N,C), fhead (P,N,128), logits (P,N,class_num))."""
    N, C, H, W = x_feat.shape
    P = num_parts
    # TODO(synk): torch.chunk tolerates an uneven last strip; we require even.
    assert H % P == 0
    Hc = H // P
    class_num = wct.shape[-1]
    k_pad = ((class_num + 127) // 128) * 128          # lane-dense logits columns

    # Per-strip adaptive avg-pool in XLA on the native NCHW layout (no HBM
    # transpose of the full feature map); only the tiny pooled result moves.
    xp = x_feat.reshape(N, C, P, Hc, W).mean(axis=(3, 4))          # (N, C, P)
    xp = jnp.transpose(xp, (2, 0, 1))                              # (P, N, C)

    # bf16 weight streams (f32 accumulation inside the kernel).
    w1_bf = w1t.astype(jnp.bfloat16)                               # (C, C)
    w2_bf = w2t.astype(jnp.bfloat16)                               # (C, 128)
    # classifier weights concatenated along the class dim, grouped by part.
    wct_pad = jnp.pad(wct, ((0, 0), (0, 0), (0, k_pad - class_num)))   # (P, C, k_pad)
    wct_all = jnp.transpose(wct_pad, (1, 0, 2)).reshape(C, P * k_pad)
    wct_all = wct_all.astype(jnp.bfloat16)

    J = 2                               # 2-way column split (v7x megacore)
    assert C % (J * tk) == 0 and P % J == 0
    n_half = C // J                     # w1 output columns per core
    cols_half = (P // J) * k_pad        # classifier columns per core
    KT = C // tk
    D = w2t.shape[-1]
    M = P * N

    out_shape = (
        jax.ShapeDtypeStruct((J, M, D), jnp.float32),           # partial head41 z
        jax.ShapeDtypeStruct((J, M, cols_half), jnp.float32),   # logits halves
    )
    grid_spec = pltpu.PrefetchScalarGridSpec(
        num_scalar_prefetch=0,
        grid=(J, KT),
        in_specs=[
            pl.BlockSpec((P, N, C), lambda j, k: (0, 0, 0)),          # pooled feats
            pl.BlockSpec((P, C), lambda j, k: (0, 0)),                # BN gamma
            pl.BlockSpec((P, C), lambda j, k: (0, 0)),                # BN beta
            pl.BlockSpec((tk, n_half), lambda j, k: (k, j)),          # w1  (K-tiled, col half)
            pl.BlockSpec((1, n_half), lambda j, k: (0, j)),           # b1  half
            pl.BlockSpec((n_half, D), lambda j, k: (j, 0)),           # w2  row half
            pl.BlockSpec((tk, cols_half), lambda j, k: (k, j)),       # classifiers
        ],
        out_specs=(
            pl.BlockSpec((1, M, D), lambda j, k: (j, 0, 0)),
            pl.BlockSpec((1, M, cols_half), lambda j, k: (j, 0, 0)),
        ),
        scratch_shapes=[
            pltpu.VMEM((KT, M, tk), jnp.bfloat16),    # BN'd features, K-chunked
            pltpu.VMEM((M, n_half), jnp.float32),     # head41 hidden accumulator
            pltpu.VMEM((M, cols_half), jnp.float32),  # logits accumulator
        ],
    )
    z_parts, logits_parts = pl.pallas_call(
        _head_kernel,
        out_shape=out_shape,
        grid_spec=grid_spec,
        compiler_params=pltpu.CompilerParams(
            dimension_semantics=("parallel", "arbitrary"),
            vmem_limit_bytes=32 * 1024 * 1024),
    )(xp, gamma, beta, w1_bf, b1, w2_bf, wct_all)

    # TODO(synk): +b2 and L2 normalization run in XLA on the tiny (P*N, 128)
    # result because z is produced as per-TensorCore partial sums (J=2 split).
    z = jnp.sum(z_parts, axis=0) + b2                               # (P*N, 128)
    z = z * lax.rsqrt(jnp.sum(z * z, axis=1, keepdims=True) + 1e-12)
    fhead = z.reshape(P, N, D)

    # Extract each part's diagonal (rows of that part, columns of its classifier).
    ppj = P // J
    logits = jnp.stack(
        [logits_parts[p // ppj,
                      p * N:(p + 1) * N,
                      (p % ppj) * k_pad:(p % ppj) * k_pad + class_num]
         for p in range(P)], axis=0)                                # (P, N, class_num)

    return xp, fhead, logits


# ----------------------------------------------------------------------------
if __name__ == "__main__":
    key = jax.random.PRNGKey(0)
    keys = jax.random.split(key, 16)

    B = 2                      # per-modality batch
    class_num = 16
    H_in, W_in = 64, 32        # small person-ReID-like inputs
    C_pool = 2048

    x1 = jax.random.normal(keys[0], (B, 3, H_in, W_in), jnp.float32)   # visible
    x2 = jax.random.normal(keys[1], (B, 3, H_in, W_in), jnp.float32)   # thermal

    # backbone parameters (separate visible/thermal stems, shared layers)
    vis_stem = make_stem_params(keys[2])
    th_stem = make_stem_params(keys[3])
    l1, c = make_layer_params(keys[4], 64, 64, 3)
    l2, c = make_layer_params(keys[5], c, 128, 4)
    l3, c = make_layer_params(keys[6], c, 256, 6)
    l4, c = make_layer_params(keys[7], c, 512, 3)

    # head parameters, matching embed_net_ctn.__init__ init schemes
    gamma = 1.0 + 0.01 * jax.random.normal(keys[8], (4, C_pool), jnp.float32)   # BN weight ~ N(1, .01)
    beta = jnp.zeros((4, C_pool), jnp.float32)                                  # BN bias zeros (frozen)
    wc = 0.001 * jax.random.normal(keys[9], (4, class_num, C_pool), jnp.float32)  # classifier ~ N(0, .001)
    wct = jnp.transpose(wc, (0, 2, 1))                                           # (4, 2048, class_num)

    bound = 1.0 / math.sqrt(C_pool)                                              # default nn.Linear init
    w1 = jax.random.uniform(keys[10], (C_pool, C_pool), jnp.float32, -bound, bound)
    b1 = jax.random.uniform(keys[11], (1, C_pool), jnp.float32, -bound, bound)
    w2 = jax.random.uniform(keys[12], (128, C_pool), jnp.float32, -bound, bound)
    b2 = jax.random.uniform(keys[13], (1, 128), jnp.float32, -bound, bound)
    w1t, w2t = w1.T, w2.T
    # TODO(synk): head42/head43/head44 parameters exist in the reference module
    # but are never used in forward (head41 is applied to all parts), so they
    # are not materialized.

    # ---------------- forward (modal=0, training branch) ----------------
    xv = stem_forward(x1, vis_stem)
    xt = stem_forward(x2, th_stem)
    x = jnp.concatenate([xv, xt], axis=0)            # (2B, 64, 16, 8)
    x = layer_forward(x, l1, stride=1)
    x = layer_forward(x, l2, stride=2)
    x = layer_forward(x, l3, stride=2)
    x = layer_forward(x, l4, stride=1, dilation=1)   # last_conv_stride=1
    # x: (2B, 2048, 4, 2)

    xpool, fhead, logits = jax.block_until_ready(
        pcb_head(x, gamma, beta, w1t, b1, w2t, b2, wct))

    # unpack the 12 training-mode outputs
    feat_head41, feat_head42, feat_head43, feat_head44 = (fhead[k] for k in range(4))
    x41, x42, x43, x44 = (xpool[k] for k in range(4))
    out41, out42, out43, out44 = (logits[k] for k in range(4))

    assert feat_head41.shape == (2 * B, 128)
    assert x41.shape == (2 * B, C_pool)
    assert out41.shape == (2 * B, class_num)
    assert bool(jnp.all(jnp.isfinite(fhead)))
    assert bool(jnp.all(jnp.isfinite(xpool)))
    assert bool(jnp.all(jnp.isfinite(logits)))
    # L2-normalized embeddings should have unit norm
    norms = jnp.sqrt(jnp.sum(fhead * fhead, axis=-1))
    assert bool(jnp.all(jnp.abs(norms - 1.0) < 1e-3))

    print("KERNEL_OK")
</pallas_src>

<mosaic_0001>
module attributes {stable_mosaic.version = 11 : i64} {
  func.func @_head_kernel(%arg0: i32, %arg1: i32, %arg2: memref<4x4x2048xf32, #tpu.memory_space<vmem>>, %arg3: memref<4x2048xf32, #tpu.memory_space<vmem>>, %arg4: memref<4x2048xf32, #tpu.memory_space<vmem>>, %arg5: memref<512x1024xbf16, #tpu.memory_space<vmem>>, %arg6: memref<1x1024xf32, #tpu.memory_space<vmem>>, %arg7: memref<1024x128xbf16, #tpu.memory_space<vmem>>, %arg8: memref<512x256xbf16, #tpu.memory_space<vmem>>, %arg9: memref<1x16x128xf32, #tpu.memory_space<vmem>>, %arg10: memref<1x16x256xf32, #tpu.memory_space<vmem>>, %arg11: memref<4x16x512xbf16, #tpu.memory_space<vmem>>, %arg12: memref<16x1024xf32, #tpu.memory_space<vmem>>, %arg13: memref<16x256xf32, #tpu.memory_space<vmem>>) attributes {dimension_semantics = [#tpu.dimension_semantics<parallel>, #tpu.dimension_semantics<arbitrary>], iteration_bounds = array<i64: 2, 4>, scalar_prefetch = 0 : i64, scratch_operands = 3 : i64, tpu.core_type = #tpu.core_type<tc>, window_params = [{pipeline_mode = #tpu.pipeline_mode<synchronous>, transform_indices = @transform_0, window_bounds = array<i64: 4, 4, 2048>}, {pipeline_mode = #tpu.pipeline_mode<synchronous>, transform_indices = @transform_1, window_bounds = array<i64: 4, 2048>}, {pipeline_mode = #tpu.pipeline_mode<synchronous>, transform_indices = @transform_2, window_bounds = array<i64: 4, 2048>}, {transform_indices = @transform_3, window_bounds = array<i64: 512, 1024>}, {transform_indices = @transform_4, window_bounds = array<i64: 1, 1024>}, {transform_indices = @transform_5, window_bounds = array<i64: 1024, 128>}, {transform_indices = @transform_6, window_bounds = array<i64: 512, 256>}, {transform_indices = @transform_7, window_bounds = array<i64: 1, 16, 128>}, {transform_indices = @transform_8, window_bounds = array<i64: 1, 16, 256>}]} {
    %c0_i32 = arith.constant 0 : i32
    %0 = arith.cmpi eq, %arg1, %c0_i32 : i32
    %1 = arith.extui %0 : i1 to i32
    %c0_i32_0 = arith.constant 0 : i32
    %2 = arith.cmpi ne, %1, %c0_i32_0 : i32
    scf.if %2 {
      %c0_16 = arith.constant 0 : index
      %c0_17 = arith.constant 0 : index
      %c0_18 = arith.constant 0 : index
      %19 = vector.load %arg2[%c0_16, %c0_17, %c0_18] : memref<4x4x2048xf32, #tpu.memory_space<vmem>>, vector<1x4x2048xf32>
      %20 = vector.shape_cast %19 : vector<1x4x2048xf32> to vector<4x2048xf32>
      %cst_19 = arith.constant dense<0.000000e+00> : vector<2048xf32>
      %21 = vector.multi_reduction <add>, %20, %cst_19 [0] : vector<4x2048xf32> to vector<2048xf32>
      %22 = vector.shape_cast %21 : vector<2048xf32> to vector<1x2048xf32>
      %cst_20 = arith.constant 4.000000e+00 : f32
      %23 = vector.broadcast %cst_20 : f32 to vector<1x2048xf32>
      %24 = arith.divf %22, %23 : vector<1x2048xf32>
      %25 = vector.broadcast %24 : vector<1x2048xf32> to vector<4x2048xf32>
      %26 = arith.subf %20, %25 : vector<4x2048xf32>
      %27 = arith.mulf %26, %26 : vector<4x2048xf32>
      %cst_21 = arith.constant dense<0.000000e+00> : vector<2048xf32>
      %28 = vector.multi_reduction <add>, %27, %cst_21 [0] : vector<4x2048xf32> to vector<2048xf32>
      %29 = vector.shape_cast %28 : vector<2048xf32> to vector<1x2048xf32>
      %cst_22 = arith.constant 4.000000e+00 : f32
      %30 = vector.broadcast %cst_22 : f32 to vector<1x2048xf32>
      %31 = arith.divf %29, %30 : vector<1x2048xf32>
      %32 = vector.broadcast %24 : vector<1x2048xf32> to vector<4x2048xf32>
      %33 = arith.subf %20, %32 : vector<4x2048xf32>
      %cst_23 = arith.constant 9.99999974E-6 : f32
      %34 = vector.broadcast %cst_23 : f32 to vector<1x2048xf32>
      %35 = arith.addf %31, %34 : vector<1x2048xf32>
      %36 = math.rsqrt %35 : vector<1x2048xf32>
      %37 = vector.broadcast %36 : vector<1x2048xf32> to vector<4x2048xf32>
      %38 = arith.mulf %33, %37 : vector<4x2048xf32>
      %c0_24 = arith.constant 0 : index
      %c0_25 = arith.constant 0 : index
      %39 = vector.load %arg3[%c0_24, %c0_25] : memref<4x2048xf32, #tpu.memory_space<vmem>>, vector<1x2048xf32>
      %40 = vector.broadcast %39 : vector<1x2048xf32> to vector<4x2048xf32>
      %41 = arith.mulf %38, %40 : vector<4x2048xf32>
      %c0_26 = arith.constant 0 : index
      %c0_27 = arith.constant 0 : index
      %42 = vector.load %arg4[%c0_26, %c0_27] : memref<4x2048xf32, #tpu.memory_space<vmem>>, vector<1x2048xf32>
      %43 = vector.broadcast %42 : vector<1x2048xf32> to vector<4x2048xf32>
      %44 = arith.addf %41, %43 : vector<4x2048xf32>
      %45 = arith.truncf %44 : vector<4x2048xf32> to vector<4x2048xbf16>
      %c1 = arith.constant 1 : index
      %c0_28 = arith.constant 0 : index
      %c0_29 = arith.constant 0 : index
      %46 = vector.load %arg2[%c1, %c0_28, %c0_29] : memref<4x4x2048xf32, #tpu.memory_space<vmem>>, vector<1x4x2048xf32>
      %47 = vector.shape_cast %46 : vector<1x4x2048xf32> to vector<4x2048xf32>
      %cst_30 = arith.constant dense<0.000000e+00> : vector<2048xf32>
      %48 = vector.multi_reduction <add>, %47, %cst_30 [0] : vector<4x2048xf32> to vector<2048xf32>
      %49 = vector.shape_cast %48 : vector<2048xf32> to vector<1x2048xf32>
      %cst_31 = arith.constant 4.000000e+00 : f32
      %50 = vector.broadcast %cst_31 : f32 to vector<1x2048xf32>
      %51 = arith.divf %49, %50 : vector<1x2048xf32>
      %52 = vector.broadcast %51 : vector<1x2048xf32> to vector<4x2048xf32>
      %53 = arith.subf %47, %52 : vector<4x2048xf32>
      %54 = arith.mulf %53, %53 : vector<4x2048xf32>
      %cst_32 = arith.constant dense<0.000000e+00> : vector<2048xf32>
      %55 = vector.multi_reduction <add>, %54, %cst_32 [0] : vector<4x2048xf32> to vector<2048xf32>
      %56 = vector.shape_cast %55 : vector<2048xf32> to vector<1x2048xf32>
      %cst_33 = arith.constant 4.000000e+00 : f32
      %57 = vector.broadcast %cst_33 : f32 to vector<1x2048xf32>
      %58 = arith.divf %56, %57 : vector<1x2048xf32>
      %59 = vector.broadcast %51 : vector<1x2048xf32> to vector<4x2048xf32>
      %60 = arith.subf %47, %59 : vector<4x2048xf32>
      %cst_34 = arith.constant 9.99999974E-6 : f32
      %61 = vector.broadcast %cst_34 : f32 to vector<1x2048xf32>
      %62 = arith.addf %58, %61 : vector<1x2048xf32>
      %63 = math.rsqrt %62 : vector<1x2048xf32>
      %64 = vector.broadcast %63 : vector<1x2048xf32> to vector<4x2048xf32>
      %65 = arith.mulf %60, %64 : vector<4x2048xf32>
      %c1_35 = arith.constant 1 : index
      %c0_36 = arith.constant 0 : index
      %66 = vector.load %arg3[%c1_35, %c0_36] : memref<4x2048xf32, #tpu.memory_space<vmem>>, vector<1x2048xf32>
      %67 = vector.broadcast %66 : vector<1x2048xf32> to vector<4x2048xf32>
      %68 = arith.mulf %65, %67 : vector<4x2048xf32>
      %c1_37 = arith.constant 1 : index
      %c0_38 = arith.constant 0 : index
      %69 = vector.load %arg4[%c1_37, %c0_38] : memref<4x2048xf32, #tpu.memory_space<vmem>>, vector<1x2048xf32>
      %70 = vector.broadcast %69 : vector<1x2048xf32> to vector<4x2048xf32>
      %71 = arith.addf %68, %70 : vector<4x2048xf32>
      %72 = arith.truncf %71 : vector<4x2048xf32> to vector<4x2048xbf16>
      %c2 = arith.constant 2 : index
      %c0_39 = arith.constant 0 : index
      %c0_40 = arith.constant 0 : index
      %73 = vector.load %arg2[%c2, %c0_39, %c0_40] : memref<4x4x2048xf32, #tpu.memory_space<vmem>>, vector<1x4x2048xf32>
      %74 = vector.shape_cast %73 : vector<1x4x2048xf32> to vector<4x2048xf32>
      %cst_41 = arith.constant dense<0.000000e+00> : vector<2048xf32>
      %75 = vector.multi_reduction <add>, %74, %cst_41 [0] : vector<4x2048xf32> to vector<2048xf32>
      %76 = vector.shape_cast %75 : vector<2048xf32> to vector<1x2048xf32>
      %cst_42 = arith.constant 4.000000e+00 : f32
      %77 = vector.broadcast %cst_42 : f32 to vector<1x2048xf32>
      %78 = arith.divf %76, %77 : vector<1x2048xf32>
      %79 = vector.broadcast %78 : vector<1x2048xf32> to vector<4x2048xf32>
      %80 = arith.subf %74, %79 : vector<4x2048xf32>
      %81 = arith.mulf %80, %80 : vector<4x2048xf32>
      %cst_43 = arith.constant dense<0.000000e+00> : vector<2048xf32>
      %82 = vector.multi_reduction <add>, %81, %cst_43 [0] : vector<4x2048xf32> to vector<2048xf32>
      %83 = vector.shape_cast %82 : vector<2048xf32> to vector<1x2048xf32>
      %cst_44 = arith.constant 4.000000e+00 : f32
      %84 = vector.broadcast %cst_44 : f32 to vector<1x2048xf32>
      %85 = arith.divf %83, %84 : vector<1x2048xf32>
      %86 = vector.broadcast %78 : vector<1x2048xf32> to vector<4x2048xf32>
      %87 = arith.subf %74, %86 : vector<4x2048xf32>
      %cst_45 = arith.constant 9.99999974E-6 : f32
      %88 = vector.broadcast %cst_45 : f32 to vector<1x2048xf32>
      %89 = arith.addf %85, %88 : vector<1x2048xf32>
      %90 = math.rsqrt %89 : vector<1x2048xf32>
      %91 = vector.broadcast %90 : vector<1x2048xf32> to vector<4x2048xf32>
      %92 = arith.mulf %87, %91 : vector<4x2048xf32>
      %c2_46 = arith.constant 2 : index
      %c0_47 = arith.constant 0 : index
      %93 = vector.load %arg3[%c2_46, %c0_47] : memref<4x2048xf32, #tpu.memory_space<vmem>>, vector<1x2048xf32>
      %94 = vector.broadcast %93 : vector<1x2048xf32> to vector<4x2048xf32>
      %95 = arith.mulf %92, %94 : vector<4x2048xf32>
      %c2_48 = arith.constant 2 : index
      %c0_49 = arith.constant 0 : index
      %96 = vector.load %arg4[%c2_48, %c0_49] : memref<4x2048xf32, #tpu.memory_space<vmem>>, vector<1x2048xf32>
      %97 = vector.broadcast %96 : vector<1x2048xf32> to vector<4x2048xf32>
      %98 = arith.addf %95, %97 : vector<4x2048xf32>
      %99 = arith.truncf %98 : vector<4x2048xf32> to vector<4x2048xbf16>
      %c3 = arith.constant 3 : index
      %c0_50 = arith.constant 0 : index
      %c0_51 = arith.constant 0 : index
      %100 = vector.load %arg2[%c3, %c0_50, %c0_51] : memref<4x4x2048xf32, #tpu.memory_space<vmem>>, vector<1x4x2048xf32>
      %101 = vector.shape_cast %100 : vector<1x4x2048xf32> to vector<4x2048xf32>
      %cst_52 = arith.constant dense<0.000000e+00> : vector<2048xf32>
      %102 = vector.multi_reduction <add>, %101, %cst_52 [0] : vector<4x2048xf32> to vector<2048xf32>
      %103 = vector.shape_cast %102 : vector<2048xf32> to vector<1x2048xf32>
      %cst_53 = arith.constant 4.000000e+00 : f32
      %104 = vector.broadcast %cst_53 : f32 to vector<1x2048xf32>
      %105 = arith.divf %103, %104 : vector<1x2048xf32>
      %106 = vector.broadcast %105 : vector<1x2048xf32> to vector<4x2048xf32>
      %107 = arith.subf %101, %106 : vector<4x2048xf32>
      %108 = arith.mulf %107, %107 : vector<4x2048xf32>
      %cst_54 = arith.constant dense<0.000000e+00> : vector<2048xf32>
      %109 = vector.multi_reduction <add>, %108, %cst_54 [0] : vector<4x2048xf32> to vector<2048xf32>
      %110 = vector.shape_cast %109 : vector<2048xf32> to vector<1x2048xf32>
      %cst_55 = arith.constant 4.000000e+00 : f32
      %111 = vector.broadcast %cst_55 : f32 to vector<1x2048xf32>
      %112 = arith.divf %110, %111 : vector<1x2048xf32>
      %113 = vector.broadcast %105 : vector<1x2048xf32> to vector<4x2048xf32>
      %114 = arith.subf %101, %113 : vector<4x2048xf32>
      %cst_56 = arith.constant 9.99999974E-6 : f32
      %115 = vector.broadcast %cst_56 : f32 to vector<1x2048xf32>
      %116 = arith.addf %112, %115 : vector<1x2048xf32>
      %117 = math.rsqrt %116 : vector<1x2048xf32>
      %118 = vector.broadcast %117 : vector<1x2048xf32> to vector<4x2048xf32>
      %119 = arith.mulf %114, %118 : vector<4x2048xf32>
      %c3_57 = arith.constant 3 : index
      %c0_58 = arith.constant 0 : index
      %120 = vector.load %arg3[%c3_57, %c0_58] : memref<4x2048xf32, #tpu.memory_space<vmem>>, vector<1x2048xf32>
      %121 = vector.broadcast %120 : vector<1x2048xf32> to vector<4x2048xf32>
      %122 = arith.mulf %119, %121 : vector<4x2048xf32>
      %c3_59 = arith.constant 3 : index
      %c0_60 = arith.constant 0 : index
      %123 = vector.load %arg4[%c3_59, %c0_60] : memref<4x2048xf32, #tpu.memory_space<vmem>>, vector<1x2048xf32>
      %124 = vector.broadcast %123 : vector<1x2048xf32> to vector<4x2048xf32>
      %125 = arith.addf %122, %124 : vector<4x2048xf32>
      %126 = arith.truncf %125 : vector<4x2048xf32> to vector<4x2048xbf16>
      %127 = tpu.concatenate %45, %72, %99, %126 in 0 : vector<4x2048xbf16>, vector<4x2048xbf16>, vector<4x2048xbf16>, vector<4x2048xbf16> -> vector<16x2048xbf16>
      %128 = vector.extract_strided_slice %127 {offsets = [0, 0], sizes = [16, 512], strides = [1, 1]} : vector<16x2048xbf16> to vector<16x512xbf16>
      %c0_61 = arith.constant 0 : index
      %c0_62 = arith.constant 0 : index
      %c0_63 = arith.constant 0 : index
      %129 = vector.load %arg11[%c0_61, %c0_62, %c0_63] : memref<4x16x512xbf16, #tpu.memory_space<vmem>>, vector<1x16x512xbf16>
      %130 = vector.shape_cast %129 : vector<1x16x512xbf16> to vector<16x512xbf16>
      %131 = vector.shape_cast %128 : vector<16x512xbf16> to vector<1x16x512xbf16>
      tpu.vector_store %arg11[%c0_61, %c0_62, %c0_63], %131 {strides = array<i32>} : memref<4x16x512xbf16, #tpu.memory_space<vmem>>, vector<1x16x512xbf16>,
      %132 = vector.extract_strided_slice %127 {offsets = [0, 512], sizes = [16, 512], strides = [1, 1]} : vector<16x2048xbf16> to vector<16x512xbf16>
      %c1_64 = arith.constant 1 : index
      %c0_65 = arith.constant 0 : index
      %c0_66 = arith.constant 0 : index
      %133 = vector.load %arg11[%c1_64, %c0_65, %c0_66] : memref<4x16x512xbf16, #tpu.memory_space<vmem>>, vector<1x16x512xbf16>
      %134 = vector.shape_cast %133 : vector<1x16x512xbf16> to vector<16x512xbf16>
      %135 = vector.shape_cast %132 : vector<16x512xbf16> to vector<1x16x512xbf16>
      tpu.vector_store %arg11[%c1_64, %c0_65, %c0_66], %135 {strides = array<i32>} : memref<4x16x512xbf16, #tpu.memory_space<vmem>>, vector<1x16x512xbf16>,
      %136 = vector.extract_strided_slice %127 {offsets = [0, 1024], sizes = [16, 512], strides = [1, 1]} : vector<16x2048xbf16> to vector<16x512xbf16>
      %c2_67 = arith.constant 2 : index
      %c0_68 = arith.constant 0 : index
      %c0_69 = arith.constant 0 : index
      %137 = vector.load %arg11[%c2_67, %c0_68, %c0_69] : memref<4x16x512xbf16, #tpu.memory_space<vmem>>, vector<1x16x512xbf16>
      %138 = vector.shape_cast %137 : vector<1x16x512xbf16> to vector<16x512xbf16>
      %139 = vector.shape_cast %136 : vector<16x512xbf16> to vector<1x16x512xbf16>
      tpu.vector_store %arg11[%c2_67, %c0_68, %c0_69], %139 {strides = array<i32>} : memref<4x16x512xbf16, #tpu.memory_space<vmem>>, vector<1x16x512xbf16>,
      %140 = vector.extract_strided_slice %127 {offsets = [0, 1536], sizes = [16, 512], strides = [1, 1]} : vector<16x2048xbf16> to vector<16x512xbf16>
      %c3_70 = arith.constant 3 : index
      %c0_71 = arith.constant 0 : index
      %c0_72 = arith.constant 0 : index
      %141 = vector.load %arg11[%c3_70, %c0_71, %c0_72] : memref<4x16x512xbf16, #tpu.memory_space<vmem>>, vector<1x16x512xbf16>
      %142 = vector.shape_cast %141 : vector<1x16x512xbf16> to vector<16x512xbf16>
      %143 = vector.shape_cast %140 : vector<16x512xbf16> to vector<1x16x512xbf16>
      tpu.vector_store %arg11[%c3_70, %c0_71, %c0_72], %143 {strides = array<i32>} : memref<4x16x512xbf16, #tpu.memory_space<vmem>>, vector<1x16x512xbf16>,
      %cst_73 = arith.constant 0.000000e+00 : f32
      %144 = vector.broadcast %cst_73 : f32 to vector<16x1024xf32>
      %c0_74 = arith.constant 0 : index
      %c0_75 = arith.constant 0 : index
      %145 = vector.load %arg12[%c0_74, %c0_75] : memref<16x1024xf32, #tpu.memory_space<vmem>>, vector<16x1024xf32>
      tpu.vector_store %arg12[%c0_74, %c0_75], %144 {strides = array<i32>} : memref<16x1024xf32, #tpu.memory_space<vmem>>, vector<16x1024xf32>,
      %cst_76 = arith.constant 0.000000e+00 : f32
      %146 = vector.broadcast %cst_76 : f32 to vector<16x256xf32>
      %c0_77 = arith.constant 0 : index
      %c0_78 = arith.constant 0 : index
      %147 = vector.load %arg13[%c0_77, %c0_78] : memref<16x256xf32, #tpu.memory_space<vmem>>, vector<16x256xf32>
      tpu.vector_store %arg13[%c0_77, %c0_78], %146 {strides = array<i32>} : memref<16x256xf32, #tpu.memory_space<vmem>>, vector<16x256xf32>,
    } else {
    }
    %3 = arith.index_cast %arg1 : i32 to index
    %c0 = arith.constant 0 : index
    %c0_1 = arith.constant 0 : index
    %4 = vector.load %arg11[%3, %c0, %c0_1] : memref<4x16x512xbf16, #tpu.memory_space<vmem>>, vector<1x16x512xbf16>
    %5 = vector.shape_cast %4 : vector<1x16x512xbf16> to vector<16x512xbf16>
    %c0_2 = arith.constant 0 : index
    %c0_3 = arith.constant 0 : index
    %6 = vector.load %arg12[%c0_2, %c0_3] : memref<16x1024xf32, #tpu.memory_space<vmem>>, vector<16x1024xf32>
    %c0_4 = arith.constant 0 : index
    %c0_5 = arith.constant 0 : index
    %7 = vector.load %arg5[%c0_4, %c0_5] : memref<512x1024xbf16, #tpu.memory_space<vmem>>, vector<512x1024xbf16>
    %cst = arith.constant dense<0.000000e+00> : vector<16x1024xf32>
    %8 = tpu.matmul %5, %7, %cst {dimension_numbers = #tpu.dot_dimension_numbers<[1], [0], [0], [1], [0, 0, 1, 1], [], []>} : vector<16x512xbf16>, vector<512x1024xbf16>, vector<16x1024xf32> -> vector<16x1024xf32>
    %9 = arith.addf %6, %8 : vector<16x1024xf32>
    %c0_6 = arith.constant 0 : index
    %c0_7 = arith.constant 0 : index
    %10 = vector.load %arg12[%c0_6, %c0_7] : memref<16x1024xf32, #tpu.memory_space<vmem>>, vector<16x1024xf32>
    tpu.vector_store %arg12[%c0_6, %c0_7], %9 {strides = array<i32>} : memref<16x1024xf32, #tpu.memory_space<vmem>>, vector<16x1024xf32>,
    %c0_8 = arith.constant 0 : index
    %c0_9 = arith.constant 0 : index
    %11 = vector.load %arg13[%c0_8, %c0_9] : memref<16x256xf32, #tpu.memory_space<vmem>>, vector<16x256xf32>
    %c0_10 = arith.constant 0 : index
    %c0_11 = arith.constant 0 : index
    %12 = vector.load %arg8[%c0_10, %c0_11] : memref<512x256xbf16, #tpu.memory_space<vmem>>, vector<512x256xbf16>
    %cst_12 = arith.constant dense<0.000000e+00> : vector<16x256xf32>
    %13 = tpu.matmul %5, %12, %cst_12 {dimension_numbers = #tpu.dot_dimension_numbers<[1], [0], [0], [1], [0, 0, 1, 1], [], []>} : vector<16x512xbf16>, vector<512x256xbf16>, vector<16x256xf32> -> vector<16x256xf32>
    %14 = arith.addf %11, %13 : vector<16x256xf32>
    %c0_13 = arith.constant 0 : index
    %c0_14 = arith.constant 0 : index
    %15 = vector.load %arg13[%c0_13, %c0_14] : memref<16x256xf32, #tpu.memory_space<vmem>>, vector<16x256xf32>
    tpu.vector_store %arg13[%c0_13, %c0_14], %14 {strides = array<i32>} : memref<16x256xf32, #tpu.memory_space<vmem>>, vector<16x256xf32>,
    %c3_i32 = arith.constant 3 : i32
    %16 = arith.cmpi eq, %arg1, %c3_i32 : i32
    %17 = arith.extui %16 : i1 to i32
    %c0_i32_15 = arith.constant 0 : i32
    %18 = arith.cmpi ne, %17, %c0_i32_15 : i32
    scf.if %18 {
      %c0_16 = arith.constant 0 : index
      %c0_17 = arith.constant 0 : index
      %19 = vector.load %arg12[%c0_16, %c0_17] : memref<16x1024xf32, #tpu.memory_space<vmem>>, vector<16x1024xf32>
      %c0_18 = arith.constant 0 : index
      %c0_19 = arith.constant 0 : index
      %20 = vector.load %arg6[%c0_18, %c0_19] : memref<1x1024xf32, #tpu.memory_space<vmem>>, vector<1x1024xf32>
      %21 = vector.broadcast %20 : vector<1x1024xf32> to vector<16x1024xf32>
      %22 = arith.addf %19, %21 : vector<16x1024xf32>
      %cst_20 = arith.constant 0.000000e+00 : f32
      %23 = vector.broadcast %cst_20 : f32 to vector<16x1024xf32>
      %24 = arith.maximumf %22, %23 : vector<16x1024xf32>
      %25 = arith.truncf %24 : vector<16x1024xf32> to vector<16x1024xbf16>
      %c0_21 = arith.constant 0 : index
      %c0_22 = arith.constant 0 : index
      %26 = vector.load %arg7[%c0_21, %c0_22] : memref<1024x128xbf16, #tpu.memory_space<vmem>>, vector<1024x128xbf16>
      %cst_23 = arith.constant dense<0.000000e+00> : vector<16x128xf32>
      %27 = tpu.matmul %25, %26, %cst_23 {dimension_numbers = #tpu.dot_dimension_numbers<[1], [0], [0], [1], [0, 0, 1, 1], [], []>} : vector<16x1024xbf16>, vector<1024x128xbf16>, vector<16x128xf32> -> vector<16x128xf32>
      %c0_24 = arith.constant 0 : index
      %c0_25 = arith.constant 0 : index
      %c0_26 = arith.constant 0 : index
      %28 = vector.load %arg9[%c0_24, %c0_25, %c0_26] : memref<1x16x128xf32, #tpu.memory_space<vmem>>, vector<1x16x128xf32>
      %29 = vector.shape_cast %28 : vector<1x16x128xf32> to vector<16x128xf32>
      %30 = vector.shape_cast %27 : vector<16x128xf32> to vector<1x16x128xf32>
      tpu.vector_store %arg9[%c0_24, %c0_25, %c0_26], %30 {strides = array<i32>} : memref<1x16x128xf32, #tpu.memory_space<vmem>>, vector<1x16x128xf32>,
      %c0_27 = arith.constant 0 : index
      %c0_28 = arith.constant 0 : index
      %31 = vector.load %arg13[%c0_27, %c0_28] : memref<16x256xf32, #tpu.memory_space<vmem>>, vector<16x256xf32>
      %c0_29 = arith.constant 0 : index
      %c0_30 = arith.constant 0 : index
      %c0_31 = arith.constant 0 : index
      %32 = vector.load %arg10[%c0_29, %c0_30, %c0_31] : memref<1x16x256xf32, #tpu.memory_space<vmem>>, vector<1x16x256xf32>
      %33 = vector.shape_cast %32 : vector<1x16x256xf32> to vector<16x256xf32>
      %34 = vector.shape_cast %31 : vector<16x256xf32> to vector<1x16x256xf32>
      tpu.vector_store %arg10[%c0_29, %c0_30, %c0_31], %34 {strides = array<i32>} : memref<1x16x256xf32, #tpu.memory_space<vmem>>, vector<1x16x256xf32>,
    } else {
    }
    return
  }
  func.func @transform_0(%arg0: i32, %arg1: i32) -> (i32, i32, i32) {
    %c0_i32 = arith.constant 0 : i32
    %c0_i32_0 = arith.constant 0 : i32
    %c0_i32_1 = arith.constant 0 : i32
    %c0_i32_2 = arith.constant 0 : i32
    return %c0_i32, %c0_i32_0, %c0_i32_1 : i32, i32, i32
  }
  func.func @transform_1(%arg0: i32, %arg1: i32) -> (i32, i32) {
    %c0_i32 = arith.constant 0 : i32
    %c0_i32_0 = arith.constant 0 : i32
    %c0_i32_1 = arith.constant 0 : i32
    return %c0_i32, %c0_i32_0 : i32, i32
  }
  func.func @transform_2(%arg0: i32, %arg1: i32) -> (i32, i32) {
    %c0_i32 = arith.constant 0 : i32
    %c0_i32_0 = arith.constant 0 : i32
    %c0_i32_1 = arith.constant 0 : i32
    return %c0_i32, %c0_i32_0 : i32, i32
  }
  func.func @transform_3(%arg0: i32, %arg1: i32) -> (i32, i32) {
    %c0_i32 = arith.constant 0 : i32
    return %arg1, %arg0 : i32, i32
  }
  func.func @transform_4(%arg0: i32, %arg1: i32) -> (i32, i32) {
    %c0_i32 = arith.constant 0 : i32
    %c0_i32_0 = arith.constant 0 : i32
    return %c0_i32, %arg0 : i32, i32
  }
  func.func @transform_5(%arg0: i32, %arg1: i32) -> (i32, i32) {
    %c0_i32 = arith.constant 0 : i32
    %c0_i32_0 = arith.constant 0 : i32
    return %arg0, %c0_i32 : i32, i32
  }
  func.func @transform_6(%arg0: i32, %arg1: i32) -> (i32, i32) {
    %c0_i32 = arith.constant 0 : i32
    return %arg1, %arg0 : i32, i32
  }
  func.func @transform_7(%arg0: i32, %arg1: i32) -> (i32, i32, i32) {
    %c0_i32 = arith.constant 0 : i32
    %c0_i32_0 = arith.constant 0 : i32
    %c0_i32_1 = arith.constant 0 : i32
    return %arg0, %c0_i32, %c0_i32_0 : i32, i32, i32
  }
  func.func @transform_8(%arg0: i32, %arg1: i32) -> (i32, i32, i32) {
    %c0_i32 = arith.constant 0 : i32
    %c0_i32_0 = arith.constant 0 : i32
    %c0_i32_1 = arith.constant 0 : i32
    return %arg0, %c0_i32, %c0_i32_0 : i32, i32, i32
  }
}

</mosaic_0001>

<llo_original>
// kernel: tpu_custom_call.1
$region0: #{tpu_custom_call.1}
  #allocation0 [shape = 'u32[]', space=smem, size = 0x4, offset = 0x4, fixed_abs, tag = 'smem constant byte address 0x4 - core index']
  #allocation1 [shape = 'u32[72,128]{1,0:T(1,128)}', space=vmem, size = 0x9000, scoped, tag = 'internal scratch']
  #allocation2 [shape = 'bf16[4,16,512]{2,1,0:T(8,128)(2,1)}', space=vmem, size = 0x10000, scoped, tag = 'scratch operand']
  #allocation3 [shape = 'f32[16,1024]{1,0:T(8,128)}', space=vmem, size = 0x10000, scoped, tag = 'scratch operand']
  #allocation4 [shape = 'f32[16,256]{1,0:T(8,128)}', space=vmem, size = 0x4000, scoped, tag = 'scratch operand']
  %s0 = inlined_call_operand.hbm [shape: f32[4,4,2048], index: 0, kind: input, shape index: {}]
  %s1 = inlined_call_operand.hbm [shape: f32[4,2048], index: 1, kind: input, shape index: {}]
  %s2 = inlined_call_operand.hbm [shape: f32[4,2048], index: 2, kind: input, shape index: {}]
  %s3 = inlined_call_operand.hbm [shape: bf16[2048,2048], index: 3, kind: input, shape index: {}]
  %s4 = inlined_call_operand.hbm [shape: f32[1,2048], index: 4, kind: input, shape index: {}]
  %s5 = inlined_call_operand.hbm [shape: bf16[2048,128], index: 5, kind: input, shape index: {}]
  %s6 = inlined_call_operand.hbm [shape: bf16[2048,512], index: 6, kind: input, shape index: {}]
  %s7 = inlined_call_operand.hbm [shape: f32[2,16,128], index: 7, kind: output, shape index: {0}]
  %s8 = inlined_call_operand.hbm [shape: f32[2,16,256], index: 8, kind: output, shape index: {1}]
  %9 = xla_tuple %s7, %s8
  %s10 = sld [smem:[#allocation0]]
  $region105: #{tpu_custom_call.1} parent=0
    _
  %s12 = ssub.s32 1, %s10
  %s13 = scalar_select 0, %s12, %s10
  $region1: #{tpu_custom_call.1} parent=0
    #allocation5 [shape = 'u8[131072]{0}', space=vmem, size = 0x20000, scoped, tag = 'input window, operand 0, single buffered']
    #allocation6 [shape = 's32[2]{0}', space=sflag, size = 0x8, scoped, tag = 'scoped memory for tpu_custom_call.1']
    #allocation7 [shape = 's32[2]{0}', space=sflag, size = 0x8, scoped, tag = 'scoped memory for tpu_custom_call.1']
    #allocation8 [shape = 'u8[32768]{0}', space=vmem, size = 0x8000, scoped, tag = 'input window, operand 1, single buffered']
    #allocation9 [shape = 's32[1]{0}', space=sflag, size = 0x4, scoped, tag = 'scoped memory for tpu_custom_call.1']
    #allocation10 [shape = 'u8[32768]{0}', space=vmem, size = 0x8000, scoped, tag = 'input window, operand 2, single buffered']
    #allocation11 [shape = 'u8[2097152]{0}', space=vmem, size = 0x200000, scoped, tag = 'input window, operand 3']
    #allocation12 [shape = 's32[2]{0}', space=sflag, size = 0x8, scoped, tag = 'scoped memory for tpu_custom_call.1']
    #allocation13 [shape = 'u8[8192]{0}', space=vmem, size = 0x2000, scoped, tag = 'input window, operand 4']
    #allocation14 [shape = 'u8[524288]{0}', space=vmem, size = 0x80000, scoped, tag = 'input window, operand 5']
    #allocation15 [shape = 's32[2]{0}', space=sflag, size = 0x8, scoped, tag = 'scoped memory for tpu_custom_call.1']
    #allocation16 [shape = 'u8[524288]{0}', space=vmem, size = 0x80000, scoped, tag = 'input window, operand 6']
    #allocation17 [shape = 'u8[16384]{0}', space=vmem, size = 0x4000, scoped, tag = 'output window, operand 0']
    #allocation18 [shape = 'u8[32768]{0}', space=vmem, size = 0x8000, scoped, tag = 'output window, operand 1']
    #allocation19 [shape = 's32[2]{0}', space=sflag, size = 0x8, scoped, tag = 'scoped memory for tpu_custom_call.1']
    %14 = vsyncpa [#allocation6], 0
    %15 = vsyncpa [#allocation9], 0
    %16 = vsyncpa [#allocation12], 0
    %s17 = scalar_lea.sflag [#allocation12], 1
    %18 = vsyncpa %s17, 0
    %19 = vsyncpa [#allocation15], 0
    %s20 = scalar_lea.sflag [#allocation15], 1
    %21 = vsyncpa %s20, 0
    %22 = vsyncpa [#allocation7], 0
    %s23 = scalar_lea.sflag [#allocation7], 1
    %24 = vsyncpa %s23, 0
    %25 = vsyncpa [#allocation19], 0
    %s26 = scalar_lea.sflag [#allocation19], 1
    %27 = vsyncpa %s26, 0
    loop: start=0, step=1, limit=10
    $region2: #{tpu_custom_call.1} parent=1 // loop_pre_header
      _
    $region3: #{tpu_custom_call.1} parent=1 // loop_header
      %s29 = sphi 0, %s33
      %p30 = scmp.ge.s32.totalorder %s29, 10
      %s36 = sphi 0, %s48
      %s37 = sphi 0, %s44
      %s38 = sphi 0, %s36
      %s39 = sphi 0, %s37
      %s40 = sphi 0, %s38
      %s41 = sphi 0, %s39
      %s49 = sphi 0, %s49
      %s51 = sphi 0, %s49
      %s52 = sphi 0, %s51
      %s66 = sphi 0, %s52
      %s70 = sphi 0, %s70
      %s72 = sphi 0, %s70
      %s73 = sphi 0, %s72
      %s87 = sphi 0, %s73
      %s91 = sphi 0, %s91
      %s93 = sphi 0, %s91
      %s94 = sphi 0, %s93
      %s108 = sphi 0, %s94
      %s116 = sphi 0, %s118
      %s119 = sphi 0, %s116
      %s120 = sphi 0, %s119
      %s136 = sphi 0, %s120
      %s142 = sphi 0, %s144
      %s145 = sphi 0, %s142
      %s146 = sphi 0, %s145
      %s162 = sphi 0, %s146
      %s168 = sphi 0, %s170
      %s171 = sphi 0, %s168
      %s172 = sphi 0, %s171
      %s188 = sphi 0, %s172
      %s196 = sphi 0, %s198
      %s199 = sphi 0, %s196
      %s200 = sphi 0, %s199
      %s216 = sphi 0, %s200
      %s222 = sphi 0, %s224
      %s225 = sphi 0, %s222
      %s226 = sphi 0, %s225
      %s242 = sphi 0, %s226
      %s248 = sphi 0, %s250
      %s251 = sphi 0, %s248
      %s252 = sphi 0, %s251
      %s268 = sphi 0, %s252
    $region4: #{tpu_custom_call.1} parent=1 // loop_header_branch
      %32 = sbr.rel (%p30) target = $region8
    $region5: #{tpu_custom_call.1} parent=1 // loop_body
      %s34 = ssub.s32 %s29, 1
      %s35 = ssub.s32 %s29, 2
      %s42 = sadd.s32 1, %s37
      %p43 = scmp.ge.s32.totalorder %s42, 4
      %s44 = scalar_select %p43, 0, %s42
      %s45 = sadd.s32 1, %s36
      %s46 = scalar_select %p43, %s45, %s36
      %p47 = scmp.ge.s32.totalorder %s46, 2
      %s48 = scalar_select %p47, 0, %s46
      %s50 = sadd.s32 %s49, 1
      %p53 = scmp.eq.s32.totalorder %s29, 7
      %p54 = scmp.ne.s32.totalorder %s49, %s51
      %p55 = scmp.eq.s32.totalorder %s29, 0
      %p56 = por %p54, %p55
      %p57 = scmp.ne.s32.totalorder %s49, %s51
      %p58 = scmp.eq.s32.totalorder %s34, 7
      %p59 = por %p57, %p58
      %p60 = scmp.ne.s32.totalorder %s51, %s52
      %p61 = scmp.eq.s32.totalorder %s34, 0
      %p62 = por %p60, %p61
      %p63 = scmp.ne.s32.totalorder %s51, %s52
      %p64 = scmp.eq.s32.totalorder %s35, 7
      %p65 = por %p63, %p64
      %p67 = scmp.ne.s32.totalorder %s52, %s66
      %p68 = scmp.eq.s32.totalorder %s35, 0
      %p69 = por %p67, %p68
      %s71 = sadd.s32 %s70, 1
      %p74 = scmp.eq.s32.totalorder %s29, 7
      %p75 = scmp.ne.s32.totalorder %s70, %s72
      %p76 = scmp.eq.s32.totalorder %s29, 0
      %p77 = por %p75, %p76
      %p78 = scmp.ne.s32.totalorder %s70, %s72
      %p79 = scmp.eq.s32.totalorder %s34, 7
      %p80 = por %p78, %p79
      %p81 = scmp.ne.s32.totalorder %s72, %s73
      %p82 = scmp.eq.s32.totalorder %s34, 0
      %p83 = por %p81, %p82
      %p84 = scmp.ne.s32.totalorder %s72, %s73
      %p85 = scmp.eq.s32.totalorder %s35, 7
      %p86 = por %p84, %p85
      %p88 = scmp.ne.s32.totalorder %s73, %s87
      %p89 = scmp.eq.s32.totalorder %s35, 0
      %p90 = por %p88, %p89
      %s92 = sadd.s32 %s91, 1
      %p95 = scmp.eq.s32.totalorder %s29, 7
      %p96 = scmp.ne.s32.totalorder %s91, %s93
      %p97 = scmp.eq.s32.totalorder %s29, 0
      %p98 = por %p96, %p97
      %p99 = scmp.ne.s32.totalorder %s91, %s93
      %p100 = scmp.eq.s32.totalorder %s34, 7
      %p101 = por %p99, %p100
      %p102 = scmp.ne.s32.totalorder %s93, %s94
      %p103 = scmp.eq.s32.totalorder %s34, 0
      %p104 = por %p102, %p103
      %p105 = scmp.ne.s32.totalorder %s93, %s94
      %p106 = scmp.eq.s32.totalorder %s35, 7
      %p107 = por %p105, %p106
      %p109 = scmp.ne.s32.totalorder %s94, %s108
      %p110 = scmp.eq.s32.totalorder %s35, 0
      %p111 = por %p109, %p110
      %s112 = ssub.s32 %s37, %s44
      %s113 = ssub.s32 %s36, %s48
      %s114 = sor.u32 %s112, %s113
      %p115 = scmp.eq.s32.totalorder %s114, 0
      %s117 = sadd.s32 %s116, 1
      %s118 = scalar_select %p115, %s116, %s117
      %p121 = pneg %p115
      %p122 = scmp.eq.s32.totalorder %s29, 7
      %p123 = por %p121, %p122
      %p124 = scmp.ne.s32.totalorder %s116, %s119
      %p125 = scmp.eq.s32.totalorder %s29, 0
      %p126 = por %p124, %p125
      %p127 = scmp.ne.s32.totalorder %s116, %s119
      %p128 = scmp.eq.s32.totalorder %s34, 7
      %p129 = por %p127, %p128
      %p130 = scmp.ne.s32.totalorder %s119, %s120
      %p131 = scmp.eq.s32.totalorder %s34, 0
      %p132 = por %p130, %p131
      %p133 = scmp.ne.s32.totalorder %s119, %s120
      %p134 = scmp.eq.s32.totalorder %s35, 7
      %p135 = por %p133, %p134
      %p137 = scmp.ne.s32.totalorder %s120, %s136
      %p138 = scmp.eq.s32.totalorder %s35, 0
      %p139 = por %p137, %p138
      %s140 = ssub.s32 %s36, %s48
      %p141 = scmp.eq.s32.totalorder %s140, 0
      %s143 = sadd.s32 %s142, 1
      %s144 = scalar_select %p141, %s142, %s143
      %p147 = pneg %p141
      %p148 = scmp.eq.s32.totalorder %s29, 7
      %p149 = por %p147, %p148
      %p150 = scmp.ne.s32.totalorder %s142, %s145
      %p151 = scmp.eq.s32.totalorder %s29, 0
      %p152 = por %p150, %p151
      %p153 = scmp.ne.s32.totalorder %s142, %s145
      %p154 = scmp.eq.s32.totalorder %s34, 7
      %p155 = por %p153, %p154
      %p156 = scmp.ne.s32.totalorder %s145, %s146
      %p157 = scmp.eq.s32.totalorder %s34, 0
      %p158 = por %p156, %p157
      %p159 = scmp.ne.s32.totalorder %s145, %s146
      %p160 = scmp.eq.s32.totalorder %s35, 7
      %p161 = por %p159, %p160
      %p163 = scmp.ne.s32.totalorder %s146, %s162
      %p164 = scmp.eq.s32.totalorder %s35, 0
      %p165 = por %p163, %p164
      %s166 = ssub.s32 %s36, %s48
      %p167 = scmp.eq.s32.totalorder %s166, 0
      %s169 = sadd.s32 %s168, 1
      %s170 = scalar_select %p167, %s168, %s169
      %p173 = pneg %p167
      %p174 = scmp.eq.s32.totalorder %s29, 7
      %p175 = por %p173, %p174
      %p176 = scmp.ne.s32.totalorder %s168, %s171
      %p177 = scmp.eq.s32.totalorder %s29, 0
      %p178 = por %p176, %p177
      %p179 = scmp.ne.s32.totalorder %s168, %s171
      %p180 = scmp.eq.s32.totalorder %s34, 7
      %p181 = por %p179, %p180
      %p182 = scmp.ne.s32.totalorder %s171, %s172
      %p183 = scmp.eq.s32.totalorder %s34, 0
      %p184 = por %p182, %p183
      %p185 = scmp.ne.s32.totalorder %s171, %s172
      %p186 = scmp.eq.s32.totalorder %s35, 7
      %p187 = por %p185, %p186
      %p189 = scmp.ne.s32.totalorder %s172, %s188
      %p190 = scmp.eq.s32.totalorder %s35, 0
      %p191 = por %p189, %p190
      %s192 = ssub.s32 %s37, %s44
      %s193 = ssub.s32 %s36, %s48
      %s194 = sor.u32 %s192, %s193
      %p195 = scmp.eq.s32.totalorder %s194, 0
      %s197 = sadd.s32 %s196, 1
      %s198 = scalar_select %p195, %s196, %s197
      %p201 = pneg %p195
      %p202 = scmp.eq.s32.totalorder %s29, 7
      %p203 = por %p201, %p202
      %p204 = scmp.ne.s32.totalorder %s196, %s199
      %p205 = scmp.eq.s32.totalorder %s29, 0
      %p206 = por %p204, %p205
      %p207 = scmp.ne.s32.totalorder %s196, %s199
      %p208 = scmp.eq.s32.totalorder %s34, 7
      %p209 = por %p207, %p208
      %p210 = scmp.ne.s32.totalorder %s199, %s200
      %p211 = scmp.eq.s32.totalorder %s34, 0
      %p212 = por %p210, %p211
      %p213 = scmp.ne.s32.totalorder %s199, %s200
      %p214 = scmp.eq.s32.totalorder %s35, 7
      %p215 = por %p213, %p214
      %p217 = scmp.ne.s32.totalorder %s200, %s216
      %p218 = scmp.eq.s32.totalorder %s35, 0
      %p219 = por %p217, %p218
      %s220 = ssub.s32 %s36, %s48
      %p221 = scmp.eq.s32.totalorder %s220, 0
      %s223 = sadd.s32 %s222, 1
      %s224 = scalar_select %p221, %s222, %s223
      %p227 = pneg %p221
      %p228 = scmp.eq.s32.totalorder %s29, 7
      %p229 = por %p227, %p228
      %p230 = scmp.ne.s32.totalorder %s222, %s225
      %p231 = scmp.eq.s32.totalorder %s29, 0
      %p232 = por %p230, %p231
      %p233 = scmp.ne.s32.totalorder %s222, %s225
      %p234 = scmp.eq.s32.totalorder %s34, 7
      %p235 = por %p233, %p234
      %p236 = scmp.ne.s32.totalorder %s225, %s226
      %p237 = scmp.eq.s32.totalorder %s34, 0
      %p238 = por %p236, %p237
      %p239 = scmp.ne.s32.totalorder %s225, %s226
      %p240 = scmp.eq.s32.totalorder %s35, 7
      %p241 = por %p239, %p240
      %p243 = scmp.ne.s32.totalorder %s226, %s242
      %p244 = scmp.eq.s32.totalorder %s35, 0
      %p245 = por %p243, %p244
      %s246 = ssub.s32 %s36, %s48
      %p247 = scmp.eq.s32.totalorder %s246, 0
      %s249 = sadd.s32 %s248, 1
      %s250 = scalar_select %p247, %s248, %s249
      %p253 = pneg %p247
      %p254 = scmp.eq.s32.totalorder %s29, 7
      %p255 = por %p253, %p254
      %p256 = scmp.ne.s32.totalorder %s248, %s251
      %p257 = scmp.eq.s32.totalorder %s29, 0
      %p258 = por %p256, %p257
      %p259 = scmp.ne.s32.totalorder %s248, %s251
      %p260 = scmp.eq.s32.totalorder %s34, 7
      %p261 = por %p259, %p260
      %p262 = scmp.ne.s32.totalorder %s251, %s252
      %p263 = scmp.eq.s32.totalorder %s34, 0
      %p264 = por %p262, %p263
      %p265 = scmp.ne.s32.totalorder %s251, %s252
      %p266 = scmp.eq.s32.totalorder %s35, 7
      %p267 = por %p265, %p266
      %p269 = scmp.ne.s32.totalorder %s252, %s268
      %p270 = scmp.eq.s32.totalorder %s35, 0
      %p271 = por %p269, %p270
      %p272 = scmp.le.s32.totalorder 1, %s29
      %p273 = scmp.lt.s32.totalorder %s29, 9
      %p274 = pnand %p272, %p273
      %p275 = pneg %p274
      // Predicated region
      $region9: #{tpu_custom_call.1} parent=5 // pred_check
        _
      $region10: #{tpu_custom_call.1} parent=5 // pred_check_branch
        %277 = sbr.rel (%p274) target = $region12
      $region11: #{tpu_custom_call.1} parent=5 // pred_region
        %s278 = ssub.s32 %s29, 1
        // Predicated region
        $region13: #{tpu_custom_call.1} parent=11 // pred_check
          %p279 = pneg %p62
        $region14: #{tpu_custom_call.1} parent=11 // pred_check_branch
          %281 = sbr.rel (%p279) target = $region16
        $region15: #{tpu_custom_call.1} parent=11 // pred_region
          %283 = vsyncadd [#allocation6], 0
          %s284 = sshll.u32 %s0, 4
          %s285 = int_to_ptr.hbm [resolvable:$true] %s284
          %s286 = sshll.u32 [#allocation5], 4
          %s287 = int_to_ptr.vmem [resolvable:$true] %s286
          %292 = dma.hbm_to_vmem [thread:$0]  %s285, 4096, %s287, [#allocation6], 1024, 1024, 64
        $region16: #{tpu_custom_call.1} parent=11 // pred_fallthru
          _
        // Predicated region
        $region17: #{tpu_custom_call.1} parent=11 // pred_check
          %p293 = pneg %p83
        $region18: #{tpu_custom_call.1} parent=11 // pred_check_branch
          %295 = sbr.rel (%p293) target = $region20
        $region19: #{tpu_custom_call.1} parent=11 // pred_region
          %297 = vsyncadd [#allocation9], 0
          %s299 = sshll.u32 %s1, 4
          %s300 = int_to_ptr.hbm [resolvable:$true] %s299
          %s301 = sshll.u32 [#allocation8], 4
          %s302 = int_to_ptr.vmem [resolvable:$true] %s301
          %304 = dma.hbm_to_vmem [thread:$0]  %s300, 1024, %s302, [#allocation9]
        $region20: #{tpu_custom_call.1} parent=11 // pred_fallthru
          _
        // Predicated region
        $region21: #{tpu_custom_call.1} parent=11 // pred_check
          %p305 = pneg %p104
        $region22: #{tpu_custom_call.1} parent=11 // pred_check_branch
          %307 = sbr.rel (%p305) target = $region24
        $region23: #{tpu_custom_call.1} parent=11 // pred_region
          %309 = vsyncadd [#allocation9], 0
          %s311 = sshll.u32 %s2, 4
          %s312 = int_to_ptr.hbm [resolvable:$true] %s311
          %s313 = sshll.u32 [#allocation10], 4
          %s314 = int_to_ptr.vmem [resolvable:$true] %s313
          %316 = dma.hbm_to_vmem [thread:$0]  %s312, 1024, %s314, [#allocation9]
        $region24: #{tpu_custom_call.1} parent=11 // pred_fallthru
          _
      $region12: #{tpu_custom_call.1} parent=5 // pred_fallthru
        _
      %p317 = scmp.lt.s32.totalorder %s29, 8
      // Predicated region
      $region25: #{tpu_custom_call.1} parent=5 // pred_check
        %p318 = pneg %p317
      $region26: #{tpu_custom_call.1} parent=5 // pred_check_branch
        %320 = sbr.rel (%p318) target = $region28
      $region27: #{tpu_custom_call.1} parent=5 // pred_region
        // Predicated region
        $region29: #{tpu_custom_call.1} parent=27 // pred_check
          %p321 = pneg %p126
        $region30: #{tpu_custom_call.1} parent=27 // pred_check_branch
          %323 = sbr.rel (%p321) target = $region32
        $region31: #{tpu_custom_call.1} parent=27 // pred_region
          %s324 = sand.u32 %s29, 1
          %s325 = scalar_lea.sflag [#allocation12], %s324
          %s326 = sand.u32 %s116, 1
          %s327 = smul.addr %s326, 2048
          %s328 = scalar_lea.vmem [#allocation11], %s327
          %s329 = smul.u32 64, %s37
          %s330 = smul.u32 8, %s36
          %332 = vsyncadd %s325, 0
          %s333 = smul.addr %s329, 16
          %s334 = sadd.s32 %s330, %s333
          %s335 = smul.addr %s334, 4
          %s336 = scalar_lea.hbm %s3, %s335
          %s337 = sshll.u32 %s336, 4
          %s338 = int_to_ptr.hbm [resolvable:$true] %s337
          %s339 = sshll.u32 %s328, 4
          %s340 = int_to_ptr.vmem [resolvable:$true] %s339
          %345 = dma.hbm_to_vmem [thread:$0]  %s338, 32768, %s340, %s325, 1024, 512, 32
        $region32: #{tpu_custom_call.1} parent=27 // pred_fallthru
          _
        // Predicated region
        $region33: #{tpu_custom_call.1} parent=27 // pred_check
          %p346 = pneg %p152
        $region34: #{tpu_custom_call.1} parent=27 // pred_check_branch
          %348 = sbr.rel (%p346) target = $region36
        $region35: #{tpu_custom_call.1} parent=27 // pred_region
          %s349 = sand.u32 %s29, 1
          %s350 = scalar_lea.sflag [#allocation12], %s349
          %s351 = sand.u32 %s142, 1
          %s352 = smul.addr %s351, 8
          %s353 = scalar_lea.vmem [#allocation13], %s352
          %s354 = smul.u32 8, %s36
          %356 = vsyncadd %s350, 0
          %s357 = scalar_lea.hbm %s4, %s354
          %s359 = sshll.u32 %s357, 4
          %s360 = int_to_ptr.hbm [resolvable:$true] %s359
          %s361 = sshll.u32 %s353, 4
          %s362 = int_to_ptr.vmem [resolvable:$true] %s361
          %364 = dma.hbm_to_vmem [thread:$0]  %s360, 128, %s362, %s350
        $region36: #{tpu_custom_call.1} parent=27 // pred_fallthru
          _
        // Predicated region
        $region37: #{tpu_custom_call.1} parent=27 // pred_check
          %p365 = pneg %p178
        $region38: #{tpu_custom_call.1} parent=27 // pred_check_branch
          %367 = sbr.rel (%p365) target = $region40
        $region39: #{tpu_custom_call.1} parent=27 // pred_region
          %s368 = sand.u32 %s29, 1
          %s369 = scalar_lea.sflag [#allocation15], %s368
          %s370 = sand.u32 %s168, 1
          %s371 = smul.addr %s370, 512
          %s372 = scalar_lea.vmem [#allocation14], %s371
          %s373 = smul.u32 128, %s36
          %375 = vsyncadd %s369, 0
          %s376 = smul.addr %s373, 4
          %s377 = scalar_lea.hbm %s5, %s376
          %s378 = sshll.u32 %s377, 4
          %s379 = int_to_ptr.hbm [resolvable:$true] %s378
          %s380 = sshll.u32 %s372, 4
          %s381 = int_to_ptr.vmem [resolvable:$true] %s380
          %386 = dma.hbm_to_vmem [thread:$0]  %s379, 8192, %s381, %s369, 64, 64, 4
        $region40: #{tpu_custom_call.1} parent=27 // pred_fallthru
          _
        // Predicated region
        $region41: #{tpu_custom_call.1} parent=27 // pred_check
          %p387 = pneg %p206
        $region42: #{tpu_custom_call.1} parent=27 // pred_check_branch
          %389 = sbr.rel (%p387) target = $region44
        $region43: #{tpu_custom_call.1} parent=27 // pred_region
          %s390 = sand.u32 %s29, 1
          %s391 = scalar_lea.sflag [#allocation15], %s390
          %s392 = sand.u32 %s196, 1
          %s393 = smul.addr %s392, 512
          %s394 = scalar_lea.vmem [#allocation16], %s393
          %s395 = smul.u32 64, %s37
          %s396 = smul.u32 2, %s36
          %398 = vsyncadd %s391, 0
          %s399 = smul.addr %s395, 4
          %s400 = sadd.s32 %s396, %s399
          %s401 = smul.addr %s400, 4
          %s402 = scalar_lea.hbm %s6, %s401
          %s403 = sshll.u32 %s402, 4
          %s404 = int_to_ptr.hbm [resolvable:$true] %s403
          %s405 = sshll.u32 %s394, 4
          %s406 = int_to_ptr.vmem [resolvable:$true] %s405
          %411 = dma.hbm_to_vmem [thread:$0]  %s404, 8192, %s406, %s391, 256, 128, 8
        $region44: #{tpu_custom_call.1} parent=27 // pred_fallthru
          _
      $region28: #{tpu_custom_call.1} parent=5 // pred_fallthru
        _
      %p412 = scmp.le.s32.totalorder 1, %s29
      %p413 = scmp.lt.s32.totalorder %s29, 9
      %p414 = pnand %p412, %p413
      %p415 = pneg %p414
      // Predicated region
      $region45: #{tpu_custom_call.1} parent=5 // pred_check
        _
      $region46: #{tpu_custom_call.1} parent=5 // pred_check_branch
        %417 = sbr.rel (%p414) target = $region48
      $region47: #{tpu_custom_call.1} parent=5 // pred_region
        %s418 = ssub.s32 %s29, 1
        // Predicated region
        $region49: #{tpu_custom_call.1} parent=47 // pred_check
          %p419 = pneg %p62
        $region50: #{tpu_custom_call.1} parent=47 // pred_check_branch
          %421 = sbr.rel (%p419) target = $region52
        $region51: #{tpu_custom_call.1} parent=47 // pred_region
          %423 = dma.done [#allocation6], 4096
        $region52: #{tpu_custom_call.1} parent=47 // pred_fallthru
          _
        // Predicated region
        $region53: #{tpu_custom_call.1} parent=47 // pred_check
          %p424 = pneg %p83
        $region54: #{tpu_custom_call.1} parent=47 // pred_check_branch
          %426 = sbr.rel (%p424) target = $region56
        $region55: #{tpu_custom_call.1} parent=47 // pred_region
          %428 = dma.done [#allocation9], 1024
        $region56: #{tpu_custom_call.1} parent=47 // pred_fallthru
          _
        // Predicated region
        $region57: #{tpu_custom_call.1} parent=47 // pred_check
          %p429 = pneg %p104
        $region58: #{tpu_custom_call.1} parent=47 // pred_check_branch
          %431 = sbr.rel (%p429) target = $region60
        $region59: #{tpu_custom_call.1} parent=47 // pred_region
          %433 = dma.done [#allocation9], 1024
        $region60: #{tpu_custom_call.1} parent=47 // pred_fallthru
          _
        %s434 = sand.u32 %s34, 1
        %s435 = scalar_lea.sflag [#allocation12], %s434
        %s436 = sand.u32 %s119, 1
        %s437 = smul.addr %s436, 2048
        %s438 = scalar_lea.vmem [#allocation11], %s437
        // Predicated region
        $region61: #{tpu_custom_call.1} parent=47 // pred_check
          %p439 = pneg %p132
        $region62: #{tpu_custom_call.1} parent=47 // pred_check_branch
          %441 = sbr.rel (%p439) target = $region64
        $region63: #{tpu_custom_call.1} parent=47 // pred_region
          %443 = dma.done %s435, 32768
        $region64: #{tpu_custom_call.1} parent=47 // pred_fallthru
          _
        %s444 = sand.u32 %s34, 1
        %s445 = scalar_lea.sflag [#allocation12], %s444
        %s446 = sand.u32 %s145, 1
        %s447 = smul.addr %s446, 8
        %s448 = scalar_lea.vmem [#allocation13], %s447
        // Predicated region
        $region65: #{tpu_custom_call.1} parent=47 // pred_check
          %p449 = pneg %p158
        $region66: #{tpu_custom_call.1} parent=47 // pred_check_branch
          %451 = sbr.rel (%p449) target = $region68
        $region67: #{tpu_custom_call.1} parent=47 // pred_region
          %453 = dma.done %s445, 128
        $region68: #{tpu_custom_call.1} parent=47 // pred_fallthru
          _
        %s454 = sand.u32 %s34, 1
        %s455 = scalar_lea.sflag [#allocation15], %s454
        %s456 = sand.u32 %s171, 1
        %s457 = smul.addr %s456, 512
        %s458 = scalar_lea.vmem [#allocation14], %s457
        // Predicated region
        $region69: #{tpu_custom_call.1} parent=47 // pred_check
          %p459 = pneg %p184
        $region70: #{tpu_custom_call.1} parent=47 // pred_check_branch
          %461 = sbr.rel (%p459) target = $region72
        $region71: #{tpu_custom_call.1} parent=47 // pred_region
          %463 = dma.done %s455, 8192
        $region72: #{tpu_custom_call.1} parent=47 // pred_fallthru
          _
        %s464 = sand.u32 %s34, 1
        %s465 = scalar_lea.sflag [#allocation15], %s464
        %s466 = sand.u32 %s199, 1
        %s467 = smul.addr %s466, 512
        %s468 = scalar_lea.vmem [#allocation16], %s467
        // Predicated region
        $region73: #{tpu_custom_call.1} parent=47 // pred_check
          %p469 = pneg %p212
        $region74: #{tpu_custom_call.1} parent=47 // pred_check_branch
          %471 = sbr.rel (%p469) target = $region76
        $region75: #{tpu_custom_call.1} parent=47 // pred_region
          %473 = dma.done %s465, 8192
        $region76: #{tpu_custom_call.1} parent=47 // pred_fallthru
          _
        %p474 = pneg %p62
        %p475 = pneg %p59
        %p476 = pneg %p83
        %p477 = pneg %p80
        %p478 = pneg %p104
        %p479 = pneg %p101
        %s480 = sand.u32 %s34, 1
        %s481 = scalar_lea.sflag [#allocation12], %s480
        %s482 = sand.u32 %s119, 1
        %s483 = smul.addr %s482, 2048
        %s484 = scalar_lea.vmem [#allocation11], %s483
        %p485 = pneg %p132
        %p486 = pneg %p129
        %s487 = sand.u32 %s34, 1
        %s488 = scalar_lea.sflag [#allocation12], %s487
        %s489 = sand.u32 %s145, 1
        %s490 = smul.addr %s489, 8
        %s491 = scalar_lea.vmem [#allocation13], %s490
        %p492 = pneg %p158
        %p493 = pneg %p155
        %s494 = sand.u32 %s34, 1
        %s495 = scalar_lea.sflag [#allocation15], %s494
        %s496 = sand.u32 %s171, 1
        %s497 = smul.addr %s496, 512
        %s498 = scalar_lea.vmem [#allocation14], %s497
        %p499 = pneg %p184
        %p500 = pneg %p181
        %s501 = sand.u32 %s34, 1
        %s502 = scalar_lea.sflag [#allocation15], %s501
        %s503 = sand.u32 %s199, 1
        %s504 = smul.addr %s503, 512
        %s505 = scalar_lea.vmem [#allocation16], %s504
        %p506 = pneg %p212
        %p507 = pneg %p209
        %p508 = pneg %p238
        %p509 = pneg %p235
        %s510 = sand.u32 %s225, 1
        %s511 = scalar_lea.sflag [#allocation7], %s510
        %s512 = sand.u32 %s225, 1
        %s513 = smul.addr %s512, 16
        %s514 = scalar_lea.vmem [#allocation17], %s513
        %p515 = pneg %p264
        %p516 = pneg %p261
        %s517 = sand.u32 %s251, 1
        %s518 = scalar_lea.sflag [#allocation19], %s517
        %s519 = sand.u32 %s251, 1
        %s520 = smul.addr %s519, 32
        %s521 = scalar_lea.vmem [#allocation18], %s520
        %s522 = smul.u32 64, %s39
        %s523 = smul.u32 8, %s38
        %s524 = smul.u32 8, %s38
        %s525 = smul.u32 128, %s38
        %s526 = smul.u32 64, %s39
        %s527 = smul.u32 2, %s38
        %p528 = scmp.eq.s32.totalorder %s39, 0
        // Predicated region
        $region77: #{tpu_custom_call.1} parent=47 // pred_check
          %p529 = pneg %p528
        $region78: #{tpu_custom_call.1} parent=47 // pred_check_branch
          %531 = sbr.rel (%p529) target = $region80
        $region79: #{tpu_custom_call.1} parent=47 // pred_region
          %v532 = vld [vmem:[#allocation5] sm:$0xff]
          %v533 = vld [vmem:[#allocation5 + $0x8] sm:$0xff]
          %v534 = vld [vmem:[#allocation5 + $0x10] sm:$0xff]
          %v535 = vld [vmem:[#allocation5 + $0x18] sm:$0xff]
          %v536 = vld [vmem:[#allocation5 + $0x20] sm:$0xff]
          %v537 = vld [vmem:[#allocation5 + $0x28] sm:$0xff]
          %v538 = vld [vmem:[#allocation5 + $0x30] sm:$0xff]
          %v539 = vld [vmem:[#allocation5 + $0x38] sm:$0xff]
          %548 = vst [vmem:[#allocation1] ss:$2 sm:$0xff] %v532
          %s549 = scalar_lea.vmem [#allocation1], 16
          %550 = vst [vmem:[%s549] ss:$2 sm:$0xff] %v533
          %s551 = scalar_lea.vmem [#allocation1], 32
          %552 = vst [vmem:[%s551] ss:$2 sm:$0xff] %v534
          %s553 = scalar_lea.vmem [#allocation1], 48
          %554 = vst [vmem:[%s553] ss:$2 sm:$0xff] %v535
          %v555 = vld.sshfl [vmem:[#allocation1] sm:$0xff pattern:$0x75316420]
          %v556 = vld.sshfl [vmem:[#allocation1 + $0x8] sm:$0xff pattern:$0x75316420]
          %v557 = vld.sshfl [vmem:[#allocation1 + $0x10] sm:$0xff pattern:$0x75316420]
          %v558 = vld.sshfl [vmem:[#allocation1 + $0x18] sm:$0xff pattern:$0x75316420]
          %v559 = vld.sshfl [vmem:[#allocation1 + $0x20] sm:$0xff pattern:$0x75316420]
          %v560 = vld.sshfl [vmem:[#allocation1 + $0x28] sm:$0xff pattern:$0x75316420]
          %v561 = vld.sshfl [vmem:[#allocation1 + $0x30] sm:$0xff pattern:$0x75316420]
          %v562 = vld.sshfl [vmem:[#allocation1 + $0x38] sm:$0xff pattern:$0x75316420]
          %563 = vst [vmem:[#allocation1] ss:$2 sm:$0xff] %v536
          %564 = vst [vmem:[%s549] ss:$2 sm:$0xff] %v537
          %565 = vst [vmem:[%s551] ss:$2 sm:$0xff] %v538
          %566 = vst [vmem:[%s553] ss:$2 sm:$0xff] %v539
          %v567 = vld.sshfl [vmem:[#allocation1] sm:$0xff pattern:$0x75316420]
          %v568 = vld.sshfl [vmem:[#allocation1 + $0x8] sm:$0xff pattern:$0x75316420]
          %v569 = vld.sshfl [vmem:[#allocation1 + $0x10] sm:$0xff pattern:$0x75316420]
          %v570 = vld.sshfl [vmem:[#allocation1 + $0x18] sm:$0xff pattern:$0x75316420]
          %v571 = vld.sshfl [vmem:[#allocation1 + $0x20] sm:$0xff pattern:$0x75316420]
          %v572 = vld.sshfl [vmem:[#allocation1 + $0x28] sm:$0xff pattern:$0x75316420]
          %v573 = vld.sshfl [vmem:[#allocation1 + $0x30] sm:$0xff pattern:$0x75316420]
          %v574 = vld.sshfl [vmem:[#allocation1 + $0x38] sm:$0xff pattern:$0x75316420]
          %vm591 = vcmask 1043456
          %v592 = vsel %vm591, %v555, 0.0
          %v593 = vrot.slane %v592, 4
          %v594 = vadd.f32 %v592, %v593
          %v595 = vrot.slane %v594, 2
          %v596 = vadd.f32 %v594, %v595
          %v597 = vrot.slane %v596, 1
          %v598 = vadd.f32 %v596, %v597
          %v599 = vsel %vm591, %v556, 0.0
          %v600 = vrot.slane %v599, 4
          %v601 = vadd.f32 %v599, %v600
          %v602 = vrot.slane %v601, 2
          %v603 = vadd.f32 %v601, %v602
          %v604 = vrot.slane %v603, 1
          %v605 = vadd.f32 %v603, %v604
          %v606 = vsel %vm591, %v557, 0.0
          %v607 = vrot.slane %v606, 4
          %v608 = vadd.f32 %v606, %v607
          %v609 = vrot.slane %v608, 2
          %v610 = vadd.f32 %v608, %v609
          %v611 = vrot.slane %v610, 1
          %v612 = vadd.f32 %v610, %v611
          %v613 = vsel %vm591, %v558, 0.0
          %v614 = vrot.slane %v613, 4
          %v615 = vadd.f32 %v613, %v614
          %v616 = vrot.slane %v615, 2
          %v617 = vadd.f32 %v615, %v616
          %v618 = vrot.slane %v617, 1
          %v619 = vadd.f32 %v617, %v618
          %v620 = vsel %vm591, %v559, 0.0
          %v621 = vrot.slane %v620, 4
          %v622 = vadd.f32 %v620, %v621
          %v623 = vrot.slane %v622, 2
          %v624 = vadd.f32 %v622, %v623
          %v625 = vrot.slane %v624, 1
          %v626 = vadd.f32 %v624, %v625
          %v627 = vsel %vm591, %v560, 0.0
          %v628 = vrot.slane %v627, 4
          %v629 = vadd.f32 %v627, %v628
          %v630 = vrot.slane %v629, 2
          %v631 = vadd.f32 %v629, %v630
          %v632 = vrot.slane %v631, 1
          %v633 = vadd.f32 %v631, %v632
          %v634 = vsel %vm591, %v561, 0.0
          %v635 = vrot.slane %v634, 4
          %v636 = vadd.f32 %v634, %v635
          %v637 = vrot.slane %v636, 2
          %v638 = vadd.f32 %v636, %v637
          %v639 = vrot.slane %v638, 1
          %v640 = vadd.f32 %v638, %v639
          %v641 = vsel %vm591, %v562, 0.0
          %v642 = vrot.slane %v641, 4
          %v643 = vadd.f32 %v641, %v642
          %v644 = vrot.slane %v643, 2
          %v645 = vadd.f32 %v643, %v644
          %v646 = vrot.slane %v645, 1
          %v647 = vadd.f32 %v645, %v646
          %v648 = vsel %vm591, %v567, 0.0
          %v649 = vrot.slane %v648, 4
          %v650 = vadd.f32 %v648, %v649
          %v651 = vrot.slane %v650, 2
          %v652 = vadd.f32 %v650, %v651
          %v653 = vrot.slane %v652, 1
          %v654 = vadd.f32 %v652, %v653
          %v655 = vsel %vm591, %v568, 0.0
          %v656 = vrot.slane %v655, 4
          %v657 = vadd.f32 %v655, %v656
          %v658 = vrot.slane %v657, 2
          %v659 = vadd.f32 %v657, %v658
          %v660 = vrot.slane %v659, 1
          %v661 = vadd.f32 %v659, %v660
          %v662 = vsel %vm591, %v569, 0.0
          %v663 = vrot.slane %v662, 4
          %v664 = vadd.f32 %v662, %v663
          %v665 = vrot.slane %v664, 2
          %v666 = vadd.f32 %v664, %v665
          %v667 = vrot.slane %v666, 1
          %v668 = vadd.f32 %v666, %v667
          %v669 = vsel %vm591, %v570, 0.0
          %v670 = vrot.slane %v669, 4
          %v671 = vadd.f32 %v669, %v670
          %v672 = vrot.slane %v671, 2
          %v673 = vadd.f32 %v671, %v672
          %v674 = vrot.slane %v673, 1
          %v675 = vadd.f32 %v673, %v674
          %v676 = vsel %vm591, %v571, 0.0
          %v677 = vrot.slane %v676, 4
          %v678 = vadd.f32 %v676, %v677
          %v679 = vrot.slane %v678, 2
          %v680 = vadd.f32 %v678, %v679
          %v681 = vrot.slane %v680, 1
          %v682 = vadd.f32 %v680, %v681
          %v683 = vsel %vm591, %v572, 0.0
          %v684 = vrot.slane %v683, 4
          %v685 = vadd.f32 %v683, %v684
          %v686 = vrot.slane %v685, 2
          %v687 = vadd.f32 %v685, %v686
          %v688 = vrot.slane %v687, 1
          %v689 = vadd.f32 %v687, %v688
          %v690 = vsel %vm591, %v573, 0.0
          %v691 = vrot.slane %v690, 4
          %v692 = vadd.f32 %v690, %v691
          %v693 = vrot.slane %v692, 2
          %v694 = vadd.f32 %v692, %v693
          %v695 = vrot.slane %v694, 1
          %v696 = vadd.f32 %v694, %v695
          %v697 = vsel %vm591, %v574, 0.0
          %v698 = vrot.slane %v697, 4
          %v699 = vadd.f32 %v697, %v698
          %v700 = vrot.slane %v699, 2
          %v701 = vadd.f32 %v699, %v700
          %v702 = vrot.slane %v701, 1
          %v703 = vadd.f32 %v701, %v702
          %v704 = vrcp.pop 4.0
          %v705 = vmul.f32 4.0, %v704
          %v706 = vsub.f32 1.0, %v705
          %v707 = vmul.f32 %v704, %v706
          %v708 = vadd.f32 %v704, %v707
          %vm709 = vweird.f32 %v704
          %v710 = vsel %vm709, %v704, %v708
          %v711 = vmul.f32 %v598, %v710
          %v712 = vmul.f32 %v605, %v710
          %v713 = vmul.f32 %v612, %v710
          %v714 = vmul.f32 %v619, %v710
          %v715 = vmul.f32 %v626, %v710
          %v716 = vmul.f32 %v633, %v710
          %v717 = vmul.f32 %v640, %v710
          %v718 = vmul.f32 %v647, %v710
          %v719 = vmul.f32 %v654, %v710
          %v720 = vmul.f32 %v661, %v710
          %v721 = vmul.f32 %v668, %v710
          %v722 = vmul.f32 %v675, %v710
          %v723 = vmul.f32 %v682, %v710
          %v724 = vmul.f32 %v689, %v710
          %v725 = vmul.f32 %v696, %v710
          %v726 = vmul.f32 %v703, %v710
          %v743 = vrot.slane %v712, 4
          %v744 = vrot.slane %v714, 4
          %v745 = vrot.slane %v716, 4
          %v746 = vrot.slane %v718, 4
          %v747 = vrot.slane %v720, 4
          %v748 = vrot.slane %v722, 4
          %v749 = vrot.slane %v724, 4
          %v750 = vrot.slane %v726, 4
          %v751 = vsel %vm591, %v711, %v743
          %v752 = vsel %vm591, %v713, %v744
          %v753 = vsel %vm591, %v715, %v745
          %v754 = vsel %vm591, %v717, %v746
          %v755 = vsel %vm591, %v719, %v747
          %v756 = vsel %vm591, %v721, %v748
          %v757 = vsel %vm591, %v723, %v749
          %v758 = vsel %vm591, %v725, %v750
          %v767 = vsub.f32 %v532, %v751
          %v768 = vsub.f32 %v533, %v752
          %v769 = vsub.f32 %v534, %v753
          %v770 = vsub.f32 %v535, %v754
          %v771 = vsub.f32 %v536, %v755
          %v772 = vsub.f32 %v537, %v756
          %v773 = vsub.f32 %v538, %v757
          %v774 = vsub.f32 %v539, %v758
          %v775 = vmul.f32 %v767, %v767
          %v776 = vmul.f32 %v768, %v768
          %v777 = vmul.f32 %v769, %v769
          %v778 = vmul.f32 %v770, %v770
          %v779 = vmul.f32 %v771, %v771
          %v780 = vmul.f32 %v772, %v772
          %v781 = vmul.f32 %v773, %v773
          %v782 = vmul.f32 %v774, %v774
          %791 = vst [vmem:[#allocation1] ss:$2 sm:$0xff] %v775
          %s792 = scalar_lea.vmem [#allocation1], 16
          %793 = vst [vmem:[%s792] ss:$2 sm:$0xff] %v776
          %s794 = scalar_lea.vmem [#allocation1], 32
          %795 = vst [vmem:[%s794] ss:$2 sm:$0xff] %v777
          %s796 = scalar_lea.vmem [#allocation1], 48
          %797 = vst [vmem:[%s796] ss:$2 sm:$0xff] %v778
          %v798 = vld.sshfl [vmem:[#allocation1] sm:$0xff pattern:$0x75316420]
          %v799 = vld.sshfl [vmem:[#allocation1 + $0x8] sm:$0xff pattern:$0x75316420]
          %v800 = vld.sshfl [vmem:[#allocation1 + $0x10] sm:$0xff pattern:$0x75316420]
          %v801 = vld.sshfl [vmem:[#allocation1 + $0x18] sm:$0xff pattern:$0x75316420]
          %v802 = vld.sshfl [vmem:[#allocation1 + $0x20] sm:$0xff pattern:$0x75316420]
          %v803 = vld.sshfl [vmem:[#allocation1 + $0x28] sm:$0xff pattern:$0x75316420]
          %v804 = vld.sshfl [vmem:[#allocation1 + $0x30] sm:$0xff pattern:$0x75316420]
          %v805 = vld.sshfl [vmem:[#allocation1 + $0x38] sm:$0xff pattern:$0x75316420]
          %806 = vst [vmem:[#allocation1] ss:$2 sm:$0xff] %v779
          %807 = vst [vmem:[%s792] ss:$2 sm:$0xff] %v780
          %808 = vst [vmem:[%s794] ss:$2 sm:$0xff] %v781
          %809 = vst [vmem:[%s796] ss:$2 sm:$0xff] %v782
          %v810 = vld.sshfl [vmem:[#allocation1] sm:$0xff pattern:$0x75316420]
          %v811 = vld.sshfl [vmem:[#allocation1 + $0x8] sm:$0xff pattern:$0x75316420]
          %v812 = vld.sshfl [vmem:[#allocation1 + $0x10] sm:$0xff pattern:$0x75316420]
          %v813 = vld.sshfl [vmem:[#allocation1 + $0x18] sm:$0xff pattern:$0x75316420]
          %v814 = vld.sshfl [vmem:[#allocation1 + $0x20] sm:$0xff pattern:$0x75316420]
          %v815 = vld.sshfl [vmem:[#allocation1 + $0x28] sm:$0xff pattern:$0x75316420]
          %v816 = vld.sshfl [vmem:[#allocation1 + $0x30] sm:$0xff pattern:$0x75316420]
          %v817 = vld.sshfl [vmem:[#allocation1 + $0x38] sm:$0xff pattern:$0x75316420]
          %v834 = vsel %vm591, %v798, 0.0
          %v835 = vrot.slane %v834, 4
          %v836 = vadd.f32 %v834, %v835
          %v837 = vrot.slane %v836, 2
          %v838 = vadd.f32 %v836, %v837
          %v839 = vrot.slane %v838, 1
          %v840 = vadd.f32 %v838, %v839
          %v841 = vsel %vm591, %v799, 0.0
          %v842 = vrot.slane %v841, 4
          %v843 = vadd.f32 %v841, %v842
          %v844 = vrot.slane %v843, 2
          %v845 = vadd.f32 %v843, %v844
          %v846 = vrot.slane %v845, 1
          %v847 = vadd.f32 %v845, %v846
          %v848 = vsel %vm591, %v800, 0.0
          %v849 = vrot.slane %v848, 4
          %v850 = vadd.f32 %v848, %v849
          %v851 = vrot.slane %v850, 2
          %v852 = vadd.f32 %v850, %v851
          %v853 = vrot.slane %v852, 1
          %v854 = vadd.f32 %v852, %v853
          %v855 = vsel %vm591, %v801, 0.0
          %v856 = vrot.slane %v855, 4
          %v857 = vadd.f32 %v855, %v856
          %v858 = vrot.slane %v857, 2
          %v859 = vadd.f32 %v857, %v858
          %v860 = vrot.slane %v859, 1
          %v861 = vadd.f32 %v859, %v860
          %v862 = vsel %vm591, %v802, 0.0
          %v863 = vrot.slane %v862, 4
          %v864 = vadd.f32 %v862, %v863
          %v865 = vrot.slane %v864, 2
          %v866 = vadd.f32 %v864, %v865
          %v867 = vrot.slane %v866, 1
          %v868 = vadd.f32 %v866, %v867
          %v869 = vsel %vm591, %v803, 0.0
          %v870 = vrot.slane %v869, 4
          %v871 = vadd.f32 %v869, %v870
          %v872 = vrot.slane %v871, 2
          %v873 = vadd.f32 %v871, %v872
          %v874 = vrot.slane %v873, 1
          %v875 = vadd.f32 %v873, %v874
          %v876 = vsel %vm591, %v804, 0.0
          %v877 = vrot.slane %v876, 4
          %v878 = vadd.f32 %v876, %v877
          %v879 = vrot.slane %v878, 2
          %v880 = vadd.f32 %v878, %v879
          %v881 = vrot.slane %v880, 1
          %v882 = vadd.f32 %v880, %v881
          %v883 = vsel %vm591, %v805, 0.0
          %v884 = vrot.slane %v883, 4
          %v885 = vadd.f32 %v883, %v884
          %v886 = vrot.slane %v885, 2
          %v887 = vadd.f32 %v885, %v886
          %v888 = vrot.slane %v887, 1
          %v889 = vadd.f32 %v887, %v888
          %v890 = vsel %vm591, %v810, 0.0
          %v891 = vrot.slane %v890, 4
          %v892 = vadd.f32 %v890, %v891
          %v893 = vrot.slane %v892, 2
          %v894 = vadd.f32 %v892, %v893
          %v895 = vrot.slane %v894, 1
          %v896 = vadd.f32 %v894, %v895
          %v897 = vsel %vm591, %v811, 0.0
          %v898 = vrot.slane %v897, 4
          %v899 = vadd.f32 %v897, %v898
          %v900 = vrot.slane %v899, 2
          %v901 = vadd.f32 %v899, %v900
          %v902 = vrot.slane %v901, 1
          %v903 = vadd.f32 %v901, %v902
          %v904 = vsel %vm591, %v812, 0.0
          %v905 = vrot.slane %v904, 4
          %v906 = vadd.f32 %v904, %v905
          %v907 = vrot.slane %v906, 2
          %v908 = vadd.f32 %v906, %v907
          %v909 = vrot.slane %v908, 1
          %v910 = vadd.f32 %v908, %v909
          %v911 = vsel %vm591, %v813, 0.0
          %v912 = vrot.slane %v911, 4
          %v913 = vadd.f32 %v911, %v912
          %v914 = vrot.slane %v913, 2
          %v915 = vadd.f32 %v913, %v914
          %v916 = vrot.slane %v915, 1
          %v917 = vadd.f32 %v915, %v916
          %v918 = vsel %vm591, %v814, 0.0
          %v919 = vrot.slane %v918, 4
          %v920 = vadd.f32 %v918, %v919
          %v921 = vrot.slane %v920, 2
          %v922 = vadd.f32 %v920, %v921
          %v923 = vrot.slane %v922, 1
          %v924 = vadd.f32 %v922, %v923
          %v925 = vsel %vm591, %v815, 0.0
          %v926 = vrot.slane %v925, 4
          %v927 = vadd.f32 %v925, %v926
          %v928 = vrot.slane %v927, 2
          %v929 = vadd.f32 %v927, %v928
          %v930 = vrot.slane %v929, 1
          %v931 = vadd.f32 %v929, %v930
          %v932 = vsel %vm591, %v816, 0.0
          %v933 = vrot.slane %v932, 4
          %v934 = vadd.f32 %v932, %v933
          %v935 = vrot.slane %v934, 2
          %v936 = vadd.f32 %v934, %v935
          %v937 = vrot.slane %v936, 1
          %v938 = vadd.f32 %v936, %v937
          %v939 = vsel %vm591, %v817, 0.0
          %v940 = vrot.slane %v939, 4
          %v941 = vadd.f32 %v939, %v940
          %v942 = vrot.slane %v941, 2
          %v943 = vadd.f32 %v941, %v942
          %v944 = vrot.slane %v943, 1
          %v945 = vadd.f32 %v943, %v944
          %v946 = vmul.f32 %v840, %v710
          %v947 = vmul.f32 %v847, %v710
          %v948 = vmul.f32 %v854, %v710
          %v949 = vmul.f32 %v861, %v710
          %v950 = vmul.f32 %v868, %v710
          %v951 = vmul.f32 %v875, %v710
          %v952 = vmul.f32 %v882, %v710
          %v953 = vmul.f32 %v889, %v710
          %v954 = vmul.f32 %v896, %v710
          %v955 = vmul.f32 %v903, %v710
          %v956 = vmul.f32 %v910, %v710
          %v957 = vmul.f32 %v917, %v710
          %v958 = vmul.f32 %v924, %v710
          %v959 = vmul.f32 %v931, %v710
          %v960 = vmul.f32 %v938, %v710
          %v961 = vmul.f32 %v945, %v710
          %v962 = vadd.f32 %v946, 1e-05
          %v963 = vadd.f32 %v947, 1e-05
          %v964 = vadd.f32 %v948, 1e-05
          %v965 = vadd.f32 %v949, 1e-05
          %v966 = vadd.f32 %v950, 1e-05
          %v967 = vadd.f32 %v951, 1e-05
          %v968 = vadd.f32 %v952, 1e-05
          %v969 = vadd.f32 %v953, 1e-05
          %v970 = vadd.f32 %v954, 1e-05
          %v971 = vadd.f32 %v955, 1e-05
          %v972 = vadd.f32 %v956, 1e-05
          %v973 = vadd.f32 %v957, 1e-05
          %v974 = vadd.f32 %v958, 1e-05
          %v975 = vadd.f32 %v959, 1e-05
          %v976 = vadd.f32 %v960, 1e-05
          %v977 = vadd.f32 %v961, 1e-05
          %v978 = vrsqrt.pop %v962
          %v979 = vmul.f32 %v978, %v962
          %v980 = vmul.f32 %v979, %v978
          %v981 = vmul.f32 0.5, %v980
          %v982 = vsub.f32 1.5, %v981
          %v983 = vmul.f32 %v978, %v982
          %vm984 = vweird.f32 %v962
          %vm985 = vweird.f32 %v978
          %vm986 = vmor %vm984, %vm985
          %v987 = vsel %vm986, %v978, %v983
          %v988 = vrsqrt.pop %v963
          %v989 = vmul.f32 %v988, %v963
          %v990 = vmul.f32 %v989, %v988
          %v991 = vmul.f32 0.5, %v990
          %v992 = vsub.f32 1.5, %v991
          %v993 = vmul.f32 %v988, %v992
          %vm994 = vweird.f32 %v963
          %vm995 = vweird.f32 %v988
          %vm996 = vmor %vm994, %vm995
          %v997 = vsel %vm996, %v988, %v993
          %v998 = vrsqrt.pop %v964
          %v999 = vmul.f32 %v998, %v964
          %v1000 = vmul.f32 %v999, %v998
          %v1001 = vmul.f32 0.5, %v1000
          %v1002 = vsub.f32 1.5, %v1001
          %v1003 = vmul.f32 %v998, %v1002
          %vm1004 = vweird.f32 %v964
          %vm1005 = vweird.f32 %v998
          %vm1006 = vmor %vm1004, %vm1005
          %v1007 = vsel %vm1006, %v998, %v1003
          %v1008 = vrsqrt.pop %v965
          %v1009 = vmul.f32 %v1008, %v965
          %v1010 = vmul.f32 %v1009, %v1008
          %v1011 = vmul.f32 0.5, %v1010
          %v1012 = vsub.f32 1.5, %v1011
          %v1013 = vmul.f32 %v1008, %v1012
          %vm1014 = vweird.f32 %v965
          %vm1015 = vweird.f32 %v1008
          %vm1016 = vmor %vm1014, %vm1015
          %v1017 = vsel %vm1016, %v1008, %v1013
          %v1018 = vrsqrt.pop %v966
          %v1019 = vmul.f32 %v1018, %v966
          %v1020 = vmul.f32 %v1019, %v1018
          %v1021 = vmul.f32 0.5, %v1020
          %v1022 = vsub.f32 1.5, %v1021
          %v1023 = vmul.f32 %v1018, %v1022
          %vm1024 = vweird.f32 %v966
          %vm1025 = vweird.f32 %v1018
          %vm1026 = vmor %vm1024, %vm1025
          %v1027 = vsel %vm1026, %v1018, %v1023
          %v1028 = vrsqrt.pop %v967
          %v1029 = vmul.f32 %v1028, %v967
          %v1030 = vmul.f32 %v1029, %v1028
          %v1031 = vmul.f32 0.5, %v1030
          %v1032 = vsub.f32 1.5, %v1031
          %v1033 = vmul.f32 %v1028, %v1032
          %vm1034 = vweird.f32 %v967
          %vm1035 = vweird.f32 %v1028
          %vm1036 = vmor %vm1034, %vm1035
          %v1037 = vsel %vm1036, %v1028, %v1033
          %v1038 = vrsqrt.pop %v968
          %v1039 = vmul.f32 %v1038, %v968
          %v1040 = vmul.f32 %v1039, %v1038
          %v1041 = vmul.f32 0.5, %v1040
          %v1042 = vsub.f32 1.5, %v1041
          %v1043 = vmul.f32 %v1038, %v1042
          %vm1044 = vweird.f32 %v968
          %vm1045 = vweird.f32 %v1038
          %vm1046 = vmor %vm1044, %vm1045
          %v1047 = vsel %vm1046, %v1038, %v1043
          %v1048 = vrsqrt.pop %v969
          %v1049 = vmul.f32 %v1048, %v969
          %v1050 = vmul.f32 %v1049, %v1048
          %v1051 = vmul.f32 0.5, %v1050
          %v1052 = vsub.f32 1.5, %v1051
          %v1053 = vmul.f32 %v1048, %v1052
          %vm1054 = vweird.f32 %v969
          %vm1055 = vweird.f32 %v1048
          %vm1056 = vmor %vm1054, %vm1055
          %v1057 = vsel %vm1056, %v1048, %v1053
          %v1058 = vrsqrt.pop %v970
          %v1059 = vmul.f32 %v1058, %v970
          %v1060 = vmul.f32 %v1059, %v1058
          %v1061 = vmul.f32 0.5, %v1060
          %v1062 = vsub.f32 1.5, %v1061
          %v1063 = vmul.f32 %v1058, %v1062
          %vm1064 = vweird.f32 %v970
          %vm1065 = vweird.f32 %v1058
          %vm1066 = vmor %vm1064, %vm1065
          %v1067 = vsel %vm1066, %v1058, %v1063
          %v1068 = vrsqrt.pop %v971
          %v1069 = vmul.f32 %v1068, %v971
          %v1070 = vmul.f32 %v1069, %v1068
          %v1071 = vmul.f32 0.5, %v1070
          %v1072 = vsub.f32 1.5, %v1071
          %v1073 = vmul.f32 %v1068, %v1072
          %vm1074 = vweird.f32 %v971
          %vm1075 = vweird.f32 %v1068
          %vm1076 = vmor %vm1074, %vm1075
          %v1077 = vsel %vm1076, %v1068, %v1073
          %v1078 = vrsqrt.pop %v972
          %v1079 = vmul.f32 %v1078, %v972
          %v1080 = vmul.f32 %v1079, %v1078
          %v1081 = vmul.f32 0.5, %v1080
          %v1082 = vsub.f32 1.5, %v1081
          %v1083 = vmul.f32 %v1078, %v1082
          %vm1084 = vweird.f32 %v972
          %vm1085 = vweird.f32 %v1078
          %vm1086 = vmor %vm1084, %vm1085
          %v1087 = vsel %vm1086, %v1078, %v1083
          %v1088 = vrsqrt.pop %v973
          %v1089 = vmul.f32 %v1088, %v973
          %v1090 = vmul.f32 %v1089, %v1088
          %v1091 = vmul.f32 0.5, %v1090
          %v1092 = vsub.f32 1.5, %v1091
          %v1093 = vmul.f32 %v1088, %v1092
          %vm1094 = vweird.f32 %v973
          %vm1095 = vweird.f32 %v1088
          %vm1096 = vmor %vm1094, %vm1095
          %v1097 = vsel %vm1096, %v1088, %v1093
          %v1098 = vrsqrt.pop %v974
          %v1099 = vmul.f32 %v1098, %v974
          %v1100 = vmul.f32 %v1099, %v1098
          %v1101 = vmul.f32 0.5, %v1100
          %v1102 = vsub.f32 1.5, %v1101
          %v1103 = vmul.f32 %v1098, %v1102
          %vm1104 = vweird.f32 %v974
          %vm1105 = vweird.f32 %v1098
          %vm1106 = vmor %vm1104, %vm1105
          %v1107 = vsel %vm1106, %v1098, %v1103
          %v1108 = vrsqrt.pop %v975
          %v1109 = vmul.f32 %v1108, %v975
          %v1110 = vmul.f32 %v1109, %v1108
          %v1111 = vmul.f32 0.5, %v1110
          %v1112 = vsub.f32 1.5, %v1111
          %v1113 = vmul.f32 %v1108, %v1112
          %vm1114 = vweird.f32 %v975
          %vm1115 = vweird.f32 %v1108
          %vm1116 = vmor %vm1114, %vm1115
          %v1117 = vsel %vm1116, %v1108, %v1113
          %v1118 = vrsqrt.pop %v976
          %v1119 = vmul.f32 %v1118, %v976
          %v1120 = vmul.f32 %v1119, %v1118
          %v1121 = vmul.f32 0.5, %v1120
          %v1122 = vsub.f32 1.5, %v1121
          %v1123 = vmul.f32 %v1118, %v1122
          %vm1124 = vweird.f32 %v976
          %vm1125 = vweird.f32 %v1118
          %vm1126 = vmor %vm1124, %vm1125
          %v1127 = vsel %vm1126, %v1118, %v1123
          %v1128 = vrsqrt.pop %v977
          %v1129 = vmul.f32 %v1128, %v977
          %v1130 = vmul.f32 %v1129, %v1128
          %v1131 = vmul.f32 0.5, %v1130
          %v1132 = vsub.f32 1.5, %v1131
          %v1133 = vmul.f32 %v1128, %v1132
          %vm1134 = vweird.f32 %v977
          %vm1135 = vweird.f32 %v1128
          %vm1136 = vmor %vm1134, %vm1135
          %v1137 = vsel %vm1136, %v1128, %v1133
          %v1154 = vrot.slane %v997, 4
          %v1155 = vrot.slane %v1017, 4
          %v1156 = vrot.slane %v1037, 4
          %v1157 = vrot.slane %v1057, 4
          %v1158 = vrot.slane %v1077, 4
          %v1159 = vrot.slane %v1097, 4
          %v1160 = vrot.slane %v1117, 4
          %v1161 = vrot.slane %v1137, 4
          %v1162 = vsel %vm591, %v987, %v1154
          %v1163 = vsel %vm591, %v1007, %v1155
          %v1164 = vsel %vm591, %v1027, %v1156
          %v1165 = vsel %vm591, %v1047, %v1157
          %v1166 = vsel %vm591, %v1067, %v1158
          %v1167 = vsel %vm591, %v1087, %v1159
          %v1168 = vsel %vm591, %v1107, %v1160
          %v1169 = vsel %vm591, %v1127, %v1161
          %v1178 = vmul.f32 %v767, %v1162
          %v1179 = vmul.f32 %v768, %v1163
          %v1180 = vmul.f32 %v769, %v1164
          %v1181 = vmul.f32 %v770, %v1165
          %v1182 = vmul.f32 %v771, %v1166
          %v1183 = vmul.f32 %v772, %v1167
          %v1184 = vmul.f32 %v773, %v1168
          %v1185 = vmul.f32 %v774, %v1169
          %v1186 = vld [vmem:[#allocation8] ss:$4 sm:$0xff]
          %s1187 = scalar_lea.vmem [#allocation8], 32
          %v1188 = vld [vmem:[%s1187] ss:$4 sm:$0xff]
          %v1191 = vperm.slane %v1186, 0
          %v1192 = vperm.slane %v1186, 1
          %v1193 = vperm.slane %v1186, 2
          %v1194 = vperm.slane %v1186, 3
          %v1195 = vperm.slane %v1186, 4
          %v1196 = vperm.slane %v1186, 5
          %v1197 = vperm.slane %v1186, 6
          %v1198 = vperm.slane %v1186, 7
          %v1199 = vperm.slane %v1188, 0
          %v1200 = vperm.slane %v1188, 1
          %v1201 = vperm.slane %v1188, 2
          %v1202 = vperm.slane %v1188, 3
          %v1203 = vperm.slane %v1188, 4
          %v1204 = vperm.slane %v1188, 5
          %v1205 = vperm.slane %v1188, 6
          %v1206 = vperm.slane %v1188, 7
          %v1207 = vrot.slane %v1192, 4
          %v1208 = vrot.slane %v1194, 4
          %v1209 = vrot.slane %v1196, 4
          %v1210 = vrot.slane %v1198, 4
          %v1211 = vrot.slane %v1200, 4
          %v1212 = vrot.slane %v1202, 4
          %v1213 = vrot.slane %v1204, 4
          %v1214 = vrot.slane %v1206, 4
          %v1215 = vsel %vm591, %v1191, %v1207
          %v1216 = vsel %vm591, %v1193, %v1208
          %v1217 = vsel %vm591, %v1195, %v1209
          %v1218 = vsel %vm591, %v1197, %v1210
          %v1219 = vsel %vm591, %v1199, %v1211
          %v1220 = vsel %vm591, %v1201, %v1212
          %v1221 = vsel %vm591, %v1203, %v1213
          %v1222 = vsel %vm591, %v1205, %v1214
          %v1231 = vmul.f32 %v1178, %v1215
          %v1232 = vmul.f32 %v1179, %v1216
          %v1233 = vmul.f32 %v1180, %v1217
          %v1234 = vmul.f32 %v1181, %v1218
          %v1235 = vmul.f32 %v1182, %v1219
          %v1236 = vmul.f32 %v1183, %v1220
          %v1237 = vmul.f32 %v1184, %v1221
          %v1238 = vmul.f32 %v1185, %v1222
          %v1239 = vld [vmem:[#allocation10] ss:$4 sm:$0xff]
          %s1240 = scalar_lea.vmem [#allocation10], 32
          %v1241 = vld [vmem:[%s1240] ss:$4 sm:$0xff]
          %v1244 = vperm.slane %v1239, 0
          %v1245 = vperm.slane %v1239, 1
          %v1246 = vperm.slane %v1239, 2
          %v1247 = vperm.slane %v1239, 3
          %v1248 = vperm.slane %v1239, 4
          %v1249 = vperm.slane %v1239, 5
          %v1250 = vperm.slane %v1239, 6
          %v1251 = vperm.slane %v1239, 7
          %v1252 = vperm.slane %v1241, 0
          %v1253 = vperm.slane %v1241, 1
          %v1254 = vperm.slane %v1241, 2
          %v1255 = vperm.slane %v1241, 3
          %v1256 = vperm.slane %v1241, 4
          %v1257 = vperm.slane %v1241, 5
          %v1258 = vperm.slane %v1241, 6
          %v1259 = vperm.slane %v1241, 7
          %v1260 = vrot.slane %v1245, 4
          %v1261 = vrot.slane %v1247, 4
          %v1262 = vrot.slane %v1249, 4
          %v1263 = vrot.slane %v1251, 4
          %v1264 = vrot.slane %v1253, 4
          %v1265 = vrot.slane %v1255, 4
          %v1266 = vrot.slane %v1257, 4
          %v1267 = vrot.slane %v1259, 4
          %v1268 = vsel %vm591, %v1244, %v1260
          %v1269 = vsel %vm591, %v1246, %v1261
          %v1270 = vsel %vm591, %v1248, %v1262
          %v1271 = vsel %vm591, %v1250, %v1263
          %v1272 = vsel %vm591, %v1252, %v1264
          %v1273 = vsel %vm591, %v1254, %v1265
          %v1274 = vsel %vm591, %v1256, %v1266
          %v1275 = vsel %vm591, %v1258, %v1267
          %v1284 = vadd.f32 %v1231, %v1268
          %v1285 = vadd.f32 %v1232, %v1269
          %v1286 = vadd.f32 %v1233, %v1270
          %v1287 = vadd.f32 %v1234, %v1271
          %v1288 = vadd.f32 %v1235, %v1272
          %v1289 = vadd.f32 %v1236, %v1273
          %v1290 = vadd.f32 %v1237, %v1274
          %v1291 = vadd.f32 %v1238, %v1275
          %1300 = vst [vmem:[#allocation1] ss:$2 sm:$0xff] %v1284
          %s1301 = scalar_lea.vmem [#allocation1], 16
          %1302 = vst [vmem:[%s1301] ss:$2 sm:$0xff] %v1285
          %s1303 = scalar_lea.vmem [#allocation1], 32
          %1304 = vst [vmem:[%s1303] ss:$2 sm:$0xff] %v1286
          %s1305 = scalar_lea.vmem [#allocation1], 48
          %1306 = vst [vmem:[%s1305] ss:$2 sm:$0xff] %v1287
          %v1307 = vld.sshfl [vmem:[#allocation1] sm:$0xff pattern:$0x75316420]
          %v1308 = vld.sshfl [vmem:[#allocation1 + $0x8] sm:$0xff pattern:$0x75316420]
          %v1309 = vld.sshfl [vmem:[#allocation1 + $0x10] sm:$0xff pattern:$0x75316420]
          %v1310 = vld.sshfl [vmem:[#allocation1 + $0x18] sm:$0xff pattern:$0x75316420]
          %v1311 = vld.sshfl [vmem:[#allocation1 + $0x20] sm:$0xff pattern:$0x75316420]
          %v1312 = vld.sshfl [vmem:[#allocation1 + $0x28] sm:$0xff pattern:$0x75316420]
          %v1313 = vld.sshfl [vmem:[#allocation1 + $0x30] sm:$0xff pattern:$0x75316420]
          %v1314 = vld.sshfl [vmem:[#allocation1 + $0x38] sm:$0xff pattern:$0x75316420]
          %1315 = vst [vmem:[#allocation1] ss:$2 sm:$0xff] %v1288
          %1316 = vst [vmem:[%s1301] ss:$2 sm:$0xff] %v1289
          %1317 = vst [vmem:[%s1303] ss:$2 sm:$0xff] %v1290
          %1318 = vst [vmem:[%s1305] ss:$2 sm:$0xff] %v1291
          %v1319 = vld.sshfl [vmem:[#allocation1] sm:$0xff pattern:$0x75316420]
          %v1320 = vld.sshfl [vmem:[#allocation1 + $0x8] sm:$0xff pattern:$0x75316420]
          %v1321 = vld.sshfl [vmem:[#allocation1 + $0x10] sm:$0xff pattern:$0x75316420]
          %v1322 = vld.sshfl [vmem:[#allocation1 + $0x18] sm:$0xff pattern:$0x75316420]
          %v1323 = vld.sshfl [vmem:[#allocation1 + $0x20] sm:$0xff pattern:$0x75316420]
          %v1324 = vld.sshfl [vmem:[#allocation1 + $0x28] sm:$0xff pattern:$0x75316420]
          %v1325 = vld.sshfl [vmem:[#allocation1 + $0x30] sm:$0xff pattern:$0x75316420]
          %v1326 = vld.sshfl [vmem:[#allocation1 + $0x38] sm:$0xff pattern:$0x75316420]
          %v1343 = vpack.c.bf16 %v1308, %v1307
          %v1344 = vpack.c.bf16 %v1310, %v1309
          %v1345 = vpack.c.bf16 %v1312, %v1311
          %v1346 = vpack.c.bf16 %v1314, %v1313
          %v1347 = vpack.c.bf16 %v1320, %v1319
          %v1348 = vpack.c.bf16 %v1322, %v1321
          %v1349 = vpack.c.bf16 %v1324, %v1323
          %v1350 = vpack.c.bf16 %v1326, %v1325
          %s1351 = scalar_lea.vmem [#allocation5], 64
          %v1352 = vld [vmem:[%s1351] sm:$0xff]
          %v1353 = vld [vmem:[%s1351 + $0x8] sm:$0xff]
          %v1354 = vld [vmem:[%s1351 + $0x10] sm:$0xff]
          %v1355 = vld [vmem:[%s1351 + $0x18] sm:$0xff]
          %v1356 = vld [vmem:[%s1351 + $0x20] sm:$0xff]
          %v1357 = vld [vmem:[%s1351 + $0x28] sm:$0xff]
          %v1358 = vld [vmem:[%s1351 + $0x30] sm:$0xff]
          %v1359 = vld [vmem:[%s1351 + $0x38] sm:$0xff]
          %1368 = vst [vmem:[#allocation1] ss:$2 sm:$0xff] %v1352
          %s1369 = scalar_lea.vmem [#allocation1], 16
          %1370 = vst [vmem:[%s1369] ss:$2 sm:$0xff] %v1353
          %s1371 = scalar_lea.vmem [#allocation1], 32
          %1372 = vst [vmem:[%s1371] ss:$2 sm:$0xff] %v1354
          %s1373 = scalar_lea.vmem [#allocation1], 48
          %1374 = vst [vmem:[%s1373] ss:$2 sm:$0xff] %v1355
          %v1375 = vld.sshfl [vmem:[#allocation1] sm:$0xff pattern:$0x75316420]
          %v1376 = vld.sshfl [vmem:[#allocation1 + $0x8] sm:$0xff pattern:$0x75316420]
          %v1377 = vld.sshfl [vmem:[#allocation1 + $0x10] sm:$0xff pattern:$0x75316420]
          %v1378 = vld.sshfl [vmem:[#allocation1 + $0x18] sm:$0xff pattern:$0x75316420]
          %v1379 = vld.sshfl [vmem:[#allocation1 + $0x20] sm:$0xff pattern:$0x75316420]
          %v1380 = vld.sshfl [vmem:[#allocation1 + $0x28] sm:$0xff pattern:$0x75316420]
          %v1381 = vld.sshfl [vmem:[#allocation1 + $0x30] sm:$0xff pattern:$0x75316420]
          %v1382 = vld.sshfl [vmem:[#allocation1 + $0x38] sm:$0xff pattern:$0x75316420]
          %1383 = vst [vmem:[#allocation1] ss:$2 sm:$0xff] %v1356
          %1384 = vst [vmem:[%s1369] ss:$2 sm:$0xff] %v1357
          %1385 = vst [vmem:[%s1371] ss:$2 sm:$0xff] %v1358
          %1386 = vst [vmem:[%s1373] ss:$2 sm:$0xff] %v1359
          %v1387 = vld.sshfl [vmem:[#allocation1] sm:$0xff pattern:$0x75316420]
          %v1388 = vld.sshfl [vmem:[#allocation1 + $0x8] sm:$0xff pattern:$0x75316420]
          %v1389 = vld.sshfl [vmem:[#allocation1 + $0x10] sm:$0xff pattern:$0x75316420]
          %v1390 = vld.sshfl [vmem:[#allocation1 + $0x18] sm:$0xff pattern:$0x75316420]
          %v1391 = vld.sshfl [vmem:[#allocation1 + $0x20] sm:$0xff pattern:$0x75316420]
          %v1392 = vld.sshfl [vmem:[#allocation1 + $0x28] sm:$0xff pattern:$0x75316420]
          %v1393 = vld.sshfl [vmem:[#allocation1 + $0x30] sm:$0xff pattern:$0x75316420]
          %v1394 = vld.sshfl [vmem:[#allocation1 + $0x38] sm:$0xff pattern:$0x75316420]
          %v1411 = vsel %vm591, %v1375, 0.0
          %v1412 = vrot.slane %v1411, 4
          %v1413 = vadd.f32 %v1411, %v1412
          %v1414 = vrot.slane %v1413, 2
          %v1415 = vadd.f32 %v1413, %v1414
          %v1416 = vrot.slane %v1415, 1
          %v1417 = vadd.f32 %v1415, %v1416
          %v1418 = vsel %vm591, %v1376, 0.0
          %v1419 = vrot.slane %v1418, 4
          %v1420 = vadd.f32 %v1418, %v1419
          %v1421 = vrot.slane %v1420, 2
          %v1422 = vadd.f32 %v1420, %v1421
          %v1423 = vrot.slane %v1422, 1
          %v1424 = vadd.f32 %v1422, %v1423
          %v1425 = vsel %vm591, %v1377, 0.0
          %v1426 = vrot.slane %v1425, 4
          %v1427 = vadd.f32 %v1425, %v1426
          %v1428 = vrot.slane %v1427, 2
          %v1429 = vadd.f32 %v1427, %v1428
          %v1430 = vrot.slane %v1429, 1
          %v1431 = vadd.f32 %v1429, %v1430
          %v1432 = vsel %vm591, %v1378, 0.0
          %v1433 = vrot.slane %v1432, 4
          %v1434 = vadd.f32 %v1432, %v1433
          %v1435 = vrot.slane %v1434, 2
          %v1436 = vadd.f32 %v1434, %v1435
          %v1437 = vrot.slane %v1436, 1
          %v1438 = vadd.f32 %v1436, %v1437
          %v1439 = vsel %vm591, %v1379, 0.0
          %v1440 = vrot.slane %v1439, 4
          %v1441 = vadd.f32 %v1439, %v1440
          %v1442 = vrot.slane %v1441, 2
          %v1443 = vadd.f32 %v1441, %v1442
          %v1444 = vrot.slane %v1443, 1
          %v1445 = vadd.f32 %v1443, %v1444
          %v1446 = vsel %vm591, %v1380, 0.0
          %v1447 = vrot.slane %v1446, 4
          %v1448 = vadd.f32 %v1446, %v1447
          %v1449 = vrot.slane %v1448, 2
          %v1450 = vadd.f32 %v1448, %v1449
          %v1451 = vrot.slane %v1450, 1
          %v1452 = vadd.f32 %v1450, %v1451
          %v1453 = vsel %vm591, %v1381, 0.0
          %v1454 = vrot.slane %v1453, 4
          %v1455 = vadd.f32 %v1453, %v1454
          %v1456 = vrot.slane %v1455, 2
          %v1457 = vadd.f32 %v1455, %v1456
          %v1458 = vrot.slane %v1457, 1
          %v1459 = vadd.f32 %v1457, %v1458
          %v1460 = vsel %vm591, %v1382, 0.0
          %v1461 = vrot.slane %v1460, 4
          %v1462 = vadd.f32 %v1460, %v1461
          %v1463 = vrot.slane %v1462, 2
          %v1464 = vadd.f32 %v1462, %v1463
          %v1465 = vrot.slane %v1464, 1
          %v1466 = vadd.f32 %v1464, %v1465
          %v1467 = vsel %vm591, %v1387, 0.0
          %v1468 = vrot.slane %v1467, 4
          %v1469 = vadd.f32 %v1467, %v1468
          %v1470 = vrot.slane %v1469, 2
          %v1471 = vadd.f32 %v1469, %v1470
          %v1472 = vrot.slane %v1471, 1
          %v1473 = vadd.f32 %v1471, %v1472
          %v1474 = vsel %vm591, %v1388, 0.0
          %v1475 = vrot.slane %v1474, 4
          %v1476 = vadd.f32 %v1474, %v1475
          %v1477 = vrot.slane %v1476, 2
          %v1478 = vadd.f32 %v1476, %v1477
          %v1479 = vrot.slane %v1478, 1
          %v1480 = vadd.f32 %v1478, %v1479
          %v1481 = vsel %vm591, %v1389, 0.0
          %v1482 = vrot.slane %v1481, 4
          %v1483 = vadd.f32 %v1481, %v1482
          %v1484 = vrot.slane %v1483, 2
          %v1485 = vadd.f32 %v1483, %v1484
          %v1486 = vrot.slane %v1485, 1
          %v1487 = vadd.f32 %v1485, %v1486
          %v1488 = vsel %vm591, %v1390, 0.0
          %v1489 = vrot.slane %v1488, 4
          %v1490 = vadd.f32 %v1488, %v1489
          %v1491 = vrot.slane %v1490, 2
          %v1492 = vadd.f32 %v1490, %v1491
          %v1493 = vrot.slane %v1492, 1
          %v1494 = vadd.f32 %v1492, %v1493
          %v1495 = vsel %vm591, %v1391, 0.0
          %v1496 = vrot.slane %v1495, 4
          %v1497 = vadd.f32 %v1495, %v1496
          %v1498 = vrot.slane %v1497, 2
          %v1499 = vadd.f32 %v1497, %v1498
          %v1500 = vrot.slane %v1499, 1
          %v1501 = vadd.f32 %v1499, %v1500
          %v1502 = vsel %vm591, %v1392, 0.0
          %v1503 = vrot.slane %v1502, 4
          %v1504 = vadd.f32 %v1502, %v1503
          %v1505 = vrot.slane %v1504, 2
          %v1506 = vadd.f32 %v1504, %v1505
          %v1507 = vrot.slane %v1506, 1
          %v1508 = vadd.f32 %v1506, %v1507
          %v1509 = vsel %vm591, %v1393, 0.0
          %v1510 = vrot.slane %v1509, 4
          %v1511 = vadd.f32 %v1509, %v1510
          %v1512 = vrot.slane %v1511, 2
          %v1513 = vadd.f32 %v1511, %v1512
          %v1514 = vrot.slane %v1513, 1
          %v1515 = vadd.f32 %v1513, %v1514
          %v1516 = vsel %vm591, %v1394, 0.0
          %v1517 = vrot.slane %v1516, 4
          %v1518 = vadd.f32 %v1516, %v1517
          %v1519 = vrot.slane %v1518, 2
          %v1520 = vadd.f32 %v1518, %v1519
          %v1521 = vrot.slane %v1520, 1
          %v1522 = vadd.f32 %v1520, %v1521
          %v1523 = vmul.f32 %v1417, %v710
          %v1524 = vmul.f32 %v1424, %v710
          %v1525 = vmul.f32 %v1431, %v710
          %v1526 = vmul.f32 %v1438, %v710
          %v1527 = vmul.f32 %v1445, %v710
          %v1528 = vmul.f32 %v1452, %v710
          %v1529 = vmul.f32 %v1459, %v710
          %v1530 = vmul.f32 %v1466, %v710
          %v1531 = vmul.f32 %v1473, %v710
          %v1532 = vmul.f32 %v1480, %v710
          %v1533 = vmul.f32 %v1487, %v710
          %v1534 = vmul.f32 %v1494, %v710
          %v1535 = vmul.f32 %v1501, %v710
          %v1536 = vmul.f32 %v1508, %v710
          %v1537 = vmul.f32 %v1515, %v710
          %v1538 = vmul.f32 %v1522, %v710
          %v1555 = vrot.slane %v1524, 4
          %v1556 = vrot.slane %v1526, 4
          %v1557 = vrot.slane %v1528, 4
          %v1558 = vrot.slane %v1530, 4
          %v1559 = vrot.slane %v1532, 4
          %v1560 = vrot.slane %v1534, 4
          %v1561 = vrot.slane %v1536, 4
          %v1562 = vrot.slane %v1538, 4
          %v1563 = vsel %vm591, %v1523, %v1555
          %v1564 = vsel %vm591, %v1525, %v1556
          %v1565 = vsel %vm591, %v1527, %v1557
          %v1566 = vsel %vm591, %v1529, %v1558
          %v1567 = vsel %vm591, %v1531, %v1559
          %v1568 = vsel %vm591, %v1533, %v1560
          %v1569 = vsel %vm591, %v1535, %v1561
          %v1570 = vsel %vm591, %v1537, %v1562
          %v1579 = vsub.f32 %v1352, %v1563
          %v1580 = vsub.f32 %v1353, %v1564
          %v1581 = vsub.f32 %v1354, %v1565
          %v1582 = vsub.f32 %v1355, %v1566
          %v1583 = vsub.f32 %v1356, %v1567
          %v1584 = vsub.f32 %v1357, %v1568
          %v1585 = vsub.f32 %v1358, %v1569
          %v1586 = vsub.f32 %v1359, %v1570
          %v1587 = vmul.f32 %v1579, %v1579
          %v1588 = vmul.f32 %v1580, %v1580
          %v1589 = vmul.f32 %v1581, %v1581
          %v1590 = vmul.f32 %v1582, %v1582
          %v1591 = vmul.f32 %v1583, %v1583
          %v1592 = vmul.f32 %v1584, %v1584
          %v1593 = vmul.f32 %v1585, %v1585
          %v1594 = vmul.f32 %v1586, %v1586
          %1603 = vst [vmem:[#allocation1] ss:$2 sm:$0xff] %v1587
          %s1604 = scalar_lea.vmem [#allocation1], 16
          %1605 = vst [vmem:[%s1604] ss:$2 sm:$0xff] %v1588
          %s1606 = scalar_lea.vmem [#allocation1], 32
          %1607 = vst [vmem:[%s1606] ss:$2 sm:$0xff] %v1589
          %s1608 = scalar_lea.vmem [#allocation1], 48
          %1609 = vst [vmem:[%s1608] ss:$2 sm:$0xff] %v1590
          %v1610 = vld.sshfl [vmem:[#allocation1] sm:$0xff pattern:$0x75316420]
          %v1611 = vld.sshfl [vmem:[#allocation1 + $0x8] sm:$0xff pattern:$0x75316420]
          %v1612 = vld.sshfl [vmem:[#allocation1 + $0x10] sm:$0xff pattern:$0x75316420]
          %v1613 = vld.sshfl [vmem:[#allocation1 + $0x18] sm:$0xff pattern:$0x75316420]
          %v1614 = vld.sshfl [vmem:[#allocation1 + $0x20] sm:$0xff pattern:$0x75316420]
          %v1615 = vld.sshfl [vmem:[#allocation1 + $0x28] sm:$0xff pattern:$0x75316420]
          %v1616 = vld.sshfl [vmem:[#allocation1 + $0x30] sm:$0xff pattern:$0x75316420]
          %v1617 = vld.sshfl [vmem:[#allocation1 + $0x38] sm:$0xff pattern:$0x75316420]
          %1618 = vst [vmem:[#allocation1] ss:$2 sm:$0xff] %v1591
          %1619 = vst [vmem:[%s1604] ss:$2 sm:$0xff] %v1592
          %1620 = vst [vmem:[%s1606] ss:$2 sm:$0xff] %v1593
          %1621 = vst [vmem:[%s1608] ss:$2 sm:$0xff] %v1594
          %v1622 = vld.sshfl [vmem:[#allocation1] sm:$0xff pattern:$0x75316420]
          %v1623 = vld.sshfl [vmem:[#allocation1 + $0x8] sm:$0xff pattern:$0x75316420]
          %v1624 = vld.sshfl [vmem:[#allocation1 + $0x10] sm:$0xff pattern:$0x75316420]
          %v1625 = vld.sshfl [vmem:[#allocation1 + $0x18] sm:$0xff pattern:$0x75316420]
          %v1626 = vld.sshfl [vmem:[#allocation1 + $0x20] sm:$0xff pattern:$0x75316420]
          %v1627 = vld.sshfl [vmem:[#allocation1 + $0x28] sm:$0xff pattern:$0x75316420]
          %v1628 = vld.sshfl [vmem:[#allocation1 + $0x30] sm:$0xff pattern:$0x75316420]
          %v1629 = vld.sshfl [vmem:[#allocation1 + $0x38] sm:$0xff pattern:$0x75316420]
          %v1646 = vsel %vm591, %v1610, 0.0
          %v1647 = vrot.slane %v1646, 4
          %v1648 = vadd.f32 %v1646, %v1647
          %v1649 = vrot.slane %v1648, 2
          %v1650 = vadd.f32 %v1648, %v1649
          %v1651 = vrot.slane %v1650, 1
          %v1652 = vadd.f32 %v1650, %v1651
          %v1653 = vsel %vm591, %v1611, 0.0
          %v1654 = vrot.slane %v1653, 4
          %v1655 = vadd.f32 %v1653, %v1654
          %v1656 = vrot.slane %v1655, 2
          %v1657 = vadd.f32 %v1655, %v1656
          %v1658 = vrot.slane %v1657, 1
          %v1659 = vadd.f32 %v1657, %v1658
          %v1660 = vsel %vm591, %v1612, 0.0
          %v1661 = vrot.slane %v1660, 4
          %v1662 = vadd.f32 %v1660, %v1661
          %v1663 = vrot.slane %v1662, 2
          %v1664 = vadd.f32 %v1662, %v1663
          %v1665 = vrot.slane %v1664, 1
          %v1666 = vadd.f32 %v1664, %v1665
          %v1667 = vsel %vm591, %v1613, 0.0
          %v1668 = vrot.slane %v1667, 4
          %v1669 = vadd.f32 %v1667, %v1668
          %v1670 = vrot.slane %v1669, 2
          %v1671 = vadd.f32 %v1669, %v1670
          %v1672 = vrot.slane %v1671, 1
          %v1673 = vadd.f32 %v1671, %v1672
          %v1674 = vsel %vm591, %v1614, 0.0
          %v1675 = vrot.slane %v1674, 4
          %v1676 = vadd.f32 %v1674, %v1675
          %v1677 = vrot.slane %v1676, 2
          %v1678 = vadd.f32 %v1676, %v1677
          %v1679 = vrot.slane %v1678, 1
          %v1680 = vadd.f32 %v1678, %v1679
          %v1681 = vsel %vm591, %v1615, 0.0
          %v1682 = vrot.slane %v1681, 4
          %v1683 = vadd.f32 %v1681, %v1682
          %v1684 = vrot.slane %v1683, 2
          %v1685 = vadd.f32 %v1683, %v1684
          %v1686 = vrot.slane %v1685, 1
          %v1687 = vadd.f32 %v1685, %v1686
          %v1688 = vsel %vm591, %v1616, 0.0
          %v1689 = vrot.slane %v1688, 4
          %v1690 = vadd.f32 %v1688, %v1689
          %v1691 = vrot.slane %v1690, 2
          %v1692 = vadd.f32 %v1690, %v1691
          %v1693 = vrot.slane %v1692, 1
          %v1694 = vadd.f32 %v1692, %v1693
          %v1695 = vsel %vm591, %v1617, 0.0
          %v1696 = vrot.slane %v1695, 4
          %v1697 = vadd.f32 %v1695, %v1696
          %v1698 = vrot.slane %v1697, 2
          %v1699 = vadd.f32 %v1697, %v1698
          %v1700 = vrot.slane %v1699, 1
          %v1701 = vadd.f32 %v1699, %v1700
          %v1702 = vsel %vm591, %v1622, 0.0
          %v1703 = vrot.slane %v1702, 4
          %v1704 = vadd.f32 %v1702, %v1703
          %v1705 = vrot.slane %v1704, 2
          %v1706 = vadd.f32 %v1704, %v1705
          %v1707 = vrot.slane %v1706, 1
          %v1708 = vadd.f32 %v1706, %v1707
          %v1709 = vsel %vm591, %v1623, 0.0
          %v1710 = vrot.slane %v1709, 4
          %v1711 = vadd.f32 %v1709, %v1710
          %v1712 = vrot.slane %v1711, 2
          %v1713 = vadd.f32 %v1711, %v1712
          %v1714 = vrot.slane %v1713, 1
          %v1715 = vadd.f32 %v1713, %v1714
          %v1716 = vsel %vm591, %v1624, 0.0
          %v1717 = vrot.slane %v1716, 4
          %v1718 = vadd.f32 %v1716, %v1717
          %v1719 = vrot.slane %v1718, 2
          %v1720 = vadd.f32 %v1718, %v1719
          %v1721 = vrot.slane %v1720, 1
          %v1722 = vadd.f32 %v1720, %v1721
          %v1723 = vsel %vm591, %v1625, 0.0
          %v1724 = vrot.slane %v1723, 4
          %v1725 = vadd.f32 %v1723, %v1724
          %v1726 = vrot.slane %v1725, 2
          %v1727 = vadd.f32 %v1725, %v1726
          %v1728 = vrot.slane %v1727, 1
          %v1729 = vadd.f32 %v1727, %v1728
          %v1730 = vsel %vm591, %v1626, 0.0
          %v1731 = vrot.slane %v1730, 4
          %v1732 = vadd.f32 %v1730, %v1731
          %v1733 = vrot.slane %v1732, 2
          %v1734 = vadd.f32 %v1732, %v1733
          %v1735 = vrot.slane %v1734, 1
          %v1736 = vadd.f32 %v1734, %v1735
          %v1737 = vsel %vm591, %v1627, 0.0
          %v1738 = vrot.slane %v1737, 4
          %v1739 = vadd.f32 %v1737, %v1738
          %v1740 = vrot.slane %v1739, 2
          %v1741 = vadd.f32 %v1739, %v1740
          %v1742 = vrot.slane %v1741, 1
          %v1743 = vadd.f32 %v1741, %v1742
          %v1744 = vsel %vm591, %v1628, 0.0
          %v1745 = vrot.slane %v1744, 4
          %v1746 = vadd.f32 %v1744, %v1745
          %v1747 = vrot.slane %v1746, 2
          %v1748 = vadd.f32 %v1746, %v1747
          %v1749 = vrot.slane %v1748, 1
          %v1750 = vadd.f32 %v1748, %v1749
          %v1751 = vsel %vm591, %v1629, 0.0
          %v1752 = vrot.slane %v1751, 4
          %v1753 = vadd.f32 %v1751, %v1752
          %v1754 = vrot.slane %v1753, 2
          %v1755 = vadd.f32 %v1753, %v1754
          %v1756 = vrot.slane %v1755, 1
          %v1757 = vadd.f32 %v1755, %v1756
          %v1758 = vmul.f32 %v1652, %v710
          %v1759 = vmul.f32 %v1659, %v710
          %v1760 = vmul.f32 %v1666, %v710
          %v1761 = vmul.f32 %v1673, %v710
          %v1762 = vmul.f32 %v1680, %v710
          %v1763 = vmul.f32 %v1687, %v710
          %v1764 = vmul.f32 %v1694, %v710
          %v1765 = vmul.f32 %v1701, %v710
          %v1766 = vmul.f32 %v1708, %v710
          %v1767 = vmul.f32 %v1715, %v710
          %v1768 = vmul.f32 %v1722, %v710
          %v1769 = vmul.f32 %v1729, %v710
          %v1770 = vmul.f32 %v1736, %v710
          %v1771 = vmul.f32 %v1743, %v710
          %v1772 = vmul.f32 %v1750, %v710
          %v1773 = vmul.f32 %v1757, %v710
          %v1774 = vadd.f32 %v1758, 1e-05
          %v1775 = vadd.f32 %v1759, 1e-05
          %v1776 = vadd.f32 %v1760, 1e-05
          %v1777 = vadd.f32 %v1761, 1e-05
          %v1778 = vadd.f32 %v1762, 1e-05
          %v1779 = vadd.f32 %v1763, 1e-05
          %v1780 = vadd.f32 %v1764, 1e-05
          %v1781 = vadd.f32 %v1765, 1e-05
          %v1782 = vadd.f32 %v1766, 1e-05
          %v1783 = vadd.f32 %v1767, 1e-05
          %v1784 = vadd.f32 %v1768, 1e-05
          %v1785 = vadd.f32 %v1769, 1e-05
          %v1786 = vadd.f32 %v1770, 1e-05
          %v1787 = vadd.f32 %v1771, 1e-05
          %v1788 = vadd.f32 %v1772, 1e-05
          %v1789 = vadd.f32 %v1773, 1e-05
          %v1790 = vrsqrt.pop %v1774
          %v1791 = vmul.f32 %v1790, %v1774
          %v1792 = vmul.f32 %v1791, %v1790
          %v1793 = vmul.f32 0.5, %v1792
          %v1794 = vsub.f32 1.5, %v1793
          %v1795 = vmul.f32 %v1790, %v1794
          %vm1796 = vweird.f32 %v1774
          %vm1797 = vweird.f32 %v1790
          %vm1798 = vmor %vm1796, %vm1797
          %v1799 = vsel %vm1798, %v1790, %v1795
          %v1800 = vrsqrt.pop %v1775
          %v1801 = vmul.f32 %v1800, %v1775
          %v1802 = vmul.f32 %v1801, %v1800
          %v1803 = vmul.f32 0.5, %v1802
          %v1804 = vsub.f32 1.5, %v1803
          %v1805 = vmul.f32 %v1800, %v1804
          %vm1806 = vweird.f32 %v1775
          %vm1807 = vweird.f32 %v1800
          %vm1808 = vmor %vm1806, %vm1807
          %v1809 = vsel %vm1808, %v1800, %v1805
          %v1810 = vrsqrt.pop %v1776
          %v1811 = vmul.f32 %v1810, %v1776
          %v1812 = vmul.f32 %v1811, %v1810
          %v1813 = vmul.f32 0.5, %v1812
          %v1814 = vsub.f32 1.5, %v1813
          %v1815 = vmul.f32 %v1810, %v1814
          %vm1816 = vweird.f32 %v1776
          %vm1817 = vweird.f32 %v1810
          %vm1818 = vmor %vm1816, %vm1817
          %v1819 = vsel %vm1818, %v1810, %v1815
          %v1820 = vrsqrt.pop %v1777
          %v1821 = vmul.f32 %v1820, %v1777
          %v1822 = vmul.f32 %v1821, %v1820
          %v1823 = vmul.f32 0.5, %v1822
          %v1824 = vsub.f32 1.5, %v1823
          %v1825 = vmul.f32 %v1820, %v1824
          %vm1826 = vweird.f32 %v1777
          %vm1827 = vweird.f32 %v1820
          %vm1828 = vmor %vm1826, %vm1827
          %v1829 = vsel %vm1828, %v1820, %v1825
          %v1830 = vrsqrt.pop %v1778
          %v1831 = vmul.f32 %v1830, %v1778
          %v1832 = vmul.f32 %v1831, %v1830
          %v1833 = vmul.f32 0.5, %v1832
          %v1834 = vsub.f32 1.5, %v1833
          %v1835 = vmul.f32 %v1830, %v1834
          %vm1836 = vweird.f32 %v1778
          %vm1837 = vweird.f32 %v1830
          %vm1838 = vmor %vm1836, %vm1837
          %v1839 = vsel %vm1838, %v1830, %v1835
          %v1840 = vrsqrt.pop %v1779
          %v1841 = vmul.f32 %v1840, %v1779
          %v1842 = vmul.f32 %v1841, %v1840
          %v1843 = vmul.f32 0.5, %v1842
          %v1844 = vsub.f32 1.5, %v1843
          %v1845 = vmul.f32 %v1840, %v1844
          %vm1846 = vweird.f32 %v1779
          %vm1847 = vweird.f32 %v1840
          %vm1848 = vmor %vm1846, %vm1847
          %v1849 = vsel %vm1848, %v1840, %v1845
          %v1850 = vrsqrt.pop %v1780
          %v1851 = vmul.f32 %v1850, %v1780
          %v1852 = vmul.f32 %v1851, %v1850
          %v1853 = vmul.f32 0.5, %v1852
          %v1854 = vsub.f32 1.5, %v1853
          %v1855 = vmul.f32 %v1850, %v1854
          %vm1856 = vweird.f32 %v1780
          %vm1857 = vweird.f32 %v1850
          %vm1858 = vmor %vm1856, %vm1857
          %v1859 = vsel %vm1858, %v1850, %v1855
          %v1860 = vrsqrt.pop %v1781
          %v1861 = vmul.f32 %v1860, %v1781
          %v1862 = vmul.f32 %v1861, %v1860
          %v1863 = vmul.f32 0.5, %v1862
          %v1864 = vsub.f32 1.5, %v1863
          %v1865 = vmul.f32 %v1860, %v1864
          %vm1866 = vweird.f32 %v1781
          %vm1867 = vweird.f32 %v1860
          %vm1868 = vmor %vm1866, %vm1867
          %v1869 = vsel %vm1868, %v1860, %v1865
          %v1870 = vrsqrt.pop %v1782
          %v1871 = vmul.f32 %v1870, %v1782
          %v1872 = vmul.f32 %v1871, %v1870
          %v1873 = vmul.f32 0.5, %v1872
          %v1874 = vsub.f32 1.5, %v1873
          %v1875 = vmul.f32 %v1870, %v1874
          %vm1876 = vweird.f32 %v1782
          %vm1877 = vweird.f32 %v1870
          %vm1878 = vmor %vm1876, %vm1877
          %v1879 = vsel %vm1878, %v1870, %v1875
          %v1880 = vrsqrt.pop %v1783
          %v1881 = vmul.f32 %v1880, %v1783
          %v1882 = vmul.f32 %v1881, %v1880
          %v1883 = vmul.f32 0.5, %v1882
          %v1884 = vsub.f32 1.5, %v1883
          %v1885 = vmul.f32 %v1880, %v1884
          %vm1886 = vweird.f32 %v1783
          %vm1887 = vweird.f32 %v1880
          %vm1888 = vmor %vm1886, %vm1887
          %v1889 = vsel %vm1888, %v1880, %v1885
          %v1890 = vrsqrt.pop %v1784
          %v1891 = vmul.f32 %v1890, %v1784
          %v1892 = vmul.f32 %v1891, %v1890
          %v1893 = vmul.f32 0.5, %v1892
          %v1894 = vsub.f32 1.5, %v1893
          %v1895 = vmul.f32 %v1890, %v1894
          %vm1896 = vweird.f32 %v1784
          %vm1897 = vweird.f32 %v1890
          %vm1898 = vmor %vm1896, %vm1897
          %v1899 = vsel %vm1898, %v1890, %v1895
          %v1900 = vrsqrt.pop %v1785
          %v1901 = vmul.f32 %v1900, %v1785
          %v1902 = vmul.f32 %v1901, %v1900
          %v1903 = vmul.f32 0.5, %v1902
          %v1904 = vsub.f32 1.5, %v1903
          %v1905 = vmul.f32 %v1900, %v1904
          %vm1906 = vweird.f32 %v1785
          %vm1907 = vweird.f32 %v1900
          %vm1908 = vmor %vm1906, %vm1907
          %v1909 = vsel %vm1908, %v1900, %v1905
          %v1910 = vrsqrt.pop %v1786
          %v1911 = vmul.f32 %v1910, %v1786
          %v1912 = vmul.f32 %v1911, %v1910
          %v1913 = vmul.f32 0.5, %v1912
          %v1914 = vsub.f32 1.5, %v1913
          %v1915 = vmul.f32 %v1910, %v1914
          %vm1916 = vweird.f32 %v1786
          %vm1917 = vweird.f32 %v1910
          %vm1918 = vmor %vm1916, %vm1917
          %v1919 = vsel %vm1918, %v1910, %v1915
          %v1920 = vrsqrt.pop %v1787
          %v1921 = vmul.f32 %v1920, %v1787
          %v1922 = vmul.f32 %v1921, %v1920
          %v1923 = vmul.f32 0.5, %v1922
          %v1924 = vsub.f32 1.5, %v1923
          %v1925 = vmul.f32 %v1920, %v1924
          %vm1926 = vweird.f32 %v1787
          %vm1927 = vweird.f32 %v1920
          %vm1928 = vmor %vm1926, %vm1927
          %v1929 = vsel %vm1928, %v1920, %v1925
          %v1930 = vrsqrt.pop %v1788
          %v1931 = vmul.f32 %v1930, %v1788
          %v1932 = vmul.f32 %v1931, %v1930
          %v1933 = vmul.f32 0.5, %v1932
          %v1934 = vsub.f32 1.5, %v1933
          %v1935 = vmul.f32 %v1930, %v1934
          %vm1936 = vweird.f32 %v1788
          %vm1937 = vweird.f32 %v1930
          %vm1938 = vmor %vm1936, %vm1937
          %v1939 = vsel %vm1938, %v1930, %v1935
          %v1940 = vrsqrt.pop %v1789
          %v1941 = vmul.f32 %v1940, %v1789
          %v1942 = vmul.f32 %v1941, %v1940
          %v1943 = vmul.f32 0.5, %v1942
          %v1944 = vsub.f32 1.5, %v1943
          %v1945 = vmul.f32 %v1940, %v1944
          %vm1946 = vweird.f32 %v1789
          %vm1947 = vweird.f32 %v1940
          %vm1948 = vmor %vm1946, %vm1947
          %v1949 = vsel %vm1948, %v1940, %v1945
          %v1966 = vrot.slane %v1809, 4
          %v1967 = vrot.slane %v1829, 4
          %v1968 = vrot.slane %v1849, 4
          %v1969 = vrot.slane %v1869, 4
          %v1970 = vrot.slane %v1889, 4
          %v1971 = vrot.slane %v1909, 4
          %v1972 = vrot.slane %v1929, 4
          %v1973 = vrot.slane %v1949, 4
          %v1974 = vsel %vm591, %v1799, %v1966
          %v1975 = vsel %vm591, %v1819, %v1967
          %v1976 = vsel %vm591, %v1839, %v1968
          %v1977 = vsel %vm591, %v1859, %v1969
          %v1978 = vsel %vm591, %v1879, %v1970
          %v1979 = vsel %vm591, %v1899, %v1971
          %v1980 = vsel %vm591, %v1919, %v1972
          %v1981 = vsel %vm591, %v1939, %v1973
          %v1990 = vmul.f32 %v1579, %v1974
          %v1991 = vmul.f32 %v1580, %v1975
          %v1992 = vmul.f32 %v1581, %v1976
          %v1993 = vmul.f32 %v1582, %v1977
          %v1994 = vmul.f32 %v1583, %v1978
          %v1995 = vmul.f32 %v1584, %v1979
          %v1996 = vmul.f32 %v1585, %v1980
          %v1997 = vmul.f32 %v1586, %v1981
          %s1998 = scalar_lea.vmem [#allocation8], 1
          %v1999 = vld [vmem:[%s1998] ss:$4 sm:$0xff]
          %s2000 = scalar_lea.vmem [#allocation8], 33
          %v2001 = vld [vmem:[%s2000] ss:$4 sm:$0xff]
          %v2004 = vperm.slane %v1999, 0
          %v2005 = vperm.slane %v1999, 1
          %v2006 = vperm.slane %v1999, 2
          %v2007 = vperm.slane %v1999, 3
          %v2008 = vperm.slane %v1999, 4
          %v2009 = vperm.slane %v1999, 5
          %v2010 = vperm.slane %v1999, 6
          %v2011 = vperm.slane %v1999, 7
          %v2012 = vperm.slane %v2001, 0
          %v2013 = vperm.slane %v2001, 1
          %v2014 = vperm.slane %v2001, 2
          %v2015 = vperm.slane %v2001, 3
          %v2016 = vperm.slane %v2001, 4
          %v2017 = vperm.slane %v2001, 5
          %v2018 = vperm.slane %v2001, 6
          %v2019 = vperm.slane %v2001, 7
          %v2020 = vrot.slane %v2005, 4
          %v2021 = vrot.slane %v2007, 4
          %v2022 = vrot.slane %v2009, 4
          %v2023 = vrot.slane %v2011, 4
          %v2024 = vrot.slane %v2013, 4
          %v2025 = vrot.slane %v2015, 4
          %v2026 = vrot.slane %v2017, 4
          %v2027 = vrot.slane %v2019, 4
          %v2028 = vsel %vm591, %v2004, %v2020
          %v2029 = vsel %vm591, %v2006, %v2021
          %v2030 = vsel %vm591, %v2008, %v2022
          %v2031 = vsel %vm591, %v2010, %v2023
          %v2032 = vsel %vm591, %v2012, %v2024
          %v2033 = vsel %vm591, %v2014, %v2025
          %v2034 = vsel %vm591, %v2016, %v2026
          %v2035 = vsel %vm591, %v2018, %v2027
          %v2044 = vmul.f32 %v1990, %v2028
          %v2045 = vmul.f32 %v1991, %v2029
          %v2046 = vmul.f32 %v1992, %v2030
          %v2047 = vmul.f32 %v1993, %v2031
          %v2048 = vmul.f32 %v1994, %v2032
          %v2049 = vmul.f32 %v1995, %v2033
          %v2050 = vmul.f32 %v1996, %v2034
          %v2051 = vmul.f32 %v1997, %v2035
          %s2052 = scalar_lea.vmem [#allocation10], 1
          %v2053 = vld [vmem:[%s2052] ss:$4 sm:$0xff]
          %s2054 = scalar_lea.vmem [#allocation10], 33
          %v2055 = vld [vmem:[%s2054] ss:$4 sm:$0xff]
          %v2058 = vperm.slane %v2053, 0
          %v2059 = vperm.slane %v2053, 1
          %v2060 = vperm.slane %v2053, 2
          %v2061 = vperm.slane %v2053, 3
          %v2062 = vperm.slane %v2053, 4
          %v2063 = vperm.slane %v2053, 5
          %v2064 = vperm.slane %v2053, 6
          %v2065 = vperm.slane %v2053, 7
          %v2066 = vperm.slane %v2055, 0
          %v2067 = vperm.slane %v2055, 1
          %v2068 = vperm.slane %v2055, 2
          %v2069 = vperm.slane %v2055, 3
          %v2070 = vperm.slane %v2055, 4
          %v2071 = vperm.slane %v2055, 5
          %v2072 = vperm.slane %v2055, 6
          %v2073 = vperm.slane %v2055, 7
          %v2074 = vrot.slane %v2059, 4
          %v2075 = vrot.slane %v2061, 4
          %v2076 = vrot.slane %v2063, 4
          %v2077 = vrot.slane %v2065, 4
          %v2078 = vrot.slane %v2067, 4
          %v2079 = vrot.slane %v2069, 4
          %v2080 = vrot.slane %v2071, 4
          %v2081 = vrot.slane %v2073, 4
          %v2082 = vsel %vm591, %v2058, %v2074
          %v2083 = vsel %vm591, %v2060, %v2075
          %v2084 = vsel %vm591, %v2062, %v2076
          %v2085 = vsel %vm591, %v2064, %v2077
          %v2086 = vsel %vm591, %v2066, %v2078
          %v2087 = vsel %vm591, %v2068, %v2079
          %v2088 = vsel %vm591, %v2070, %v2080
          %v2089 = vsel %vm591, %v2072, %v2081
          %v2098 = vadd.f32 %v2044, %v2082
          %v2099 = vadd.f32 %v2045, %v2083
          %v2100 = vadd.f32 %v2046, %v2084
          %v2101 = vadd.f32 %v2047, %v2085
          %v2102 = vadd.f32 %v2048, %v2086
          %v2103 = vadd.f32 %v2049, %v2087
          %v2104 = vadd.f32 %v2050, %v2088
          %v2105 = vadd.f32 %v2051, %v2089
          %2114 = vst [vmem:[#allocation1] ss:$2 sm:$0xff] %v2098
          %s2115 = scalar_lea.vmem [#allocation1], 16
          %2116 = vst [vmem:[%s2115] ss:$2 sm:$0xff] %v2099
          %s2117 = scalar_lea.vmem [#allocation1], 32
          %2118 = vst [vmem:[%s2117] ss:$2 sm:$0xff] %v2100
          %s2119 = scalar_lea.vmem [#allocation1], 48
          %2120 = vst [vmem:[%s2119] ss:$2 sm:$0xff] %v2101
          %v2121 = vld.sshfl [vmem:[#allocation1] sm:$0xff pattern:$0x75316420]
          %v2122 = vld.sshfl [vmem:[#allocation1 + $0x8] sm:$0xff pattern:$0x75316420]
          %v2123 = vld.sshfl [vmem:[#allocation1 + $0x10] sm:$0xff pattern:$0x75316420]
          %v2124 = vld.sshfl [vmem:[#allocation1 + $0x18] sm:$0xff pattern:$0x75316420]
          %v2125 = vld.sshfl [vmem:[#allocation1 + $0x20] sm:$0xff pattern:$0x75316420]
          %v2126 = vld.sshfl [vmem:[#allocation1 + $0x28] sm:$0xff pattern:$0x75316420]
          %v2127 = vld.sshfl [vmem:[#allocation1 + $0x30] sm:$0xff pattern:$0x75316420]
          %v2128 = vld.sshfl [vmem:[#allocation1 + $0x38] sm:$0xff pattern:$0x75316420]
          %2129 = vst [vmem:[#allocation1] ss:$2 sm:$0xff] %v2102
          %2130 = vst [vmem:[%s2115] ss:$2 sm:$0xff] %v2103
          %2131 = vst [vmem:[%s2117] ss:$2 sm:$0xff] %v2104
          %2132 = vst [vmem:[%s2119] ss:$2 sm:$0xff] %v2105
          %v2133 = vld.sshfl [vmem:[#allocation1] sm:$0xff pattern:$0x75316420]
          %v2134 = vld.sshfl [vmem:[#allocation1 + $0x8] sm:$0xff pattern:$0x75316420]
          %v2135 = vld.sshfl [vmem:[#allocation1 + $0x10] sm:$0xff pattern:$0x75316420]
          %v2136 = vld.sshfl [vmem:[#allocation1 + $0x18] sm:$0xff pattern:$0x75316420]
          %v2137 = vld.sshfl [vmem:[#allocation1 + $0x20] sm:$0xff pattern:$0x75316420]
          %v2138 = vld.sshfl [vmem:[#allocation1 + $0x28] sm:$0xff pattern:$0x75316420]
          %v2139 = vld.sshfl [vmem:[#allocation1 + $0x30] sm:$0xff pattern:$0x75316420]
          %v2140 = vld.sshfl [vmem:[#allocation1 + $0x38] sm:$0xff pattern:$0x75316420]
          %v2157 = vpack.c.bf16 %v2122, %v2121
          %v2158 = vpack.c.bf16 %v2124, %v2123
          %v2159 = vpack.c.bf16 %v2126, %v2125
          %v2160 = vpack.c.bf16 %v2128, %v2127
          %v2161 = vpack.c.bf16 %v2134, %v2133
          %v2162 = vpack.c.bf16 %v2136, %v2135
          %v2163 = vpack.c.bf16 %v2138, %v2137
          %v2164 = vpack.c.bf16 %v2140, %v2139
          %s2165 = scalar_lea.vmem [#allocation5], 128
          %v2166 = vld [vmem:[%s2165] sm:$0xff]
          %v2167 = vld [vmem:[%s2165 + $0x8] sm:$0xff]
          %v2168 = vld [vmem:[%s2165 + $0x10] sm:$0xff]
          %v2169 = vld [vmem:[%s2165 + $0x18] sm:$0xff]
          %v2170 = vld [vmem:[%s2165 + $0x20] sm:$0xff]
          %v2171 = vld [vmem:[%s2165 + $0x28] sm:$0xff]
          %v2172 = vld [vmem:[%s2165 + $0x30] sm:$0xff]
          %v2173 = vld [vmem:[%s2165 + $0x38] sm:$0xff]
          %2182 = vst [vmem:[#allocation1] ss:$2 sm:$0xff] %v2166
          %s2183 = scalar_lea.vmem [#allocation1], 16
          %2184 = vst [vmem:[%s2183] ss:$2 sm:$0xff] %v2167
          %s2185 = scalar_lea.vmem [#allocation1], 32
          %2186 = vst [vmem:[%s2185] ss:$2 sm:$0xff] %v2168
          %s2187 = scalar_lea.vmem [#allocation1], 48
          %2188 = vst [vmem:[%s2187] ss:$2 sm:$0xff] %v2169
          %v2189 = vld.sshfl [vmem:[#allocation1] sm:$0xff pattern:$0x75316420]
          %v2190 = vld.sshfl [vmem:[#allocation1 + $0x8] sm:$0xff pattern:$0x75316420]
          %v2191 = vld.sshfl [vmem:[#allocation1 + $0x10] sm:$0xff pattern:$0x75316420]
          %v2192 = vld.sshfl [vmem:[#allocation1 + $0x18] sm:$0xff pattern:$0x75316420]
          %v2193 = vld.sshfl [vmem:[#allocation1 + $0x20] sm:$0xff pattern:$0x75316420]
          %v2194 = vld.sshfl [vmem:[#allocation1 + $0x28] sm:$0xff pattern:$0x75316420]
          %v2195 = vld.sshfl [vmem:[#allocation1 + $0x30] sm:$0xff pattern:$0x75316420]
          %v2196 = vld.sshfl [vmem:[#allocation1 + $0x38] sm:$0xff pattern:$0x75316420]
          %2197 = vst [vmem:[#allocation1] ss:$2 sm:$0xff] %v2170
          %2198 = vst [vmem:[%s2183] ss:$2 sm:$0xff] %v2171
          %2199 = vst [vmem:[%s2185] ss:$2 sm:$0xff] %v2172
          %2200 = vst [vmem:[%s2187] ss:$2 sm:$0xff] %v2173
          %v2201 = vld.sshfl [vmem:[#allocation1] sm:$0xff pattern:$0x75316420]
          %v2202 = vld.sshfl [vmem:[#allocation1 + $0x8] sm:$0xff pattern:$0x75316420]
          %v2203 = vld.sshfl [vmem:[#allocation1 + $0x10] sm:$0xff pattern:$0x75316420]
          %v2204 = vld.sshfl [vmem:[#allocation1 + $0x18] sm:$0xff pattern:$0x75316420]
          %v2205 = vld.sshfl [vmem:[#allocation1 + $0x20] sm:$0xff pattern:$0x75316420]
          %v2206 = vld.sshfl [vmem:[#allocation1 + $0x28] sm:$0xff pattern:$0x75316420]
          %v2207 = vld.sshfl [vmem:[#allocation1 + $0x30] sm:$0xff pattern:$0x75316420]
          %v2208 = vld.sshfl [vmem:[#allocation1 + $0x38] sm:$0xff pattern:$0x75316420]
          %v2225 = vsel %vm591, %v2189, 0.0
          %v2226 = vrot.slane %v2225, 4
          %v2227 = vadd.f32 %v2225, %v2226
          %v2228 = vrot.slane %v2227, 2
          %v2229 = vadd.f32 %v2227, %v2228
          %v2230 = vrot.slane %v2229, 1
          %v2231 = vadd.f32 %v2229, %v2230
          %v2232 = vsel %vm591, %v2190, 0.0
          %v2233 = vrot.slane %v2232, 4
          %v2234 = vadd.f32 %v2232, %v2233
          %v2235 = vrot.slane %v2234, 2
          %v2236 = vadd.f32 %v2234, %v2235
          %v2237 = vrot.slane %v2236, 1
          %v2238 = vadd.f32 %v2236, %v2237
          %v2239 = vsel %vm591, %v2191, 0.0
          %v2240 = vrot.slane %v2239, 4
          %v2241 = vadd.f32 %v2239, %v2240
          %v2242 = vrot.slane %v2241, 2
          %v2243 = vadd.f32 %v2241, %v2242
          %v2244 = vrot.slane %v2243, 1
          %v2245 = vadd.f32 %v2243, %v2244
          %v2246 = vsel %vm591, %v2192, 0.0
          %v2247 = vrot.slane %v2246, 4
          %v2248 = vadd.f32 %v2246, %v2247
          %v2249 = vrot.slane %v2248, 2
          %v2250 = vadd.f32 %v2248, %v2249
          %v2251 = vrot.slane %v2250, 1
          %v2252 = vadd.f32 %v2250, %v2251
          %v2253 = vsel %vm591, %v2193, 0.0
          %v2254 = vrot.slane %v2253, 4
          %v2255 = vadd.f32 %v2253, %v2254
          %v2256 = vrot.slane %v2255, 2
          %v2257 = vadd.f32 %v2255, %v2256
          %v2258 = vrot.slane %v2257, 1
          %v2259 = vadd.f32 %v2257, %v2258
          %v2260 = vsel %vm591, %v2194, 0.0
          %v2261 = vrot.slane %v2260, 4
          %v2262 = vadd.f32 %v2260, %v2261
          %v2263 = vrot.slane %v2262, 2
          %v2264 = vadd.f32 %v2262, %v2263
          %v2265 = vrot.slane %v2264, 1
          %v2266 = vadd.f32 %v2264, %v2265
          %v2267 = vsel %vm591, %v2195, 0.0
          %v2268 = vrot.slane %v2267, 4
          %v2269 = vadd.f32 %v2267, %v2268
          %v2270 = vrot.slane %v2269, 2
          %v2271 = vadd.f32 %v2269, %v2270
          %v2272 = vrot.slane %v2271, 1
          %v2273 = vadd.f32 %v2271, %v2272
          %v2274 = vsel %vm591, %v2196, 0.0
          %v2275 = vrot.slane %v2274, 4
          %v2276 = vadd.f32 %v2274, %v2275
          %v2277 = vrot.slane %v2276, 2
          %v2278 = vadd.f32 %v2276, %v2277
          %v2279 = vrot.slane %v2278, 1
          %v2280 = vadd.f32 %v2278, %v2279
          %v2281 = vsel %vm591, %v2201, 0.0
          %v2282 = vrot.slane %v2281, 4
          %v2283 = vadd.f32 %v2281, %v2282
          %v2284 = vrot.slane %v2283, 2
          %v2285 = vadd.f32 %v2283, %v2284
          %v2286 = vrot.slane %v2285, 1
          %v2287 = vadd.f32 %v2285, %v2286
          %v2288 = vsel %vm591, %v2202, 0.0
          %v2289 = vrot.slane %v2288, 4
          %v2290 = vadd.f32 %v2288, %v2289
          %v2291 = vrot.slane %v2290, 2
          %v2292 = vadd.f32 %v2290, %v2291
          %v2293 = vrot.slane %v2292, 1
          %v2294 = vadd.f32 %v2292, %v2293
          %v2295 = vsel %vm591, %v2203, 0.0
          %v2296 = vrot.slane %v2295, 4
          %v2297 = vadd.f32 %v2295, %v2296
          %v2298 = vrot.slane %v2297, 2
          %v2299 = vadd.f32 %v2297, %v2298
          %v2300 = vrot.slane %v2299, 1
          %v2301 = vadd.f32 %v2299, %v2300
          %v2302 = vsel %vm591, %v2204, 0.0
          %v2303 = vrot.slane %v2302, 4
          %v2304 = vadd.f32 %v2302, %v2303
          %v2305 = vrot.slane %v2304, 2
          %v2306 = vadd.f32 %v2304, %v2305
          %v2307 = vrot.slane %v2306, 1
          %v2308 = vadd.f32 %v2306, %v2307
          %v2309 = vsel %vm591, %v2205, 0.0
          %v2310 = vrot.slane %v2309, 4
          %v2311 = vadd.f32 %v2309, %v2310
          %v2312 = vrot.slane %v2311, 2
          %v2313 = vadd.f32 %v2311, %v2312
          %v2314 = vrot.slane %v2313, 1
          %v2315 = vadd.f32 %v2313, %v2314
          %v2316 = vsel %vm591, %v2206, 0.0
          %v2317 = vrot.slane %v2316, 4
          %v2318 = vadd.f32 %v2316, %v2317
          %v2319 = vrot.slane %v2318, 2
          %v2320 = vadd.f32 %v2318, %v2319
          %v2321 = vrot.slane %v2320, 1
          %v2322 = vadd.f32 %v2320, %v2321
          %v2323 = vsel %vm591, %v2207, 0.0
          %v2324 = vrot.slane %v2323, 4
          %v2325 = vadd.f32 %v2323, %v2324
          %v2326 = vrot.slane %v2325, 2
          %v2327 = vadd.f32 %v2325, %v2326
          %v2328 = vrot.slane %v2327, 1
          %v2329 = vadd.f32 %v2327, %v2328
          %v2330 = vsel %vm591, %v2208, 0.0
          %v2331 = vrot.slane %v2330, 4
          %v2332 = vadd.f32 %v2330, %v2331
          %v2333 = vrot.slane %v2332, 2
          %v2334 = vadd.f32 %v2332, %v2333
          %v2335 = vrot.slane %v2334, 1
          %v2336 = vadd.f32 %v2334, %v2335
          %v2337 = vmul.f32 %v2231, %v710
          %v2338 = vmul.f32 %v2238, %v710
          %v2339 = vmul.f32 %v2245, %v710
          %v2340 = vmul.f32 %v2252, %v710
          %v2341 = vmul.f32 %v2259, %v710
          %v2342 = vmul.f32 %v2266, %v710
          %v2343 = vmul.f32 %v2273, %v710
          %v2344 = vmul.f32 %v2280, %v710
          %v2345 = vmul.f32 %v2287, %v710
          %v2346 = vmul.f32 %v2294, %v710
          %v2347 = vmul.f32 %v2301, %v710
          %v2348 = vmul.f32 %v2308, %v710
          %v2349 = vmul.f32 %v2315, %v710
          %v2350 = vmul.f32 %v2322, %v710
          %v2351 = vmul.f32 %v2329, %v710
          %v2352 = vmul.f32 %v2336, %v710
          %v2369 = vrot.slane %v2338, 4
          %v2370 = vrot.slane %v2340, 4
          %v2371 = vrot.slane %v2342, 4
          %v2372 = vrot.slane %v2344, 4
          %v2373 = vrot.slane %v2346, 4
          %v2374 = vrot.slane %v2348, 4
          %v2375 = vrot.slane %v2350, 4
          %v2376 = vrot.slane %v2352, 4
          %v2377 = vsel %vm591, %v2337, %v2369
          %v2378 = vsel %vm591, %v2339, %v2370
          %v2379 = vsel %vm591, %v2341, %v2371
          %v2380 = vsel %vm591, %v2343, %v2372
          %v2381 = vsel %vm591, %v2345, %v2373
          %v2382 = vsel %vm591, %v2347, %v2374
          %v2383 = vsel %vm591, %v2349, %v2375
          %v2384 = vsel %vm591, %v2351, %v2376
          %v2393 = vsub.f32 %v2166, %v2377
          %v2394 = vsub.f32 %v2167, %v2378
          %v2395 = vsub.f32 %v2168, %v2379
          %v2396 = vsub.f32 %v2169, %v2380
          %v2397 = vsub.f32 %v2170, %v2381
          %v2398 = vsub.f32 %v2171, %v2382
          %v2399 = vsub.f32 %v2172, %v2383
          %v2400 = vsub.f32 %v2173, %v2384
          %v2401 = vmul.f32 %v2393, %v2393
          %v2402 = vmul.f32 %v2394, %v2394
          %v2403 = vmul.f32 %v2395, %v2395
          %v2404 = vmul.f32 %v2396, %v2396
          %v2405 = vmul.f32 %v2397, %v2397
          %v2406 = vmul.f32 %v2398, %v2398
          %v2407 = vmul.f32 %v2399, %v2399
          %v2408 = vmul.f32 %v2400, %v2400
          %2417 = vst [vmem:[#allocation1] ss:$2 sm:$0xff] %v2401
          %s2418 = scalar_lea.vmem [#allocation1], 16
          %2419 = vst [vmem:[%s2418] ss:$2 sm:$0xff] %v2402
          %s2420 = scalar_lea.vmem [#allocation1], 32
          %2421 = vst [vmem:[%s2420] ss:$2 sm:$0xff] %v2403
          %s2422 = scalar_lea.vmem [#allocation1], 48
          %2423 = vst [vmem:[%s2422] ss:$2 sm:$0xff] %v2404
          %v2424 = vld.sshfl [vmem:[#allocation1] sm:$0xff pattern:$0x75316420]
          %v2425 = vld.sshfl [vmem:[#allocation1 + $0x8] sm:$0xff pattern:$0x75316420]
          %v2426 = vld.sshfl [vmem:[#allocation1 + $0x10] sm:$0xff pattern:$0x75316420]
          %v2427 = vld.sshfl [vmem:[#allocation1 + $0x18] sm:$0xff pattern:$0x75316420]
          %v2428 = vld.sshfl [vmem:[#allocation1 + $0x20] sm:$0xff pattern:$0x75316420]
          %v2429 = vld.sshfl [vmem:[#allocation1 + $0x28] sm:$0xff pattern:$0x75316420]
          %v2430 = vld.sshfl [vmem:[#allocation1 + $0x30] sm:$0xff pattern:$0x75316420]
          %v2431 = vld.sshfl [vmem:[#allocation1 + $0x38] sm:$0xff pattern:$0x75316420]
          %2432 = vst [vmem:[#allocation1] ss:$2 sm:$0xff] %v2405
          %2433 = vst [vmem:[%s2418] ss:$2 sm:$0xff] %v2406
          %2434 = vst [vmem:[%s2420] ss:$2 sm:$0xff] %v2407
          %2435 = vst [vmem:[%s2422] ss:$2 sm:$0xff] %v2408
          %v2436 = vld.sshfl [vmem:[#allocation1] sm:$0xff pattern:$0x75316420]
          %v2437 = vld.sshfl [vmem:[#allocation1 + $0x8] sm:$0xff pattern:$0x75316420]
          %v2438 = vld.sshfl [vmem:[#allocation1 + $0x10] sm:$0xff pattern:$0x75316420]
          %v2439 = vld.sshfl [vmem:[#allocation1 + $0x18] sm:$0xff pattern:$0x75316420]
          %v2440 = vld.sshfl [vmem:[#allocation1 + $0x20] sm:$0xff pattern:$0x75316420]
          %v2441 = vld.sshfl [vmem:[#allocation1 + $0x28] sm:$0xff pattern:$0x75316420]
          %v2442 = vld.sshfl [vmem:[#allocation1 + $0x30] sm:$0xff pattern:$0x75316420]
          %v2443 = vld.sshfl [vmem:[#allocation1 + $0x38] sm:$0xff pattern:$0x75316420]
          %v2460 = vsel %vm591, %v2424, 0.0
          %v2461 = vrot.slane %v2460, 4
          %v2462 = vadd.f32 %v2460, %v2461
          %v2463 = vrot.slane %v2462, 2
          %v2464 = vadd.f32 %v2462, %v2463
          %v2465 = vrot.slane %v2464, 1
          %v2466 = vadd.f32 %v2464, %v2465
          %v2467 = vsel %vm591, %v2425, 0.0
          %v2468 = vrot.slane %v2467, 4
          %v2469 = vadd.f32 %v2467, %v2468
          %v2470 = vrot.slane %v2469, 2
          %v2471 = vadd.f32 %v2469, %v2470
          %v2472 = vrot.slane %v2471, 1
          %v2473 = vadd.f32 %v2471, %v2472
          %v2474 = vsel %vm591, %v2426, 0.0
          %v2475 = vrot.slane %v2474, 4
          %v2476 = vadd.f32 %v2474, %v2475
          %v2477 = vrot.slane %v2476, 2
          %v2478 = vadd.f32 %v2476, %v2477
          %v2479 = vrot.slane %v2478, 1
          %v2480 = vadd.f32 %v2478, %v2479
          %v2481 = vsel %vm591, %v2427, 0.0
          %v2482 = vrot.slane %v2481, 4
          %v2483 = vadd.f32 %v2481, %v2482
          %v2484 = vrot.slane %v2483, 2
          %v2485 = vadd.f32 %v2483, %v2484
          %v2486 = vrot.slane %v2485, 1
          %v2487 = vadd.f32 %v2485, %v2486
          %v2488 = vsel %vm591, %v2428, 0.0
          %v2489 = vrot.slane %v2488, 4
          %v2490 = vadd.f32 %v2488, %v2489
          %v2491 = vrot.slane %v2490, 2
          %v2492 = vadd.f32 %v2490, %v2491
          %v2493 = vrot.slane %v2492, 1
          %v2494 = vadd.f32 %v2492, %v2493
          %v2495 = vsel %vm591, %v2429, 0.0
          %v2496 = vrot.slane %v2495, 4
          %v2497 = vadd.f32 %v2495, %v2496
          %v2498 = vrot.slane %v2497, 2
          %v2499 = vadd.f32 %v2497, %v2498
          %v2500 = vrot.slane %v2499, 1
          %v2501 = vadd.f32 %v2499, %v2500
          %v2502 = vsel %vm591, %v2430, 0.0
          %v2503 = vrot.slane %v2502, 4
          %v2504 = vadd.f32 %v2502, %v2503
          %v2505 = vrot.slane %v2504, 2
          %v2506 = vadd.f32 %v2504, %v2505
          %v2507 = vrot.slane %v2506, 1
          %v2508 = vadd.f32 %v2506, %v2507
          %v2509 = vsel %vm591, %v2431, 0.0
          %v2510 = vrot.slane %v2509, 4
          %v2511 = vadd.f32 %v2509, %v2510
          %v2512 = vrot.slane %v2511, 2
          %v2513 = vadd.f32 %v2511, %v2512
          %v2514 = vrot.slane %v2513, 1
          %v2515 = vadd.f32 %v2513, %v2514
          %v2516 = vsel %vm591, %v2436, 0.0
          %v2517 = vrot.slane %v2516, 4
          %v2518 = vadd.f32 %v2516, %v2517
          %v2519 = vrot.slane %v2518, 2
          %v2520 = vadd.f32 %v2518, %v2519
          %v2521 = vrot.slane %v2520, 1
          %v2522 = vadd.f32 %v2520, %v2521
          %v2523 = vsel %vm591, %v2437, 0.0
          %v2524 = vrot.slane %v2523, 4
          %v2525 = vadd.f32 %v2523, %v2524
          %v2526 = vrot.slane %v2525, 2
          %v2527 = vadd.f32 %v2525, %v2526
          %v2528 = vrot.slane %v2527, 1
          %v2529 = vadd.f32 %v2527, %v2528
          %v2530 = vsel %vm591, %v2438, 0.0
          %v2531 = vrot.slane %v2530, 4
          %v2532 = vadd.f32 %v2530, %v2531
          %v2533 = vrot.slane %v2532, 2
          %v2534 = vadd.f32 %v2532, %v2533
          %v2535 = vrot.slane %v2534, 1
          %v2536 = vadd.f32 %v2534, %v2535
          %v2537 = vsel %vm591, %v2439, 0.0
          %v2538 = vrot.slane %v2537, 4
          %v2539 = vadd.f32 %v2537, %v2538
          %v2540 = vrot.slane %v2539, 2
          %v2541 = vadd.f32 %v2539, %v2540
          %v2542 = vrot.slane %v2541, 1
          %v2543 = vadd.f32 %v2541, %v2542
          %v2544 = vsel %vm591, %v2440, 0.0
          %v2545 = vrot.slane %v2544, 4
          %v2546 = vadd.f32 %v2544, %v2545
          %v2547 = vrot.slane %v2546, 2
          %v2548 = vadd.f32 %v2546, %v2547
          %v2549 = vrot.slane %v2548, 1
          %v2550 = vadd.f32 %v2548, %v2549
          %v2551 = vsel %vm591, %v2441, 0.0
          %v2552 = vrot.slane %v2551, 4
          %v2553 = vadd.f32 %v2551, %v2552
          %v2554 = vrot.slane %v2553, 2
          %v2555 = vadd.f32 %v2553, %v2554
          %v2556 = vrot.slane %v2555, 1
          %v2557 = vadd.f32 %v2555, %v2556
          %v2558 = vsel %vm591, %v2442, 0.0
          %v2559 = vrot.slane %v2558, 4
          %v2560 = vadd.f32 %v2558, %v2559
          %v2561 = vrot.slane %v2560, 2
          %v2562 = vadd.f32 %v2560, %v2561
          %v2563 = vrot.slane %v2562, 1
          %v2564 = vadd.f32 %v2562, %v2563
          %v2565 = vsel %vm591, %v2443, 0.0
          %v2566 = vrot.slane %v2565, 4
          %v2567 = vadd.f32 %v2565, %v2566
          %v2568 = vrot.slane %v2567, 2
          %v2569 = vadd.f32 %v2567, %v2568
          %v2570 = vrot.slane %v2569, 1
          %v2571 = vadd.f32 %v2569, %v2570
          %v2572 = vmul.f32 %v2466, %v710
          %v2573 = vmul.f32 %v2473, %v710
          %v2574 = vmul.f32 %v2480, %v710
          %v2575 = vmul.f32 %v2487, %v710
          %v2576 = vmul.f32 %v2494, %v710
          %v2577 = vmul.f32 %v2501, %v710
          %v2578 = vmul.f32 %v2508, %v710
          %v2579 = vmul.f32 %v2515, %v710
          %v2580 = vmul.f32 %v2522, %v710
          %v2581 = vmul.f32 %v2529, %v710
          %v2582 = vmul.f32 %v2536, %v710
          %v2583 = vmul.f32 %v2543, %v710
          %v2584 = vmul.f32 %v2550, %v710
          %v2585 = vmul.f32 %v2557, %v710
          %v2586 = vmul.f32 %v2564, %v710
          %v2587 = vmul.f32 %v2571, %v710
          %v2588 = vadd.f32 %v2572, 1e-05
          %v2589 = vadd.f32 %v2573, 1e-05
          %v2590 = vadd.f32 %v2574, 1e-05
          %v2591 = vadd.f32 %v2575, 1e-05
          %v2592 = vadd.f32 %v2576, 1e-05
          %v2593 = vadd.f32 %v2577, 1e-05
          %v2594 = vadd.f32 %v2578, 1e-05
          %v2595 = vadd.f32 %v2579, 1e-05
          %v2596 = vadd.f32 %v2580, 1e-05
          %v2597 = vadd.f32 %v2581, 1e-05
          %v2598 = vadd.f32 %v2582, 1e-05
          %v2599 = vadd.f32 %v2583, 1e-05
          %v2600 = vadd.f32 %v2584, 1e-05
          %v2601 = vadd.f32 %v2585, 1e-05
          %v2602 = vadd.f32 %v2586, 1e-05
          %v2603 = vadd.f32 %v2587, 1e-05
          %v2604 = vrsqrt.pop %v2588
          %v2605 = vmul.f32 %v2604, %v2588
          %v2606 = vmul.f32 %v2605, %v2604
          %v2607 = vmul.f32 0.5, %v2606
          %v2608 = vsub.f32 1.5, %v2607
          %v2609 = vmul.f32 %v2604, %v2608
          %vm2610 = vweird.f32 %v2588
          %vm2611 = vweird.f32 %v2604
          %vm2612 = vmor %vm2610, %vm2611
          %v2613 = vsel %vm2612, %v2604, %v2609
          %v2614 = vrsqrt.pop %v2589
          %v2615 = vmul.f32 %v2614, %v2589
          %v2616 = vmul.f32 %v2615, %v2614
          %v2617 = vmul.f32 0.5, %v2616
          %v2618 = vsub.f32 1.5, %v2617
          %v2619 = vmul.f32 %v2614, %v2618
          %vm2620 = vweird.f32 %v2589
          %vm2621 = vweird.f32 %v2614
          %vm2622 = vmor %vm2620, %vm2621
          %v2623 = vsel %vm2622, %v2614, %v2619
          %v2624 = vrsqrt.pop %v2590
          %v2625 = vmul.f32 %v2624, %v2590
          %v2626 = vmul.f32 %v2625, %v2624
          %v2627 = vmul.f32 0.5, %v2626
          %v2628 = vsub.f32 1.5, %v2627
          %v2629 = vmul.f32 %v2624, %v2628
          %vm2630 = vweird.f32 %v2590
          %vm2631 = vweird.f32 %v2624
          %vm2632 = vmor %vm2630, %vm2631
          %v2633 = vsel %vm2632, %v2624, %v2629
          %v2634 = vrsqrt.pop %v2591
          %v2635 = vmul.f32 %v2634, %v2591
          %v2636 = vmul.f32 %v2635, %v2634
          %v2637 = vmul.f32 0.5, %v2636
          %v2638 = vsub.f32 1.5, %v2637
          %v2639 = vmul.f32 %v2634, %v2638
          %vm2640 = vweird.f32 %v2591
          %vm2641 = vweird.f32 %v2634
          %vm2642 = vmor %vm2640, %vm2641
          %v2643 = vsel %vm2642, %v2634, %v2639
          %v2644 = vrsqrt.pop %v2592
          %v2645 = vmul.f32 %v2644, %v2592
          %v2646 = vmul.f32 %v2645, %v2644
          %v2647 = vmul.f32 0.5, %v2646
          %v2648 = vsub.f32 1.5, %v2647
          %v2649 = vmul.f32 %v2644, %v2648
          %vm2650 = vweird.f32 %v2592
          %vm2651 = vweird.f32 %v2644
          %vm2652 = vmor %vm2650, %vm2651
          %v2653 = vsel %vm2652, %v2644, %v2649
          %v2654 = vrsqrt.pop %v2593
          %v2655 = vmul.f32 %v2654, %v2593
          %v2656 = vmul.f32 %v2655, %v2654
          %v2657 = vmul.f32 0.5, %v2656
          %v2658 = vsub.f32 1.5, %v2657
          %v2659 = vmul.f32 %v2654, %v2658
          %vm2660 = vweird.f32 %v2593
          %vm2661 = vweird.f32 %v2654
          %vm2662 = vmor %vm2660, %vm2661
          %v2663 = vsel %vm2662, %v2654, %v2659
          %v2664 = vrsqrt.pop %v2594
          %v2665 = vmul.f32 %v2664, %v2594
          %v2666 = vmul.f32 %v2665, %v2664
          %v2667 = vmul.f32 0.5, %v2666
          %v2668 = vsub.f32 1.5, %v2667
          %v2669 = vmul.f32 %v2664, %v2668
          %vm2670 = vweird.f32 %v2594
          %vm2671 = vweird.f32 %v2664
          %vm2672 = vmor %vm2670, %vm2671
          %v2673 = vsel %vm2672, %v2664, %v2669
          %v2674 = vrsqrt.pop %v2595
          %v2675 = vmul.f32 %v2674, %v2595
          %v2676 = vmul.f32 %v2675, %v2674
          %v2677 = vmul.f32 0.5, %v2676
          %v2678 = vsub.f32 1.5, %v2677
          %v2679 = vmul.f32 %v2674, %v2678
          %vm2680 = vweird.f32 %v2595
          %vm2681 = vweird.f32 %v2674
          %vm2682 = vmor %vm2680, %vm2681
          %v2683 = vsel %vm2682, %v2674, %v2679
          %v2684 = vrsqrt.pop %v2596
          %v2685 = vmul.f32 %v2684, %v2596
          %v2686 = vmul.f32 %v2685, %v2684
          %v2687 = vmul.f32 0.5, %v2686
          %v2688 = vsub.f32 1.5, %v2687
          %v2689 = vmul.f32 %v2684, %v2688
          %vm2690 = vweird.f32 %v2596
          %vm2691 = vweird.f32 %v2684
          %vm2692 = vmor %vm2690, %vm2691
          %v2693 = vsel %vm2692, %v2684, %v2689
          %v2694 = vrsqrt.pop %v2597
          %v2695 = vmul.f32 %v2694, %v2597
          %v2696 = vmul.f32 %v2695, %v2694
          %v2697 = vmul.f32 0.5, %v2696
          %v2698 = vsub.f32 1.5, %v2697
          %v2699 = vmul.f32 %v2694, %v2698
          %vm2700 = vweird.f32 %v2597
          %vm2701 = vweird.f32 %v2694
          %vm2702 = vmor %vm2700, %vm2701
          %v2703 = vsel %vm2702, %v2694, %v2699
          %v2704 = vrsqrt.pop %v2598
          %v2705 = vmul.f32 %v2704, %v2598
          %v2706 = vmul.f32 %v2705, %v2704
          %v2707 = vmul.f32 0.5, %v2706
          %v2708 = vsub.f32 1.5, %v2707
          %v2709 = vmul.f32 %v2704, %v2708
          %vm2710 = vweird.f32 %v2598
          %vm2711 = vweird.f32 %v2704
          %vm2712 = vmor %vm2710, %vm2711
          %v2713 = vsel %vm2712, %v2704, %v2709
          %v2714 = vrsqrt.pop %v2599
          %v2715 = vmul.f32 %v2714, %v2599
          %v2716 = vmul.f32 %v2715, %v2714
          %v2717 = vmul.f32 0.5, %v2716
          %v2718 = vsub.f32 1.5, %v2717
          %v2719 = vmul.f32 %v2714, %v2718
          %vm2720 = vweird.f32 %v2599
          %vm2721 = vweird.f32 %v2714
          %vm2722 = vmor %vm2720, %vm2721
          %v2723 = vsel %vm2722, %v2714, %v2719
          %v2724 = vrsqrt.pop %v2600
          %v2725 = vmul.f32 %v2724, %v2600
          %v2726 = vmul.f32 %v2725, %v2724
          %v2727 = vmul.f32 0.5, %v2726
          %v2728 = vsub.f32 1.5, %v2727
          %v2729 = vmul.f32 %v2724, %v2728
          %vm2730 = vweird.f32 %v2600
          %vm2731 = vweird.f32 %v2724
          %vm2732 = vmor %vm2730, %vm2731
          %v2733 = vsel %vm2732, %v2724, %v2729
          %v2734 = vrsqrt.pop %v2601
          %v2735 = vmul.f32 %v2734, %v2601
          %v2736 = vmul.f32 %v2735, %v2734
          %v2737 = vmul.f32 0.5, %v2736
          %v2738 = vsub.f32 1.5, %v2737
          %v2739 = vmul.f32 %v2734, %v2738
          %vm2740 = vweird.f32 %v2601
          %vm2741 = vweird.f32 %v2734
          %vm2742 = vmor %vm2740, %vm2741
          %v2743 = vsel %vm2742, %v2734, %v2739
          %v2744 = vrsqrt.pop %v2602
          %v2745 = vmul.f32 %v2744, %v2602
          %v2746 = vmul.f32 %v2745, %v2744
          %v2747 = vmul.f32 0.5, %v2746
          %v2748 = vsub.f32 1.5, %v2747
          %v2749 = vmul.f32 %v2744, %v2748
          %vm2750 = vweird.f32 %v2602
          %vm2751 = vweird.f32 %v2744
          %vm2752 = vmor %vm2750, %vm2751
          %v2753 = vsel %vm2752, %v2744, %v2749
          %v2754 = vrsqrt.pop %v2603
          %v2755 = vmul.f32 %v2754, %v2603
          %v2756 = vmul.f32 %v2755, %v2754
          %v2757 = vmul.f32 0.5, %v2756
          %v2758 = vsub.f32 1.5, %v2757
          %v2759 = vmul.f32 %v2754, %v2758
          %vm2760 = vweird.f32 %v2603
          %vm2761 = vweird.f32 %v2754
          %vm2762 = vmor %vm2760, %vm2761
          %v2763 = vsel %vm2762, %v2754, %v2759
          %v2780 = vrot.slane %v2623, 4
          %v2781 = vrot.slane %v2643, 4
          %v2782 = vrot.slane %v2663, 4
          %v2783 = vrot.slane %v2683, 4
          %v2784 = vrot.slane %v2703, 4
          %v2785 = vrot.slane %v2723, 4
          %v2786 = vrot.slane %v2743, 4
          %v2787 = vrot.slane %v2763, 4
          %v2788 = vsel %vm591, %v2613, %v2780
          %v2789 = vsel %vm591, %v2633, %v2781
          %v2790 = vsel %vm591, %v2653, %v2782
          %v2791 = vsel %vm591, %v2673, %v2783
          %v2792 = vsel %vm591, %v2693, %v2784
          %v2793 = vsel %vm591, %v2713, %v2785
          %v2794 = vsel %vm591, %v2733, %v2786
          %v2795 = vsel %vm591, %v2753, %v2787
          %v2804 = vmul.f32 %v2393, %v2788
          %v2805 = vmul.f32 %v2394, %v2789
          %v2806 = vmul.f32 %v2395, %v2790
          %v2807 = vmul.f32 %v2396, %v2791
          %v2808 = vmul.f32 %v2397, %v2792
          %v2809 = vmul.f32 %v2398, %v2793
          %v2810 = vmul.f32 %v2399, %v2794
          %v2811 = vmul.f32 %v2400, %v2795
          %s2812 = scalar_lea.vmem [#allocation8], 2
          %v2813 = vld [vmem:[%s2812] ss:$4 sm:$0xff]
          %s2814 = scalar_lea.vmem [#allocation8], 34
          %v2815 = vld [vmem:[%s2814] ss:$4 sm:$0xff]
          %v2818 = vperm.slane %v2813, 0
          %v2819 = vperm.slane %v2813, 1
          %v2820 = vperm.slane %v2813, 2
          %v2821 = vperm.slane %v2813, 3
          %v2822 = vperm.slane %v2813, 4
          %v2823 = vperm.slane %v2813, 5
          %v2824 = vperm.slane %v2813, 6
          %v2825 = vperm.slane %v2813, 7
          %v2826 = vperm.slane %v2815, 0
          %v2827 = vperm.slane %v2815, 1
          %v2828 = vperm.slane %v2815, 2
          %v2829 = vperm.slane %v2815, 3
          %v2830 = vperm.slane %v2815, 4
          %v2831 = vperm.slane %v2815, 5
          %v2832 = vperm.slane %v2815, 6
          %v2833 = vperm.slane %v2815, 7
          %v2834 = vrot.slane %v2819, 4
          %v2835 = vrot.slane %v2821, 4
          %v2836 = vrot.slane %v2823, 4
          %v2837 = vrot.slane %v2825, 4
          %v2838 = vrot.slane %v2827, 4
          %v2839 = vrot.slane %v2829, 4
          %v2840 = vrot.slane %v2831, 4
          %v2841 = vrot.slane %v2833, 4
          %v2842 = vsel %vm591, %v2818, %v2834
          %v2843 = vsel %vm591, %v2820, %v2835
          %v2844 = vsel %vm591, %v2822, %v2836
          %v2845 = vsel %vm591, %v2824, %v2837
          %v2846 = vsel %vm591, %v2826, %v2838
          %v2847 = vsel %vm591, %v2828, %v2839
          %v2848 = vsel %vm591, %v2830, %v2840
          %v2849 = vsel %vm591, %v2832, %v2841
          %v2858 = vmul.f32 %v2804, %v2842
          %v2859 = vmul.f32 %v2805, %v2843
          %v2860 = vmul.f32 %v2806, %v2844
          %v2861 = vmul.f32 %v2807, %v2845
          %v2862 = vmul.f32 %v2808, %v2846
          %v2863 = vmul.f32 %v2809, %v2847
          %v2864 = vmul.f32 %v2810, %v2848
          %v2865 = vmul.f32 %v2811, %v2849
          %s2866 = scalar_lea.vmem [#allocation10], 2
          %v2867 = vld [vmem:[%s2866] ss:$4 sm:$0xff]
          %s2868 = scalar_lea.vmem [#allocation10], 34
          %v2869 = vld [vmem:[%s2868] ss:$4 sm:$0xff]
          %v2872 = vperm.slane %v2867, 0
          %v2873 = vperm.slane %v2867, 1
          %v2874 = vperm.slane %v2867, 2
          %v2875 = vperm.slane %v2867, 3
          %v2876 = vperm.slane %v2867, 4
          %v2877 = vperm.slane %v2867, 5
          %v2878 = vperm.slane %v2867, 6
          %v2879 = vperm.slane %v2867, 7
          %v2880 = vperm.slane %v2869, 0
          %v2881 = vperm.slane %v2869, 1
          %v2882 = vperm.slane %v2869, 2
          %v2883 = vperm.slane %v2869, 3
          %v2884 = vperm.slane %v2869, 4
          %v2885 = vperm.slane %v2869, 5
          %v2886 = vperm.slane %v2869, 6
          %v2887 = vperm.slane %v2869, 7
          %v2888 = vrot.slane %v2873, 4
          %v2889 = vrot.slane %v2875, 4
          %v2890 = vrot.slane %v2877, 4
          %v2891 = vrot.slane %v2879, 4
          %v2892 = vrot.slane %v2881, 4
          %v2893 = vrot.slane %v2883, 4
          %v2894 = vrot.slane %v2885, 4
          %v2895 = vrot.slane %v2887, 4
          %v2896 = vsel %vm591, %v2872, %v2888
          %v2897 = vsel %vm591, %v2874, %v2889
          %v2898 = vsel %vm591, %v2876, %v2890
          %v2899 = vsel %vm591, %v2878, %v2891
          %v2900 = vsel %vm591, %v2880, %v2892
          %v2901 = vsel %vm591, %v2882, %v2893
          %v2902 = vsel %vm591, %v2884, %v2894
          %v2903 = vsel %vm591, %v2886, %v2895
          %v2912 = vadd.f32 %v2858, %v2896
          %v2913 = vadd.f32 %v2859, %v2897
          %v2914 = vadd.f32 %v2860, %v2898
          %v2915 = vadd.f32 %v2861, %v2899
          %v2916 = vadd.f32 %v2862, %v2900
          %v2917 = vadd.f32 %v2863, %v2901
          %v2918 = vadd.f32 %v2864, %v2902
          %v2919 = vadd.f32 %v2865, %v2903
          %2928 = vst [vmem:[#allocation1] ss:$2 sm:$0xff] %v2912
          %s2929 = scalar_lea.vmem [#allocation1], 16
          %2930 = vst [vmem:[%s2929] ss:$2 sm:$0xff] %v2913
          %s2931 = scalar_lea.vmem [#allocation1], 32
          %2932 = vst [vmem:[%s2931] ss:$2 sm:$0xff] %v2914
          %s2933 = scalar_lea.vmem [#allocation1], 48
          %2934 = vst [vmem:[%s2933] ss:$2 sm:$0xff] %v2915
          %v2935 = vld.sshfl [vmem:[#allocation1] sm:$0xff pattern:$0x75316420]
          %v2936 = vld.sshfl [vmem:[#allocation1 + $0x8] sm:$0xff pattern:$0x75316420]
          %v2937 = vld.sshfl [vmem:[#allocation1 + $0x10] sm:$0xff pattern:$0x75316420]
          %v2938 = vld.sshfl [vmem:[#allocation1 + $0x18] sm:$0xff pattern:$0x75316420]
          %v2939 = vld.sshfl [vmem:[#allocation1 + $0x20] sm:$0xff pattern:$0x75316420]
          %v2940 = vld.sshfl [vmem:[#allocation1 + $0x28] sm:$0xff pattern:$0x75316420]
          %v2941 = vld.sshfl [vmem:[#allocation1 + $0x30] sm:$0xff pattern:$0x75316420]
          %v2942 = vld.sshfl [vmem:[#allocation1 + $0x38] sm:$0xff pattern:$0x75316420]
          %2943 = vst [vmem:[#allocation1] ss:$2 sm:$0xff] %v2916
          %2944 = vst [vmem:[%s2929] ss:$2 sm:$0xff] %v2917
          %2945 = vst [vmem:[%s2931] ss:$2 sm:$0xff] %v2918
          %2946 = vst [vmem:[%s2933] ss:$2 sm:$0xff] %v2919
          %v2947 = vld.sshfl [vmem:[#allocation1] sm:$0xff pattern:$0x75316420]
          %v2948 = vld.sshfl [vmem:[#allocation1 + $0x8] sm:$0xff pattern:$0x75316420]
          %v2949 = vld.sshfl [vmem:[#allocation1 + $0x10] sm:$0xff pattern:$0x75316420]
          %v2950 = vld.sshfl [vmem:[#allocation1 + $0x18] sm:$0xff pattern:$0x75316420]
          %v2951 = vld.sshfl [vmem:[#allocation1 + $0x20] sm:$0xff pattern:$0x75316420]
          %v2952 = vld.sshfl [vmem:[#allocation1 + $0x28] sm:$0xff pattern:$0x75316420]
          %v2953 = vld.sshfl [vmem:[#allocation1 + $0x30] sm:$0xff pattern:$0x75316420]
          %v2954 = vld.sshfl [vmem:[#allocation1 + $0x38] sm:$0xff pattern:$0x75316420]
          %v2971 = vpack.c.bf16 %v2936, %v2935
          %v2972 = vpack.c.bf16 %v2938, %v2937
          %v2973 = vpack.c.bf16 %v2940, %v2939
          %v2974 = vpack.c.bf16 %v2942, %v2941
          %v2975 = vpack.c.bf16 %v2948, %v2947
          %v2976 = vpack.c.bf16 %v2950, %v2949
          %v2977 = vpack.c.bf16 %v2952, %v2951
          %v2978 = vpack.c.bf16 %v2954, %v2953
          %s2979 = scalar_lea.vmem [#allocation5], 192
          %v2980 = vld [vmem:[%s2979] sm:$0xff]
          %v2981 = vld [vmem:[%s2979 + $0x8] sm:$0xff]
          %v2982 = vld [vmem:[%s2979 + $0x10] sm:$0xff]
          %v2983 = vld [vmem:[%s2979 + $0x18] sm:$0xff]
          %v2984 = vld [vmem:[%s2979 + $0x20] sm:$0xff]
          %v2985 = vld [vmem:[%s2979 + $0x28] sm:$0xff]
          %v2986 = vld [vmem:[%s2979 + $0x30] sm:$0xff]
          %v2987 = vld [vmem:[%s2979 + $0x38] sm:$0xff]
          %2996 = vst [vmem:[#allocation1] ss:$2 sm:$0xff] %v2980
          %s2997 = scalar_lea.vmem [#allocation1], 16
          %2998 = vst [vmem:[%s2997] ss:$2 sm:$0xff] %v2981
          %s2999 = scalar_lea.vmem [#allocation1], 32
          %3000 = vst [vmem:[%s2999] ss:$2 sm:$0xff] %v2982
          %s3001 = scalar_lea.vmem [#allocation1], 48
          %3002 = vst [vmem:[%s3001] ss:$2 sm:$0xff] %v2983
          %v3003 = vld.sshfl [vmem:[#allocation1] sm:$0xff pattern:$0x75316420]
          %v3004 = vld.sshfl [vmem:[#allocation1 + $0x8] sm:$0xff pattern:$0x75316420]
          %v3005 = vld.sshfl [vmem:[#allocation1 + $0x10] sm:$0xff pattern:$0x75316420]
          %v3006 = vld.sshfl [vmem:[#allocation1 + $0x18] sm:$0xff pattern:$0x75316420]
          %v3007 = vld.sshfl [vmem:[#allocation1 + $0x20] sm:$0xff pattern:$0x75316420]
          %v3008 = vld.sshfl [vmem:[#allocation1 + $0x28] sm:$0xff pattern:$0x75316420]
          %v3009 = vld.sshfl [vmem:[#allocation1 + $0x30] sm:$0xff pattern:$0x75316420]
          %v3010 = vld.sshfl [vmem:[#allocation1 + $0x38] sm:$0xff pattern:$0x75316420]
          %3011 = vst [vmem:[#allocation1] ss:$2 sm:$0xff] %v2984
          %3012 = vst [vmem:[%s2997] ss:$2 sm:$0xff] %v2985
          %3013 = vst [vmem:[%s2999] ss:$2 sm:$0xff] %v2986
          %3014 = vst [vmem:[%s3001] ss:$2 sm:$0xff] %v2987
          %v3015 = vld.sshfl [vmem:[#allocation1] sm:$0xff pattern:$0x75316420]
          %v3016 = vld.sshfl [vmem:[#allocation1 + $0x8] sm:$0xff pattern:$0x75316420]
          %v3017 = vld.sshfl [vmem:[#allocation1 + $0x10] sm:$0xff pattern:$0x75316420]
          %v3018 = vld.sshfl [vmem:[#allocation1 + $0x18] sm:$0xff pattern:$0x75316420]
          %v3019 = vld.sshfl [vmem:[#allocation1 + $0x20] sm:$0xff pattern:$0x75316420]
          %v3020 = vld.sshfl [vmem:[#allocation1 + $0x28] sm:$0xff pattern:$0x75316420]
          %v3021 = vld.sshfl [vmem:[#allocation1 + $0x30] sm:$0xff pattern:$0x75316420]
          %v3022 = vld.sshfl [vmem:[#allocation1 + $0x38] sm:$0xff pattern:$0x75316420]
          %v3039 = vsel %vm591, %v3003, 0.0
          %v3040 = vrot.slane %v3039, 4
          %v3041 = vadd.f32 %v3039, %v3040
          %v3042 = vrot.slane %v3041, 2
          %v3043 = vadd.f32 %v3041, %v3042
          %v3044 = vrot.slane %v3043, 1
          %v3045 = vadd.f32 %v3043, %v3044
          %v3046 = vsel %vm591, %v3004, 0.0
          %v3047 = vrot.slane %v3046, 4
          %v3048 = vadd.f32 %v3046, %v3047
          %v3049 = vrot.slane %v3048, 2
          %v3050 = vadd.f32 %v3048, %v3049
          %v3051 = vrot.slane %v3050, 1
          %v3052 = vadd.f32 %v3050, %v3051
          %v3053 = vsel %vm591, %v3005, 0.0
          %v3054 = vrot.slane %v3053, 4
          %v3055 = vadd.f32 %v3053, %v3054
          %v3056 = vrot.slane %v3055, 2
          %v3057 = vadd.f32 %v3055, %v3056
          %v3058 = vrot.slane %v3057, 1
          %v3059 = vadd.f32 %v3057, %v3058
          %v3060 = vsel %vm591, %v3006, 0.0
          %v3061 = vrot.slane %v3060, 4
          %v3062 = vadd.f32 %v3060, %v3061
          %v3063 = vrot.slane %v3062, 2
          %v3064 = vadd.f32 %v3062, %v3063
          %v3065 = vrot.slane %v3064, 1
          %v3066 = vadd.f32 %v3064, %v3065
          %v3067 = vsel %vm591, %v3007, 0.0
          %v3068 = vrot.slane %v3067, 4
          %v3069 = vadd.f32 %v3067, %v3068
          %v3070 = vrot.slane %v3069, 2
          %v3071 = vadd.f32 %v3069, %v3070
          %v3072 = vrot.slane %v3071, 1
          %v3073 = vadd.f32 %v3071, %v3072
          %v3074 = vsel %vm591, %v3008, 0.0
          %v3075 = vrot.slane %v3074, 4
          %v3076 = vadd.f32 %v3074, %v3075
          %v3077 = vrot.slane %v3076, 2
          %v3078 = vadd.f32 %v3076, %v3077
          %v3079 = vrot.slane %v3078, 1
          %v3080 = vadd.f32 %v3078, %v3079
          %v3081 = vsel %vm591, %v3009, 0.0
          %v3082 = vrot.slane %v3081, 4
          %v3083 = vadd.f32 %v3081, %v3082
          %v3084 = vrot.slane %v3083, 2
          %v3085 = vadd.f32 %v3083, %v3084
          %v3086 = vrot.slane %v3085, 1
          %v3087 = vadd.f32 %v3085, %v3086
          %v3088 = vsel %vm591, %v3010, 0.0
          %v3089 = vrot.slane %v3088, 4
          %v3090 = vadd.f32 %v3088, %v3089
          %v3091 = vrot.slane %v3090, 2
          %v3092 = vadd.f32 %v3090, %v3091
          %v3093 = vrot.slane %v3092, 1
          %v3094 = vadd.f32 %v3092, %v3093
          %v3095 = vsel %vm591, %v3015, 0.0
          %v3096 = vrot.slane %v3095, 4
          %v3097 = vadd.f32 %v3095, %v3096
          %v3098 = vrot.slane %v3097, 2
          %v3099 = vadd.f32 %v3097, %v3098
          %v3100 = vrot.slane %v3099, 1
          %v3101 = vadd.f32 %v3099, %v3100
          %v3102 = vsel %vm591, %v3016, 0.0
          %v3103 = vrot.slane %v3102, 4
          %v3104 = vadd.f32 %v3102, %v3103
          %v3105 = vrot.slane %v3104, 2
          %v3106 = vadd.f32 %v3104, %v3105
          %v3107 = vrot.slane %v3106, 1
          %v3108 = vadd.f32 %v3106, %v3107
          %v3109 = vsel %vm591, %v3017, 0.0
          %v3110 = vrot.slane %v3109, 4
          %v3111 = vadd.f32 %v3109, %v3110
          %v3112 = vrot.slane %v3111, 2
          %v3113 = vadd.f32 %v3111, %v3112
          %v3114 = vrot.slane %v3113, 1
          %v3115 = vadd.f32 %v3113, %v3114
          %v3116 = vsel %vm591, %v3018, 0.0
          %v3117 = vrot.slane %v3116, 4
          %v3118 = vadd.f32 %v3116, %v3117
          %v3119 = vrot.slane %v3118, 2
          %v3120 = vadd.f32 %v3118, %v3119
          %v3121 = vrot.slane %v3120, 1
          %v3122 = vadd.f32 %v3120, %v3121
          %v3123 = vsel %vm591, %v3019, 0.0
          %v3124 = vrot.slane %v3123, 4
          %v3125 = vadd.f32 %v3123, %v3124
          %v3126 = vrot.slane %v3125, 2
          %v3127 = vadd.f32 %v3125, %v3126
          %v3128 = vrot.slane %v3127, 1
          %v3129 = vadd.f32 %v3127, %v3128
          %v3130 = vsel %vm591, %v3020, 0.0
          %v3131 = vrot.slane %v3130, 4
          %v3132 = vadd.f32 %v3130, %v3131
          %v3133 = vrot.slane %v3132, 2
          %v3134 = vadd.f32 %v3132, %v3133
          %v3135 = vrot.slane %v3134, 1
          %v3136 = vadd.f32 %v3134, %v3135
          %v3137 = vsel %vm591, %v3021, 0.0
          %v3138 = vrot.slane %v3137, 4
          %v3139 = vadd.f32 %v3137, %v3138
          %v3140 = vrot.slane %v3139, 2
          %v3141 = vadd.f32 %v3139, %v3140
          %v3142 = vrot.slane %v3141, 1
          %v3143 = vadd.f32 %v3141, %v3142
          %v3144 = vsel %vm591, %v3022, 0.0
          %v3145 = vrot.slane %v3144, 4
          %v3146 = vadd.f32 %v3144, %v3145
          %v3147 = vrot.slane %v3146, 2
          %v3148 = vadd.f32 %v3146, %v3147
          %v3149 = vrot.slane %v3148, 1
          %v3150 = vadd.f32 %v3148, %v3149
          %v3151 = vmul.f32 %v3045, %v710
          %v3152 = vmul.f32 %v3052, %v710
          %v3153 = vmul.f32 %v3059, %v710
          %v3154 = vmul.f32 %v3066, %v710
          %v3155 = vmul.f32 %v3073, %v710
          %v3156 = vmul.f32 %v3080, %v710
          %v3157 = vmul.f32 %v3087, %v710
          %v3158 = vmul.f32 %v3094, %v710
          %v3159 = vmul.f32 %v3101, %v710
          %v3160 = vmul.f32 %v3108, %v710
          %v3161 = vmul.f32 %v3115, %v710
          %v3162 = vmul.f32 %v3122, %v710
          %v3163 = vmul.f32 %v3129, %v710
          %v3164 = vmul.f32 %v3136, %v710
          %v3165 = vmul.f32 %v3143, %v710
          %v3166 = vmul.f32 %v3150, %v710
          %v3183 = vrot.slane %v3152, 4
          %v3184 = vrot.slane %v3154, 4
          %v3185 = vrot.slane %v3156, 4
          %v3186 = vrot.slane %v3158, 4
          %v3187 = vrot.slane %v3160, 4
          %v3188 = vrot.slane %v3162, 4
          %v3189 = vrot.slane %v3164, 4
          %v3190 = vrot.slane %v3166, 4
          %v3191 = vsel %vm591, %v3151, %v3183
          %v3192 = vsel %vm591, %v3153, %v3184
          %v3193 = vsel %vm591, %v3155, %v3185
          %v3194 = vsel %vm591, %v3157, %v3186
          %v3195 = vsel %vm591, %v3159, %v3187
          %v3196 = vsel %vm591, %v3161, %v3188
          %v3197 = vsel %vm591, %v3163, %v3189
          %v3198 = vsel %vm591, %v3165, %v3190
          %v3207 = vsub.f32 %v2980, %v3191
          %v3208 = vsub.f32 %v2981, %v3192
          %v3209 = vsub.f32 %v2982, %v3193
          %v3210 = vsub.f32 %v2983, %v3194
          %v3211 = vsub.f32 %v2984, %v3195
          %v3212 = vsub.f32 %v2985, %v3196
          %v3213 = vsub.f32 %v2986, %v3197
          %v3214 = vsub.f32 %v2987, %v3198
          %v3215 = vmul.f32 %v3207, %v3207
          %v3216 = vmul.f32 %v3208, %v3208
          %v3217 = vmul.f32 %v3209, %v3209
          %v3218 = vmul.f32 %v3210, %v3210
          %v3219 = vmul.f32 %v3211, %v3211
          %v3220 = vmul.f32 %v3212, %v3212
          %v3221 = vmul.f32 %v3213, %v3213
          %v3222 = vmul.f32 %v3214, %v3214
          %3231 = vst [vmem:[#allocation1] ss:$2 sm:$0xff] %v3215
          %s3232 = scalar_lea.vmem [#allocation1], 16
          %3233 = vst [vmem:[%s3232] ss:$2 sm:$0xff] %v3216
          %s3234 = scalar_lea.vmem [#allocation1], 32
          %3235 = vst [vmem:[%s3234] ss:$2 sm:$0xff] %v3217
          %s3236 = scalar_lea.vmem [#allocation1], 48
          %3237 = vst [vmem:[%s3236] ss:$2 sm:$0xff] %v3218
          %v3238 = vld.sshfl [vmem:[#allocation1] sm:$0xff pattern:$0x75316420]
          %v3239 = vld.sshfl [vmem:[#allocation1 + $0x8] sm:$0xff pattern:$0x75316420]
          %v3240 = vld.sshfl [vmem:[#allocation1 + $0x10] sm:$0xff pattern:$0x75316420]
          %v3241 = vld.sshfl [vmem:[#allocation1 + $0x18] sm:$0xff pattern:$0x75316420]
          %v3242 = vld.sshfl [vmem:[#allocation1 + $0x20] sm:$0xff pattern:$0x75316420]
          %v3243 = vld.sshfl [vmem:[#allocation1 + $0x28] sm:$0xff pattern:$0x75316420]
          %v3244 = vld.sshfl [vmem:[#allocation1 + $0x30] sm:$0xff pattern:$0x75316420]
          %v3245 = vld.sshfl [vmem:[#allocation1 + $0x38] sm:$0xff pattern:$0x75316420]
          %3246 = vst [vmem:[#allocation1] ss:$2 sm:$0xff] %v3219
          %3247 = vst [vmem:[%s3232] ss:$2 sm:$0xff] %v3220
          %3248 = vst [vmem:[%s3234] ss:$2 sm:$0xff] %v3221
          %3249 = vst [vmem:[%s3236] ss:$2 sm:$0xff] %v3222
          %v3250 = vld.sshfl [vmem:[#allocation1] sm:$0xff pattern:$0x75316420]
          %v3251 = vld.sshfl [vmem:[#allocation1 + $0x8] sm:$0xff pattern:$0x75316420]
          %v3252 = vld.sshfl [vmem:[#allocation1 + $0x10] sm:$0xff pattern:$0x75316420]
          %v3253 = vld.sshfl [vmem:[#allocation1 + $0x18] sm:$0xff pattern:$0x75316420]
          %v3254 = vld.sshfl [vmem:[#allocation1 + $0x20] sm:$0xff pattern:$0x75316420]
          %v3255 = vld.sshfl [vmem:[#allocation1 + $0x28] sm:$0xff pattern:$0x75316420]
          %v3256 = vld.sshfl [vmem:[#allocation1 + $0x30] sm:$0xff pattern:$0x75316420]
          %v3257 = vld.sshfl [vmem:[#allocation1 + $0x38] sm:$0xff pattern:$0x75316420]
          %v3274 = vsel %vm591, %v3238, 0.0
          %v3275 = vrot.slane %v3274, 4
          %v3276 = vadd.f32 %v3274, %v3275
          %v3277 = vrot.slane %v3276, 2
          %v3278 = vadd.f32 %v3276, %v3277
          %v3279 = vrot.slane %v3278, 1
          %v3280 = vadd.f32 %v3278, %v3279
          %v3281 = vsel %vm591, %v3239, 0.0
          %v3282 = vrot.slane %v3281, 4
          %v3283 = vadd.f32 %v3281, %v3282
          %v3284 = vrot.slane %v3283, 2
          %v3285 = vadd.f32 %v3283, %v3284
          %v3286 = vrot.slane %v3285, 1
          %v3287 = vadd.f32 %v3285, %v3286
          %v3288 = vsel %vm591, %v3240, 0.0
          %v3289 = vrot.slane %v3288, 4
          %v3290 = vadd.f32 %v3288, %v3289
          %v3291 = vrot.slane %v3290, 2
          %v3292 = vadd.f32 %v3290, %v3291
          %v3293 = vrot.slane %v3292, 1
          %v3294 = vadd.f32 %v3292, %v3293
          %v3295 = vsel %vm591, %v3241, 0.0
          %v3296 = vrot.slane %v3295, 4
          %v3297 = vadd.f32 %v3295, %v3296
          %v3298 = vrot.slane %v3297, 2
          %v3299 = vadd.f32 %v3297, %v3298
          %v3300 = vrot.slane %v3299, 1
          %v3301 = vadd.f32 %v3299, %v3300
          %v3302 = vsel %vm591, %v3242, 0.0
          %v3303 = vrot.slane %v3302, 4
          %v3304 = vadd.f32 %v3302, %v3303
          %v3305 = vrot.slane %v3304, 2
          %v3306 = vadd.f32 %v3304, %v3305
          %v3307 = vrot.slane %v3306, 1
          %v3308 = vadd.f32 %v3306, %v3307
          %v3309 = vsel %vm591, %v3243, 0.0
          %v3310 = vrot.slane %v3309, 4
          %v3311 = vadd.f32 %v3309, %v3310
          %v3312 = vrot.slane %v3311, 2
          %v3313 = vadd.f32 %v3311, %v3312
          %v3314 = vrot.slane %v3313, 1
          %v3315 = vadd.f32 %v3313, %v3314
          %v3316 = vsel %vm591, %v3244, 0.0
          %v3317 = vrot.slane %v3316, 4
          %v3318 = vadd.f32 %v3316, %v3317
          %v3319 = vrot.slane %v3318, 2
          %v3320 = vadd.f32 %v3318, %v3319
          %v3321 = vrot.slane %v3320, 1
          %v3322 = vadd.f32 %v3320, %v3321
          %v3323 = vsel %vm591, %v3245, 0.0
          %v3324 = vrot.slane %v3323, 4
          %v3325 = vadd.f32 %v3323, %v3324
          %v3326 = vrot.slane %v3325, 2
          %v3327 = vadd.f32 %v3325, %v3326
          %v3328 = vrot.slane %v3327, 1
          %v3329 = vadd.f32 %v3327, %v3328
          %v3330 = vsel %vm591, %v3250, 0.0
          %v3331 = vrot.slane %v3330, 4
          %v3332 = vadd.f32 %v3330, %v3331
          %v3333 = vrot.slane %v3332, 2
          %v3334 = vadd.f32 %v3332, %v3333
          %v3335 = vrot.slane %v3334, 1
          %v3336 = vadd.f32 %v3334, %v3335
          %v3337 = vsel %vm591, %v3251, 0.0
          %v3338 = vrot.slane %v3337, 4
          %v3339 = vadd.f32 %v3337, %v3338
          %v3340 = vrot.slane %v3339, 2
          %v3341 = vadd.f32 %v3339, %v3340
          %v3342 = vrot.slane %v3341, 1
          %v3343 = vadd.f32 %v3341, %v3342
          %v3344 = vsel %vm591, %v3252, 0.0
          %v3345 = vrot.slane %v3344, 4
          %v3346 = vadd.f32 %v3344, %v3345
          %v3347 = vrot.slane %v3346, 2
          %v3348 = vadd.f32 %v3346, %v3347
          %v3349 = vrot.slane %v3348, 1
          %v3350 = vadd.f32 %v3348, %v3349
          %v3351 = vsel %vm591, %v3253, 0.0
          %v3352 = vrot.slane %v3351, 4
          %v3353 = vadd.f32 %v3351, %v3352
          %v3354 = vrot.slane %v3353, 2
          %v3355 = vadd.f32 %v3353, %v3354
          %v3356 = vrot.slane %v3355, 1
          %v3357 = vadd.f32 %v3355, %v3356
          %v3358 = vsel %vm591, %v3254, 0.0
          %v3359 = vrot.slane %v3358, 4
          %v3360 = vadd.f32 %v3358, %v3359
          %v3361 = vrot.slane %v3360, 2
          %v3362 = vadd.f32 %v3360, %v3361
          %v3363 = vrot.slane %v3362, 1
          %v3364 = vadd.f32 %v3362, %v3363
          %v3365 = vsel %vm591, %v3255, 0.0
          %v3366 = vrot.slane %v3365, 4
          %v3367 = vadd.f32 %v3365, %v3366
          %v3368 = vrot.slane %v3367, 2
          %v3369 = vadd.f32 %v3367, %v3368
          %v3370 = vrot.slane %v3369, 1
          %v3371 = vadd.f32 %v3369, %v3370
          %v3372 = vsel %vm591, %v3256, 0.0
          %v3373 = vrot.slane %v3372, 4
          %v3374 = vadd.f32 %v3372, %v3373
          %v3375 = vrot.slane %v3374, 2
          %v3376 = vadd.f32 %v3374, %v3375
          %v3377 = vrot.slane %v3376, 1
          %v3378 = vadd.f32 %v3376, %v3377
          %v3379 = vsel %vm591, %v3257, 0.0
          %v3380 = vrot.slane %v3379, 4
          %v3381 = vadd.f32 %v3379, %v3380
          %v3382 = vrot.slane %v3381, 2
          %v3383 = vadd.f32 %v3381, %v3382
          %v3384 = vrot.slane %v3383, 1
          %v3385 = vadd.f32 %v3383, %v3384
          %v3386 = vmul.f32 %v3280, %v710
          %v3387 = vmul.f32 %v3287, %v710
          %v3388 = vmul.f32 %v3294, %v710
          %v3389 = vmul.f32 %v3301, %v710
          %v3390 = vmul.f32 %v3308, %v710
          %v3391 = vmul.f32 %v3315, %v710
          %v3392 = vmul.f32 %v3322, %v710
          %v3393 = vmul.f32 %v3329, %v710
          %v3394 = vmul.f32 %v3336, %v710
          %v3395 = vmul.f32 %v3343, %v710
          %v3396 = vmul.f32 %v3350, %v710
          %v3397 = vmul.f32 %v3357, %v710
          %v3398 = vmul.f32 %v3364, %v710
          %v3399 = vmul.f32 %v3371, %v710
          %v3400 = vmul.f32 %v3378, %v710
          %v3401 = vmul.f32 %v3385, %v710
          %v3402 = vadd.f32 %v3386, 1e-05
          %v3403 = vadd.f32 %v3387, 1e-05
          %v3404 = vadd.f32 %v3388, 1e-05
          %v3405 = vadd.f32 %v3389, 1e-05
          %v3406 = vadd.f32 %v3390, 1e-05
          %v3407 = vadd.f32 %v3391, 1e-05
          %v3408 = vadd.f32 %v3392, 1e-05
          %v3409 = vadd.f32 %v3393, 1e-05
          %v3410 = vadd.f32 %v3394, 1e-05
          %v3411 = vadd.f32 %v3395, 1e-05
          %v3412 = vadd.f32 %v3396, 1e-05
          %v3413 = vadd.f32 %v3397, 1e-05
          %v3414 = vadd.f32 %v3398, 1e-05
          %v3415 = vadd.f32 %v3399, 1e-05
          %v3416 = vadd.f32 %v3400, 1e-05
          %v3417 = vadd.f32 %v3401, 1e-05
          %v3418 = vrsqrt.pop %v3402
          %v3419 = vmul.f32 %v3418, %v3402
          %v3420 = vmul.f32 %v3419, %v3418
          %v3421 = vmul.f32 0.5, %v3420
          %v3422 = vsub.f32 1.5, %v3421
          %v3423 = vmul.f32 %v3418, %v3422
          %vm3424 = vweird.f32 %v3402
          %vm3425 = vweird.f32 %v3418
          %vm3426 = vmor %vm3424, %vm3425
          %v3427 = vsel %vm3426, %v3418, %v3423
          %v3428 = vrsqrt.pop %v3403
          %v3429 = vmul.f32 %v3428, %v3403
          %v3430 = vmul.f32 %v3429, %v3428
          %v3431 = vmul.f32 0.5, %v3430
          %v3432 = vsub.f32 1.5, %v3431
          %v3433 = vmul.f32 %v3428, %v3432
          %vm3434 = vweird.f32 %v3403
          %vm3435 = vweird.f32 %v3428
          %vm3436 = vmor %vm3434, %vm3435
          %v3437 = vsel %vm3436, %v3428, %v3433
          %v3438 = vrsqrt.pop %v3404
          %v3439 = vmul.f32 %v3438, %v3404
          %v3440 = vmul.f32 %v3439, %v3438
          %v3441 = vmul.f32 0.5, %v3440
          %v3442 = vsub.f32 1.5, %v3441
          %v3443 = vmul.f32 %v3438, %v3442
          %vm3444 = vweird.f32 %v3404
          %vm3445 = vweird.f32 %v3438
          %vm3446 = vmor %vm3444, %vm3445
          %v3447 = vsel %vm3446, %v3438, %v3443
          %v3448 = vrsqrt.pop %v3405
          %v3449 = vmul.f32 %v3448, %v3405
          %v3450 = vmul.f32 %v3449, %v3448
          %v3451 = vmul.f32 0.5, %v3450
          %v3452 = vsub.f32 1.5, %v3451
          %v3453 = vmul.f32 %v3448, %v3452
          %vm3454 = vweird.f32 %v3405
          %vm3455 = vweird.f32 %v3448
          %vm3456 = vmor %vm3454, %vm3455
          %v3457 = vsel %vm3456, %v3448, %v3453
          %v3458 = vrsqrt.pop %v3406
          %v3459 = vmul.f32 %v3458, %v3406
          %v3460 = vmul.f32 %v3459, %v3458
          %v3461 = vmul.f32 0.5, %v3460
          %v3462 = vsub.f32 1.5, %v3461
          %v3463 = vmul.f32 %v3458, %v3462
          %vm3464 = vweird.f32 %v3406
          %vm3465 = vweird.f32 %v3458
          %vm3466 = vmor %vm3464, %vm3465
          %v3467 = vsel %vm3466, %v3458, %v3463
          %v3468 = vrsqrt.pop %v3407
          %v3469 = vmul.f32 %v3468, %v3407
          %v3470 = vmul.f32 %v3469, %v3468
          %v3471 = vmul.f32 0.5, %v3470
          %v3472 = vsub.f32 1.5, %v3471
          %v3473 = vmul.f32 %v3468, %v3472
          %vm3474 = vweird.f32 %v3407
          %vm3475 = vweird.f32 %v3468
          %vm3476 = vmor %vm3474, %vm3475
          %v3477 = vsel %vm3476, %v3468, %v3473
          %v3478 = vrsqrt.pop %v3408
          %v3479 = vmul.f32 %v3478, %v3408
          %v3480 = vmul.f32 %v3479, %v3478
          %v3481 = vmul.f32 0.5, %v3480
          %v3482 = vsub.f32 1.5, %v3481
          %v3483 = vmul.f32 %v3478, %v3482
          %vm3484 = vweird.f32 %v3408
          %vm3485 = vweird.f32 %v3478
          %vm3486 = vmor %vm3484, %vm3485
          %v3487 = vsel %vm3486, %v3478, %v3483
          %v3488 = vrsqrt.pop %v3409
          %v3489 = vmul.f32 %v3488, %v3409
          %v3490 = vmul.f32 %v3489, %v3488
          %v3491 = vmul.f32 0.5, %v3490
          %v3492 = vsub.f32 1.5, %v3491
          %v3493 = vmul.f32 %v3488, %v3492
          %vm3494 = vweird.f32 %v3409
          %vm3495 = vweird.f32 %v3488
          %vm3496 = vmor %vm3494, %vm3495
          %v3497 = vsel %vm3496, %v3488, %v3493
          %v3498 = vrsqrt.pop %v3410
          %v3499 = vmul.f32 %v3498, %v3410
          %v3500 = vmul.f32 %v3499, %v3498
          %v3501 = vmul.f32 0.5, %v3500
          %v3502 = vsub.f32 1.5, %v3501
          %v3503 = vmul.f32 %v3498, %v3502
          %vm3504 = vweird.f32 %v3410
          %vm3505 = vweird.f32 %v3498
          %vm3506 = vmor %vm3504, %vm3505
          %v3507 = vsel %vm3506, %v3498, %v3503
          %v3508 = vrsqrt.pop %v3411
          %v3509 = vmul.f32 %v3508, %v3411
          %v3510 = vmul.f32 %v3509, %v3508
          %v3511 = vmul.f32 0.5, %v3510
          %v3512 = vsub.f32 1.5, %v3511
          %v3513 = vmul.f32 %v3508, %v3512
          %vm3514 = vweird.f32 %v3411
          %vm3515 = vweird.f32 %v3508
          %vm3516 = vmor %vm3514, %vm3515
          %v3517 = vsel %vm3516, %v3508, %v3513
          %v3518 = vrsqrt.pop %v3412
          %v3519 = vmul.f32 %v3518, %v3412
          %v3520 = vmul.f32 %v3519, %v3518
          %v3521 = vmul.f32 0.5, %v3520
          %v3522 = vsub.f32 1.5, %v3521
          %v3523 = vmul.f32 %v3518, %v3522
          %vm3524 = vweird.f32 %v3412
          %vm3525 = vweird.f32 %v3518
          %vm3526 = vmor %vm3524, %vm3525
          %v3527 = vsel %vm3526, %v3518, %v3523
          %v3528 = vrsqrt.pop %v3413
          %v3529 = vmul.f32 %v3528, %v3413
          %v3530 = vmul.f32 %v3529, %v3528
          %v3531 = vmul.f32 0.5, %v3530
          %v3532 = vsub.f32 1.5, %v3531
          %v3533 = vmul.f32 %v3528, %v3532
          %vm3534 = vweird.f32 %v3413
          %vm3535 = vweird.f32 %v3528
          %vm3536 = vmor %vm3534, %vm3535
          %v3537 = vsel %vm3536, %v3528, %v3533
          %v3538 = vrsqrt.pop %v3414
          %v3539 = vmul.f32 %v3538, %v3414
          %v3540 = vmul.f32 %v3539, %v3538
          %v3541 = vmul.f32 0.5, %v3540
          %v3542 = vsub.f32 1.5, %v3541
          %v3543 = vmul.f32 %v3538, %v3542
          %vm3544 = vweird.f32 %v3414
          %vm3545 = vweird.f32 %v3538
          %vm3546 = vmor %vm3544, %vm3545
          %v3547 = vsel %vm3546, %v3538, %v3543
          %v3548 = vrsqrt.pop %v3415
          %v3549 = vmul.f32 %v3548, %v3415
          %v3550 = vmul.f32 %v3549, %v3548
          %v3551 = vmul.f32 0.5, %v3550
          %v3552 = vsub.f32 1.5, %v3551
          %v3553 = vmul.f32 %v3548, %v3552
          %vm3554 = vweird.f32 %v3415
          %vm3555 = vweird.f32 %v3548
          %vm3556 = vmor %vm3554, %vm3555
          %v3557 = vsel %vm3556, %v3548, %v3553
          %v3558 = vrsqrt.pop %v3416
          %v3559 = vmul.f32 %v3558, %v3416
          %v3560 = vmul.f32 %v3559, %v3558
          %v3561 = vmul.f32 0.5, %v3560
          %v3562 = vsub.f32 1.5, %v3561
          %v3563 = vmul.f32 %v3558, %v3562
          %vm3564 = vweird.f32 %v3416
          %vm3565 = vweird.f32 %v3558
          %vm3566 = vmor %vm3564, %vm3565
          %v3567 = vsel %vm3566, %v3558, %v3563
          %v3568 = vrsqrt.pop %v3417
          %v3569 = vmul.f32 %v3568, %v3417
          %v3570 = vmul.f32 %v3569, %v3568
          %v3571 = vmul.f32 0.5, %v3570
          %v3572 = vsub.f32 1.5, %v3571
          %v3573 = vmul.f32 %v3568, %v3572
          %vm3574 = vweird.f32 %v3417
          %vm3575 = vweird.f32 %v3568
          %vm3576 = vmor %vm3574, %vm3575
          %v3577 = vsel %vm3576, %v3568, %v3573
          %v3594 = vrot.slane %v3437, 4
          %v3595 = vrot.slane %v3457, 4
          %v3596 = vrot.slane %v3477, 4
          %v3597 = vrot.slane %v3497, 4
          %v3598 = vrot.slane %v3517, 4
          %v3599 = vrot.slane %v3537, 4
          %v3600 = vrot.slane %v3557, 4
          %v3601 = vrot.slane %v3577, 4
          %v3602 = vsel %vm591, %v3427, %v3594
          %v3603 = vsel %vm591, %v3447, %v3595
          %v3604 = vsel %vm591, %v3467, %v3596
          %v3605 = vsel %vm591, %v3487, %v3597
          %v3606 = vsel %vm591, %v3507, %v3598
          %v3607 = vsel %vm591, %v3527, %v3599
          %v3608 = vsel %vm591, %v3547, %v3600
          %v3609 = vsel %vm591, %v3567, %v3601
          %v3618 = vmul.f32 %v3207, %v3602
          %v3619 = vmul.f32 %v3208, %v3603
          %v3620 = vmul.f32 %v3209, %v3604
          %v3621 = vmul.f32 %v3210, %v3605
          %v3622 = vmul.f32 %v3211, %v3606
          %v3623 = vmul.f32 %v3212, %v3607
          %v3624 = vmul.f32 %v3213, %v3608
          %v3625 = vmul.f32 %v3214, %v3609
          %s3626 = scalar_lea.vmem [#allocation8], 3
          %v3627 = vld [vmem:[%s3626] ss:$4 sm:$0xff]
          %s3628 = scalar_lea.vmem [#allocation8], 35
          %v3629 = vld [vmem:[%s3628] ss:$4 sm:$0xff]
          %v3632 = vperm.slane %v3627, 0
          %v3633 = vperm.slane %v3627, 1
          %v3634 = vperm.slane %v3627, 2
          %v3635 = vperm.slane %v3627, 3
          %v3636 = vperm.slane %v3627, 4
          %v3637 = vperm.slane %v3627, 5
          %v3638 = vperm.slane %v3627, 6
          %v3639 = vperm.slane %v3627, 7
          %v3640 = vperm.slane %v3629, 0
          %v3641 = vperm.slane %v3629, 1
          %v3642 = vperm.slane %v3629, 2
          %v3643 = vperm.slane %v3629, 3
          %v3644 = vperm.slane %v3629, 4
          %v3645 = vperm.slane %v3629, 5
          %v3646 = vperm.slane %v3629, 6
          %v3647 = vperm.slane %v3629, 7
          %v3648 = vrot.slane %v3633, 4
          %v3649 = vrot.slane %v3635, 4
          %v3650 = vrot.slane %v3637, 4
          %v3651 = vrot.slane %v3639, 4
          %v3652 = vrot.slane %v3641, 4
          %v3653 = vrot.slane %v3643, 4
          %v3654 = vrot.slane %v3645, 4
          %v3655 = vrot.slane %v3647, 4
          %v3656 = vsel %vm591, %v3632, %v3648
          %v3657 = vsel %vm591, %v3634, %v3649
          %v3658 = vsel %vm591, %v3636, %v3650
          %v3659 = vsel %vm591, %v3638, %v3651
          %v3660 = vsel %vm591, %v3640, %v3652
          %v3661 = vsel %vm591, %v3642, %v3653
          %v3662 = vsel %vm591, %v3644, %v3654
          %v3663 = vsel %vm591, %v3646, %v3655
          %v3672 = vmul.f32 %v3618, %v3656
          %v3673 = vmul.f32 %v3619, %v3657
          %v3674 = vmul.f32 %v3620, %v3658
          %v3675 = vmul.f32 %v3621, %v3659
          %v3676 = vmul.f32 %v3622, %v3660
          %v3677 = vmul.f32 %v3623, %v3661
          %v3678 = vmul.f32 %v3624, %v3662
          %v3679 = vmul.f32 %v3625, %v3663
          %s3680 = scalar_lea.vmem [#allocation10], 3
          %v3681 = vld [vmem:[%s3680] ss:$4 sm:$0xff]
          %s3682 = scalar_lea.vmem [#allocation10], 35
          %v3683 = vld [vmem:[%s3682] ss:$4 sm:$0xff]
          %v3686 = vperm.slane %v3681, 0
          %v3687 = vperm.slane %v3681, 1
          %v3688 = vperm.slane %v3681, 2
          %v3689 = vperm.slane %v3681, 3
          %v3690 = vperm.slane %v3681, 4
          %v3691 = vperm.slane %v3681, 5
          %v3692 = vperm.slane %v3681, 6
          %v3693 = vperm.slane %v3681, 7
          %v3694 = vperm.slane %v3683, 0
          %v3695 = vperm.slane %v3683, 1
          %v3696 = vperm.slane %v3683, 2
          %v3697 = vperm.slane %v3683, 3
          %v3698 = vperm.slane %v3683, 4
          %v3699 = vperm.slane %v3683, 5
          %v3700 = vperm.slane %v3683, 6
          %v3701 = vperm.slane %v3683, 7
          %v3702 = vrot.slane %v3687, 4
          %v3703 = vrot.slane %v3689, 4
          %v3704 = vrot.slane %v3691, 4
          %v3705 = vrot.slane %v3693, 4
          %v3706 = vrot.slane %v3695, 4
          %v3707 = vrot.slane %v3697, 4
          %v3708 = vrot.slane %v3699, 4
          %v3709 = vrot.slane %v3701, 4
          %v3710 = vsel %vm591, %v3686, %v3702
          %v3711 = vsel %vm591, %v3688, %v3703
          %v3712 = vsel %vm591, %v3690, %v3704
          %v3713 = vsel %vm591, %v3692, %v3705
          %v3714 = vsel %vm591, %v3694, %v3706
          %v3715 = vsel %vm591, %v3696, %v3707
          %v3716 = vsel %vm591, %v3698, %v3708
          %v3717 = vsel %vm591, %v3700, %v3709
          %v3726 = vadd.f32 %v3672, %v3710
          %v3727 = vadd.f32 %v3673, %v3711
          %v3728 = vadd.f32 %v3674, %v3712
          %v3729 = vadd.f32 %v3675, %v3713
          %v3730 = vadd.f32 %v3676, %v3714
          %v3731 = vadd.f32 %v3677, %v3715
          %v3732 = vadd.f32 %v3678, %v3716
          %v3733 = vadd.f32 %v3679, %v3717
          %3742 = vst [vmem:[#allocation1] ss:$2 sm:$0xff] %v3726
          %s3743 = scalar_lea.vmem [#allocation1], 16
          %3744 = vst [vmem:[%s3743] ss:$2 sm:$0xff] %v3727
          %s3745 = scalar_lea.vmem [#allocation1], 32
          %3746 = vst [vmem:[%s3745] ss:$2 sm:$0xff] %v3728
          %s3747 = scalar_lea.vmem [#allocation1], 48
          %3748 = vst [vmem:[%s3747] ss:$2 sm:$0xff] %v3729
          %v3749 = vld.sshfl [vmem:[#allocation1] sm:$0xff pattern:$0x75316420]
          %v3750 = vld.sshfl [vmem:[#allocation1 + $0x8] sm:$0xff pattern:$0x75316420]
          %v3751 = vld.sshfl [vmem:[#allocation1 + $0x10] sm:$0xff pattern:$0x75316420]
          %v3752 = vld.sshfl [vmem:[#allocation1 + $0x18] sm:$0xff pattern:$0x75316420]
          %v3753 = vld.sshfl [vmem:[#allocation1 + $0x20] sm:$0xff pattern:$0x75316420]
          %v3754 = vld.sshfl [vmem:[#allocation1 + $0x28] sm:$0xff pattern:$0x75316420]
          %v3755 = vld.sshfl [vmem:[#allocation1 + $0x30] sm:$0xff pattern:$0x75316420]
          %v3756 = vld.sshfl [vmem:[#allocation1 + $0x38] sm:$0xff pattern:$0x75316420]
          %3757 = vst [vmem:[#allocation1] ss:$2 sm:$0xff] %v3730
          %3758 = vst [vmem:[%s3743] ss:$2 sm:$0xff] %v3731
          %3759 = vst [vmem:[%s3745] ss:$2 sm:$0xff] %v3732
          %3760 = vst [vmem:[%s3747] ss:$2 sm:$0xff] %v3733
          %v3761 = vld.sshfl [vmem:[#allocation1] sm:$0xff pattern:$0x75316420]
          %v3762 = vld.sshfl [vmem:[#allocation1 + $0x8] sm:$0xff pattern:$0x75316420]
          %v3763 = vld.sshfl [vmem:[#allocation1 + $0x10] sm:$0xff pattern:$0x75316420]
          %v3764 = vld.sshfl [vmem:[#allocation1 + $0x18] sm:$0xff pattern:$0x75316420]
          %v3765 = vld.sshfl [vmem:[#allocation1 + $0x20] sm:$0xff pattern:$0x75316420]
          %v3766 = vld.sshfl [vmem:[#allocation1 + $0x28] sm:$0xff pattern:$0x75316420]
          %v3767 = vld.sshfl [vmem:[#allocation1 + $0x30] sm:$0xff pattern:$0x75316420]
          %v3768 = vld.sshfl [vmem:[#allocation1 + $0x38] sm:$0xff pattern:$0x75316420]
          %v3785 = vpack.c.bf16 %v3750, %v3749
          %v3786 = vpack.c.bf16 %v3752, %v3751
          %v3787 = vpack.c.bf16 %v3754, %v3753
          %v3788 = vpack.c.bf16 %v3756, %v3755
          %v3789 = vpack.c.bf16 %v3762, %v3761
          %v3790 = vpack.c.bf16 %v3764, %v3763
          %v3791 = vpack.c.bf16 %v3766, %v3765
          %v3792 = vpack.c.bf16 %v3768, %v3767
          %v3801 = vunpack.c.l.b16 %v1343
          %v3802 = vunpack.c.h.b16 %v1343
          %v3803 = vunpack.c.l.b16 %v1344
          %v3804 = vunpack.c.h.b16 %v1344
          %v3805 = vunpack.c.l.b16 %v1345
          %v3806 = vunpack.c.h.b16 %v1345
          %v3807 = vunpack.c.l.b16 %v1346
          %v3808 = vunpack.c.h.b16 %v1346
          %v3809 = vunpack.c.l.b16 %v1347
          %v3810 = vunpack.c.h.b16 %v1347
          %v3811 = vunpack.c.l.b16 %v1348
          %v3812 = vunpack.c.h.b16 %v1348
          %v3813 = vunpack.c.l.b16 %v1349
          %v3814 = vunpack.c.h.b16 %v1349
          %v3815 = vunpack.c.l.b16 %v1350
          %v3816 = vunpack.c.h.b16 %v1350
          %v3817 = vpack.c.b16 %v3801, %v3801
          %v3818 = vpack.c.b16 %v3802, %v3802
          %v3819 = vpack.c.b16 %v3803, %v3803
          %v3820 = vpack.c.b16 %v3804, %v3804
          %v3821 = vpack.c.b16 %v3805, %v3805
          %v3822 = vpack.c.b16 %v3806, %v3806
          %v3823 = vpack.c.b16 %v3807, %v3807
          %v3824 = vpack.c.b16 %v3808, %v3808
          %v3825 = vpack.c.b16 %v3809, %v3809
          %v3826 = vpack.c.b16 %v3810, %v3810
          %v3827 = vpack.c.b16 %v3811, %v3811
          %v3828 = vpack.c.b16 %v3812, %v3812
          %v3829 = vpack.c.b16 %v3813, %v3813
          %v3830 = vpack.c.b16 %v3814, %v3814
          %v3831 = vpack.c.b16 %v3815, %v3815
          %v3832 = vpack.c.b16 %v3816, %v3816
          %v3841 = vunpack.c.l.b16 %v2157
          %v3842 = vunpack.c.h.b16 %v2157
          %v3843 = vunpack.c.l.b16 %v2158
          %v3844 = vunpack.c.h.b16 %v2158
          %v3845 = vunpack.c.l.b16 %v2159
          %v3846 = vunpack.c.h.b16 %v2159
          %v3847 = vunpack.c.l.b16 %v2160
          %v3848 = vunpack.c.h.b16 %v2160
          %v3849 = vunpack.c.l.b16 %v2161
          %v3850 = vunpack.c.h.b16 %v2161
          %v3851 = vunpack.c.l.b16 %v2162
          %v3852 = vunpack.c.h.b16 %v2162
          %v3853 = vunpack.c.l.b16 %v2163
          %v3854 = vunpack.c.h.b16 %v2163
          %v3855 = vunpack.c.l.b16 %v2164
          %v3856 = vunpack.c.h.b16 %v2164
          %v3857 = vpack.c.b16 %v3841, %v3841
          %v3858 = vpack.c.b16 %v3842, %v3842
          %v3859 = vpack.c.b16 %v3843, %v3843
          %v3860 = vpack.c.b16 %v3844, %v3844
          %v3861 = vpack.c.b16 %v3845, %v3845
          %v3862 = vpack.c.b16 %v3846, %v3846
          %v3863 = vpack.c.b16 %v3847, %v3847
          %v3864 = vpack.c.b16 %v3848, %v3848
          %v3865 = vpack.c.b16 %v3849, %v3849
          %v3866 = vpack.c.b16 %v3850, %v3850
          %v3867 = vpack.c.b16 %v3851, %v3851
          %v3868 = vpack.c.b16 %v3852, %v3852
          %v3869 = vpack.c.b16 %v3853, %v3853
          %v3870 = vpack.c.b16 %v3854, %v3854
          %v3871 = vpack.c.b16 %v3855, %v3855
          %v3872 = vpack.c.b16 %v3856, %v3856
          %v3873 = vrot.slane %v3857, 6
          %v3874 = vrot.slane %v3858, 6
          %v3875 = vrot.slane %v3859, 6
          %v3876 = vrot.slane %v3860, 6
          %v3877 = vrot.slane %v3861, 6
          %v3878 = vrot.slane %v3862, 6
          %v3879 = vrot.slane %v3863, 6
          %v3880 = vrot.slane %v3864, 6
          %v3881 = vrot.slane %v3865, 6
          %v3882 = vrot.slane %v3866, 6
          %v3883 = vrot.slane %v3867, 6
          %v3884 = vrot.slane %v3868, 6
          %v3885 = vrot.slane %v3869, 6
          %v3886 = vrot.slane %v3870, 6
          %v3887 = vrot.slane %v3871, 6
          %v3888 = vrot.slane %v3872, 6
          %v3897 = vunpack.c.l.b16 %v2971
          %v3898 = vunpack.c.h.b16 %v2971
          %v3899 = vunpack.c.l.b16 %v2972
          %v3900 = vunpack.c.h.b16 %v2972
          %v3901 = vunpack.c.l.b16 %v2973
          %v3902 = vunpack.c.h.b16 %v2973
          %v3903 = vunpack.c.l.b16 %v2974
          %v3904 = vunpack.c.h.b16 %v2974
          %v3905 = vunpack.c.l.b16 %v2975
          %v3906 = vunpack.c.h.b16 %v2975
          %v3907 = vunpack.c.l.b16 %v2976
          %v3908 = vunpack.c.h.b16 %v2976
          %v3909 = vunpack.c.l.b16 %v2977
          %v3910 = vunpack.c.h.b16 %v2977
          %v3911 = vunpack.c.l.b16 %v2978
          %v3912 = vunpack.c.h.b16 %v2978
          %v3913 = vpack.c.b16 %v3897, %v3897
          %v3914 = vpack.c.b16 %v3898, %v3898
          %v3915 = vpack.c.b16 %v3899, %v3899
          %v3916 = vpack.c.b16 %v3900, %v3900
          %v3917 = vpack.c.b16 %v3901, %v3901
          %v3918 = vpack.c.b16 %v3902, %v3902
          %v3919 = vpack.c.b16 %v3903, %v3903
          %v3920 = vpack.c.b16 %v3904, %v3904
          %v3921 = vpack.c.b16 %v3905, %v3905
          %v3922 = vpack.c.b16 %v3906, %v3906
          %v3923 = vpack.c.b16 %v3907, %v3907
          %v3924 = vpack.c.b16 %v3908, %v3908
          %v3925 = vpack.c.b16 %v3909, %v3909
          %v3926 = vpack.c.b16 %v3910, %v3910
          %v3927 = vpack.c.b16 %v3911, %v3911
          %v3928 = vpack.c.b16 %v3912, %v3912
          %v3937 = vunpack.c.l.b16 %v3785
          %v3938 = vunpack.c.h.b16 %v3785
          %v3939 = vunpack.c.l.b16 %v3786
          %v3940 = vunpack.c.h.b16 %v3786
          %v3941 = vunpack.c.l.b16 %v3787
          %v3942 = vunpack.c.h.b16 %v3787
          %v3943 = vunpack.c.l.b16 %v3788
          %v3944 = vunpack.c.h.b16 %v3788
          %v3945 = vunpack.c.l.b16 %v3789
          %v3946 = vunpack.c.h.b16 %v3789
          %v3947 = vunpack.c.l.b16 %v3790
          %v3948 = vunpack.c.h.b16 %v3790
          %v3949 = vunpack.c.l.b16 %v3791
          %v3950 = vunpack.c.h.b16 %v3791
          %v3951 = vunpack.c.l.b16 %v3792
          %v3952 = vunpack.c.h.b16 %v3792
          %v3953 = vpack.c.b16 %v3937, %v3937
          %v3954 = vpack.c.b16 %v3938, %v3938
          %v3955 = vpack.c.b16 %v3939, %v3939
          %v3956 = vpack.c.b16 %v3940, %v3940
          %v3957 = vpack.c.b16 %v3941, %v3941
          %v3958 = vpack.c.b16 %v3942, %v3942
          %v3959 = vpack.c.b16 %v3943, %v3943
          %v3960 = vpack.c.b16 %v3944, %v3944
          %v3961 = vpack.c.b16 %v3945, %v3945
          %v3962 = vpack.c.b16 %v3946, %v3946
          %v3963 = vpack.c.b16 %v3947, %v3947
          %v3964 = vpack.c.b16 %v3948, %v3948
          %v3965 = vpack.c.b16 %v3949, %v3949
          %v3966 = vpack.c.b16 %v3950, %v3950
          %v3967 = vpack.c.b16 %v3951, %v3951
          %v3968 = vpack.c.b16 %v3952, %v3952
          %v3969 = vrot.slane %v3953, 2
          %v3970 = vrot.slane %v3954, 2
          %v3971 = vrot.slane %v3955, 2
          %v3972 = vrot.slane %v3956, 2
          %v3973 = vrot.slane %v3957, 2
          %v3974 = vrot.slane %v3958, 2
          %v3975 = vrot.slane %v3959, 2
          %v3976 = vrot.slane %v3960, 2
          %v3977 = vrot.slane %v3961, 2
          %v3978 = vrot.slane %v3962, 2
          %v3979 = vrot.slane %v3963, 2
          %v3980 = vrot.slane %v3964, 2
          %v3981 = vrot.slane %v3965, 2
          %v3982 = vrot.slane %v3966, 2
          %v3983 = vrot.slane %v3967, 2
          %v3984 = vrot.slane %v3968, 2
          %vm3985 = vcmask 1041408
          %v3988 = vsel %vm3985, %v3817, %v3873
          %v3991 = vsel %vm3985, %v3818, %v3874
          %v3994 = vsel %vm3985, %v3819, %v3875
          %v3997 = vsel %vm3985, %v3820, %v3876
          %v4000 = vsel %vm3985, %v3821, %v3877
          %v4003 = vsel %vm3985, %v3822, %v3878
          %v4006 = vsel %vm3985, %v3823, %v3879
          %v4009 = vsel %vm3985, %v3824, %v3880
          %v4012 = vsel %vm3985, %v3825, %v3881
          %v4015 = vsel %vm3985, %v3826, %v3882
          %v4018 = vsel %vm3985, %v3827, %v3883
          %v4021 = vsel %vm3985, %v3828, %v3884
          %v4024 = vsel %vm3985, %v3829, %v3885
          %v4027 = vsel %vm3985, %v3830, %v3886
          %v4030 = vsel %vm3985, %v3831, %v3887
          %v4033 = vsel %vm3985, %v3832, %v3888
          %v4035 = vsel %vm591, %v3988, %v3913
          %v4037 = vsel %vm591, %v3991, %v3914
          %v4039 = vsel %vm591, %v3994, %v3915
          %v4041 = vsel %vm591, %v3997, %v3916
          %v4043 = vsel %vm591, %v4000, %v3917
          %v4045 = vsel %vm591, %v4003, %v3918
          %v4047 = vsel %vm591, %v4006, %v3919
          %v4049 = vsel %vm591, %v4009, %v3920
          %v4051 = vsel %vm591, %v4012, %v3921
          %v4053 = vsel %vm591, %v4015, %v3922
          %v4055 = vsel %vm591, %v4018, %v3923
          %v4057 = vsel %vm591, %v4021, %v3924
          %v4059 = vsel %vm591, %v4024, %v3925
          %v4061 = vsel %vm591, %v4027, %v3926
          %v4063 = vsel %vm591, %v4030, %v3927
          %v4065 = vsel %vm591, %v4033, %v3928
          %vm4066 = vcmask 1045504
          %v4068 = vsel %vm4066, %v4035, %v3969
          %v4070 = vsel %vm4066, %v4037, %v3970
          %v4072 = vsel %vm4066, %v4039, %v3971
          %v4074 = vsel %vm4066, %v4041, %v3972
          %v4076 = vsel %vm4066, %v4043, %v3973
          %v4078 = vsel %vm4066, %v4045, %v3974
          %v4080 = vsel %vm4066, %v4047, %v3975
          %v4082 = vsel %vm4066, %v4049, %v3976
          %v4084 = vsel %vm4066, %v4051, %v3977
          %v4086 = vsel %vm4066, %v4053, %v3978
          %v4088 = vsel %vm4066, %v4055, %v3979
          %v4090 = vsel %vm4066, %v4057, %v3980
          %v4092 = vsel %vm4066, %v4059, %v3981
          %v4094 = vsel %vm4066, %v4061, %v3982
          %v4096 = vsel %vm4066, %v4063, %v3983
          %v4098 = vsel %vm4066, %v4065, %v3984
          %v4103 = vunpack.c.l.b16 %v4068
          %v4104 = vunpack.c.l.b16 %v4070
          %v4105 = vunpack.c.l.b16 %v4072
          %v4106 = vunpack.c.l.b16 %v4074
          %v4107 = vunpack.c.h.b16 %v4068
          %v4108 = vunpack.c.h.b16 %v4070
          %v4109 = vunpack.c.h.b16 %v4072
          %v4110 = vunpack.c.h.b16 %v4074
          %v4111 = vpack.c.b16 %v4104, %v4103
          %v4112 = vpack.c.b16 %v4106, %v4105
          %v4113 = vpack.c.b16 %v4108, %v4107
          %v4114 = vpack.c.b16 %v4110, %v4109
          %4119 = vst [vmem:[#allocation2] sm:$0xff] %v4111
          %4120 = vst [vmem:[#allocation2 + $0x8] sm:$0xff] %v4112
          %4121 = vst [vmem:[#allocation2 + $0x10] sm:$0xff] %v4113
          %4122 = vst [vmem:[#allocation2 + $0x18] sm:$0xff] %v4114
          %v4127 = vunpack.c.l.b16 %v4076
          %v4128 = vunpack.c.l.b16 %v4078
          %v4129 = vunpack.c.l.b16 %v4080
          %v4130 = vunpack.c.l.b16 %v4082
          %v4131 = vunpack.c.h.b16 %v4076
          %v4132 = vunpack.c.h.b16 %v4078
          %v4133 = vunpack.c.h.b16 %v4080
          %v4134 = vunpack.c.h.b16 %v4082
          %v4135 = vpack.c.b16 %v4128, %v4127
          %v4136 = vpack.c.b16 %v4130, %v4129
          %v4137 = vpack.c.b16 %v4132, %v4131
          %v4138 = vpack.c.b16 %v4134, %v4133
          %s4143 = scalar_lea.vmem [#allocation2], 32
          %4144 = vst [vmem:[%s4143] sm:$0xff] %v4135
          %4145 = vst [vmem:[%s4143 + $0x8] sm:$0xff] %v4136
          %4146 = vst [vmem:[%s4143 + $0x10] sm:$0xff] %v4137
          %4147 = vst [vmem:[%s4143 + $0x18] sm:$0xff] %v4138
          %v4152 = vunpack.c.l.b16 %v4084
          %v4153 = vunpack.c.l.b16 %v4086
          %v4154 = vunpack.c.l.b16 %v4088
          %v4155 = vunpack.c.l.b16 %v4090
          %v4156 = vunpack.c.h.b16 %v4084
          %v4157 = vunpack.c.h.b16 %v4086
          %v4158 = vunpack.c.h.b16 %v4088
          %v4159 = vunpack.c.h.b16 %v4090
          %v4160 = vpack.c.b16 %v4153, %v4152
          %v4161 = vpack.c.b16 %v4155, %v4154
          %v4162 = vpack.c.b16 %v4157, %v4156
          %v4163 = vpack.c.b16 %v4159, %v4158
          %s4168 = scalar_lea.vmem [#allocation2], 64
          %4169 = vst [vmem:[%s4168] sm:$0xff] %v4160
          %4170 = vst [vmem:[%s4168 + $0x8] sm:$0xff] %v4161
          %4171 = vst [vmem:[%s4168 + $0x10] sm:$0xff] %v4162
          %4172 = vst [vmem:[%s4168 + $0x18] sm:$0xff] %v4163
          %v4177 = vunpack.c.l.b16 %v4092
          %v4178 = vunpack.c.l.b16 %v4094
          %v4179 = vunpack.c.l.b16 %v4096
          %v4180 = vunpack.c.l.b16 %v4098
          %v4181 = vunpack.c.h.b16 %v4092
          %v4182 = vunpack.c.h.b16 %v4094
          %v4183 = vunpack.c.h.b16 %v4096
          %v4184 = vunpack.c.h.b16 %v4098
          %v4185 = vpack.c.b16 %v4178, %v4177
          %v4186 = vpack.c.b16 %v4180, %v4179
          %v4187 = vpack.c.b16 %v4182, %v4181
          %v4188 = vpack.c.b16 %v4184, %v4183
          %s4193 = scalar_lea.vmem [#allocation2], 96
          %4194 = vst [vmem:[%s4193] sm:$0xff] %v4185
          %4195 = vst [vmem:[%s4193 + $0x8] sm:$0xff] %v4186
          %4196 = vst [vmem:[%s4193 + $0x10] sm:$0xff] %v4187
          %4197 = vst [vmem:[%s4193 + $0x18] sm:$0xff] %v4188
          %4198 = vst [vmem:[#allocation3] sm:$0xff] 0.0
          %4199 = vst [vmem:[#allocation3 + $0x8] sm:$0xff] 0.0
          %4200 = vst [vmem:[#allocation3 + $0x10] sm:$0xff] 0.0
          %4201 = vst [vmem:[#allocation3 + $0x18] sm:$0xff] 0.0
          %4202 = vst [vmem:[#allocation3 + $0x20] sm:$0xff] 0.0
          %4203 = vst [vmem:[#allocation3 + $0x28] sm:$0xff] 0.0
          %4204 = vst [vmem:[#allocation3 + $0x30] sm:$0xff] 0.0
          %4205 = vst [vmem:[#allocation3 + $0x38] sm:$0xff] 0.0
          %4206 = vst [vmem:[#allocation3 + $0x40] sm:$0xff] 0.0
          %4207 = vst [vmem:[#allocation3 + $0x48] sm:$0xff] 0.0
          %4208 = vst [vmem:[#allocation3 + $0x50] sm:$0xff] 0.0
          %4209 = vst [vmem:[#allocation3 + $0x58] sm:$0xff] 0.0
          %4210 = vst [vmem:[#allocation3 + $0x60] sm:$0xff] 0.0
          %4211 = vst [vmem:[#allocation3 + $0x68] sm:$0xff] 0.0
          %4212 = vst [vmem:[#allocation3 + $0x70] sm:$0xff] 0.0
          %4213 = vst [vmem:[#allocation3 + $0x78] sm:$0xff] 0.0
          %4214 = vst [vmem:[#allocation4] sm:$0xff] 0.0
          %4215 = vst [vmem:[#allocation4 + $0x8] sm:$0xff] 0.0
          %4216 = vst [vmem:[#allocation4 + $0x10] sm:$0xff] 0.0
          %4217 = vst [vmem:[#allocation4 + $0x18] sm:$0xff] 0.0
        $region80: #{tpu_custom_call.1} parent=47 // pred_fallthru
          _
        %s4218 = smul.u32 %s39, 8
        %s4219 = smul.addr %s4218, 4
        %s4220 = scalar_lea.vmem [#allocation2], %s4219
        %v4221 = vld [vmem:[%s4220] sm:$0xff]
        %v4222 = vld [vmem:[%s4220 + $0x8] sm:$0xff]
        %v4223 = vld [vmem:[%s4220 + $0x10] sm:$0xff]
        %v4224 = vld [vmem:[%s4220 + $0x18] sm:$0xff]
        %v4225 = vld [vmem:[#allocation3] sm:$0xff]
        %v4226 = vld [vmem:[#allocation3 + $0x8] sm:$0xff]
        %v4227 = vld [vmem:[#allocation3 + $0x10] sm:$0xff]
        %v4228 = vld [vmem:[#allocation3 + $0x18] sm:$0xff]
        %v4229 = vld [vmem:[#allocation3 + $0x20] sm:$0xff]
        %v4230 = vld [vmem:[#allocation3 + $0x28] sm:$0xff]
        %v4231 = vld [vmem:[#allocation3 + $0x30] sm:$0xff]
        %v4232 = vld [vmem:[#allocation3 + $0x38] sm:$0xff]
        %v4233 = vld [vmem:[#allocation3 + $0x40] sm:$0xff]
        %v4234 = vld [vmem:[#allocation3 + $0x48] sm:$0xff]
        %v4235 = vld [vmem:[#allocation3 + $0x50] sm:$0xff]
        %v4236 = vld [vmem:[#allocation3 + $0x58] sm:$0xff]
        %v4237 = vld [vmem:[#allocation3 + $0x60] sm:$0xff]
        %v4238 = vld [vmem:[#allocation3 + $0x68] sm:$0xff]
        %v4239 = vld [vmem:[#allocation3 + $0x70] sm:$0xff]
        %v4240 = vld [vmem:[#allocation3 + $0x78] sm:$0xff]
        %v4241 = vld [vmem:[%s438] sm:$0xff]
        %v4242 = vld [vmem:[%s438 + $0x8] sm:$0xff]
        %v4243 = vld [vmem:[%s438 + $0x10] sm:$0xff]
        %v4244 = vld [vmem:[%s438 + $0x18] sm:$0xff]
        %v4245 = vld [vmem:[%s438 + $0x20] sm:$0xff]
        %v4246 = vld [vmem:[%s438 + $0x28] sm:$0xff]
        %v4247 = vld [vmem:[%s438 + $0x30] sm:$0xff]
        %v4248 = vld [vmem:[%s438 + $0x38] sm:$0xff]
        %v4249 = vld [vmem:[%s438 + $0x40] sm:$0xff]
        %v4250 = vld [vmem:[%s438 + $0x48] sm:$0xff]
        %v4251 = vld [vmem:[%s438 + $0x50] sm:$0xff]
        %v4252 = vld [vmem:[%s438 + $0x58] sm:$0xff]
        %v4253 = vld [vmem:[%s438 + $0x60] sm:$0xff]
        %v4254 = vld [vmem:[%s438 + $0x68] sm:$0xff]
        %v4255 = vld [vmem:[%s438 + $0x70] sm:$0xff]
        %v4256 = vld [vmem:[%s438 + $0x78] sm:$0xff]
        %v4257 = vld [vmem:[%s438 + $0x80] sm:$0xff]
        %v4258 = vld [vmem:[%s438 + $0x88] sm:$0xff]
        %v4259 = vld [vmem:[%s438 + $0x90] sm:$0xff]
        %v4260 = vld [vmem:[%s438 + $0x98] sm:$0xff]
        %v4261 = vld [vmem:[%s438 + $0xa0] sm:$0xff]
        %v4262 = vld [vmem:[%s438 + $0xa8] sm:$0xff]
        %v4263 = vld [vmem:[%s438 + $0xb0] sm:$0xff]
        %v4264 = vld [vmem:[%s438 + $0xb8] sm:$0xff]
        %v4265 = vld [vmem:[%s438 + $0xc0] sm:$0xff]
        %v4266 = vld [vmem:[%s438 + $0xc8] sm:$0xff]
        %v4267 = vld [vmem:[%s438 + $0xd0] sm:$0xff]
        %v4268 = vld [vmem:[%s438 + $0xd8] sm:$0xff]
        %v4269 = vld [vmem:[%s438 + $0xe0] sm:$0xff]
        %v4270 = vld [vmem:[%s438 + $0xe8] sm:$0xff]
        %v4271 = vld [vmem:[%s438 + $0xf0] sm:$0xff]
        %v4272 = vld [vmem:[%s438 + $0xf8] sm:$0xff]
        %v4273 = vld [vmem:[%s438 + $0x100] sm:$0xff]
        %v4274 = vld [vmem:[%s438 + $0x108] sm:$0xff]
        %v4275 = vld [vmem:[%s438 + $0x110] sm:$0xff]
        %v4276 = vld [vmem:[%s438 + $0x118] sm:$0xff]
        %v4277 = vld [vmem:[%s438 + $0x120] sm:$0xff]
        %v4278 = vld [vmem:[%s438 + $0x128] sm:$0xff]
        %v4279 = vld [vmem:[%s438 + $0x130] sm:$0xff]
        %v4280 = vld [vmem:[%s438 + $0x138] sm:$0xff]
        %v4281 = vld [vmem:[%s438 + $0x140] sm:$0xff]
        %v4282 = vld [vmem:[%s438 + $0x148] sm:$0xff]
        %v4283 = vld [vmem:[%s438 + $0x150] sm:$0xff]
        %v4284 = vld [vmem:[%s438 + $0x158] sm:$0xff]
        %v4285 = vld [vmem:[%s438 + $0x160] sm:$0xff]
        %v4286 = vld [vmem:[%s438 + $0x168] sm:$0xff]
        %v4287 = vld [vmem:[%s438 + $0x170] sm:$0xff]
        %v4288 = vld [vmem:[%s438 + $0x178] sm:$0xff]
        %v4289 = vld [vmem:[%s438 + $0x180] sm:$0xff]
        %v4290 = vld [vmem:[%s438 + $0x188] sm:$0xff]
        %v4291 = vld [vmem:[%s438 + $0x190] sm:$0xff]
        %v4292 = vld [vmem:[%s438 + $0x198] sm:$0xff]
        %v4293 = vld [vmem:[%s438 + $0x1a0] sm:$0xff]
        %v4294 = vld [vmem:[%s438 + $0x1a8] sm:$0xff]
        %v4295 = vld [vmem:[%s438 + $0x1b0] sm:$0xff]
        %v4296 = vld [vmem:[%s438 + $0x1b8] sm:$0xff]
        %v4297 = vld [vmem:[%s438 + $0x1c0] sm:$0xff]
        %v4298 = vld [vmem:[%s438 + $0x1c8] sm:$0xff]
        %v4299 = vld [vmem:[%s438 + $0x1d0] sm:$0xff]
        %v4300 = vld [vmem:[%s438 + $0x1d8] sm:$0xff]
        %v4301 = vld [vmem:[%s438 + $0x1e0] sm:$0xff]
        %v4302 = vld [vmem:[%s438 + $0x1e8] sm:$0xff]
        %v4303 = vld [vmem:[%s438 + $0x1f0] sm:$0xff]
        %v4304 = vld [vmem:[%s438 + $0x1f8] sm:$0xff]
        %v4305 = vld [vmem:[%s438 + $0x200] sm:$0xff]
        %v4306 = vld [vmem:[%s438 + $0x208] sm:$0xff]
        %v4307 = vld [vmem:[%s438 + $0x210] sm:$0xff]
        %v4308 = vld [vmem:[%s438 + $0x218] sm:$0xff]
        %v4309 = vld [vmem:[%s438 + $0x220] sm:$0xff]
        %v4310 = vld [vmem:[%s438 + $0x228] sm:$0xff]
        %v4311 = vld [vmem:[%s438 + $0x230] sm:$0xff]
        %v4312 = vld [vmem:[%s438 + $0x238] sm:$0xff]
        %v4313 = vld [vmem:[%s438 + $0x240] sm:$0xff]
        %v4314 = vld [vmem:[%s438 + $0x248] sm:$0xff]
        %v4315 = vld [vmem:[%s438 + $0x250] sm:$0xff]
        %v4316 = vld [vmem:[%s438 + $0x258] sm:$0xff]
        %v4317 = vld [vmem:[%s438 + $0x260] sm:$0xff]
        %v4318 = vld [vmem:[%s438 + $0x268] sm:$0xff]
        %v4319 = vld [vmem:[%s438 + $0x270] sm:$0xff]
        %v4320 = vld [vmem:[%s438 + $0x278] sm:$0xff]
        %v4321 = vld [vmem:[%s438 + $0x280] sm:$0xff]
        %v4322 = vld [vmem:[%s438 + $0x288] sm:$0xff]
        %v4323 = vld [vmem:[%s438 + $0x290] sm:$0xff]
        %v4324 = vld [vmem:[%s438 + $0x298] sm:$0xff]
        %v4325 = vld [vmem:[%s438 + $0x2a0] sm:$0xff]
        %v4326 = vld [vmem:[%s438 + $0x2a8] sm:$0xff]
        %v4327 = vld [vmem:[%s438 + $0x2b0] sm:$0xff]
        %v4328 = vld [vmem:[%s438 + $0x2b8] sm:$0xff]
        %v4329 = vld [vmem:[%s438 + $0x2c0] sm:$0xff]
        %v4330 = vld [vmem:[%s438 + $0x2c8] sm:$0xff]
        %v4331 = vld [vmem:[%s438 + $0x2d0] sm:$0xff]
        %v4332 = vld [vmem:[%s438 + $0x2d8] sm:$0xff]
        %v4333 = vld [vmem:[%s438 + $0x2e0] sm:$0xff]
        %v4334 = vld [vmem:[%s438 + $0x2e8] sm:$0xff]
        %v4335 = vld [vmem:[%s438 + $0x2f0] sm:$0xff]
        %v4336 = vld [vmem:[%s438 + $0x2f8] sm:$0xff]
        %v4337 = vld [vmem:[%s438 + $0x300] sm:$0xff]
        %v4338 = vld [vmem:[%s438 + $0x308] sm:$0xff]
        %v4339 = vld [vmem:[%s438 + $0x310] sm:$0xff]
        %v4340 = vld [vmem:[%s438 + $0x318] sm:$0xff]
        %v4341 = vld [vmem:[%s438 + $0x320] sm:$0xff]
        %v4342 = vld [vmem:[%s438 + $0x328] sm:$0xff]
        %v4343 = vld [vmem:[%s438 + $0x330] sm:$0xff]
        %v4344 = vld [vmem:[%s438 + $0x338] sm:$0xff]
        %v4345 = vld [vmem:[%s438 + $0x340] sm:$0xff]
        %v4346 = vld [vmem:[%s438 + $0x348] sm:$0xff]
        %v4347 = vld [vmem:[%s438 + $0x350] sm:$0xff]
        %v4348 = vld [vmem:[%s438 + $0x358] sm:$0xff]
        %v4349 = vld [vmem:[%s438 + $0x360] sm:$0xff]
        %v4350 = vld [vmem:[%s438 + $0x368] sm:$0xff]
        %v4351 = vld [vmem:[%s438 + $0x370] sm:$0xff]
        %v4352 = vld [vmem:[%s438 + $0x378] sm:$0xff]
        %v4353 = vld [vmem:[%s438 + $0x380] sm:$0xff]
        %v4354 = vld [vmem:[%s438 + $0x388] sm:$0xff]
        %v4355 = vld [vmem:[%s438 + $0x390] sm:$0xff]
        %v4356 = vld [vmem:[%s438 + $0x398] sm:$0xff]
        %v4357 = vld [vmem:[%s438 + $0x3a0] sm:$0xff]
        %v4358 = vld [vmem:[%s438 + $0x3a8] sm:$0xff]
        %v4359 = vld [vmem:[%s438 + $0x3b0] sm:$0xff]
        %v4360 = vld [vmem:[%s438 + $0x3b8] sm:$0xff]
        %v4361 = vld [vmem:[%s438 + $0x3c0] sm:$0xff]
        %v4362 = vld [vmem:[%s438 + $0x3c8] sm:$0xff]
        %v4363 = vld [vmem:[%s438 + $0x3d0] sm:$0xff]
        %v4364 = vld [vmem:[%s438 + $0x3d8] sm:$0xff]
        %v4365 = vld [vmem:[%s438 + $0x3e0] sm:$0xff]
        %v4366 = vld [vmem:[%s438 + $0x3e8] sm:$0xff]
        %v4367 = vld [vmem:[%s438 + $0x3f0] sm:$0xff]
        %v4368 = vld [vmem:[%s438 + $0x3f8] sm:$0xff]
        %v4369 = vld [vmem:[%s438 + $0x400] sm:$0xff]
        %v4370 = vld [vmem:[%s438 + $0x408] sm:$0xff]
        %v4371 = vld [vmem:[%s438 + $0x410] sm:$0xff]
        %v4372 = vld [vmem:[%s438 + $0x418] sm:$0xff]
        %v4373 = vld [vmem:[%s438 + $0x420] sm:$0xff]
        %v4374 = vld [vmem:[%s438 + $0x428] sm:$0xff]
        %v4375 = vld [vmem:[%s438 + $0x430] sm:$0xff]
        %v4376 = vld [vmem:[%s438 + $0x438] sm:$0xff]
        %v4377 = vld [vmem:[%s438 + $0x440] sm:$0xff]
        %v4378 = vld [vmem:[%s438 + $0x448] sm:$0xff]
        %v4379 = vld [vmem:[%s438 + $0x450] sm:$0xff]
        %v4380 = vld [vmem:[%s438 + $0x458] sm:$0xff]
        %v4381 = vld [vmem:[%s438 + $0x460] sm:$0xff]
        %v4382 = vld [vmem:[%s438 + $0x468] sm:$0xff]
        %v4383 = vld [vmem:[%s438 + $0x470] sm:$0xff]
        %v4384 = vld [vmem:[%s438 + $0x478] sm:$0xff]
        %v4385 = vld [vmem:[%s438 + $0x480] sm:$0xff]
        %v4386 = vld [vmem:[%s438 + $0x488] sm:$0xff]
        %v4387 = vld [vmem:[%s438 + $0x490] sm:$0xff]
        %v4388 = vld [vmem:[%s438 + $0x498] sm:$0xff]
        %v4389 = vld [vmem:[%s438 + $0x4a0] sm:$0xff]
        %v4390 = vld [vmem:[%s438 + $0x4a8] sm:$0xff]
        %v4391 = vld [vmem:[%s438 + $0x4b0] sm:$0xff]
        %v4392 = vld [vmem:[%s438 + $0x4b8] sm:$0xff]
        %v4393 = vld [vmem:[%s438 + $0x4c0] sm:$0xff]
        %v4394 = vld [vmem:[%s438 + $0x4c8] sm:$0xff]
        %v4395 = vld [vmem:[%s438 + $0x4d0] sm:$0xff]
        %v4396 = vld [vmem:[%s438 + $0x4d8] sm:$0xff]
        %v4397 = vld [vmem:[%s438 + $0x4e0] sm:$0xff]
        %v4398 = vld [vmem:[%s438 + $0x4e8] sm:$0xff]
        %v4399 = vld [vmem:[%s438 + $0x4f0] sm:$0xff]
        %v4400 = vld [vmem:[%s438 + $0x4f8] sm:$0xff]
        %v4401 = vld [vmem:[%s438 + $0x500] sm:$0xff]
        %v4402 = vld [vmem:[%s438 + $0x508] sm:$0xff]
        %v4403 = vld [vmem:[%s438 + $0x510] sm:$0xff]
        %v4404 = vld [vmem:[%s438 + $0x518] sm:$0xff]
        %v4405 = vld [vmem:[%s438 + $0x520] sm:$0xff]
        %v4406 = vld [vmem:[%s438 + $0x528] sm:$0xff]
        %v4407 = vld [vmem:[%s438 + $0x530] sm:$0xff]
        %v4408 = vld [vmem:[%s438 + $0x538] sm:$0xff]
        %v4409 = vld [vmem:[%s438 + $0x540] sm:$0xff]
        %v4410 = vld [vmem:[%s438 + $0x548] sm:$0xff]
        %v4411 = vld [vmem:[%s438 + $0x550] sm:$0xff]
        %v4412 = vld [vmem:[%s438 + $0x558] sm:$0xff]
        %v4413 = vld [vmem:[%s438 + $0x560] sm:$0xff]
        %v4414 = vld [vmem:[%s438 + $0x568] sm:$0xff]
        %v4415 = vld [vmem:[%s438 + $0x570] sm:$0xff]
        %v4416 = vld [vmem:[%s438 + $0x578] sm:$0xff]
        %v4417 = vld [vmem:[%s438 + $0x580] sm:$0xff]
        %v4418 = vld [vmem:[%s438 + $0x588] sm:$0xff]
        %v4419 = vld [vmem:[%s438 + $0x590] sm:$0xff]
        %v4420 = vld [vmem:[%s438 + $0x598] sm:$0xff]
        %v4421 = vld [vmem:[%s438 + $0x5a0] sm:$0xff]
        %v4422 = vld [vmem:[%s438 + $0x5a8] sm:$0xff]
        %v4423 = vld [vmem:[%s438 + $0x5b0] sm:$0xff]
        %v4424 = vld [vmem:[%s438 + $0x5b8] sm:$0xff]
        %v4425 = vld [vmem:[%s438 + $0x5c0] sm:$0xff]
        %v4426 = vld [vmem:[%s438 + $0x5c8] sm:$0xff]
        %v4427 = vld [vmem:[%s438 + $0x5d0] sm:$0xff]
        %v4428 = vld [vmem:[%s438 + $0x5d8] sm:$0xff]
        %v4429 = vld [vmem:[%s438 + $0x5e0] sm:$0xff]
        %v4430 = vld [vmem:[%s438 + $0x5e8] sm:$0xff]
        %v4431 = vld [vmem:[%s438 + $0x5f0] sm:$0xff]
        %v4432 = vld [vmem:[%s438 + $0x5f8] sm:$0xff]
        %v4433 = vld [vmem:[%s438 + $0x600] sm:$0xff]
        %v4434 = vld [vmem:[%s438 + $0x608] sm:$0xff]
        %v4435 = vld [vmem:[%s438 + $0x610] sm:$0xff]
        %v4436 = vld [vmem:[%s438 + $0x618] sm:$0xff]
        %v4437 = vld [vmem:[%s438 + $0x620] sm:$0xff]
        %v4438 = vld [vmem:[%s438 + $0x628] sm:$0xff]
        %v4439 = vld [vmem:[%s438 + $0x630] sm:$0xff]
        %v4440 = vld [vmem:[%s438 + $0x638] sm:$0xff]
        %v4441 = vld [vmem:[%s438 + $0x640] sm:$0xff]
        %v4442 = vld [vmem:[%s438 + $0x648] sm:$0xff]
        %v4443 = vld [vmem:[%s438 + $0x650] sm:$0xff]
        %v4444 = vld [vmem:[%s438 + $0x658] sm:$0xff]
        %v4445 = vld [vmem:[%s438 + $0x660] sm:$0xff]
        %v4446 = vld [vmem:[%s438 + $0x668] sm:$0xff]
        %v4447 = vld [vmem:[%s438 + $0x670] sm:$0xff]
        %v4448 = vld [vmem:[%s438 + $0x678] sm:$0xff]
        %v4449 = vld [vmem:[%s438 + $0x680] sm:$0xff]
        %v4450 = vld [vmem:[%s438 + $0x688] sm:$0xff]
        %v4451 = vld [vmem:[%s438 + $0x690] sm:$0xff]
        %v4452 = vld [vmem:[%s438 + $0x698] sm:$0xff]
        %v4453 = vld [vmem:[%s438 + $0x6a0] sm:$0xff]
        %v4454 = vld [vmem:[%s438 + $0x6a8] sm:$0xff]
        %v4455 = vld [vmem:[%s438 + $0x6b0] sm:$0xff]
        %v4456 = vld [vmem:[%s438 + $0x6b8] sm:$0xff]
        %v4457 = vld [vmem:[%s438 + $0x6c0] sm:$0xff]
        %v4458 = vld [vmem:[%s438 + $0x6c8] sm:$0xff]
        %v4459 = vld [vmem:[%s438 + $0x6d0] sm:$0xff]
        %v4460 = vld [vmem:[%s438 + $0x6d8] sm:$0xff]
        %v4461 = vld [vmem:[%s438 + $0x6e0] sm:$0xff]
        %v4462 = vld [vmem:[%s438 + $0x6e8] sm:$0xff]
        %v4463 = vld [vmem:[%s438 + $0x6f0] sm:$0xff]
        %v4464 = vld [vmem:[%s438 + $0x6f8] sm:$0xff]
        %v4465 = vld [vmem:[%s438 + $0x700] sm:$0xff]
        %v4466 = vld [vmem:[%s438 + $0x708] sm:$0xff]
        %v4467 = vld [vmem:[%s438 + $0x710] sm:$0xff]
        %v4468 = vld [vmem:[%s438 + $0x718] sm:$0xff]
        %v4469 = vld [vmem:[%s438 + $0x720] sm:$0xff]
        %v4470 = vld [vmem:[%s438 + $0x728] sm:$0xff]
        %v4471 = vld [vmem:[%s438 + $0x730] sm:$0xff]
        %v4472 = vld [vmem:[%s438 + $0x738] sm:$0xff]
        %v4473 = vld [vmem:[%s438 + $0x740] sm:$0xff]
        %v4474 = vld [vmem:[%s438 + $0x748] sm:$0xff]
        %v4475 = vld [vmem:[%s438 + $0x750] sm:$0xff]
        %v4476 = vld [vmem:[%s438 + $0x758] sm:$0xff]
        %v4477 = vld [vmem:[%s438 + $0x760] sm:$0xff]
        %v4478 = vld [vmem:[%s438 + $0x768] sm:$0xff]
        %v4479 = vld [vmem:[%s438 + $0x770] sm:$0xff]
        %v4480 = vld [vmem:[%s438 + $0x778] sm:$0xff]
        %v4481 = vld [vmem:[%s438 + $0x780] sm:$0xff]
        %v4482 = vld [vmem:[%s438 + $0x788] sm:$0xff]
        %v4483 = vld [vmem:[%s438 + $0x790] sm:$0xff]
        %v4484 = vld [vmem:[%s438 + $0x798] sm:$0xff]
        %v4485 = vld [vmem:[%s438 + $0x7a0] sm:$0xff]
        %v4486 = vld [vmem:[%s438 + $0x7a8] sm:$0xff]
        %v4487 = vld [vmem:[%s438 + $0x7b0] sm:$0xff]
        %v4488 = vld [vmem:[%s438 + $0x7b8] sm:$0xff]
        %v4489 = vld [vmem:[%s438 + $0x7c0] sm:$0xff]
        %v4490 = vld [vmem:[%s438 + $0x7c8] sm:$0xff]
        %v4491 = vld [vmem:[%s438 + $0x7d0] sm:$0xff]
        %v4492 = vld [vmem:[%s438 + $0x7d8] sm:$0xff]
        %v4493 = vld [vmem:[%s438 + $0x7e0] sm:$0xff]
        %v4494 = vld [vmem:[%s438 + $0x7e8] sm:$0xff]
        %v4495 = vld [vmem:[%s438 + $0x7f0] sm:$0xff]
        %v4496 = vld [vmem:[%s438 + $0x7f8] sm:$0xff]
        %v4501 = vunpack.c.l.b16 %v4221
        %v4502 = vunpack.c.h.b16 %v4221
        %v4503 = vunpack.c.l.b16 %v4222
        %v4504 = vunpack.c.h.b16 %v4222
        %v4505 = vunpack.c.l.b16 %v4223
        %v4506 = vunpack.c.h.b16 %v4223
        %v4507 = vunpack.c.l.b16 %v4224
        %v4508 = vunpack.c.h.b16 %v4224
        %v4509 = vpack.c.b16 %v4505, %v4501
        %v4510 = vpack.c.b16 %v4506, %v4502
        %v4511 = vpack.c.b16 %v4507, %v4503
        %v4512 = vpack.c.b16 %v4508, %v4504
        %v4773 = vunpack.c.l.b16 %v4241
        %v4774 = vunpack.c.h.b16 %v4241
        %v4775 = vunpack.c.l.b16 %v4242
        %v4776 = vunpack.c.h.b16 %v4242
        %v4777 = vunpack.c.l.b16 %v4243
        %v4778 = vunpack.c.h.b16 %v4243
        %v4779 = vunpack.c.l.b16 %v4244
        %v4780 = vunpack.c.h.b16 %v4244
        %v4781 = vunpack.c.l.b16 %v4245
        %v4782 = vunpack.c.h.b16 %v4245
        %v4783 = vunpack.c.l.b16 %v4246
        %v4784 = vunpack.c.h.b16 %v4246
        %v4785 = vunpack.c.l.b16 %v4247
        %v4786 = vunpack.c.h.b16 %v4247
        %v4787 = vunpack.c.l.b16 %v4248
        %v4788 = vunpack.c.h.b16 %v4248
        %v4789 = vunpack.c.l.b16 %v4249
        %v4790 = vunpack.c.h.b16 %v4249
        %v4791 = vunpack.c.l.b16 %v4250
        %v4792 = vunpack.c.h.b16 %v4250
        %v4793 = vunpack.c.l.b16 %v4251
        %v4794 = vunpack.c.h.b16 %v4251
        %v4795 = vunpack.c.l.b16 %v4252
        %v4796 = vunpack.c.h.b16 %v4252
        %v4797 = vunpack.c.l.b16 %v4253
        %v4798 = vunpack.c.h.b16 %v4253
        %v4799 = vunpack.c.l.b16 %v4254
        %v4800 = vunpack.c.h.b16 %v4254
        %v4801 = vunpack.c.l.b16 %v4255
        %v4802 = vunpack.c.h.b16 %v4255
        %v4803 = vunpack.c.l.b16 %v4256
        %v4804 = vunpack.c.h.b16 %v4256
        %v4805 = vunpack.c.l.b16 %v4257
        %v4806 = vunpack.c.h.b16 %v4257
        %v4807 = vunpack.c.l.b16 %v4258
        %v4808 = vunpack.c.h.b16 %v4258
        %v4809 = vunpack.c.l.b16 %v4259
        %v4810 = vunpack.c.h.b16 %v4259
        %v4811 = vunpack.c.l.b16 %v4260
        %v4812 = vunpack.c.h.b16 %v4260
        %v4813 = vunpack.c.l.b16 %v4261
        %v4814 = vunpack.c.h.b16 %v4261
        %v4815 = vunpack.c.l.b16 %v4262
        %v4816 = vunpack.c.h.b16 %v4262
        %v4817 = vunpack.c.l.b16 %v4263
        %v4818 = vunpack.c.h.b16 %v4263
        %v4819 = vunpack.c.l.b16 %v4264
        %v4820 = vunpack.c.h.b16 %v4264
        %v4821 = vunpack.c.l.b16 %v4265
        %v4822 = vunpack.c.h.b16 %v4265
        %v4823 = vunpack.c.l.b16 %v4266
        %v4824 = vunpack.c.h.b16 %v4266
        %v4825 = vunpack.c.l.b16 %v4267
        %v4826 = vunpack.c.h.b16 %v4267
        %v4827 = vunpack.c.l.b16 %v4268
        %v4828 = vunpack.c.h.b16 %v4268
        %v4829 = vunpack.c.l.b16 %v4269
        %v4830 = vunpack.c.h.b16 %v4269
        %v4831 = vunpack.c.l.b16 %v4270
        %v4832 = vunpack.c.h.b16 %v4270
        %v4833 = vunpack.c.l.b16 %v4271
        %v4834 = vunpack.c.h.b16 %v4271
        %v4835 = vunpack.c.l.b16 %v4272
        %v4836 = vunpack.c.h.b16 %v4272
        %v4837 = vunpack.c.l.b16 %v4273
        %v4838 = vunpack.c.h.b16 %v4273
        %v4839 = vunpack.c.l.b16 %v4274
        %v4840 = vunpack.c.h.b16 %v4274
        %v4841 = vunpack.c.l.b16 %v4275
        %v4842 = vunpack.c.h.b16 %v4275
        %v4843 = vunpack.c.l.b16 %v4276
        %v4844 = vunpack.c.h.b16 %v4276
        %v4845 = vunpack.c.l.b16 %v4277
        %v4846 = vunpack.c.h.b16 %v4277
        %v4847 = vunpack.c.l.b16 %v4278
        %v4848 = vunpack.c.h.b16 %v4278
        %v4849 = vunpack.c.l.b16 %v4279
        %v4850 = vunpack.c.h.b16 %v4279
        %v4851 = vunpack.c.l.b16 %v4280
        %v4852 = vunpack.c.h.b16 %v4280
        %v4853 = vunpack.c.l.b16 %v4281
        %v4854 = vunpack.c.h.b16 %v4281
        %v4855 = vunpack.c.l.b16 %v4282
        %v4856 = vunpack.c.h.b16 %v4282
        %v4857 = vunpack.c.l.b16 %v4283
        %v4858 = vunpack.c.h.b16 %v4283
        %v4859 = vunpack.c.l.b16 %v4284
        %v4860 = vunpack.c.h.b16 %v4284
        %v4861 = vunpack.c.l.b16 %v4285
        %v4862 = vunpack.c.h.b16 %v4285
        %v4863 = vunpack.c.l.b16 %v4286
        %v4864 = vunpack.c.h.b16 %v4286
        %v4865 = vunpack.c.l.b16 %v4287
        %v4866 = vunpack.c.h.b16 %v4287
        %v4867 = vunpack.c.l.b16 %v4288
        %v4868 = vunpack.c.h.b16 %v4288
        %v4869 = vunpack.c.l.b16 %v4289
        %v4870 = vunpack.c.h.b16 %v4289
        %v4871 = vunpack.c.l.b16 %v4290
        %v4872 = vunpack.c.h.b16 %v4290
        %v4873 = vunpack.c.l.b16 %v4291
        %v4874 = vunpack.c.h.b16 %v4291
        %v4875 = vunpack.c.l.b16 %v4292
        %v4876 = vunpack.c.h.b16 %v4292
        %v4877 = vunpack.c.l.b16 %v4293
        %v4878 = vunpack.c.h.b16 %v4293
        %v4879 = vunpack.c.l.b16 %v4294
        %v4880 = vunpack.c.h.b16 %v4294
        %v4881 = vunpack.c.l.b16 %v4295
        %v4882 = vunpack.c.h.b16 %v4295
        %v4883 = vunpack.c.l.b16 %v4296
        %v4884 = vunpack.c.h.b16 %v4296
        %v4885 = vunpack.c.l.b16 %v4297
        %v4886 = vunpack.c.h.b16 %v4297
        %v4887 = vunpack.c.l.b16 %v4298
        %v4888 = vunpack.c.h.b16 %v4298
        %v4889 = vunpack.c.l.b16 %v4299
        %v4890 = vunpack.c.h.b16 %v4299
        %v4891 = vunpack.c.l.b16 %v4300
        %v4892 = vunpack.c.h.b16 %v4300
        %v4893 = vunpack.c.l.b16 %v4301
        %v4894 = vunpack.c.h.b16 %v4301
        %v4895 = vunpack.c.l.b16 %v4302
        %v4896 = vunpack.c.h.b16 %v4302
        %v4897 = vunpack.c.l.b16 %v4303
        %v4898 = vunpack.c.h.b16 %v4303
        %v4899 = vunpack.c.l.b16 %v4304
        %v4900 = vunpack.c.h.b16 %v4304
        %v4901 = vunpack.c.l.b16 %v4305
        %v4902 = vunpack.c.h.b16 %v4305
        %v4903 = vunpack.c.l.b16 %v4306
        %v4904 = vunpack.c.h.b16 %v4306
        %v4905 = vunpack.c.l.b16 %v4307
        %v4906 = vunpack.c.h.b16 %v4307
        %v4907 = vunpack.c.l.b16 %v4308
        %v4908 = vunpack.c.h.b16 %v4308
        %v4909 = vunpack.c.l.b16 %v4309
        %v4910 = vunpack.c.h.b16 %v4309
        %v4911 = vunpack.c.l.b16 %v4310
        %v4912 = vunpack.c.h.b16 %v4310
        %v4913 = vunpack.c.l.b16 %v4311
        %v4914 = vunpack.c.h.b16 %v4311
        %v4915 = vunpack.c.l.b16 %v4312
        %v4916 = vunpack.c.h.b16 %v4312
        %v4917 = vunpack.c.l.b16 %v4313
        %v4918 = vunpack.c.h.b16 %v4313
        %v4919 = vunpack.c.l.b16 %v4314
        %v4920 = vunpack.c.h.b16 %v4314
        %v4921 = vunpack.c.l.b16 %v4315
        %v4922 = vunpack.c.h.b16 %v4315
        %v4923 = vunpack.c.l.b16 %v4316
        %v4924 = vunpack.c.h.b16 %v4316
        %v4925 = vunpack.c.l.b16 %v4317
        %v4926 = vunpack.c.h.b16 %v4317
        %v4927 = vunpack.c.l.b16 %v4318
        %v4928 = vunpack.c.h.b16 %v4318
        %v4929 = vunpack.c.l.b16 %v4319
        %v4930 = vunpack.c.h.b16 %v4319
        %v4931 = vunpack.c.l.b16 %v4320
        %v4932 = vunpack.c.h.b16 %v4320
        %v4933 = vunpack.c.l.b16 %v4321
        %v4934 = vunpack.c.h.b16 %v4321
        %v4935 = vunpack.c.l.b16 %v4322
        %v4936 = vunpack.c.h.b16 %v4322
        %v4937 = vunpack.c.l.b16 %v4323
        %v4938 = vunpack.c.h.b16 %v4323
        %v4939 = vunpack.c.l.b16 %v4324
        %v4940 = vunpack.c.h.b16 %v4324
        %v4941 = vunpack.c.l.b16 %v4325
        %v4942 = vunpack.c.h.b16 %v4325
        %v4943 = vunpack.c.l.b16 %v4326
        %v4944 = vunpack.c.h.b16 %v4326
        %v4945 = vunpack.c.l.b16 %v4327
        %v4946 = vunpack.c.h.b16 %v4327
        %v4947 = vunpack.c.l.b16 %v4328
        %v4948 = vunpack.c.h.b16 %v4328
        %v4949 = vunpack.c.l.b16 %v4329
        %v4950 = vunpack.c.h.b16 %v4329
        %v4951 = vunpack.c.l.b16 %v4330
        %v4952 = vunpack.c.h.b16 %v4330
        %v4953 = vunpack.c.l.b16 %v4331
        %v4954 = vunpack.c.h.b16 %v4331
        %v4955 = vunpack.c.l.b16 %v4332
        %v4956 = vunpack.c.h.b16 %v4332
        %v4957 = vunpack.c.l.b16 %v4333
        %v4958 = vunpack.c.h.b16 %v4333
        %v4959 = vunpack.c.l.b16 %v4334
        %v4960 = vunpack.c.h.b16 %v4334
        %v4961 = vunpack.c.l.b16 %v4335
        %v4962 = vunpack.c.h.b16 %v4335
        %v4963 = vunpack.c.l.b16 %v4336
        %v4964 = vunpack.c.h.b16 %v4336
        %v4965 = vunpack.c.l.b16 %v4337
        %v4966 = vunpack.c.h.b16 %v4337
        %v4967 = vunpack.c.l.b16 %v4338
        %v4968 = vunpack.c.h.b16 %v4338
        %v4969 = vunpack.c.l.b16 %v4339
        %v4970 = vunpack.c.h.b16 %v4339
        %v4971 = vunpack.c.l.b16 %v4340
        %v4972 = vunpack.c.h.b16 %v4340
        %v4973 = vunpack.c.l.b16 %v4341
        %v4974 = vunpack.c.h.b16 %v4341
        %v4975 = vunpack.c.l.b16 %v4342
        %v4976 = vunpack.c.h.b16 %v4342
        %v4977 = vunpack.c.l.b16 %v4343
        %v4978 = vunpack.c.h.b16 %v4343
        %v4979 = vunpack.c.l.b16 %v4344
        %v4980 = vunpack.c.h.b16 %v4344
        %v4981 = vunpack.c.l.b16 %v4345
        %v4982 = vunpack.c.h.b16 %v4345
        %v4983 = vunpack.c.l.b16 %v4346
        %v4984 = vunpack.c.h.b16 %v4346
        %v4985 = vunpack.c.l.b16 %v4347
        %v4986 = vunpack.c.h.b16 %v4347
        %v4987 = vunpack.c.l.b16 %v4348
        %v4988 = vunpack.c.h.b16 %v4348
        %v4989 = vunpack.c.l.b16 %v4349
        %v4990 = vunpack.c.h.b16 %v4349
        %v4991 = vunpack.c.l.b16 %v4350
        %v4992 = vunpack.c.h.b16 %v4350
        %v4993 = vunpack.c.l.b16 %v4351
        %v4994 = vunpack.c.h.b16 %v4351
        %v4995 = vunpack.c.l.b16 %v4352
        %v4996 = vunpack.c.h.b16 %v4352
        %v4997 = vunpack.c.l.b16 %v4353
        %v4998 = vunpack.c.h.b16 %v4353
        %v4999 = vunpack.c.l.b16 %v4354
        %v5000 = vunpack.c.h.b16 %v4354
        %v5001 = vunpack.c.l.b16 %v4355
        %v5002 = vunpack.c.h.b16 %v4355
        %v5003 = vunpack.c.l.b16 %v4356
        %v5004 = vunpack.c.h.b16 %v4356
        %v5005 = vunpack.c.l.b16 %v4357
        %v5006 = vunpack.c.h.b16 %v4357
        %v5007 = vunpack.c.l.b16 %v4358
        %v5008 = vunpack.c.h.b16 %v4358
        %v5009 = vunpack.c.l.b16 %v4359
        %v5010 = vunpack.c.h.b16 %v4359
        %v5011 = vunpack.c.l.b16 %v4360
        %v5012 = vunpack.c.h.b16 %v4360
        %v5013 = vunpack.c.l.b16 %v4361
        %v5014 = vunpack.c.h.b16 %v4361
        %v5015 = vunpack.c.l.b16 %v4362
        %v5016 = vunpack.c.h.b16 %v4362
        %v5017 = vunpack.c.l.b16 %v4363
        %v5018 = vunpack.c.h.b16 %v4363
        %v5019 = vunpack.c.l.b16 %v4364
        %v5020 = vunpack.c.h.b16 %v4364
        %v5021 = vunpack.c.l.b16 %v4365
        %v5022 = vunpack.c.h.b16 %v4365
        %v5023 = vunpack.c.l.b16 %v4366
        %v5024 = vunpack.c.h.b16 %v4366
        %v5025 = vunpack.c.l.b16 %v4367
        %v5026 = vunpack.c.h.b16 %v4367
        %v5027 = vunpack.c.l.b16 %v4368
        %v5028 = vunpack.c.h.b16 %v4368
        %v5029 = vunpack.c.l.b16 %v4369
        %v5030 = vunpack.c.h.b16 %v4369
        %v5031 = vunpack.c.l.b16 %v4370
        %v5032 = vunpack.c.h.b16 %v4370
        %v5033 = vunpack.c.l.b16 %v4371
        %v5034 = vunpack.c.h.b16 %v4371
        %v5035 = vunpack.c.l.b16 %v4372
        %v5036 = vunpack.c.h.b16 %v4372
        %v5037 = vunpack.c.l.b16 %v4373
        %v5038 = vunpack.c.h.b16 %v4373
        %v5039 = vunpack.c.l.b16 %v4374
        %v5040 = vunpack.c.h.b16 %v4374
        %v5041 = vunpack.c.l.b16 %v4375
        %v5042 = vunpack.c.h.b16 %v4375
        %v5043 = vunpack.c.l.b16 %v4376
        %v5044 = vunpack.c.h.b16 %v4376
        %v5045 = vunpack.c.l.b16 %v4377
        %v5046 = vunpack.c.h.b16 %v4377
        %v5047 = vunpack.c.l.b16 %v4378
        %v5048 = vunpack.c.h.b16 %v4378
        %v5049 = vunpack.c.l.b16 %v4379
        %v5050 = vunpack.c.h.b16 %v4379
        %v5051 = vunpack.c.l.b16 %v4380
        %v5052 = vunpack.c.h.b16 %v4380
        %v5053 = vunpack.c.l.b16 %v4381
        %v5054 = vunpack.c.h.b16 %v4381
        %v5055 = vunpack.c.l.b16 %v4382
        %v5056 = vunpack.c.h.b16 %v4382
        %v5057 = vunpack.c.l.b16 %v4383
        %v5058 = vunpack.c.h.b16 %v4383
        %v5059 = vunpack.c.l.b16 %v4384
        %v5060 = vunpack.c.h.b16 %v4384
        %v5061 = vunpack.c.l.b16 %v4385
        %v5062 = vunpack.c.h.b16 %v4385
        %v5063 = vunpack.c.l.b16 %v4386
        %v5064 = vunpack.c.h.b16 %v4386
        %v5065 = vunpack.c.l.b16 %v4387
        %v5066 = vunpack.c.h.b16 %v4387
        %v5067 = vunpack.c.l.b16 %v4388
        %v5068 = vunpack.c.h.b16 %v4388
        %v5069 = vunpack.c.l.b16 %v4389
        %v5070 = vunpack.c.h.b16 %v4389
        %v5071 = vunpack.c.l.b16 %v4390
        %v5072 = vunpack.c.h.b16 %v4390
        %v5073 = vunpack.c.l.b16 %v4391
        %v5074 = vunpack.c.h.b16 %v4391
        %v5075 = vunpack.c.l.b16 %v4392
        %v5076 = vunpack.c.h.b16 %v4392
        %v5077 = vunpack.c.l.b16 %v4393
        %v5078 = vunpack.c.h.b16 %v4393
        %v5079 = vunpack.c.l.b16 %v4394
        %v5080 = vunpack.c.h.b16 %v4394
        %v5081 = vunpack.c.l.b16 %v4395
        %v5082 = vunpack.c.h.b16 %v4395
        %v5083 = vunpack.c.l.b16 %v4396
        %v5084 = vunpack.c.h.b16 %v4396
        %v5085 = vunpack.c.l.b16 %v4397
        %v5086 = vunpack.c.h.b16 %v4397
        %v5087 = vunpack.c.l.b16 %v4398
        %v5088 = vunpack.c.h.b16 %v4398
        %v5089 = vunpack.c.l.b16 %v4399
        %v5090 = vunpack.c.h.b16 %v4399
        %v5091 = vunpack.c.l.b16 %v4400
        %v5092 = vunpack.c.h.b16 %v4400
        %v5093 = vunpack.c.l.b16 %v4401
        %v5094 = vunpack.c.h.b16 %v4401
        %v5095 = vunpack.c.l.b16 %v4402
        %v5096 = vunpack.c.h.b16 %v4402
        %v5097 = vunpack.c.l.b16 %v4403
        %v5098 = vunpack.c.h.b16 %v4403
        %v5099 = vunpack.c.l.b16 %v4404
        %v5100 = vunpack.c.h.b16 %v4404
        %v5101 = vunpack.c.l.b16 %v4405
        %v5102 = vunpack.c.h.b16 %v4405
        %v5103 = vunpack.c.l.b16 %v4406
        %v5104 = vunpack.c.h.b16 %v4406
        %v5105 = vunpack.c.l.b16 %v4407
        %v5106 = vunpack.c.h.b16 %v4407
        %v5107 = vunpack.c.l.b16 %v4408
        %v5108 = vunpack.c.h.b16 %v4408
        %v5109 = vunpack.c.l.b16 %v4409
        %v5110 = vunpack.c.h.b16 %v4409
        %v5111 = vunpack.c.l.b16 %v4410
        %v5112 = vunpack.c.h.b16 %v4410
        %v5113 = vunpack.c.l.b16 %v4411
        %v5114 = vunpack.c.h.b16 %v4411
        %v5115 = vunpack.c.l.b16 %v4412
        %v5116 = vunpack.c.h.b16 %v4412
        %v5117 = vunpack.c.l.b16 %v4413
        %v5118 = vunpack.c.h.b16 %v4413
        %v5119 = vunpack.c.l.b16 %v4414
        %v5120 = vunpack.c.h.b16 %v4414
        %v5121 = vunpack.c.l.b16 %v4415
        %v5122 = vunpack.c.h.b16 %v4415
        %v5123 = vunpack.c.l.b16 %v4416
        %v5124 = vunpack.c.h.b16 %v4416
        %v5125 = vunpack.c.l.b16 %v4417
        %v5126 = vunpack.c.h.b16 %v4417
        %v5127 = vunpack.c.l.b16 %v4418
        %v5128 = vunpack.c.h.b16 %v4418
        %v5129 = vunpack.c.l.b16 %v4419
        %v5130 = vunpack.c.h.b16 %v4419
        %v5131 = vunpack.c.l.b16 %v4420
        %v5132 = vunpack.c.h.b16 %v4420
        %v5133 = vunpack.c.l.b16 %v4421
        %v5134 = vunpack.c.h.b16 %v4421
        %v5135 = vunpack.c.l.b16 %v4422
        %v5136 = vunpack.c.h.b16 %v4422
        %v5137 = vunpack.c.l.b16 %v4423
        %v5138 = vunpack.c.h.b16 %v4423
        %v5139 = vunpack.c.l.b16 %v4424
        %v5140 = vunpack.c.h.b16 %v4424
        %v5141 = vunpack.c.l.b16 %v4425
        %v5142 = vunpack.c.h.b16 %v4425
        %v5143 = vunpack.c.l.b16 %v4426
        %v5144 = vunpack.c.h.b16 %v4426
        %v5145 = vunpack.c.l.b16 %v4427
        %v5146 = vunpack.c.h.b16 %v4427
        %v5147 = vunpack.c.l.b16 %v4428
        %v5148 = vunpack.c.h.b16 %v4428
        %v5149 = vunpack.c.l.b16 %v4429
        %v5150 = vunpack.c.h.b16 %v4429
        %v5151 = vunpack.c.l.b16 %v4430
        %v5152 = vunpack.c.h.b16 %v4430
        %v5153 = vunpack.c.l.b16 %v4431
        %v5154 = vunpack.c.h.b16 %v4431
        %v5155 = vunpack.c.l.b16 %v4432
        %v5156 = vunpack.c.h.b16 %v4432
        %v5157 = vunpack.c.l.b16 %v4433
        %v5158 = vunpack.c.h.b16 %v4433
        %v5159 = vunpack.c.l.b16 %v4434
        %v5160 = vunpack.c.h.b16 %v4434
        %v5161 = vunpack.c.l.b16 %v4435
        %v5162 = vunpack.c.h.b16 %v4435
        %v5163 = vunpack.c.l.b16 %v4436
        %v5164 = vunpack.c.h.b16 %v4436
        %v5165 = vunpack.c.l.b16 %v4437
        %v5166 = vunpack.c.h.b16 %v4437
        %v5167 = vunpack.c.l.b16 %v4438
        %v5168 = vunpack.c.h.b16 %v4438
        %v5169 = vunpack.c.l.b16 %v4439
        %v5170 = vunpack.c.h.b16 %v4439
        %v5171 = vunpack.c.l.b16 %v4440
        %v5172 = vunpack.c.h.b16 %v4440
        %v5173 = vunpack.c.l.b16 %v4441
        %v5174 = vunpack.c.h.b16 %v4441
        %v5175 = vunpack.c.l.b16 %v4442
        %v5176 = vunpack.c.h.b16 %v4442
        %v5177 = vunpack.c.l.b16 %v4443
        %v5178 = vunpack.c.h.b16 %v4443
        %v5179 = vunpack.c.l.b16 %v4444
        %v5180 = vunpack.c.h.b16 %v4444
        %v5181 = vunpack.c.l.b16 %v4445
        %v5182 = vunpack.c.h.b16 %v4445
        %v5183 = vunpack.c.l.b16 %v4446
        %v5184 = vunpack.c.h.b16 %v4446
        %v5185 = vunpack.c.l.b16 %v4447
        %v5186 = vunpack.c.h.b16 %v4447
        %v5187 = vunpack.c.l.b16 %v4448
        %v5188 = vunpack.c.h.b16 %v4448
        %v5189 = vunpack.c.l.b16 %v4449
        %v5190 = vunpack.c.h.b16 %v4449
        %v5191 = vunpack.c.l.b16 %v4450
        %v5192 = vunpack.c.h.b16 %v4450
        %v5193 = vunpack.c.l.b16 %v4451
        %v5194 = vunpack.c.h.b16 %v4451
        %v5195 = vunpack.c.l.b16 %v4452
        %v5196 = vunpack.c.h.b16 %v4452
        %v5197 = vunpack.c.l.b16 %v4453
        %v5198 = vunpack.c.h.b16 %v4453
        %v5199 = vunpack.c.l.b16 %v4454
        %v5200 = vunpack.c.h.b16 %v4454
        %v5201 = vunpack.c.l.b16 %v4455
        %v5202 = vunpack.c.h.b16 %v4455
        %v5203 = vunpack.c.l.b16 %v4456
        %v5204 = vunpack.c.h.b16 %v4456
        %v5205 = vunpack.c.l.b16 %v4457
        %v5206 = vunpack.c.h.b16 %v4457
        %v5207 = vunpack.c.l.b16 %v4458
        %v5208 = vunpack.c.h.b16 %v4458
        %v5209 = vunpack.c.l.b16 %v4459
        %v5210 = vunpack.c.h.b16 %v4459
        %v5211 = vunpack.c.l.b16 %v4460
        %v5212 = vunpack.c.h.b16 %v4460
        %v5213 = vunpack.c.l.b16 %v4461
        %v5214 = vunpack.c.h.b16 %v4461
        %v5215 = vunpack.c.l.b16 %v4462
        %v5216 = vunpack.c.h.b16 %v4462
        %v5217 = vunpack.c.l.b16 %v4463
        %v5218 = vunpack.c.h.b16 %v4463
        %v5219 = vunpack.c.l.b16 %v4464
        %v5220 = vunpack.c.h.b16 %v4464
        %v5221 = vunpack.c.l.b16 %v4465
        %v5222 = vunpack.c.h.b16 %v4465
        %v5223 = vunpack.c.l.b16 %v4466
        %v5224 = vunpack.c.h.b16 %v4466
        %v5225 = vunpack.c.l.b16 %v4467
        %v5226 = vunpack.c.h.b16 %v4467
        %v5227 = vunpack.c.l.b16 %v4468
        %v5228 = vunpack.c.h.b16 %v4468
        %v5229 = vunpack.c.l.b16 %v4469
        %v5230 = vunpack.c.h.b16 %v4469
        %v5231 = vunpack.c.l.b16 %v4470
        %v5232 = vunpack.c.h.b16 %v4470
        %v5233 = vunpack.c.l.b16 %v4471
        %v5234 = vunpack.c.h.b16 %v4471
        %v5235 = vunpack.c.l.b16 %v4472
        %v5236 = vunpack.c.h.b16 %v4472
        %v5237 = vunpack.c.l.b16 %v4473
        %v5238 = vunpack.c.h.b16 %v4473
        %v5239 = vunpack.c.l.b16 %v4474
        %v5240 = vunpack.c.h.b16 %v4474
        %v5241 = vunpack.c.l.b16 %v4475
        %v5242 = vunpack.c.h.b16 %v4475
        %v5243 = vunpack.c.l.b16 %v4476
        %v5244 = vunpack.c.h.b16 %v4476
        %v5245 = vunpack.c.l.b16 %v4477
        %v5246 = vunpack.c.h.b16 %v4477
        %v5247 = vunpack.c.l.b16 %v4478
        %v5248 = vunpack.c.h.b16 %v4478
        %v5249 = vunpack.c.l.b16 %v4479
        %v5250 = vunpack.c.h.b16 %v4479
        %v5251 = vunpack.c.l.b16 %v4480
        %v5252 = vunpack.c.h.b16 %v4480
        %v5253 = vunpack.c.l.b16 %v4481
        %v5254 = vunpack.c.h.b16 %v4481
        %v5255 = vunpack.c.l.b16 %v4482
        %v5256 = vunpack.c.h.b16 %v4482
        %v5257 = vunpack.c.l.b16 %v4483
        %v5258 = vunpack.c.h.b16 %v4483
        %v5259 = vunpack.c.l.b16 %v4484
        %v5260 = vunpack.c.h.b16 %v4484
        %v5261 = vunpack.c.l.b16 %v4485
        %v5262 = vunpack.c.h.b16 %v4485
        %v5263 = vunpack.c.l.b16 %v4486
        %v5264 = vunpack.c.h.b16 %v4486
        %v5265 = vunpack.c.l.b16 %v4487
        %v5266 = vunpack.c.h.b16 %v4487
        %v5267 = vunpack.c.l.b16 %v4488
        %v5268 = vunpack.c.h.b16 %v4488
        %v5269 = vunpack.c.l.b16 %v4489
        %v5270 = vunpack.c.h.b16 %v4489
        %v5271 = vunpack.c.l.b16 %v4490
        %v5272 = vunpack.c.h.b16 %v4490
        %v5273 = vunpack.c.l.b16 %v4491
        %v5274 = vunpack.c.h.b16 %v4491
        %v5275 = vunpack.c.l.b16 %v4492
        %v5276 = vunpack.c.h.b16 %v4492
        %v5277 = vunpack.c.l.b16 %v4493
        %v5278 = vunpack.c.h.b16 %v4493
        %v5279 = vunpack.c.l.b16 %v4494
        %v5280 = vunpack.c.h.b16 %v4494
        %v5281 = vunpack.c.l.b16 %v4495
        %v5282 = vunpack.c.h.b16 %v4495
        %v5283 = vunpack.c.l.b16 %v4496
        %v5284 = vunpack.c.h.b16 %v4496
        %v5285 = vpack.c.b16 %v4781, %v4773
        %v5286 = vpack.c.b16 %v4782, %v4774
        %v5287 = vpack.c.b16 %v4783, %v4775
        %v5288 = vpack.c.b16 %v4784, %v4776
        %v5289 = vpack.c.b16 %v4785, %v4777
        %v5290 = vpack.c.b16 %v4786, %v4778
        %v5291 = vpack.c.b16 %v4787, %v4779
        %v5292 = vpack.c.b16 %v4788, %v4780
        %v5293 = vpack.c.b16 %v4797, %v4789
        %v5294 = vpack.c.b16 %v4798, %v4790
        %v5295 = vpack.c.b16 %v4799, %v4791
        %v5296 = vpack.c.b16 %v4800, %v4792
        %v5297 = vpack.c.b16 %v4801, %v4793
        %v5298 = vpack.c.b16 %v4802, %v4794
        %v5299 = vpack.c.b16 %v4803, %v4795
        %v5300 = vpack.c.b16 %v4804, %v4796
        %v5301 = vpack.c.b16 %v4813, %v4805
        %v5302 = vpack.c.b16 %v4814, %v4806
        %v5303 = vpack.c.b16 %v4815, %v4807
        %v5304 = vpack.c.b16 %v4816, %v4808
        %v5305 = vpack.c.b16 %v4817, %v4809
        %v5306 = vpack.c.b16 %v4818, %v4810
        %v5307 = vpack.c.b16 %v4819, %v4811
        %v5308 = vpack.c.b16 %v4820, %v4812
        %v5309 = vpack.c.b16 %v4829, %v4821
        %v5310 = vpack.c.b16 %v4830, %v4822
        %v5311 = vpack.c.b16 %v4831, %v4823
        %v5312 = vpack.c.b16 %v4832, %v4824
        %v5313 = vpack.c.b16 %v4833, %v4825
        %v5314 = vpack.c.b16 %v4834, %v4826
        %v5315 = vpack.c.b16 %v4835, %v4827
        %v5316 = vpack.c.b16 %v4836, %v4828
        %v5317 = vpack.c.b16 %v4845, %v4837
        %v5318 = vpack.c.b16 %v4846, %v4838
        %v5319 = vpack.c.b16 %v4847, %v4839
        %v5320 = vpack.c.b16 %v4848, %v4840
        %v5321 = vpack.c.b16 %v4849, %v4841
        %v5322 = vpack.c.b16 %v4850, %v4842
        %v5323 = vpack.c.b16 %v4851, %v4843
        %v5324 = vpack.c.b16 %v4852, %v4844
        %v5325 = vpack.c.b16 %v4861, %v4853
        %v5326 = vpack.c.b16 %v4862, %v4854
        %v5327 = vpack.c.b16 %v4863, %v4855
        %v5328 = vpack.c.b16 %v4864, %v4856
        %v5329 = vpack.c.b16 %v4865, %v4857
        %v5330 = vpack.c.b16 %v4866, %v4858
        %v5331 = vpack.c.b16 %v4867, %v4859
        %v5332 = vpack.c.b16 %v4868, %v4860
        %v5333 = vpack.c.b16 %v4877, %v4869
        %v5334 = vpack.c.b16 %v4878, %v4870
        %v5335 = vpack.c.b16 %v4879, %v4871
        %v5336 = vpack.c.b16 %v4880, %v4872
        %v5337 = vpack.c.b16 %v4881, %v4873
        %v5338 = vpack.c.b16 %v4882, %v4874
        %v5339 = vpack.c.b16 %v4883, %v4875
        %v5340 = vpack.c.b16 %v4884, %v4876
        %v5341 = vpack.c.b16 %v4893, %v4885
        %v5342 = vpack.c.b16 %v4894, %v4886
        %v5343 = vpack.c.b16 %v4895, %v4887
        %v5344 = vpack.c.b16 %v4896, %v4888
        %v5345 = vpack.c.b16 %v4897, %v4889
        %v5346 = vpack.c.b16 %v4898, %v4890
        %v5347 = vpack.c.b16 %v4899, %v4891
        %v5348 = vpack.c.b16 %v4900, %v4892
        %v5349 = vpack.c.b16 %v4909, %v4901
        %v5350 = vpack.c.b16 %v4910, %v4902
        %v5351 = vpack.c.b16 %v4911, %v4903
        %v5352 = vpack.c.b16 %v4912, %v4904
        %v5353 = vpack.c.b16 %v4913, %v4905
        %v5354 = vpack.c.b16 %v4914, %v4906
        %v5355 = vpack.c.b16 %v4915, %v4907
        %v5356 = vpack.c.b16 %v4916, %v4908
        %v5357 = vpack.c.b16 %v4925, %v4917
        %v5358 = vpack.c.b16 %v4926, %v4918
        %v5359 = vpack.c.b16 %v4927, %v4919
        %v5360 = vpack.c.b16 %v4928, %v4920
        %v5361 = vpack.c.b16 %v4929, %v4921
        %v5362 = vpack.c.b16 %v4930, %v4922
        %v5363 = vpack.c.b16 %v4931, %v4923
        %v5364 = vpack.c.b16 %v4932, %v4924
        %v5365 = vpack.c.b16 %v4941, %v4933
        %v5366 = vpack.c.b16 %v4942, %v4934
        %v5367 = vpack.c.b16 %v4943, %v4935
        %v5368 = vpack.c.b16 %v4944, %v4936
        %v5369 = vpack.c.b16 %v4945, %v4937
        %v5370 = vpack.c.b16 %v4946, %v4938
        %v5371 = vpack.c.b16 %v4947, %v4939
        %v5372 = vpack.c.b16 %v4948, %v4940
        %v5373 = vpack.c.b16 %v4957, %v4949
        %v5374 = vpack.c.b16 %v4958, %v4950
        %v5375 = vpack.c.b16 %v4959, %v4951
        %v5376 = vpack.c.b16 %v4960, %v4952
        %v5377 = vpack.c.b16 %v4961, %v4953
        %v5378 = vpack.c.b16 %v4962, %v4954
        %v5379 = vpack.c.b16 %v4963, %v4955
        %v5380 = vpack.c.b16 %v4964, %v4956
        %v5381 = vpack.c.b16 %v4973, %v4965
        %v5382 = vpack.c.b16 %v4974, %v4966
        %v5383 = vpack.c.b16 %v4975, %v4967
        %v5384 = vpack.c.b16 %v4976, %v4968
        %v5385 = vpack.c.b16 %v4977, %v4969
        %v5386 = vpack.c.b16 %v4978, %v4970
        %v5387 = vpack.c.b16 %v4979, %v4971
        %v5388 = vpack.c.b16 %v4980, %v4972
        %v5389 = vpack.c.b16 %v4989, %v4981
        %v5390 = vpack.c.b16 %v4990, %v4982
        %v5391 = vpack.c.b16 %v4991, %v4983
        %v5392 = vpack.c.b16 %v4992, %v4984
        %v5393 = vpack.c.b16 %v4993, %v4985
        %v5394 = vpack.c.b16 %v4994, %v4986
        %v5395 = vpack.c.b16 %v4995, %v4987
        %v5396 = vpack.c.b16 %v4996, %v4988
        %v5397 = vpack.c.b16 %v5005, %v4997
        %v5398 = vpack.c.b16 %v5006, %v4998
        %v5399 = vpack.c.b16 %v5007, %v4999
        %v5400 = vpack.c.b16 %v5008, %v5000
        %v5401 = vpack.c.b16 %v5009, %v5001
        %v5402 = vpack.c.b16 %v5010, %v5002
        %v5403 = vpack.c.b16 %v5011, %v5003
        %v5404 = vpack.c.b16 %v5012, %v5004
        %v5405 = vpack.c.b16 %v5021, %v5013
        %v5406 = vpack.c.b16 %v5022, %v5014
        %v5407 = vpack.c.b16 %v5023, %v5015
        %v5408 = vpack.c.b16 %v5024, %v5016
        %v5409 = vpack.c.b16 %v5025, %v5017
        %v5410 = vpack.c.b16 %v5026, %v5018
        %v5411 = vpack.c.b16 %v5027, %v5019
        %v5412 = vpack.c.b16 %v5028, %v5020
        %v5413 = vpack.c.b16 %v5037, %v5029
        %v5414 = vpack.c.b16 %v5038, %v5030
        %v5415 = vpack.c.b16 %v5039, %v5031
        %v5416 = vpack.c.b16 %v5040, %v5032
        %v5417 = vpack.c.b16 %v5041, %v5033
        %v5418 = vpack.c.b16 %v5042, %v5034
        %v5419 = vpack.c.b16 %v5043, %v5035
        %v5420 = vpack.c.b16 %v5044, %v5036
        %v5421 = vpack.c.b16 %v5053, %v5045
        %v5422 = vpack.c.b16 %v5054, %v5046
        %v5423 = vpack.c.b16 %v5055, %v5047
        %v5424 = vpack.c.b16 %v5056, %v5048
        %v5425 = vpack.c.b16 %v5057, %v5049
        %v5426 = vpack.c.b16 %v5058, %v5050
        %v5427 = vpack.c.b16 %v5059, %v5051
        %v5428 = vpack.c.b16 %v5060, %v5052
        %v5429 = vpack.c.b16 %v5069, %v5061
        %v5430 = vpack.c.b16 %v5070, %v5062
        %v5431 = vpack.c.b16 %v5071, %v5063
        %v5432 = vpack.c.b16 %v5072, %v5064
        %v5433 = vpack.c.b16 %v5073, %v5065
        %v5434 = vpack.c.b16 %v5074, %v5066
        %v5435 = vpack.c.b16 %v5075, %v5067
        %v5436 = vpack.c.b16 %v5076, %v5068
        %v5437 = vpack.c.b16 %v5085, %v5077
        %v5438 = vpack.c.b16 %v5086, %v5078
        %v5439 = vpack.c.b16 %v5087, %v5079
        %v5440 = vpack.c.b16 %v5088, %v5080
        %v5441 = vpack.c.b16 %v5089, %v5081
        %v5442 = vpack.c.b16 %v5090, %v5082
        %v5443 = vpack.c.b16 %v5091, %v5083
        %v5444 = vpack.c.b16 %v5092, %v5084
        %v5445 = vpack.c.b16 %v5101, %v5093
        %v5446 = vpack.c.b16 %v5102, %v5094
        %v5447 = vpack.c.b16 %v5103, %v5095
        %v5448 = vpack.c.b16 %v5104, %v5096
        %v5449 = vpack.c.b16 %v5105, %v5097
        %v5450 = vpack.c.b16 %v5106, %v5098
        %v5451 = vpack.c.b16 %v5107, %v5099
        %v5452 = vpack.c.b16 %v5108, %v5100
        %v5453 = vpack.c.b16 %v5117, %v5109
        %v5454 = vpack.c.b16 %v5118, %v5110
        %v5455 = vpack.c.b16 %v5119, %v5111
        %v5456 = vpack.c.b16 %v5120, %v5112
        %v5457 = vpack.c.b16 %v5121, %v5113
        %v5458 = vpack.c.b16 %v5122, %v5114
        %v5459 = vpack.c.b16 %v5123, %v5115
        %v5460 = vpack.c.b16 %v5124, %v5116
        %v5461 = vpack.c.b16 %v5133, %v5125
        %v5462 = vpack.c.b16 %v5134, %v5126
        %v5463 = vpack.c.b16 %v5135, %v5127
        %v5464 = vpack.c.b16 %v5136, %v5128
        %v5465 = vpack.c.b16 %v5137, %v5129
        %v5466 = vpack.c.b16 %v5138, %v5130
        %v5467 = vpack.c.b16 %v5139, %v5131
        %v5468 = vpack.c.b16 %v5140, %v5132
        %v5469 = vpack.c.b16 %v5149, %v5141
        %v5470 = vpack.c.b16 %v5150, %v5142
        %v5471 = vpack.c.b16 %v5151, %v5143
        %v5472 = vpack.c.b16 %v5152, %v5144
        %v5473 = vpack.c.b16 %v5153, %v5145
        %v5474 = vpack.c.b16 %v5154, %v5146
        %v5475 = vpack.c.b16 %v5155, %v5147
        %v5476 = vpack.c.b16 %v5156, %v5148
        %v5477 = vpack.c.b16 %v5165, %v5157
        %v5478 = vpack.c.b16 %v5166, %v5158
        %v5479 = vpack.c.b16 %v5167, %v5159
        %v5480 = vpack.c.b16 %v5168, %v5160
        %v5481 = vpack.c.b16 %v5169, %v5161
        %v5482 = vpack.c.b16 %v5170, %v5162
        %v5483 = vpack.c.b16 %v5171, %v5163
        %v5484 = vpack.c.b16 %v5172, %v5164
        %v5485 = vpack.c.b16 %v5181, %v5173
        %v5486 = vpack.c.b16 %v5182, %v5174
        %v5487 = vpack.c.b16 %v5183, %v5175
        %v5488 = vpack.c.b16 %v5184, %v5176
        %v5489 = vpack.c.b16 %v5185, %v5177
        %v5490 = vpack.c.b16 %v5186, %v5178
        %v5491 = vpack.c.b16 %v5187, %v5179
        %v5492 = vpack.c.b16 %v5188, %v5180
        %v5493 = vpack.c.b16 %v5197, %v5189
        %v5494 = vpack.c.b16 %v5198, %v5190
        %v5495 = vpack.c.b16 %v5199, %v5191
        %v5496 = vpack.c.b16 %v5200, %v5192
        %v5497 = vpack.c.b16 %v5201, %v5193
        %v5498 = vpack.c.b16 %v5202, %v5194
        %v5499 = vpack.c.b16 %v5203, %v5195
        %v5500 = vpack.c.b16 %v5204, %v5196
        %v5501 = vpack.c.b16 %v5213, %v5205
        %v5502 = vpack.c.b16 %v5214, %v5206
        %v5503 = vpack.c.b16 %v5215, %v5207
        %v5504 = vpack.c.b16 %v5216, %v5208
        %v5505 = vpack.c.b16 %v5217, %v5209
        %v5506 = vpack.c.b16 %v5218, %v5210
        %v5507 = vpack.c.b16 %v5219, %v5211
        %v5508 = vpack.c.b16 %v5220, %v5212
        %v5509 = vpack.c.b16 %v5229, %v5221
        %v5510 = vpack.c.b16 %v5230, %v5222
        %v5511 = vpack.c.b16 %v5231, %v5223
        %v5512 = vpack.c.b16 %v5232, %v5224
        %v5513 = vpack.c.b16 %v5233, %v5225
        %v5514 = vpack.c.b16 %v5234, %v5226
        %v5515 = vpack.c.b16 %v5235, %v5227
        %v5516 = vpack.c.b16 %v5236, %v5228
        %v5517 = vpack.c.b16 %v5245, %v5237
        %v5518 = vpack.c.b16 %v5246, %v5238
        %v5519 = vpack.c.b16 %v5247, %v5239
        %v5520 = vpack.c.b16 %v5248, %v5240
        %v5521 = vpack.c.b16 %v5249, %v5241
        %v5522 = vpack.c.b16 %v5250, %v5242
        %v5523 = vpack.c.b16 %v5251, %v5243
        %v5524 = vpack.c.b16 %v5252, %v5244
        %v5525 = vpack.c.b16 %v5261, %v5253
        %v5526 = vpack.c.b16 %v5262, %v5254
        %v5527 = vpack.c.b16 %v5263, %v5255
        %v5528 = vpack.c.b16 %v5264, %v5256
        %v5529 = vpack.c.b16 %v5265, %v5257
        %v5530 = vpack.c.b16 %v5266, %v5258
        %v5531 = vpack.c.b16 %v5267, %v5259
        %v5532 = vpack.c.b16 %v5268, %v5260
        %v5533 = vpack.c.b16 %v5277, %v5269
        %v5534 = vpack.c.b16 %v5278, %v5270
        %v5535 = vpack.c.b16 %v5279, %v5271
        %v5536 = vpack.c.b16 %v5280, %v5272
        %v5537 = vpack.c.b16 %v5281, %v5273
        %v5538 = vpack.c.b16 %v5282, %v5274
        %v5539 = vpack.c.b16 %v5283, %v5275
        %v5540 = vpack.c.b16 %v5284, %v5276
        %5797 = vmatpush.bf16.msra.mxu0 %v5341
        %5798 = vmatpush.bf16.msra.mxu0 %v5333
        %5799 = vmatpush.bf16.msra.mxu0 %v5325
        %5800 = vmatpush.bf16.msra.mxu0 %v5317
        %5801 = vmatpush.bf16.msra.mxu0 %v5309
        %5802 = vmatpush.bf16.msra.mxu0 %v5301
        %5803 = vmatpush.bf16.msra.mxu0 %v5293
        %5804 = vmatpush.bf16.msra.mxu0 %v5285
        %5805 = vmatmul.bf16.gmra.mxu0 %v4509
        %v5806 = vpop.f32.mrf.mxu0
        %v5807 = vadd.f32 0.0, %v5806
        %v5808 = vpop.f32.mrf.mxu0
        %v5809 = vadd.f32 0.0, %v5808
        %5810 = vdwg.mxu0
        %5811 = vmatpush.bf16.msra.mxu0 %v5405
        %5812 = vmatpush.bf16.msra.mxu0 %v5397
        %5813 = vmatpush.bf16.msra.mxu0 %v5389
        %5814 = vmatpush.bf16.msra.mxu0 %v5381
        %5815 = vmatpush.bf16.msra.mxu0 %v5373
        %5816 = vmatpush.bf16.msra.mxu0 %v5365
        %5817 = vmatpush.bf16.msra.mxu0 %v5357
        %5818 = vmatpush.bf16.msra.mxu0 %v5349
        %5819 = vmatmul.bf16.gmra.mxu0 %v4510
        %v5820 = vpop.f32.mrf.mxu0
        %v5821 = vadd.f32 %v5807, %v5820
        %v5822 = vpop.f32.mrf.mxu0
        %v5823 = vadd.f32 %v5809, %v5822
        %5824 = vdwg.mxu0
        %5825 = vmatpush.bf16.msra.mxu0 %v5469
        %5826 = vmatpush.bf16.msra.mxu0 %v5461
        %5827 = vmatpush.bf16.msra.mxu0 %v5453
        %5828 = vmatpush.bf16.msra.mxu0 %v5445
        %5829 = vmatpush.bf16.msra.mxu0 %v5437
        %5830 = vmatpush.bf16.msra.mxu0 %v5429
        %5831 = vmatpush.bf16.msra.mxu0 %v5421
        %5832 = vmatpush.bf16.msra.mxu0 %v5413
        %5833 = vmatmul.bf16.gmra.mxu0 %v4511
        %v5834 = vpop.f32.mrf.mxu0
        %v5835 = vadd.f32 %v5821, %v5834
        %v5836 = vpop.f32.mrf.mxu0
        %v5837 = vadd.f32 %v5823, %v5836
        %5838 = vdwg.mxu0
        %5839 = vmatpush.bf16.msra.mxu0 %v5533
        %5840 = vmatpush.bf16.msra.mxu0 %v5525
        %5841 = vmatpush.bf16.msra.mxu0 %v5517
        %5842 = vmatpush.bf16.msra.mxu0 %v5509
        %5843 = vmatpush.bf16.msra.mxu0 %v5501
        %5844 = vmatpush.bf16.msra.mxu0 %v5493
        %5845 = vmatpush.bf16.msra.mxu0 %v5485
        %5846 = vmatpush.bf16.msra.mxu0 %v5477
        %5847 = vmatmul.bf16.gmra.mxu0 %v4512
        %v5848 = vpop.f32.mrf.mxu0
        %v5849 = vadd.f32 %v5835, %v5848
        %v5850 = vpop.f32.mrf.mxu0
        %v5851 = vadd.f32 %v5837, %v5850
        %5852 = vdwg.mxu0
        %5853 = vmatpush.bf16.msra.mxu0 %v5342
        %5854 = vmatpush.bf16.msra.mxu0 %v5334
        %5855 = vmatpush.bf16.msra.mxu0 %v5326
        %5856 = vmatpush.bf16.msra.mxu0 %v5318
        %5857 = vmatpush.bf16.msra.mxu0 %v5310
        %5858 = vmatpush.bf16.msra.mxu0 %v5302
        %5859 = vmatpush.bf16.msra.mxu0 %v5294
        %5860 = vmatpush.bf16.msra.mxu0 %v5286
        %5861 = vmatmul.bf16.gmra.mxu0 %v4509
        %v5862 = vpop.f32.mrf.mxu0
        %v5863 = vadd.f32 0.0, %v5862
        %v5864 = vpop.f32.mrf.mxu0
        %v5865 = vadd.f32 0.0, %v5864
        %5866 = vdwg.mxu0
        %5867 = vmatpush.bf16.msra.mxu0 %v5406
        %5868 = vmatpush.bf16.msra.mxu0 %v5398
        %5869 = vmatpush.bf16.msra.mxu0 %v5390
        %5870 = vmatpush.bf16.msra.mxu0 %v5382
        %5871 = vmatpush.bf16.msra.mxu0 %v5374
        %5872 = vmatpush.bf16.msra.mxu0 %v5366
        %5873 = vmatpush.bf16.msra.mxu0 %v5358
        %5874 = vmatpush.bf16.msra.mxu0 %v5350
        %5875 = vmatmul.bf16.gmra.mxu0 %v4510
        %v5876 = vpop.f32.mrf.mxu0
        %v5877 = vadd.f32 %v5863, %v5876
        %v5878 = vpop.f32.mrf.mxu0
        %v5879 = vadd.f32 %v5865, %v5878
        %5880 = vdwg.mxu0
        %5881 = vmatpush.bf16.msra.mxu0 %v5470
        %5882 = vmatpush.bf16.msra.mxu0 %v5462
        %5883 = vmatpush.bf16.msra.mxu0 %v5454
        %5884 = vmatpush.bf16.msra.mxu0 %v5446
        %5885 = vmatpush.bf16.msra.mxu0 %v5438
        %5886 = vmatpush.bf16.msra.mxu0 %v5430
        %5887 = vmatpush.bf16.msra.mxu0 %v5422
        %5888 = vmatpush.bf16.msra.mxu0 %v5414
        %5889 = vmatmul.bf16.gmra.mxu0 %v4511
        %v5890 = vpop.f32.mrf.mxu0
        %v5891 = vadd.f32 %v5877, %v5890
        %v5892 = vpop.f32.mrf.mxu0
        %v5893 = vadd.f32 %v5879, %v5892
        %5894 = vdwg.mxu0
        %5895 = vmatpush.bf16.msra.mxu0 %v5534
        %5896 = vmatpush.bf16.msra.mxu0 %v5526
        %5897 = vmatpush.bf16.msra.mxu0 %v5518
        %5898 = vmatpush.bf16.msra.mxu0 %v5510
        %5899 = vmatpush.bf16.msra.mxu0 %v5502
        %5900 = vmatpush.bf16.msra.mxu0 %v5494
        %5901 = vmatpush.bf16.msra.mxu0 %v5486
        %5902 = vmatpush.bf16.msra.mxu0 %v5478
        %5903 = vmatmul.bf16.gmra.mxu0 %v4512
        %v5904 = vpop.f32.mrf.mxu0
        %v5905 = vadd.f32 %v5891, %v5904
        %v5906 = vpop.f32.mrf.mxu0
        %v5907 = vadd.f32 %v5893, %v5906
        %5908 = vdwg.mxu0
        %5909 = vmatpush.bf16.msra.mxu0 %v5343
        %5910 = vmatpush.bf16.msra.mxu0 %v5335
        %5911 = vmatpush.bf16.msra.mxu0 %v5327
        %5912 = vmatpush.bf16.msra.mxu0 %v5319
        %5913 = vmatpush.bf16.msra.mxu0 %v5311
        %5914 = vmatpush.bf16.msra.mxu0 %v5303
        %5915 = vmatpush.bf16.msra.mxu0 %v5295
        %5916 = vmatpush.bf16.msra.mxu0 %v5287
        %5917 = vmatmul.bf16.gmra.mxu0 %v4509
        %v5918 = vpop.f32.mrf.mxu0
        %v5919 = vadd.f32 0.0, %v5918
        %v5920 = vpop.f32.mrf.mxu0
        %v5921 = vadd.f32 0.0, %v5920
        %5922 = vdwg.mxu0
        %5923 = vmatpush.bf16.msra.mxu0 %v5407
        %5924 = vmatpush.bf16.msra.mxu0 %v5399
        %5925 = vmatpush.bf16.msra.mxu0 %v5391
        %5926 = vmatpush.bf16.msra.mxu0 %v5383
        %5927 = vmatpush.bf16.msra.mxu0 %v5375
        %5928 = vmatpush.bf16.msra.mxu0 %v5367
        %5929 = vmatpush.bf16.msra.mxu0 %v5359
        %5930 = vmatpush.bf16.msra.mxu0 %v5351
        %5931 = vmatmul.bf16.gmra.mxu0 %v4510
        %v5932 = vpop.f32.mrf.mxu0
        %v5933 = vadd.f32 %v5919, %v5932
        %v5934 = vpop.f32.mrf.mxu0
        %v5935 = vadd.f32 %v5921, %v5934
        %5936 = vdwg.mxu0
        %5937 = vmatpush.bf16.msra.mxu0 %v5471
        %5938 = vmatpush.bf16.msra.mxu0 %v5463
        %5939 = vmatpush.bf16.msra.mxu0 %v5455
        %5940 = vmatpush.bf16.msra.mxu0 %v5447
        %5941 = vmatpush.bf16.msra.mxu0 %v5439
        %5942 = vmatpush.bf16.msra.mxu0 %v5431
        %5943 = vmatpush.bf16.msra.mxu0 %v5423
        %5944 = vmatpush.bf16.msra.mxu0 %v5415
        %5945 = vmatmul.bf16.gmra.mxu0 %v4511
        %v5946 = vpop.f32.mrf.mxu0
        %v5947 = vadd.f32 %v5933, %v5946
        %v5948 = vpop.f32.mrf.mxu0
        %v5949 = vadd.f32 %v5935, %v5948
        %5950 = vdwg.mxu0
        %5951 = vmatpush.bf16.msra.mxu0 %v5535
        %5952 = vmatpush.bf16.msra.mxu0 %v5527
        %5953 = vmatpush.bf16.msra.mxu0 %v5519
        %5954 = vmatpush.bf16.msra.mxu0 %v5511
        %5955 = vmatpush.bf16.msra.mxu0 %v5503
        %5956 = vmatpush.bf16.msra.mxu0 %v5495
        %5957 = vmatpush.bf16.msra.mxu0 %v5487
        %5958 = vmatpush.bf16.msra.mxu0 %v5479
        %5959 = vmatmul.bf16.gmra.mxu0 %v4512
        %v5960 = vpop.f32.mrf.mxu0
        %v5961 = vadd.f32 %v5947, %v5960
        %v5962 = vpop.f32.mrf.mxu0
        %v5963 = vadd.f32 %v5949, %v5962
        %5964 = vdwg.mxu0
        %5965 = vmatpush.bf16.msra.mxu0 %v5344
        %5966 = vmatpush.bf16.msra.mxu0 %v5336
        %5967 = vmatpush.bf16.msra.mxu0 %v5328
        %5968 = vmatpush.bf16.msra.mxu0 %v5320
        %5969 = vmatpush.bf16.msra.mxu0 %v5312
        %5970 = vmatpush.bf16.msra.mxu0 %v5304
        %5971 = vmatpush.bf16.msra.mxu0 %v5296
        %5972 = vmatpush.bf16.msra.mxu0 %v5288
        %5973 = vmatmul.bf16.gmra.mxu0 %v4509
        %v5974 = vpop.f32.mrf.mxu0
        %v5975 = vadd.f32 0.0, %v5974
        %v5976 = vpop.f32.mrf.mxu0
        %v5977 = vadd.f32 0.0, %v5976
        %5978 = vdwg.mxu0
        %5979 = vmatpush.bf16.msra.mxu0 %v5408
        %5980 = vmatpush.bf16.msra.mxu0 %v5400
        %5981 = vmatpush.bf16.msra.mxu0 %v5392
        %5982 = vmatpush.bf16.msra.mxu0 %v5384
        %5983 = vmatpush.bf16.msra.mxu0 %v5376
        %5984 = vmatpush.bf16.msra.mxu0 %v5368
        %5985 = vmatpush.bf16.msra.mxu0 %v5360
        %5986 = vmatpush.bf16.msra.mxu0 %v5352
        %5987 = vmatmul.bf16.gmra.mxu0 %v4510
        %v5988 = vpop.f32.mrf.mxu0
        %v5989 = vadd.f32 %v5975, %v5988
        %v5990 = vpop.f32.mrf.mxu0
        %v5991 = vadd.f32 %v5977, %v5990
        %5992 = vdwg.mxu0
        %5993 = vmatpush.bf16.msra.mxu0 %v5472
        %5994 = vmatpush.bf16.msra.mxu0 %v5464
        %5995 = vmatpush.bf16.msra.mxu0 %v5456
        %5996 = vmatpush.bf16.msra.mxu0 %v5448
        %5997 = vmatpush.bf16.msra.mxu0 %v5440
        %5998 = vmatpush.bf16.msra.mxu0 %v5432
        %5999 = vmatpush.bf16.msra.mxu0 %v5424
        %6000 = vmatpush.bf16.msra.mxu0 %v5416
        %6001 = vmatmul.bf16.gmra.mxu0 %v4511
        %v6002 = vpop.f32.mrf.mxu0
        %v6003 = vadd.f32 %v5989, %v6002
        %v6004 = vpop.f32.mrf.mxu0
        %v6005 = vadd.f32 %v5991, %v6004
        %6006 = vdwg.mxu0
        %6007 = vmatpush.bf16.msra.mxu0 %v5536
        %6008 = vmatpush.bf16.msra.mxu0 %v5528
        %6009 = vmatpush.bf16.msra.mxu0 %v5520
        %6010 = vmatpush.bf16.msra.mxu0 %v5512
        %6011 = vmatpush.bf16.msra.mxu0 %v5504
        %6012 = vmatpush.bf16.msra.mxu0 %v5496
        %6013 = vmatpush.bf16.msra.mxu0 %v5488
        %6014 = vmatpush.bf16.msra.mxu0 %v5480
        %6015 = vmatmul.bf16.gmra.mxu0 %v4512
        %v6016 = vpop.f32.mrf.mxu0
        %v6017 = vadd.f32 %v6003, %v6016
        %v6018 = vpop.f32.mrf.mxu0
        %v6019 = vadd.f32 %v6005, %v6018
        %6020 = vdwg.mxu0
        %6021 = vmatpush.bf16.msra.mxu0 %v5345
        %6022 = vmatpush.bf16.msra.mxu0 %v5337
        %6023 = vmatpush.bf16.msra.mxu0 %v5329
        %6024 = vmatpush.bf16.msra.mxu0 %v5321
        %6025 = vmatpush.bf16.msra.mxu0 %v5313
        %6026 = vmatpush.bf16.msra.mxu0 %v5305
        %6027 = vmatpush.bf16.msra.mxu0 %v5297
        %6028 = vmatpush.bf16.msra.mxu0 %v5289
        %6029 = vmatmul.bf16.gmra.mxu0 %v4509
        %v6030 = vpop.f32.mrf.mxu0
        %v6031 = vadd.f32 0.0, %v6030
        %v6032 = vpop.f32.mrf.mxu0
        %v6033 = vadd.f32 0.0, %v6032
        %6034 = vdwg.mxu0
        %6035 = vmatpush.bf16.msra.mxu0 %v5409
        %6036 = vmatpush.bf16.msra.mxu0 %v5401
        %6037 = vmatpush.bf16.msra.mxu0 %v5393
        %6038 = vmatpush.bf16.msra.mxu0 %v5385
        %6039 = vmatpush.bf16.msra.mxu0 %v5377
        %6040 = vmatpush.bf16.msra.mxu0 %v5369
        %6041 = vmatpush.bf16.msra.mxu0 %v5361
        %6042 = vmatpush.bf16.msra.mxu0 %v5353
        %6043 = vmatmul.bf16.gmra.mxu0 %v4510
        %v6044 = vpop.f32.mrf.mxu0
        %v6045 = vadd.f32 %v6031, %v6044
        %v6046 = vpop.f32.mrf.mxu0
        %v6047 = vadd.f32 %v6033, %v6046
        %6048 = vdwg.mxu0
        %6049 = vmatpush.bf16.msra.mxu0 %v5473
        %6050 = vmatpush.bf16.msra.mxu0 %v5465
        %6051 = vmatpush.bf16.msra.mxu0 %v5457
        %6052 = vmatpush.bf16.msra.mxu0 %v5449
        %6053 = vmatpush.bf16.msra.mxu0 %v5441
        %6054 = vmatpush.bf16.msra.mxu0 %v5433
        %6055 = vmatpush.bf16.msra.mxu0 %v5425
        %6056 = vmatpush.bf16.msra.mxu0 %v5417
        %6057 = vmatmul.bf16.gmra.mxu0 %v4511
        %v6058 = vpop.f32.mrf.mxu0
        %v6059 = vadd.f32 %v6045, %v6058
        %v6060 = vpop.f32.mrf.mxu0
        %v6061 = vadd.f32 %v6047, %v6060
        %6062 = vdwg.mxu0
        %6063 = vmatpush.bf16.msra.mxu0 %v5537
        %6064 = vmatpush.bf16.msra.mxu0 %v5529
        %6065 = vmatpush.bf16.msra.mxu0 %v5521
        %6066 = vmatpush.bf16.msra.mxu0 %v5513
        %6067 = vmatpush.bf16.msra.mxu0 %v5505
        %6068 = vmatpush.bf16.msra.mxu0 %v5497
        %6069 = vmatpush.bf16.msra.mxu0 %v5489
        %6070 = vmatpush.bf16.msra.mxu0 %v5481
        %6071 = vmatmul.bf16.gmra.mxu0 %v4512
        %v6072 = vpop.f32.mrf.mxu0
        %v6073 = vadd.f32 %v6059, %v6072
        %v6074 = vpop.f32.mrf.mxu0
        %v6075 = vadd.f32 %v6061, %v6074
        %6076 = vdwg.mxu0
        %6077 = vmatpush.bf16.msra.mxu0 %v5346
        %6078 = vmatpush.bf16.msra.mxu0 %v5338
        %6079 = vmatpush.bf16.msra.mxu0 %v5330
        %6080 = vmatpush.bf16.msra.mxu0 %v5322
        %6081 = vmatpush.bf16.msra.mxu0 %v5314
        %6082 = vmatpush.bf16.msra.mxu0 %v5306
        %6083 = vmatpush.bf16.msra.mxu0 %v5298
        %6084 = vmatpush.bf16.msra.mxu0 %v5290
        %6085 = vmatmul.bf16.gmra.mxu0 %v4509
        %v6086 = vpop.f32.mrf.mxu0
        %v6087 = vadd.f32 0.0, %v6086
        %v6088 = vpop.f32.mrf.mxu0
        %v6089 = vadd.f32 0.0, %v6088
        %6090 = vdwg.mxu0
        %6091 = vmatpush.bf16.msra.mxu0 %v5410
        %6092 = vmatpush.bf16.msra.mxu0 %v5402
        %6093 = vmatpush.bf16.msra.mxu0 %v5394
        %6094 = vmatpush.bf16.msra.mxu0 %v5386
        %6095 = vmatpush.bf16.msra.mxu0 %v5378
        %6096 = vmatpush.bf16.msra.mxu0 %v5370
        %6097 = vmatpush.bf16.msra.mxu0 %v5362
        %6098 = vmatpush.bf16.msra.mxu0 %v5354
        %6099 = vmatmul.bf16.gmra.mxu0 %v4510
        %v6100 = vpop.f32.mrf.mxu0
        %v6101 = vadd.f32 %v6087, %v6100
        %v6102 = vpop.f32.mrf.mxu0
        %v6103 = vadd.f32 %v6089, %v6102
        %6104 = vdwg.mxu0
        %6105 = vmatpush.bf16.msra.mxu0 %v5474
        %6106 = vmatpush.bf16.msra.mxu0 %v5466
        %6107 = vmatpush.bf16.msra.mxu0 %v5458
        %6108 = vmatpush.bf16.msra.mxu0 %v5450
        %6109 = vmatpush.bf16.msra.mxu0 %v5442
        %6110 = vmatpush.bf16.msra.mxu0 %v5434
        %6111 = vmatpush.bf16.msra.mxu0 %v5426
        %6112 = vmatpush.bf16.msra.mxu0 %v5418
        %6113 = vmatmul.bf16.gmra.mxu0 %v4511
        %v6114 = vpop.f32.mrf.mxu0
        %v6115 = vadd.f32 %v6101, %v6114
        %v6116 = vpop.f32.mrf.mxu0
        %v6117 = vadd.f32 %v6103, %v6116
        %6118 = vdwg.mxu0
        %6119 = vmatpush.bf16.msra.mxu0 %v5538
        %6120 = vmatpush.bf16.msra.mxu0 %v5530
        %6121 = vmatpush.bf16.msra.mxu0 %v5522
        %6122 = vmatpush.bf16.msra.mxu0 %v5514
        %6123 = vmatpush.bf16.msra.mxu0 %v5506
        %6124 = vmatpush.bf16.msra.mxu0 %v5498
        %6125 = vmatpush.bf16.msra.mxu0 %v5490
        %6126 = vmatpush.bf16.msra.mxu0 %v5482
        %6127 = vmatmul.bf16.gmra.mxu0 %v4512
        %v6128 = vpop.f32.mrf.mxu0
        %v6129 = vadd.f32 %v6115, %v6128
        %v6130 = vpop.f32.mrf.mxu0
        %v6131 = vadd.f32 %v6117, %v6130
        %6132 = vdwg.mxu0
        %6133 = vmatpush.bf16.msra.mxu0 %v5347
        %6134 = vmatpush.bf16.msra.mxu0 %v5339
        %6135 = vmatpush.bf16.msra.mxu0 %v5331
        %6136 = vmatpush.bf16.msra.mxu0 %v5323
        %6137 = vmatpush.bf16.msra.mxu0 %v5315
        %6138 = vmatpush.bf16.msra.mxu0 %v5307
        %6139 = vmatpush.bf16.msra.mxu0 %v5299
        %6140 = vmatpush.bf16.msra.mxu0 %v5291
        %6141 = vmatmul.bf16.gmra.mxu0 %v4509
        %v6142 = vpop.f32.mrf.mxu0
        %v6143 = vadd.f32 0.0, %v6142
        %v6144 = vpop.f32.mrf.mxu0
        %v6145 = vadd.f32 0.0, %v6144
        %6146 = vdwg.mxu0
        %6147 = vmatpush.bf16.msra.mxu0 %v5411
        %6148 = vmatpush.bf16.msra.mxu0 %v5403
        %6149 = vmatpush.bf16.msra.mxu0 %v5395
        %6150 = vmatpush.bf16.msra.mxu0 %v5387
        %6151 = vmatpush.bf16.msra.mxu0 %v5379
        %6152 = vmatpush.bf16.msra.mxu0 %v5371
        %6153 = vmatpush.bf16.msra.mxu0 %v5363
        %6154 = vmatpush.bf16.msra.mxu0 %v5355
        %6155 = vmatmul.bf16.gmra.mxu0 %v4510
        %v6156 = vpop.f32.mrf.mxu0
        %v6157 = vadd.f32 %v6143, %v6156
        %v6158 = vpop.f32.mrf.mxu0
        %v6159 = vadd.f32 %v6145, %v6158
        %6160 = vdwg.mxu0
        %6161 = vmatpush.bf16.msra.mxu0 %v5475
        %6162 = vmatpush.bf16.msra.mxu0 %v5467
        %6163 = vmatpush.bf16.msra.mxu0 %v5459
        %6164 = vmatpush.bf16.msra.mxu0 %v5451
        %6165 = vmatpush.bf16.msra.mxu0 %v5443
        %6166 = vmatpush.bf16.msra.mxu0 %v5435
        %6167 = vmatpush.bf16.msra.mxu0 %v5427
        %6168 = vmatpush.bf16.msra.mxu0 %v5419
        %6169 = vmatmul.bf16.gmra.mxu0 %v4511
        %v6170 = vpop.f32.mrf.mxu0
        %v6171 = vadd.f32 %v6157, %v6170
        %v6172 = vpop.f32.mrf.mxu0
        %v6173 = vadd.f32 %v6159, %v6172
        %6174 = vdwg.mxu0
        %6175 = vmatpush.bf16.msra.mxu0 %v5539
        %6176 = vmatpush.bf16.msra.mxu0 %v5531
        %6177 = vmatpush.bf16.msra.mxu0 %v5523
        %6178 = vmatpush.bf16.msra.mxu0 %v5515
        %6179 = vmatpush.bf16.msra.mxu0 %v5507
        %6180 = vmatpush.bf16.msra.mxu0 %v5499
        %6181 = vmatpush.bf16.msra.mxu0 %v5491
        %6182 = vmatpush.bf16.msra.mxu0 %v5483
        %6183 = vmatmul.bf16.gmra.mxu0 %v4512
        %v6184 = vpop.f32.mrf.mxu0
        %v6185 = vadd.f32 %v6171, %v6184
        %v6186 = vpop.f32.mrf.mxu0
        %v6187 = vadd.f32 %v6173, %v6186
        %6188 = vdwg.mxu0
        %6189 = vmatpush.bf16.msra.mxu0 %v5348
        %6190 = vmatpush.bf16.msra.mxu0 %v5340
        %6191 = vmatpush.bf16.msra.mxu0 %v5332
        %6192 = vmatpush.bf16.msra.mxu0 %v5324
        %6193 = vmatpush.bf16.msra.mxu0 %v5316
        %6194 = vmatpush.bf16.msra.mxu0 %v5308
        %6195 = vmatpush.bf16.msra.mxu0 %v5300
        %6196 = vmatpush.bf16.msra.mxu0 %v5292
        %6197 = vmatmul.bf16.gmra.mxu0 %v4509
        %v6198 = vpop.f32.mrf.mxu0
        %v6199 = vadd.f32 0.0, %v6198
        %v6200 = vpop.f32.mrf.mxu0
        %v6201 = vadd.f32 0.0, %v6200
        %6202 = vdwg.mxu0
        %6203 = vmatpush.bf16.msra.mxu0 %v5412
        %6204 = vmatpush.bf16.msra.mxu0 %v5404
        %6205 = vmatpush.bf16.msra.mxu0 %v5396
        %6206 = vmatpush.bf16.msra.mxu0 %v5388
        %6207 = vmatpush.bf16.msra.mxu0 %v5380
        %6208 = vmatpush.bf16.msra.mxu0 %v5372
        %6209 = vmatpush.bf16.msra.mxu0 %v5364
        %6210 = vmatpush.bf16.msra.mxu0 %v5356
        %6211 = vmatmul.bf16.gmra.mxu0 %v4510
        %v6212 = vpop.f32.mrf.mxu0
        %v6213 = vadd.f32 %v6199, %v6212
        %v6214 = vpop.f32.mrf.mxu0
        %v6215 = vadd.f32 %v6201, %v6214
        %6216 = vdwg.mxu0
        %6217 = vmatpush.bf16.msra.mxu0 %v5476
        %6218 = vmatpush.bf16.msra.mxu0 %v5468
        %6219 = vmatpush.bf16.msra.mxu0 %v5460
        %6220 = vmatpush.bf16.msra.mxu0 %v5452
        %6221 = vmatpush.bf16.msra.mxu0 %v5444
        %6222 = vmatpush.bf16.msra.mxu0 %v5436
        %6223 = vmatpush.bf16.msra.mxu0 %v5428
        %6224 = vmatpush.bf16.msra.mxu0 %v5420
        %6225 = vmatmul.bf16.gmra.mxu0 %v4511
        %v6226 = vpop.f32.mrf.mxu0
        %v6227 = vadd.f32 %v6213, %v6226
        %v6228 = vpop.f32.mrf.mxu0
        %v6229 = vadd.f32 %v6215, %v6228
        %6230 = vdwg.mxu0
        %6231 = vmatpush.bf16.msra.mxu0 %v5540
        %6232 = vmatpush.bf16.msra.mxu0 %v5532
        %6233 = vmatpush.bf16.msra.mxu0 %v5524
        %6234 = vmatpush.bf16.msra.mxu0 %v5516
        %6235 = vmatpush.bf16.msra.mxu0 %v5508
        %6236 = vmatpush.bf16.msra.mxu0 %v5500
        %6237 = vmatpush.bf16.msra.mxu0 %v5492
        %6238 = vmatpush.bf16.msra.mxu0 %v5484
        %6239 = vmatmul.bf16.gmra.mxu0 %v4512
        %v6240 = vpop.f32.mrf.mxu0
        %v6241 = vadd.f32 %v6227, %v6240
        %v6242 = vpop.f32.mrf.mxu0
        %v6243 = vadd.f32 %v6229, %v6242
        %6244 = vdwg.mxu0
        %v6245 = vadd.f32 %v4225, %v5849
        %v6246 = vadd.f32 %v4226, %v5905
        %v6247 = vadd.f32 %v4227, %v5961
        %v6248 = vadd.f32 %v4228, %v6017
        %v6249 = vadd.f32 %v4229, %v6073
        %v6250 = vadd.f32 %v4230, %v6129
        %v6251 = vadd.f32 %v4231, %v6185
        %v6252 = vadd.f32 %v4232, %v6241
        %v6253 = vadd.f32 %v4233, %v5851
        %v6254 = vadd.f32 %v4234, %v5907
        %v6255 = vadd.f32 %v4235, %v5963
        %v6256 = vadd.f32 %v4236, %v6019
        %v6257 = vadd.f32 %v4237, %v6075
        %v6258 = vadd.f32 %v4238, %v6131
        %v6259 = vadd.f32 %v4239, %v6187
        %v6260 = vadd.f32 %v4240, %v6243
        %6261 = vst [vmem:[#allocation3] sm:$0xff] %v6245
        %6262 = vst [vmem:[#allocation3 + $0x8] sm:$0xff] %v6246
        %6263 = vst [vmem:[#allocation3 + $0x10] sm:$0xff] %v6247
        %6264 = vst [vmem:[#allocation3 + $0x18] sm:$0xff] %v6248
        %6265 = vst [vmem:[#allocation3 + $0x20] sm:$0xff] %v6249
        %6266 = vst [vmem:[#allocation3 + $0x28] sm:$0xff] %v6250
        %6267 = vst [vmem:[#allocation3 + $0x30] sm:$0xff] %v6251
        %6268 = vst [vmem:[#allocation3 + $0x38] sm:$0xff] %v6252
        %6269 = vst [vmem:[#allocation3 + $0x40] sm:$0xff] %v6253
        %6270 = vst [vmem:[#allocation3 + $0x48] sm:$0xff] %v6254
        %6271 = vst [vmem:[#allocation3 + $0x50] sm:$0xff] %v6255
        %6272 = vst [vmem:[#allocation3 + $0x58] sm:$0xff] %v6256
        %6273 = vst [vmem:[#allocation3 + $0x60] sm:$0xff] %v6257
        %6274 = vst [vmem:[#allocation3 + $0x68] sm:$0xff] %v6258
        %6275 = vst [vmem:[#allocation3 + $0x70] sm:$0xff] %v6259
        %6276 = vst [vmem:[#allocation3 + $0x78] sm:$0xff] %v6260
        %v6277 = vld [vmem:[#allocation4] sm:$0xff]
        %v6278 = vld [vmem:[#allocation4 + $0x8] sm:$0xff]
        %v6279 = vld [vmem:[#allocation4 + $0x10] sm:$0xff]
        %v6280 = vld [vmem:[#allocation4 + $0x18] sm:$0xff]
        %v6281 = vld [vmem:[%s468] sm:$0xff]
        %v6282 = vld [vmem:[%s468 + $0x8] sm:$0xff]
        %v6283 = vld [vmem:[%s468 + $0x10] sm:$0xff]
        %v6284 = vld [vmem:[%s468 + $0x18] sm:$0xff]
        %v6285 = vld [vmem:[%s468 + $0x20] sm:$0xff]
        %v6286 = vld [vmem:[%s468 + $0x28] sm:$0xff]
        %v6287 = vld [vmem:[%s468 + $0x30] sm:$0xff]
        %v6288 = vld [vmem:[%s468 + $0x38] sm:$0xff]
        %v6289 = vld [vmem:[%s468 + $0x40] sm:$0xff]
        %v6290 = vld [vmem:[%s468 + $0x48] sm:$0xff]
        %v6291 = vld [vmem:[%s468 + $0x50] sm:$0xff]
        %v6292 = vld [vmem:[%s468 + $0x58] sm:$0xff]
        %v6293 = vld [vmem:[%s468 + $0x60] sm:$0xff]
        %v6294 = vld [vmem:[%s468 + $0x68] sm:$0xff]
        %v6295 = vld [vmem:[%s468 + $0x70] sm:$0xff]
        %v6296 = vld [vmem:[%s468 + $0x78] sm:$0xff]
        %v6297 = vld [vmem:[%s468 + $0x80] sm:$0xff]
        %v6298 = vld [vmem:[%s468 + $0x88] sm:$0xff]
        %v6299 = vld [vmem:[%s468 + $0x90] sm:$0xff]
        %v6300 = vld [vmem:[%s468 + $0x98] sm:$0xff]
        %v6301 = vld [vmem:[%s468 + $0xa0] sm:$0xff]
        %v6302 = vld [vmem:[%s468 + $0xa8] sm:$0xff]
        %v6303 = vld [vmem:[%s468 + $0xb0] sm:$0xff]
        %v6304 = vld [vmem:[%s468 + $0xb8] sm:$0xff]
        %v6305 = vld [vmem:[%s468 + $0xc0] sm:$0xff]
        %v6306 = vld [vmem:[%s468 + $0xc8] sm:$0xff]
        %v6307 = vld [vmem:[%s468 + $0xd0] sm:$0xff]
        %v6308 = vld [vmem:[%s468 + $0xd8] sm:$0xff]
        %v6309 = vld [vmem:[%s468 + $0xe0] sm:$0xff]
        %v6310 = vld [vmem:[%s468 + $0xe8] sm:$0xff]
        %v6311 = vld [vmem:[%s468 + $0xf0] sm:$0xff]
        %v6312 = vld [vmem:[%s468 + $0xf8] sm:$0xff]
        %v6313 = vld [vmem:[%s468 + $0x100] sm:$0xff]
        %v6314 = vld [vmem:[%s468 + $0x108] sm:$0xff]
        %v6315 = vld [vmem:[%s468 + $0x110] sm:$0xff]
        %v6316 = vld [vmem:[%s468 + $0x118] sm:$0xff]
        %v6317 = vld [vmem:[%s468 + $0x120] sm:$0xff]
        %v6318 = vld [vmem:[%s468 + $0x128] sm:$0xff]
        %v6319 = vld [vmem:[%s468 + $0x130] sm:$0xff]
        %v6320 = vld [vmem:[%s468 + $0x138] sm:$0xff]
        %v6321 = vld [vmem:[%s468 + $0x140] sm:$0xff]
        %v6322 = vld [vmem:[%s468 + $0x148] sm:$0xff]
        %v6323 = vld [vmem:[%s468 + $0x150] sm:$0xff]
        %v6324 = vld [vmem:[%s468 + $0x158] sm:$0xff]
        %v6325 = vld [vmem:[%s468 + $0x160] sm:$0xff]
        %v6326 = vld [vmem:[%s468 + $0x168] sm:$0xff]
        %v6327 = vld [vmem:[%s468 + $0x170] sm:$0xff]
        %v6328 = vld [vmem:[%s468 + $0x178] sm:$0xff]
        %v6329 = vld [vmem:[%s468 + $0x180] sm:$0xff]
        %v6330 = vld [vmem:[%s468 + $0x188] sm:$0xff]
        %v6331 = vld [vmem:[%s468 + $0x190] sm:$0xff]
        %v6332 = vld [vmem:[%s468 + $0x198] sm:$0xff]
        %v6333 = vld [vmem:[%s468 + $0x1a0] sm:$0xff]
        %v6334 = vld [vmem:[%s468 + $0x1a8] sm:$0xff]
        %v6335 = vld [vmem:[%s468 + $0x1b0] sm:$0xff]
        %v6336 = vld [vmem:[%s468 + $0x1b8] sm:$0xff]
        %v6337 = vld [vmem:[%s468 + $0x1c0] sm:$0xff]
        %v6338 = vld [vmem:[%s468 + $0x1c8] sm:$0xff]
        %v6339 = vld [vmem:[%s468 + $0x1d0] sm:$0xff]
        %v6340 = vld [vmem:[%s468 + $0x1d8] sm:$0xff]
        %v6341 = vld [vmem:[%s468 + $0x1e0] sm:$0xff]
        %v6342 = vld [vmem:[%s468 + $0x1e8] sm:$0xff]
        %v6343 = vld [vmem:[%s468 + $0x1f0] sm:$0xff]
        %v6344 = vld [vmem:[%s468 + $0x1f8] sm:$0xff]
        %v6409 = vunpack.c.l.b16 %v6281
        %v6410 = vunpack.c.h.b16 %v6281
        %v6411 = vunpack.c.l.b16 %v6282
        %v6412 = vunpack.c.h.b16 %v6282
        %v6413 = vunpack.c.l.b16 %v6283
        %v6414 = vunpack.c.h.b16 %v6283
        %v6415 = vunpack.c.l.b16 %v6284
        %v6416 = vunpack.c.h.b16 %v6284
        %v6417 = vunpack.c.l.b16 %v6285
        %v6418 = vunpack.c.h.b16 %v6285
        %v6419 = vunpack.c.l.b16 %v6286
        %v6420 = vunpack.c.h.b16 %v6286
        %v6421 = vunpack.c.l.b16 %v6287
        %v6422 = vunpack.c.h.b16 %v6287
        %v6423 = vunpack.c.l.b16 %v6288
        %v6424 = vunpack.c.h.b16 %v6288
        %v6425 = vunpack.c.l.b16 %v6289
        %v6426 = vunpack.c.h.b16 %v6289
        %v6427 = vunpack.c.l.b16 %v6290
        %v6428 = vunpack.c.h.b16 %v6290
        %v6429 = vunpack.c.l.b16 %v6291
        %v6430 = vunpack.c.h.b16 %v6291
        %v6431 = vunpack.c.l.b16 %v6292
        %v6432 = vunpack.c.h.b16 %v6292
        %v6433 = vunpack.c.l.b16 %v6293
        %v6434 = vunpack.c.h.b16 %v6293
        %v6435 = vunpack.c.l.b16 %v6294
        %v6436 = vunpack.c.h.b16 %v6294
        %v6437 = vunpack.c.l.b16 %v6295
        %v6438 = vunpack.c.h.b16 %v6295
        %v6439 = vunpack.c.l.b16 %v6296
        %v6440 = vunpack.c.h.b16 %v6296
        %v6441 = vunpack.c.l.b16 %v6297
        %v6442 = vunpack.c.h.b16 %v6297
        %v6443 = vunpack.c.l.b16 %v6298
        %v6444 = vunpack.c.h.b16 %v6298
        %v6445 = vunpack.c.l.b16 %v6299
        %v6446 = vunpack.c.h.b16 %v6299
        %v6447 = vunpack.c.l.b16 %v6300
        %v6448 = vunpack.c.h.b16 %v6300
        %v6449 = vunpack.c.l.b16 %v6301
        %v6450 = vunpack.c.h.b16 %v6301
        %v6451 = vunpack.c.l.b16 %v6302
        %v6452 = vunpack.c.h.b16 %v6302
        %v6453 = vunpack.c.l.b16 %v6303
        %v6454 = vunpack.c.h.b16 %v6303
        %v6455 = vunpack.c.l.b16 %v6304
        %v6456 = vunpack.c.h.b16 %v6304
        %v6457 = vunpack.c.l.b16 %v6305
        %v6458 = vunpack.c.h.b16 %v6305
        %v6459 = vunpack.c.l.b16 %v6306
        %v6460 = vunpack.c.h.b16 %v6306
        %v6461 = vunpack.c.l.b16 %v6307
        %v6462 = vunpack.c.h.b16 %v6307
        %v6463 = vunpack.c.l.b16 %v6308
        %v6464 = vunpack.c.h.b16 %v6308
        %v6465 = vunpack.c.l.b16 %v6309
        %v6466 = vunpack.c.h.b16 %v6309
        %v6467 = vunpack.c.l.b16 %v6310
        %v6468 = vunpack.c.h.b16 %v6310
        %v6469 = vunpack.c.l.b16 %v6311
        %v6470 = vunpack.c.h.b16 %v6311
        %v6471 = vunpack.c.l.b16 %v6312
        %v6472 = vunpack.c.h.b16 %v6312
        %v6473 = vunpack.c.l.b16 %v6313
        %v6474 = vunpack.c.h.b16 %v6313
        %v6475 = vunpack.c.l.b16 %v6314
        %v6476 = vunpack.c.h.b16 %v6314
        %v6477 = vunpack.c.l.b16 %v6315
        %v6478 = vunpack.c.h.b16 %v6315
        %v6479 = vunpack.c.l.b16 %v6316
        %v6480 = vunpack.c.h.b16 %v6316
        %v6481 = vunpack.c.l.b16 %v6317
        %v6482 = vunpack.c.h.b16 %v6317
        %v6483 = vunpack.c.l.b16 %v6318
        %v6484 = vunpack.c.h.b16 %v6318
        %v6485 = vunpack.c.l.b16 %v6319
        %v6486 = vunpack.c.h.b16 %v6319
        %v6487 = vunpack.c.l.b16 %v6320
        %v6488 = vunpack.c.h.b16 %v6320
        %v6489 = vunpack.c.l.b16 %v6321
        %v6490 = vunpack.c.h.b16 %v6321
        %v6491 = vunpack.c.l.b16 %v6322
        %v6492 = vunpack.c.h.b16 %v6322
        %v6493 = vunpack.c.l.b16 %v6323
        %v6494 = vunpack.c.h.b16 %v6323
        %v6495 = vunpack.c.l.b16 %v6324
        %v6496 = vunpack.c.h.b16 %v6324
        %v6497 = vunpack.c.l.b16 %v6325
        %v6498 = vunpack.c.h.b16 %v6325
        %v6499 = vunpack.c.l.b16 %v6326
        %v6500 = vunpack.c.h.b16 %v6326
        %v6501 = vunpack.c.l.b16 %v6327
        %v6502 = vunpack.c.h.b16 %v6327
        %v6503 = vunpack.c.l.b16 %v6328
        %v6504 = vunpack.c.h.b16 %v6328
        %v6505 = vunpack.c.l.b16 %v6329
        %v6506 = vunpack.c.h.b16 %v6329
        %v6507 = vunpack.c.l.b16 %v6330
        %v6508 = vunpack.c.h.b16 %v6330
        %v6509 = vunpack.c.l.b16 %v6331
        %v6510 = vunpack.c.h.b16 %v6331
        %v6511 = vunpack.c.l.b16 %v6332
        %v6512 = vunpack.c.h.b16 %v6332
        %v6513 = vunpack.c.l.b16 %v6333
        %v6514 = vunpack.c.h.b16 %v6333
        %v6515 = vunpack.c.l.b16 %v6334
        %v6516 = vunpack.c.h.b16 %v6334
        %v6517 = vunpack.c.l.b16 %v6335
        %v6518 = vunpack.c.h.b16 %v6335
        %v6519 = vunpack.c.l.b16 %v6336
        %v6520 = vunpack.c.h.b16 %v6336
        %v6521 = vunpack.c.l.b16 %v6337
        %v6522 = vunpack.c.h.b16 %v6337
        %v6523 = vunpack.c.l.b16 %v6338
        %v6524 = vunpack.c.h.b16 %v6338
        %v6525 = vunpack.c.l.b16 %v6339
        %v6526 = vunpack.c.h.b16 %v6339
        %v6527 = vunpack.c.l.b16 %v6340
        %v6528 = vunpack.c.h.b16 %v6340
        %v6529 = vunpack.c.l.b16 %v6341
        %v6530 = vunpack.c.h.b16 %v6341
        %v6531 = vunpack.c.l.b16 %v6342
        %v6532 = vunpack.c.h.b16 %v6342
        %v6533 = vunpack.c.l.b16 %v6343
        %v6534 = vunpack.c.h.b16 %v6343
        %v6535 = vunpack.c.l.b16 %v6344
        %v6536 = vunpack.c.h.b16 %v6344
        %v6537 = vpack.c.b16 %v6411, %v6409
        %v6538 = vpack.c.b16 %v6412, %v6410
        %v6539 = vpack.c.b16 %v6415, %v6413
        %v6540 = vpack.c.b16 %v6416, %v6414
        %v6541 = vpack.c.b16 %v6419, %v6417
        %v6542 = vpack.c.b16 %v6420, %v6418
        %v6543 = vpack.c.b16 %v6423, %v6421
        %v6544 = vpack.c.b16 %v6424, %v6422
        %v6545 = vpack.c.b16 %v6427, %v6425
        %v6546 = vpack.c.b16 %v6428, %v6426
        %v6547 = vpack.c.b16 %v6431, %v6429
        %v6548 = vpack.c.b16 %v6432, %v6430
        %v6549 = vpack.c.b16 %v6435, %v6433
        %v6550 = vpack.c.b16 %v6436, %v6434
        %v6551 = vpack.c.b16 %v6439, %v6437
        %v6552 = vpack.c.b16 %v6440, %v6438
        %v6553 = vpack.c.b16 %v6443, %v6441
        %v6554 = vpack.c.b16 %v6444, %v6442
        %v6555 = vpack.c.b16 %v6447, %v6445
        %v6556 = vpack.c.b16 %v6448, %v6446
        %v6557 = vpack.c.b16 %v6451, %v6449
        %v6558 = vpack.c.b16 %v6452, %v6450
        %v6559 = vpack.c.b16 %v6455, %v6453
        %v6560 = vpack.c.b16 %v6456, %v6454
        %v6561 = vpack.c.b16 %v6459, %v6457
        %v6562 = vpack.c.b16 %v6460, %v6458
        %v6563 = vpack.c.b16 %v6463, %v6461
        %v6564 = vpack.c.b16 %v6464, %v6462
        %v6565 = vpack.c.b16 %v6467, %v6465
        %v6566 = vpack.c.b16 %v6468, %v6466
        %v6567 = vpack.c.b16 %v6471, %v6469
        %v6568 = vpack.c.b16 %v6472, %v6470
        %v6569 = vpack.c.b16 %v6475, %v6473
        %v6570 = vpack.c.b16 %v6476, %v6474
        %v6571 = vpack.c.b16 %v6479, %v6477
        %v6572 = vpack.c.b16 %v6480, %v6478
        %v6573 = vpack.c.b16 %v6483, %v6481
        %v6574 = vpack.c.b16 %v6484, %v6482
        %v6575 = vpack.c.b16 %v6487, %v6485
        %v6576 = vpack.c.b16 %v6488, %v6486
        %v6577 = vpack.c.b16 %v6491, %v6489
        %v6578 = vpack.c.b16 %v6492, %v6490
        %v6579 = vpack.c.b16 %v6495, %v6493
        %v6580 = vpack.c.b16 %v6496, %v6494
        %v6581 = vpack.c.b16 %v6499, %v6497
        %v6582 = vpack.c.b16 %v6500, %v6498
        %v6583 = vpack.c.b16 %v6503, %v6501
        %v6584 = vpack.c.b16 %v6504, %v6502
        %v6585 = vpack.c.b16 %v6507, %v6505
        %v6586 = vpack.c.b16 %v6508, %v6506
        %v6587 = vpack.c.b16 %v6511, %v6509
        %v6588 = vpack.c.b16 %v6512, %v6510
        %v6589 = vpack.c.b16 %v6515, %v6513
        %v6590 = vpack.c.b16 %v6516, %v6514
        %v6591 = vpack.c.b16 %v6519, %v6517
        %v6592 = vpack.c.b16 %v6520, %v6518
        %v6593 = vpack.c.b16 %v6523, %v6521
        %v6594 = vpack.c.b16 %v6524, %v6522
        %v6595 = vpack.c.b16 %v6527, %v6525
        %v6596 = vpack.c.b16 %v6528, %v6526
        %v6597 = vpack.c.b16 %v6531, %v6529
        %v6598 = vpack.c.b16 %v6532, %v6530
        %v6599 = vpack.c.b16 %v6535, %v6533
        %v6600 = vpack.c.b16 %v6536, %v6534
        %6665 = vmatpush.bf16.msra.mxu0 %v6551
        %6666 = vmatpush.bf16.msra.mxu0 %v6549
        %6667 = vmatpush.bf16.msra.mxu0 %v6547
        %6668 = vmatpush.bf16.msra.mxu0 %v6545
        %6669 = vmatpush.bf16.msra.mxu0 %v6543
        %6670 = vmatpush.bf16.msra.mxu0 %v6541
        %6671 = vmatpush.bf16.msra.mxu0 %v6539
        %6672 = vmatpush.bf16.msra.mxu0 %v6537
        %6673 = vmatmul.bf16.gmra.mxu0 %v4509
        %v6674 = vpop.f32.mrf.mxu0
        %v6675 = vadd.f32 0.0, %v6674
        %v6676 = vpop.f32.mrf.mxu0
        %v6677 = vadd.f32 0.0, %v6676
        %6678 = vdwg.mxu0
        %6679 = vmatpush.bf16.msra.mxu0 %v6567
        %6680 = vmatpush.bf16.msra.mxu0 %v6565
        %6681 = vmatpush.bf16.msra.mxu0 %v6563
        %6682 = vmatpush.bf16.msra.mxu0 %v6561
        %6683 = vmatpush.bf16.msra.mxu0 %v6559
        %6684 = vmatpush.bf16.msra.mxu0 %v6557
        %6685 = vmatpush.bf16.msra.mxu0 %v6555
        %6686 = vmatpush.bf16.msra.mxu0 %v6553
        %6687 = vmatmul.bf16.gmra.mxu0 %v4510
        %v6688 = vpop.f32.mrf.mxu0
        %v6689 = vadd.f32 %v6675, %v6688
        %v6690 = vpop.f32.mrf.mxu0
        %v6691 = vadd.f32 %v6677, %v6690
        %6692 = vdwg.mxu0
        %6693 = vmatpush.bf16.msra.mxu0 %v6583
        %6694 = vmatpush.bf16.msra.mxu0 %v6581
        %6695 = vmatpush.bf16.msra.mxu0 %v6579
        %6696 = vmatpush.bf16.msra.mxu0 %v6577
        %6697 = vmatpush.bf16.msra.mxu0 %v6575
        %6698 = vmatpush.bf16.msra.mxu0 %v6573
        %6699 = vmatpush.bf16.msra.mxu0 %v6571
        %6700 = vmatpush.bf16.msra.mxu0 %v6569
        %6701 = vmatmul.bf16.gmra.mxu0 %v4511
        %v6702 = vpop.f32.mrf.mxu0
        %v6703 = vadd.f32 %v6689, %v6702
        %v6704 = vpop.f32.mrf.mxu0
        %v6705 = vadd.f32 %v6691, %v6704
        %6706 = vdwg.mxu0
        %6707 = vmatpush.bf16.msra.mxu0 %v6599
        %6708 = vmatpush.bf16.msra.mxu0 %v6597
        %6709 = vmatpush.bf16.msra.mxu0 %v6595
        %6710 = vmatpush.bf16.msra.mxu0 %v6593
        %6711 = vmatpush.bf16.msra.mxu0 %v6591
        %6712 = vmatpush.bf16.msra.mxu0 %v6589
        %6713 = vmatpush.bf16.msra.mxu0 %v6587
        %6714 = vmatpush.bf16.msra.mxu0 %v6585
        %6715 = vmatmul.bf16.gmra.mxu0 %v4512
        %v6716 = vpop.f32.mrf.mxu0
        %v6717 = vadd.f32 %v6703, %v6716
        %v6718 = vpop.f32.mrf.mxu0
        %v6719 = vadd.f32 %v6705, %v6718
        %6720 = vdwg.mxu0
        %6721 = vmatpush.bf16.msra.mxu0 %v6552
        %6722 = vmatpush.bf16.msra.mxu0 %v6550
        %6723 = vmatpush.bf16.msra.mxu0 %v6548
        %6724 = vmatpush.bf16.msra.mxu0 %v6546
        %6725 = vmatpush.bf16.msra.mxu0 %v6544
        %6726 = vmatpush.bf16.msra.mxu0 %v6542
        %6727 = vmatpush.bf16.msra.mxu0 %v6540
        %6728 = vmatpush.bf16.msra.mxu0 %v6538
        %6729 = vmatmul.bf16.gmra.mxu0 %v4509
        %v6730 = vpop.f32.mrf.mxu0
        %v6731 = vadd.f32 0.0, %v6730
        %v6732 = vpop.f32.mrf.mxu0
        %v6733 = vadd.f32 0.0, %v6732
        %6734 = vdwg.mxu0
        %6735 = vmatpush.bf16.msra.mxu0 %v6568
        %6736 = vmatpush.bf16.msra.mxu0 %v6566
        %6737 = vmatpush.bf16.msra.mxu0 %v6564
        %6738 = vmatpush.bf16.msra.mxu0 %v6562
        %6739 = vmatpush.bf16.msra.mxu0 %v6560
        %6740 = vmatpush.bf16.msra.mxu0 %v6558
        %6741 = vmatpush.bf16.msra.mxu0 %v6556
        %6742 = vmatpush.bf16.msra.mxu0 %v6554
        %6743 = vmatmul.bf16.gmra.mxu0 %v4510
        %v6744 = vpop.f32.mrf.mxu0
        %v6745 = vadd.f32 %v6731, %v6744
        %v6746 = vpop.f32.mrf.mxu0
        %v6747 = vadd.f32 %v6733, %v6746
        %6748 = vdwg.mxu0
        %6749 = vmatpush.bf16.msra.mxu0 %v6584
        %6750 = vmatpush.bf16.msra.mxu0 %v6582
        %6751 = vmatpush.bf16.msra.mxu0 %v6580
        %6752 = vmatpush.bf16.msra.mxu0 %v6578
        %6753 = vmatpush.bf16.msra.mxu0 %v6576
        %6754 = vmatpush.bf16.msra.mxu0 %v6574
        %6755 = vmatpush.bf16.msra.mxu0 %v6572
        %6756 = vmatpush.bf16.msra.mxu0 %v6570
        %6757 = vmatmul.bf16.gmra.mxu0 %v4511
        %v6758 = vpop.f32.mrf.mxu0
        %v6759 = vadd.f32 %v6745, %v6758
        %v6760 = vpop.f32.mrf.mxu0
        %v6761 = vadd.f32 %v6747, %v6760
        %6762 = vdwg.mxu0
        %6763 = vmatpush.bf16.msra.mxu0 %v6600
        %6764 = vmatpush.bf16.msra.mxu0 %v6598
        %6765 = vmatpush.bf16.msra.mxu0 %v6596
        %6766 = vmatpush.bf16.msra.mxu0 %v6594
        %6767 = vmatpush.bf16.msra.mxu0 %v6592
        %6768 = vmatpush.bf16.msra.mxu0 %v6590
        %6769 = vmatpush.bf16.msra.mxu0 %v6588
        %6770 = vmatpush.bf16.msra.mxu0 %v6586
        %6771 = vmatmul.bf16.gmra.mxu0 %v4512
        %v6772 = vpop.f32.mrf.mxu0
        %v6773 = vadd.f32 %v6759, %v6772
        %v6774 = vpop.f32.mrf.mxu0
        %v6775 = vadd.f32 %v6761, %v6774
        %6776 = vdwg.mxu0
        %v6777 = vadd.f32 %v6277, %v6717
        %v6778 = vadd.f32 %v6278, %v6773
        %v6779 = vadd.f32 %v6279, %v6719
        %v6780 = vadd.f32 %v6280, %v6775
        %6781 = vst [vmem:[#allocation4] sm:$0xff] %v6777
        %6782 = vst [vmem:[#allocation4 + $0x8] sm:$0xff] %v6778
        %6783 = vst [vmem:[#allocation4 + $0x10] sm:$0xff] %v6779
        %6784 = vst [vmem:[#allocation4 + $0x18] sm:$0xff] %v6780
        %p6785 = scmp.eq.s32.totalorder %s39, 3
        // Predicated region
        $region81: #{tpu_custom_call.1} parent=47 // pred_check
          %p6786 = pneg %p6785
        $region82: #{tpu_custom_call.1} parent=47 // pred_check_branch
          %6788 = sbr.rel (%p6786) target = $region84
        $region83: #{tpu_custom_call.1} parent=47 // pred_region
          %v6789 = vld [vmem:[#allocation3] sm:$0xff]
          %v6790 = vld [vmem:[#allocation3 + $0x8] sm:$0xff]
          %v6791 = vld [vmem:[#allocation3 + $0x10] sm:$0xff]
          %v6792 = vld [vmem:[#allocation3 + $0x18] sm:$0xff]
          %v6793 = vld [vmem:[#allocation3 + $0x20] sm:$0xff]
          %v6794 = vld [vmem:[#allocation3 + $0x28] sm:$0xff]
          %v6795 = vld [vmem:[#allocation3 + $0x30] sm:$0xff]
          %v6796 = vld [vmem:[#allocation3 + $0x38] sm:$0xff]
          %v6797 = vld [vmem:[#allocation3 + $0x40] sm:$0xff]
          %v6798 = vld [vmem:[#allocation3 + $0x48] sm:$0xff]
          %v6799 = vld [vmem:[#allocation3 + $0x50] sm:$0xff]
          %v6800 = vld [vmem:[#allocation3 + $0x58] sm:$0xff]
          %v6801 = vld [vmem:[#allocation3 + $0x60] sm:$0xff]
          %v6802 = vld [vmem:[#allocation3 + $0x68] sm:$0xff]
          %v6803 = vld [vmem:[#allocation3 + $0x70] sm:$0xff]
          %v6804 = vld [vmem:[#allocation3 + $0x78] sm:$0xff]
          %v6805 = vld [vmem:[%s448] sm:$0xff]
          %v6807 = vperm.slane %v6805, 0
          %v6808 = vperm.slane %v6805, 1
          %v6809 = vperm.slane %v6805, 2
          %v6810 = vperm.slane %v6805, 3
          %v6811 = vperm.slane %v6805, 4
          %v6812 = vperm.slane %v6805, 5
          %v6813 = vperm.slane %v6805, 6
          %v6814 = vperm.slane %v6805, 7
          %v6823 = vadd.f32 %v6789, %v6807
          %v6824 = vadd.f32 %v6790, %v6808
          %v6825 = vadd.f32 %v6791, %v6809
          %v6826 = vadd.f32 %v6792, %v6810
          %v6827 = vadd.f32 %v6793, %v6811
          %v6828 = vadd.f32 %v6794, %v6812
          %v6829 = vadd.f32 %v6795, %v6813
          %v6830 = vadd.f32 %v6796, %v6814
          %v6831 = vadd.f32 %v6797, %v6807
          %v6832 = vadd.f32 %v6798, %v6808
          %v6833 = vadd.f32 %v6799, %v6809
          %v6834 = vadd.f32 %v6800, %v6810
          %v6835 = vadd.f32 %v6801, %v6811
          %v6836 = vadd.f32 %v6802, %v6812
          %v6837 = vadd.f32 %v6803, %v6813
          %v6838 = vadd.f32 %v6804, %v6814
          %v6839 = vmax.f32 %v6823, 0.0
          %v6840 = vmax.f32 %v6824, 0.0
          %v6841 = vmax.f32 %v6825, 0.0
          %v6842 = vmax.f32 %v6826, 0.0
          %v6843 = vmax.f32 %v6827, 0.0
          %v6844 = vmax.f32 %v6828, 0.0
          %v6845 = vmax.f32 %v6829, 0.0
          %v6846 = vmax.f32 %v6830, 0.0
          %v6847 = vmax.f32 %v6831, 0.0
          %v6848 = vmax.f32 %v6832, 0.0
          %v6849 = vmax.f32 %v6833, 0.0
          %v6850 = vmax.f32 %v6834, 0.0
          %v6851 = vmax.f32 %v6835, 0.0
          %v6852 = vmax.f32 %v6836, 0.0
          %v6853 = vmax.f32 %v6837, 0.0
          %v6854 = vmax.f32 %v6838, 0.0
          %v6855 = vpack.c.bf16 %v6847, %v6839
          %v6856 = vpack.c.bf16 %v6848, %v6840
          %v6857 = vpack.c.bf16 %v6849, %v6841
          %v6858 = vpack.c.bf16 %v6850, %v6842
          %v6859 = vpack.c.bf16 %v6851, %v6843
          %v6860 = vpack.c.bf16 %v6852, %v6844
          %v6861 = vpack.c.bf16 %v6853, %v6845
          %v6862 = vpack.c.bf16 %v6854, %v6846
          %v6863 = vld [vmem:[%s458] sm:$0xf]
          %v6864 = vld [vmem:[%s458 + $0x4] sm:$0xf]
          %v6865 = vld [vmem:[%s458 + $0x8] sm:$0xf]
          %v6866 = vld [vmem:[%s458 + $0xc] sm:$0xf]
          %v6867 = vld [vmem:[%s458 + $0x10] sm:$0xf]
          %v6868 = vld [vmem:[%s458 + $0x14] sm:$0xf]
          %v6869 = vld [vmem:[%s458 + $0x18] sm:$0xf]
          %v6870 = vld [vmem:[%s458 + $0x1c] sm:$0xf]
          %v6871 = vld [vmem:[%s458 + $0x20] sm:$0xf]
          %v6872 = vld [vmem:[%s458 + $0x24] sm:$0xf]
          %v6873 = vld [vmem:[%s458 + $0x28] sm:$0xf]
          %v6874 = vld [vmem:[%s458 + $0x2c] sm:$0xf]
          %v6875 = vld [vmem:[%s458 + $0x30] sm:$0xf]
          %v6876 = vld [vmem:[%s458 + $0x34] sm:$0xf]
          %v6877 = vld [vmem:[%s458 + $0x38] sm:$0xf]
          %v6878 = vld [vmem:[%s458 + $0x3c] sm:$0xf]
          %v6879 = vld [vmem:[%s458 + $0x40] sm:$0xf]
          %v6880 = vld [vmem:[%s458 + $0x44] sm:$0xf]
          %v6881 = vld [vmem:[%s458 + $0x48] sm:$0xf]
          %v6882 = vld [vmem:[%s458 + $0x4c] sm:$0xf]
          %v6883 = vld [vmem:[%s458 + $0x50] sm:$0xf]
          %v6884 = vld [vmem:[%s458 + $0x54] sm:$0xf]
          %v6885 = vld [vmem:[%s458 + $0x58] sm:$0xf]
          %v6886 = vld [vmem:[%s458 + $0x5c] sm:$0xf]
          %v6887 = vld [vmem:[%s458 + $0x60] sm:$0xf]
          %v6888 = vld [vmem:[%s458 + $0x64] sm:$0xf]
          %v6889 = vld [vmem:[%s458 + $0x68] sm:$0xf]
          %v6890 = vld [vmem:[%s458 + $0x6c] sm:$0xf]
          %v6891 = vld [vmem:[%s458 + $0x70] sm:$0xf]
          %v6892 = vld [vmem:[%s458 + $0x74] sm:$0xf]
          %v6893 = vld [vmem:[%s458 + $0x78] sm:$0xf]
          %v6894 = vld [vmem:[%s458 + $0x7c] sm:$0xf]
          %v6895 = vld [vmem:[%s458 + $0x80] sm:$0xf]
          %v6896 = vld [vmem:[%s458 + $0x84] sm:$0xf]
          %v6897 = vld [vmem:[%s458 + $0x88] sm:$0xf]
          %v6898 = vld [vmem:[%s458 + $0x8c] sm:$0xf]
          %v6899 = vld [vmem:[%s458 + $0x90] sm:$0xf]
          %v6900 = vld [vmem:[%s458 + $0x94] sm:$0xf]
          %v6901 = vld [vmem:[%s458 + $0x98] sm:$0xf]
          %v6902 = vld [vmem:[%s458 + $0x9c] sm:$0xf]
          %v6903 = vld [vmem:[%s458 + $0xa0] sm:$0xf]
          %v6904 = vld [vmem:[%s458 + $0xa4] sm:$0xf]
          %v6905 = vld [vmem:[%s458 + $0xa8] sm:$0xf]
          %v6906 = vld [vmem:[%s458 + $0xac] sm:$0xf]
          %v6907 = vld [vmem:[%s458 + $0xb0] sm:$0xf]
          %v6908 = vld [vmem:[%s458 + $0xb4] sm:$0xf]
          %v6909 = vld [vmem:[%s458 + $0xb8] sm:$0xf]
          %v6910 = vld [vmem:[%s458 + $0xbc] sm:$0xf]
          %v6911 = vld [vmem:[%s458 + $0xc0] sm:$0xf]
          %v6912 = vld [vmem:[%s458 + $0xc4] sm:$0xf]
          %v6913 = vld [vmem:[%s458 + $0xc8] sm:$0xf]
          %v6914 = vld [vmem:[%s458 + $0xcc] sm:$0xf]
          %v6915 = vld [vmem:[%s458 + $0xd0] sm:$0xf]
          %v6916 = vld [vmem:[%s458 + $0xd4] sm:$0xf]
          %v6917 = vld [vmem:[%s458 + $0xd8] sm:$0xf]
          %v6918 = vld [vmem:[%s458 + $0xdc] sm:$0xf]
          %v6919 = vld [vmem:[%s458 + $0xe0] sm:$0xf]
          %v6920 = vld [vmem:[%s458 + $0xe4] sm:$0xf]
          %v6921 = vld [vmem:[%s458 + $0xe8] sm:$0xf]
          %v6922 = vld [vmem:[%s458 + $0xec] sm:$0xf]
          %v6923 = vld [vmem:[%s458 + $0xf0] sm:$0xf]
          %v6924 = vld [vmem:[%s458 + $0xf4] sm:$0xf]
          %v6925 = vld [vmem:[%s458 + $0xf8] sm:$0xf]
          %v6926 = vld [vmem:[%s458 + $0xfc] sm:$0xf]
          %v6927 = vld [vmem:[%s458 + $0x100] sm:$0xf]
          %v6928 = vld [vmem:[%s458 + $0x104] sm:$0xf]
          %v6929 = vld [vmem:[%s458 + $0x108] sm:$0xf]
          %v6930 = vld [vmem:[%s458 + $0x10c] sm:$0xf]
          %v6931 = vld [vmem:[%s458 + $0x110] sm:$0xf]
          %v6932 = vld [vmem:[%s458 + $0x114] sm:$0xf]
          %v6933 = vld [vmem:[%s458 + $0x118] sm:$0xf]
          %v6934 = vld [vmem:[%s458 + $0x11c] sm:$0xf]
          %v6935 = vld [vmem:[%s458 + $0x120] sm:$0xf]
          %v6936 = vld [vmem:[%s458 + $0x124] sm:$0xf]
          %v6937 = vld [vmem:[%s458 + $0x128] sm:$0xf]
          %v6938 = vld [vmem:[%s458 + $0x12c] sm:$0xf]
          %v6939 = vld [vmem:[%s458 + $0x130] sm:$0xf]
          %v6940 = vld [vmem:[%s458 + $0x134] sm:$0xf]
          %v6941 = vld [vmem:[%s458 + $0x138] sm:$0xf]
          %v6942 = vld [vmem:[%s458 + $0x13c] sm:$0xf]
          %v6943 = vld [vmem:[%s458 + $0x140] sm:$0xf]
          %v6944 = vld [vmem:[%s458 + $0x144] sm:$0xf]
          %v6945 = vld [vmem:[%s458 + $0x148] sm:$0xf]
          %v6946 = vld [vmem:[%s458 + $0x14c] sm:$0xf]
          %v6947 = vld [vmem:[%s458 + $0x150] sm:$0xf]
          %v6948 = vld [vmem:[%s458 + $0x154] sm:$0xf]
          %v6949 = vld [vmem:[%s458 + $0x158] sm:$0xf]
          %v6950 = vld [vmem:[%s458 + $0x15c] sm:$0xf]
          %v6951 = vld [vmem:[%s458 + $0x160] sm:$0xf]
          %v6952 = vld [vmem:[%s458 + $0x164] sm:$0xf]
          %v6953 = vld [vmem:[%s458 + $0x168] sm:$0xf]
          %v6954 = vld [vmem:[%s458 + $0x16c] sm:$0xf]
          %v6955 = vld [vmem:[%s458 + $0x170] sm:$0xf]
          %v6956 = vld [vmem:[%s458 + $0x174] sm:$0xf]
          %v6957 = vld [vmem:[%s458 + $0x178] sm:$0xf]
          %v6958 = vld [vmem:[%s458 + $0x17c] sm:$0xf]
          %v6959 = vld [vmem:[%s458 + $0x180] sm:$0xf]
          %v6960 = vld [vmem:[%s458 + $0x184] sm:$0xf]
          %v6961 = vld [vmem:[%s458 + $0x188] sm:$0xf]
          %v6962 = vld [vmem:[%s458 + $0x18c] sm:$0xf]
          %v6963 = vld [vmem:[%s458 + $0x190] sm:$0xf]
          %v6964 = vld [vmem:[%s458 + $0x194] sm:$0xf]
          %v6965 = vld [vmem:[%s458 + $0x198] sm:$0xf]
          %v6966 = vld [vmem:[%s458 + $0x19c] sm:$0xf]
          %v6967 = vld [vmem:[%s458 + $0x1a0] sm:$0xf]
          %v6968 = vld [vmem:[%s458 + $0x1a4] sm:$0xf]
          %v6969 = vld [vmem:[%s458 + $0x1a8] sm:$0xf]
          %v6970 = vld [vmem:[%s458 + $0x1ac] sm:$0xf]
          %v6971 = vld [vmem:[%s458 + $0x1b0] sm:$0xf]
          %v6972 = vld [vmem:[%s458 + $0x1b4] sm:$0xf]
          %v6973 = vld [vmem:[%s458 + $0x1b8] sm:$0xf]
          %v6974 = vld [vmem:[%s458 + $0x1bc] sm:$0xf]
          %v6975 = vld [vmem:[%s458 + $0x1c0] sm:$0xf]
          %v6976 = vld [vmem:[%s458 + $0x1c4] sm:$0xf]
          %v6977 = vld [vmem:[%s458 + $0x1c8] sm:$0xf]
          %v6978 = vld [vmem:[%s458 + $0x1cc] sm:$0xf]
          %v6979 = vld [vmem:[%s458 + $0x1d0] sm:$0xf]
          %v6980 = vld [vmem:[%s458 + $0x1d4] sm:$0xf]
          %v6981 = vld [vmem:[%s458 + $0x1d8] sm:$0xf]
          %v6982 = vld [vmem:[%s458 + $0x1dc] sm:$0xf]
          %v6983 = vld [vmem:[%s458 + $0x1e0] sm:$0xf]
          %v6984 = vld [vmem:[%s458 + $0x1e4] sm:$0xf]
          %v6985 = vld [vmem:[%s458 + $0x1e8] sm:$0xf]
          %v6986 = vld [vmem:[%s458 + $0x1ec] sm:$0xf]
          %v6987 = vld [vmem:[%s458 + $0x1f0] sm:$0xf]
          %v6988 = vld [vmem:[%s458 + $0x1f4] sm:$0xf]
          %v6989 = vld [vmem:[%s458 + $0x1f8] sm:$0xf]
          %v6990 = vld [vmem:[%s458 + $0x1fc] sm:$0xf]
          %v7119 = vunpack.c.l.b16 %v6863
          %v7120 = vunpack.c.l.b16 %v6864
          %v7121 = vunpack.c.l.b16 %v6865
          %v7122 = vunpack.c.l.b16 %v6866
          %v7123 = vunpack.c.l.b16 %v6867
          %v7124 = vunpack.c.l.b16 %v6868
          %v7125 = vunpack.c.l.b16 %v6869
          %v7126 = vunpack.c.l.b16 %v6870
          %v7127 = vunpack.c.l.b16 %v6871
          %v7128 = vunpack.c.l.b16 %v6872
          %v7129 = vunpack.c.l.b16 %v6873
          %v7130 = vunpack.c.l.b16 %v6874
          %v7131 = vunpack.c.l.b16 %v6875
          %v7132 = vunpack.c.l.b16 %v6876
          %v7133 = vunpack.c.l.b16 %v6877
          %v7134 = vunpack.c.l.b16 %v6878
          %v7135 = vunpack.c.l.b16 %v6879
          %v7136 = vunpack.c.l.b16 %v6880
          %v7137 = vunpack.c.l.b16 %v6881
          %v7138 = vunpack.c.l.b16 %v6882
          %v7139 = vunpack.c.l.b16 %v6883
          %v7140 = vunpack.c.l.b16 %v6884
          %v7141 = vunpack.c.l.b16 %v6885
          %v7142 = vunpack.c.l.b16 %v6886
          %v7143 = vunpack.c.l.b16 %v6887
          %v7144 = vunpack.c.l.b16 %v6888
          %v7145 = vunpack.c.l.b16 %v6889
          %v7146 = vunpack.c.l.b16 %v6890
          %v7147 = vunpack.c.l.b16 %v6891
          %v7148 = vunpack.c.l.b16 %v6892
          %v7149 = vunpack.c.l.b16 %v6893
          %v7150 = vunpack.c.l.b16 %v6894
          %v7151 = vunpack.c.l.b16 %v6895
          %v7152 = vunpack.c.l.b16 %v6896
          %v7153 = vunpack.c.l.b16 %v6897
          %v7154 = vunpack.c.l.b16 %v6898
          %v7155 = vunpack.c.l.b16 %v6899
          %v7156 = vunpack.c.l.b16 %v6900
          %v7157 = vunpack.c.l.b16 %v6901
          %v7158 = vunpack.c.l.b16 %v6902
          %v7159 = vunpack.c.l.b16 %v6903
          %v7160 = vunpack.c.l.b16 %v6904
          %v7161 = vunpack.c.l.b16 %v6905
          %v7162 = vunpack.c.l.b16 %v6906
          %v7163 = vunpack.c.l.b16 %v6907
          %v7164 = vunpack.c.l.b16 %v6908
          %v7165 = vunpack.c.l.b16 %v6909
          %v7166 = vunpack.c.l.b16 %v6910
          %v7167 = vunpack.c.l.b16 %v6911
          %v7168 = vunpack.c.l.b16 %v6912
          %v7169 = vunpack.c.l.b16 %v6913
          %v7170 = vunpack.c.l.b16 %v6914
          %v7171 = vunpack.c.l.b16 %v6915
          %v7172 = vunpack.c.l.b16 %v6916
          %v7173 = vunpack.c.l.b16 %v6917
          %v7174 = vunpack.c.l.b16 %v6918
          %v7175 = vunpack.c.l.b16 %v6919
          %v7176 = vunpack.c.l.b16 %v6920
          %v7177 = vunpack.c.l.b16 %v6921
          %v7178 = vunpack.c.l.b16 %v6922
          %v7179 = vunpack.c.l.b16 %v6923
          %v7180 = vunpack.c.l.b16 %v6924
          %v7181 = vunpack.c.l.b16 %v6925
          %v7182 = vunpack.c.l.b16 %v6926
          %v7183 = vunpack.c.l.b16 %v6927
          %v7184 = vunpack.c.l.b16 %v6928
          %v7185 = vunpack.c.l.b16 %v6929
          %v7186 = vunpack.c.l.b16 %v6930
          %v7187 = vunpack.c.l.b16 %v6931
          %v7188 = vunpack.c.l.b16 %v6932
          %v7189 = vunpack.c.l.b16 %v6933
          %v7190 = vunpack.c.l.b16 %v6934
          %v7191 = vunpack.c.l.b16 %v6935
          %v7192 = vunpack.c.l.b16 %v6936
          %v7193 = vunpack.c.l.b16 %v6937
          %v7194 = vunpack.c.l.b16 %v6938
          %v7195 = vunpack.c.l.b16 %v6939
          %v7196 = vunpack.c.l.b16 %v6940
          %v7197 = vunpack.c.l.b16 %v6941
          %v7198 = vunpack.c.l.b16 %v6942
          %v7199 = vunpack.c.l.b16 %v6943
          %v7200 = vunpack.c.l.b16 %v6944
          %v7201 = vunpack.c.l.b16 %v6945
          %v7202 = vunpack.c.l.b16 %v6946
          %v7203 = vunpack.c.l.b16 %v6947
          %v7204 = vunpack.c.l.b16 %v6948
          %v7205 = vunpack.c.l.b16 %v6949
          %v7206 = vunpack.c.l.b16 %v6950
          %v7207 = vunpack.c.l.b16 %v6951
          %v7208 = vunpack.c.l.b16 %v6952
          %v7209 = vunpack.c.l.b16 %v6953
          %v7210 = vunpack.c.l.b16 %v6954
          %v7211 = vunpack.c.l.b16 %v6955
          %v7212 = vunpack.c.l.b16 %v6956
          %v7213 = vunpack.c.l.b16 %v6957
          %v7214 = vunpack.c.l.b16 %v6958
          %v7215 = vunpack.c.l.b16 %v6959
          %v7216 = vunpack.c.l.b16 %v6960
          %v7217 = vunpack.c.l.b16 %v6961
          %v7218 = vunpack.c.l.b16 %v6962
          %v7219 = vunpack.c.l.b16 %v6963
          %v7220 = vunpack.c.l.b16 %v6964
          %v7221 = vunpack.c.l.b16 %v6965
          %v7222 = vunpack.c.l.b16 %v6966
          %v7223 = vunpack.c.l.b16 %v6967
          %v7224 = vunpack.c.l.b16 %v6968
          %v7225 = vunpack.c.l.b16 %v6969
          %v7226 = vunpack.c.l.b16 %v6970
          %v7227 = vunpack.c.l.b16 %v6971
          %v7228 = vunpack.c.l.b16 %v6972
          %v7229 = vunpack.c.l.b16 %v6973
          %v7230 = vunpack.c.l.b16 %v6974
          %v7231 = vunpack.c.l.b16 %v6975
          %v7232 = vunpack.c.l.b16 %v6976
          %v7233 = vunpack.c.l.b16 %v6977
          %v7234 = vunpack.c.l.b16 %v6978
          %v7235 = vunpack.c.l.b16 %v6979
          %v7236 = vunpack.c.l.b16 %v6980
          %v7237 = vunpack.c.l.b16 %v6981
          %v7238 = vunpack.c.l.b16 %v6982
          %v7239 = vunpack.c.l.b16 %v6983
          %v7240 = vunpack.c.l.b16 %v6984
          %v7241 = vunpack.c.l.b16 %v6985
          %v7242 = vunpack.c.l.b16 %v6986
          %v7243 = vunpack.c.l.b16 %v6987
          %v7244 = vunpack.c.l.b16 %v6988
          %v7245 = vunpack.c.l.b16 %v6989
          %v7246 = vunpack.c.l.b16 %v6990
          %v7247 = vpack.c.b16 %v7120, %v7119
          %v7248 = vpack.c.b16 %v7122, %v7121
          %v7249 = vpack.c.b16 %v7124, %v7123
          %v7250 = vpack.c.b16 %v7126, %v7125
          %v7251 = vpack.c.b16 %v7128, %v7127
          %v7252 = vpack.c.b16 %v7130, %v7129
          %v7253 = vpack.c.b16 %v7132, %v7131
          %v7254 = vpack.c.b16 %v7134, %v7133
          %v7255 = vpack.c.b16 %v7136, %v7135
          %v7256 = vpack.c.b16 %v7138, %v7137
          %v7257 = vpack.c.b16 %v7140, %v7139
          %v7258 = vpack.c.b16 %v7142, %v7141
          %v7259 = vpack.c.b16 %v7144, %v7143
          %v7260 = vpack.c.b16 %v7146, %v7145
          %v7261 = vpack.c.b16 %v7148, %v7147
          %v7262 = vpack.c.b16 %v7150, %v7149
          %v7263 = vpack.c.b16 %v7152, %v7151
          %v7264 = vpack.c.b16 %v7154, %v7153
          %v7265 = vpack.c.b16 %v7156, %v7155
          %v7266 = vpack.c.b16 %v7158, %v7157
          %v7267 = vpack.c.b16 %v7160, %v7159
          %v7268 = vpack.c.b16 %v7162, %v7161
          %v7269 = vpack.c.b16 %v7164, %v7163
          %v7270 = vpack.c.b16 %v7166, %v7165
          %v7271 = vpack.c.b16 %v7168, %v7167
          %v7272 = vpack.c.b16 %v7170, %v7169
          %v7273 = vpack.c.b16 %v7172, %v7171
          %v7274 = vpack.c.b16 %v7174, %v7173
          %v7275 = vpack.c.b16 %v7176, %v7175
          %v7276 = vpack.c.b16 %v7178, %v7177
          %v7277 = vpack.c.b16 %v7180, %v7179
          %v7278 = vpack.c.b16 %v7182, %v7181
          %v7279 = vpack.c.b16 %v7184, %v7183
          %v7280 = vpack.c.b16 %v7186, %v7185
          %v7281 = vpack.c.b16 %v7188, %v7187
          %v7282 = vpack.c.b16 %v7190, %v7189
          %v7283 = vpack.c.b16 %v7192, %v7191
          %v7284 = vpack.c.b16 %v7194, %v7193
          %v7285 = vpack.c.b16 %v7196, %v7195
          %v7286 = vpack.c.b16 %v7198, %v7197
          %v7287 = vpack.c.b16 %v7200, %v7199
          %v7288 = vpack.c.b16 %v7202, %v7201
          %v7289 = vpack.c.b16 %v7204, %v7203
          %v7290 = vpack.c.b16 %v7206, %v7205
          %v7291 = vpack.c.b16 %v7208, %v7207
          %v7292 = vpack.c.b16 %v7210, %v7209
          %v7293 = vpack.c.b16 %v7212, %v7211
          %v7294 = vpack.c.b16 %v7214, %v7213
          %v7295 = vpack.c.b16 %v7216, %v7215
          %v7296 = vpack.c.b16 %v7218, %v7217
          %v7297 = vpack.c.b16 %v7220, %v7219
          %v7298 = vpack.c.b16 %v7222, %v7221
          %v7299 = vpack.c.b16 %v7224, %v7223
          %v7300 = vpack.c.b16 %v7226, %v7225
          %v7301 = vpack.c.b16 %v7228, %v7227
          %v7302 = vpack.c.b16 %v7230, %v7229
          %v7303 = vpack.c.b16 %v7232, %v7231
          %v7304 = vpack.c.b16 %v7234, %v7233
          %v7305 = vpack.c.b16 %v7236, %v7235
          %v7306 = vpack.c.b16 %v7238, %v7237
          %v7307 = vpack.c.b16 %v7240, %v7239
          %v7308 = vpack.c.b16 %v7242, %v7241
          %v7309 = vpack.c.b16 %v7244, %v7243
          %v7310 = vpack.c.b16 %v7246, %v7245
          %7375 = vmatpush.bf16.msra.mxu0 %v7254
          %7376 = vmatpush.bf16.msra.mxu0 %v7253
          %7377 = vmatpush.bf16.msra.mxu0 %v7252
          %7378 = vmatpush.bf16.msra.mxu0 %v7251
          %7379 = vmatpush.bf16.msra.mxu0 %v7250
          %7380 = vmatpush.bf16.msra.mxu0 %v7249
          %7381 = vmatpush.bf16.msra.mxu0 %v7248
          %7382 = vmatpush.bf16.msra.mxu0 %v7247
          %7383 = vmatmul.bf16.gmra.mxu0 %v6855
          %v7384 = vpop.f32.mrf.mxu0
          %v7385 = vadd.f32 0.0, %v7384
          %v7386 = vpop.f32.mrf.mxu0
          %v7387 = vadd.f32 0.0, %v7386
          %7388 = vdwg.mxu0
          %7389 = vmatpush.bf16.msra.mxu0 %v7262
          %7390 = vmatpush.bf16.msra.mxu0 %v7261
          %7391 = vmatpush.bf16.msra.mxu0 %v7260
          %7392 = vmatpush.bf16.msra.mxu0 %v7259
          %7393 = vmatpush.bf16.msra.mxu0 %v7258
          %7394 = vmatpush.bf16.msra.mxu0 %v7257
          %7395 = vmatpush.bf16.msra.mxu0 %v7256
          %7396 = vmatpush.bf16.msra.mxu0 %v7255
          %7397 = vmatmul.bf16.gmra.mxu0 %v6856
          %v7398 = vpop.f32.mrf.mxu0
          %v7399 = vadd.f32 %v7385, %v7398
          %v7400 = vpop.f32.mrf.mxu0
          %v7401 = vadd.f32 %v7387, %v7400
          %7402 = vdwg.mxu0
          %7403 = vmatpush.bf16.msra.mxu0 %v7270
          %7404 = vmatpush.bf16.msra.mxu0 %v7269
          %7405 = vmatpush.bf16.msra.mxu0 %v7268
          %7406 = vmatpush.bf16.msra.mxu0 %v7267
          %7407 = vmatpush.bf16.msra.mxu0 %v7266
          %7408 = vmatpush.bf16.msra.mxu0 %v7265
          %7409 = vmatpush.bf16.msra.mxu0 %v7264
          %7410 = vmatpush.bf16.msra.mxu0 %v7263
          %7411 = vmatmul.bf16.gmra.mxu0 %v6857
          %v7412 = vpop.f32.mrf.mxu0
          %v7413 = vadd.f32 %v7399, %v7412
          %v7414 = vpop.f32.mrf.mxu0
          %v7415 = vadd.f32 %v7401, %v7414
          %7416 = vdwg.mxu0
          %7417 = vmatpush.bf16.msra.mxu0 %v7278
          %7418 = vmatpush.bf16.msra.mxu0 %v7277
          %7419 = vmatpush.bf16.msra.mxu0 %v7276
          %7420 = vmatpush.bf16.msra.mxu0 %v7275
          %7421 = vmatpush.bf16.msra.mxu0 %v7274
          %7422 = vmatpush.bf16.msra.mxu0 %v7273
          %7423 = vmatpush.bf16.msra.mxu0 %v7272
          %7424 = vmatpush.bf16.msra.mxu0 %v7271
          %7425 = vmatmul.bf16.gmra.mxu0 %v6858
          %v7426 = vpop.f32.mrf.mxu0
          %v7427 = vadd.f32 %v7413, %v7426
          %v7428 = vpop.f32.mrf.mxu0
          %v7429 = vadd.f32 %v7415, %v7428
          %7430 = vdwg.mxu0
          %7431 = vmatpush.bf16.msra.mxu0 %v7286
          %7432 = vmatpush.bf16.msra.mxu0 %v7285
          %7433 = vmatpush.bf16.msra.mxu0 %v7284
          %7434 = vmatpush.bf16.msra.mxu0 %v7283
          %7435 = vmatpush.bf16.msra.mxu0 %v7282
          %7436 = vmatpush.bf16.msra.mxu0 %v7281
          %7437 = vmatpush.bf16.msra.mxu0 %v7280
          %7438 = vmatpush.bf16.msra.mxu0 %v7279
          %7439 = vmatmul.bf16.gmra.mxu0 %v6859
          %v7440 = vpop.f32.mrf.mxu0
          %v7441 = vadd.f32 %v7427, %v7440
          %v7442 = vpop.f32.mrf.mxu0
          %v7443 = vadd.f32 %v7429, %v7442
          %7444 = vdwg.mxu0
          %7445 = vmatpush.bf16.msra.mxu0 %v7294
          %7446 = vmatpush.bf16.msra.mxu0 %v7293
          %7447 = vmatpush.bf16.msra.mxu0 %v7292
          %7448 = vmatpush.bf16.msra.mxu0 %v7291
          %7449 = vmatpush.bf16.msra.mxu0 %v7290
          %7450 = vmatpush.bf16.msra.mxu0 %v7289
          %7451 = vmatpush.bf16.msra.mxu0 %v7288
          %7452 = vmatpush.bf16.msra.mxu0 %v7287
          %7453 = vmatmul.bf16.gmra.mxu0 %v6860
          %v7454 = vpop.f32.mrf.mxu0
          %v7455 = vadd.f32 %v7441, %v7454
          %v7456 = vpop.f32.mrf.mxu0
          %v7457 = vadd.f32 %v7443, %v7456
          %7458 = vdwg.mxu0
          %7459 = vmatpush.bf16.msra.mxu0 %v7302
          %7460 = vmatpush.bf16.msra.mxu0 %v7301
          %7461 = vmatpush.bf16.msra.mxu0 %v7300
          %7462 = vmatpush.bf16.msra.mxu0 %v7299
          %7463 = vmatpush.bf16.msra.mxu0 %v7298
          %7464 = vmatpush.bf16.msra.mxu0 %v7297
          %7465 = vmatpush.bf16.msra.mxu0 %v7296
          %7466 = vmatpush.bf16.msra.mxu0 %v7295
          %7467 = vmatmul.bf16.gmra.mxu0 %v6861
          %v7468 = vpop.f32.mrf.mxu0
          %v7469 = vadd.f32 %v7455, %v7468
          %v7470 = vpop.f32.mrf.mxu0
          %v7471 = vadd.f32 %v7457, %v7470
          %7472 = vdwg.mxu0
          %7473 = vmatpush.bf16.msra.mxu0 %v7310
          %7474 = vmatpush.bf16.msra.mxu0 %v7309
          %7475 = vmatpush.bf16.msra.mxu0 %v7308
          %7476 = vmatpush.bf16.msra.mxu0 %v7307
          %7477 = vmatpush.bf16.msra.mxu0 %v7306
          %7478 = vmatpush.bf16.msra.mxu0 %v7305
          %7479 = vmatpush.bf16.msra.mxu0 %v7304
          %7480 = vmatpush.bf16.msra.mxu0 %v7303
          %7481 = vmatmul.bf16.gmra.mxu0 %v6862
          %v7482 = vpop.f32.mrf.mxu0
          %v7483 = vadd.f32 %v7469, %v7482
          %v7484 = vpop.f32.mrf.mxu0
          %v7485 = vadd.f32 %v7471, %v7484
          %7486 = vdwg.mxu0
          %7487 = vst [vmem:[%s514] sm:$0xff] %v7483
          %7488 = vst [vmem:[%s514 + $0x8] sm:$0xff] %v7485
          %v7489 = vld [vmem:[#allocation4] sm:$0xff]
          %v7490 = vld [vmem:[#allocation4 + $0x8] sm:$0xff]
          %v7491 = vld [vmem:[#allocation4 + $0x10] sm:$0xff]
          %v7492 = vld [vmem:[#allocation4 + $0x18] sm:$0xff]
          %7493 = vst [vmem:[%s521] sm:$0xff] %v7489
          %7494 = vst [vmem:[%s521 + $0x8] sm:$0xff] %v7490
          %7495 = vst [vmem:[%s521 + $0x10] sm:$0xff] %v7491
          %7496 = vst [vmem:[%s521 + $0x18] sm:$0xff] %v7492
        $region84: #{tpu_custom_call.1} parent=47 // pred_fallthru
          _
        %s7497 = sand.u32 %s225, 1
        %s7498 = scalar_lea.sflag [#allocation7], %s7497
        %s7499 = sand.u32 %s225, 1
        %s7500 = smul.addr %s7499, 16
        %s7501 = scalar_lea.vmem [#allocation17], %s7500
        %s7502 = sand.u32 %s251, 1
        %s7503 = scalar_lea.sflag [#allocation19], %s7502
        %s7504 = sand.u32 %s251, 1
        %s7505 = smul.addr %s7504, 32
        %s7506 = scalar_lea.vmem [#allocation18], %s7505
        // Predicated region
        $region85: #{tpu_custom_call.1} parent=47 // pred_check
          %p7507 = pneg %p235
        $region86: #{tpu_custom_call.1} parent=47 // pred_check_branch
          %7509 = sbr.rel (%p7507) target = $region88
        $region87: #{tpu_custom_call.1} parent=47 // pred_region
          %7511 = vsyncadd %s7498, 0
          %s7512 = smul.addr %s38, 2
          %s7513 = smul.addr %s7512, 8
          %s7514 = scalar_lea.hbm %s7, %s7513
          %s7515 = sshll.u32 %s7501, 4
          %s7516 = int_to_ptr.vmem [resolvable:$true] %s7515
          %s7517 = sshll.u32 %s7514, 4
          %s7518 = int_to_ptr.hbm [resolvable:$true] %s7517
          %7523 = dma.vmem_to_hbm [thread:$0]  %s7516, 256, %s7518, %s7498, 128, 128, 8
        $region88: #{tpu_custom_call.1} parent=47 // pred_fallthru
          _
        // Predicated region
        $region89: #{tpu_custom_call.1} parent=47 // pred_check
          %p7524 = pneg %p261
        $region90: #{tpu_custom_call.1} parent=47 // pred_check_branch
          %7526 = sbr.rel (%p7524) target = $region92
        $region91: #{tpu_custom_call.1} parent=47 // pred_region
          %7528 = vsyncadd %s7503, 0
          %s7529 = smul.addr %s38, 4
          %s7530 = smul.addr %s7529, 8
          %s7531 = scalar_lea.hbm %s8, %s7530
          %s7532 = sshll.u32 %s7506, 4
          %s7533 = int_to_ptr.vmem [resolvable:$true] %s7532
          %s7534 = sshll.u32 %s7531, 4
          %s7535 = int_to_ptr.hbm [resolvable:$true] %s7534
          %7540 = dma.vmem_to_hbm [thread:$0]  %s7533, 512, %s7535, %s7503, 256, 256, 16
        $region92: #{tpu_custom_call.1} parent=47 // pred_fallthru
          _
      $region48: #{tpu_custom_call.1} parent=5 // pred_fallthru
        _
      %p7541 = scmp.le.s32.totalorder 2, %s29
      // Predicated region
      $region93: #{tpu_custom_call.1} parent=5 // pred_check
        %p7542 = pneg %p7541
      $region94: #{tpu_custom_call.1} parent=5 // pred_check_branch
        %7544 = sbr.rel (%p7542) target = $region96
      $region95: #{tpu_custom_call.1} parent=5 // pred_region
        %s7545 = ssub.s32 %s29, 2
        // Predicated region
        $region97: #{tpu_custom_call.1} parent=95 // pred_check
          %p7546 = pneg %p241
        $region98: #{tpu_custom_call.1} parent=95 // pred_check_branch
          %7548 = sbr.rel (%p7546) target = $region100
        $region99: #{tpu_custom_call.1} parent=95 // pred_region
          %s7549 = sand.u32 %s226, 1
          %s7550 = scalar_lea.sflag [#allocation7], %s7549
          %s7551 = sand.u32 %s226, 1
          %s7552 = smul.addr %s7551, 16
          %s7553 = scalar_lea.vmem [#allocation17], %s7552
          %7555 = dma.done %s7550, 256
        $region100: #{tpu_custom_call.1} parent=95 // pred_fallthru
          _
        // Predicated region
        $region101: #{tpu_custom_call.1} parent=95 // pred_check
          %p7556 = pneg %p267
        $region102: #{tpu_custom_call.1} parent=95 // pred_check_branch
          %7558 = sbr.rel (%p7556) target = $region104
        $region103: #{tpu_custom_call.1} parent=95 // pred_region
          %s7559 = sand.u32 %s252, 1
          %s7560 = scalar_lea.sflag [#allocation19], %s7559
          %s7561 = sand.u32 %s252, 1
          %s7562 = smul.addr %s7561, 32
          %s7563 = scalar_lea.vmem [#allocation18], %s7562
          %7565 = dma.done %s7560, 512
        $region104: #{tpu_custom_call.1} parent=95 // pred_fallthru
          _
      $region96: #{tpu_custom_call.1} parent=5 // pred_fallthru
        _
    $region6: #{tpu_custom_call.1} parent=1 // loop_footer
      %s33 = sadd.s32 1, %s29
    $region7: #{tpu_custom_call.1} parent=1 // loop_footer_branch
      %28 = sbr.rel target = $region3
    $region8: #{tpu_custom_call.1} parent=1 // loop_exit
      _
    %7566 = vsyncpa [#allocation6], 1
    %s7567 = scalar_lea.sflag [#allocation6], 1
    %7568 = vsyncpa %s7567, 1
    %7569 = vsyncpa [#allocation9], 1
    %7570 = vsyncpa [#allocation12], 1
    %s7571 = scalar_lea.sflag [#allocation12], 1
    %7572 = vsyncpa %s7571, 1
    %7573 = vsyncpa [#allocation15], 1
    %s7574 = scalar_lea.sflag [#allocation15], 1
    %7575 = vsyncpa %s7574, 1
    %7576 = vsyncpa [#allocation7], 1
    %s7577 = scalar_lea.sflag [#allocation7], 1
    %7578 = vsyncpa %s7577, 1
    %7579 = vsyncpa [#allocation19], 1
    %s7580 = scalar_lea.sflag [#allocation19], 1
    %7581 = vsyncpa %s7580, 1

</llo_original>
